<compile_context>
chip_gen: v7x
topology: tpu7x:2x2x1
jax: 0.10.0
libtpu: 0.0.40
codegen_flags: <defaults>
</compile_context>

<pallas_src>
import numpy as np

import jax
import jax.numpy as jnp
from jax.experimental import pallas as pl
from jax.experimental.pallas import tpu as pltpu


# ---------------------------------------------------------------------------
# Kernel
# ---------------------------------------------------------------------------
def _window_attn_kernel(x_ref, wq_ref, wk_ref, wv_ref, bq_ref, bk_ref, bv_ref,
                        cw_ref, cb_ref, shift_ref, wp_ref, bp_ref, o_ref):
    # x_ref: (WB, C, N)   windows in channels-on-sublane / pixels-on-lane form
    # wq/wk/wv/wp: (C, C); bq/bk/bv/cb/bp: (C, 1)
    # cw_ref: (9, C, 1)   depthwise 3x3 weights, tap-major
    # shift_ref: (9, N, N) constant shift matrices (zero padding baked in)
    wb, C, N = x_ref.shape
    scale = float(C) ** -0.5

    # Small weights: load once, resident across the (static) window loop.
    wq = wq_ref[...].astype(jnp.float32)
    wk = wk_ref[...].astype(jnp.float32)
    wv = wv_ref[...].astype(jnp.float32)
    wp = wp_ref[...].astype(jnp.float32)
    bq = bq_ref[...].astype(jnp.float32)
    bk = bk_ref[...].astype(jnp.float32)
    bv = bv_ref[...].astype(jnp.float32)
    cb = cb_ref[...].astype(jnp.float32)
    bp = bp_ref[...].astype(jnp.float32)

    for b in range(wb):  # static unroll over the windows of this block
        x = x_ref[b].astype(jnp.float32)                         # (C, N)

        q = jnp.dot(wq, x, preferred_element_type=jnp.float32) + bq
        k = jnp.dot(wk, x, preferred_element_type=jnp.float32) + bk
        v = jnp.dot(wv, x, preferred_element_type=jnp.float32) + bv

        # attn[n, m] = scale * sum_c q[c, n] * k[c, m]
        attn = jax.lax.dot_general(
            q, k, (((0,), (0,)), ((), ())),
            preferred_element_type=jnp.float32) * scale          # (N, N)
        attn = attn - jnp.max(attn, axis=-1, keepdims=True)
        p = jnp.exp(attn)
        attn = p / jnp.sum(p, axis=-1, keepdims=True)

        # LePE: depthwise 3x3 conv on v (viewed spatially) as 9 shift-matmuls.
        lepe = cb                                                # (C, 1) -> broadcasts
        for t in range(9):
            sv = jax.lax.dot_general(
                v, shift_ref[t].astype(jnp.float32),
                (((1,), (1,)), ((), ())),
                preferred_element_type=jnp.float32)              # (C, N)
            lepe = lepe + sv * cw_ref[t].astype(jnp.float32)

        # out[c, n] = sum_m v[c, m] * attn[n, m]
        out = jax.lax.dot_general(
            v, attn, (((1,), (1,)), ((), ())),
            preferred_element_type=jnp.float32) + lepe           # (C, N)

        y = jnp.dot(wp, out, preferred_element_type=jnp.float32) + bp
        o_ref[b] = y.astype(o_ref.dtype)


# ---------------------------------------------------------------------------
# Wrapper
# ---------------------------------------------------------------------------
def _build_shift_mats(ws):
    """Shift matrices A[t] with A[t, n, m] = 1 iff pixel m is the (di-1, dj-1)
    spatial neighbour of pixel n inside a ws x ws window (zero padding)."""
    N = ws * ws
    A = np.zeros((9, N, N), np.float32)
    for di in range(3):
        for dj in range(3):
            t = di * 3 + dj
            for i in range(ws):
                for j in range(ws):
                    si, sj = i + di - 1, j + dj - 1
                    if 0 <= si < ws and 0 <= sj < ws:
                        A[t, i * ws + j, si * ws + sj] = 1.0
    return jnp.asarray(A)


def _pick_window_block(num_windows, max_wb=8):
    """Largest divisor of num_windows <= max_wb, preferring >=2 grid steps so
    both v7x TensorCores get work."""
    divisors = [d for d in range(1, num_windows + 1)
                if num_windows % d == 0 and d <= max_wb]
    two_step = [d for d in divisors if num_windows // d >= 2]
    return max(two_step) if two_step else max(divisors)


def downsample_vit_forward(x, wqkv, bqkv, conv_w, conv_b, wproj, bproj,
                           *, window_size=8, max_wb=8):
    """x: (B, C, H, W). wqkv: (3C, C), bqkv: (3C,), conv_w: (C, 1, 3, 3),
    conv_b: (C,), wproj: (C, C), bproj: (C,). Returns (B, C, H, W)."""
    B, C, H, W = x.shape
    ws = window_size
    assert H % ws == 0 and W % ws == 0, "H, W must be multiples of window_size"
    nWh, nWw = H // ws, W // ws
    N = ws * ws
    nwin = B * nWh * nWw

    # NCHW -> per-window (C, N) layout (channels on sublanes, pixels on lanes).
    x_win = x.reshape(B, C, nWh, ws, nWw, ws)
    x_win = jnp.transpose(x_win, (0, 2, 4, 1, 3, 5)).reshape(nwin, C, N)

    # Split qkv weights / biases; reshape biases to (C, 1) for lane broadcast.
    wq, wk, wv = wqkv[:C], wqkv[C:2 * C], wqkv[2 * C:]
    bq = bqkv[:C].reshape(C, 1)
    bk = bqkv[C:2 * C].reshape(C, 1)
    bv = bqkv[2 * C:].reshape(C, 1)
    cw = jnp.transpose(conv_w.reshape(C, 9), (1, 0)).reshape(9, C, 1)
    cb = conv_b.reshape(C, 1)
    bp = bproj.reshape(C, 1)
    shifts = _build_shift_mats(ws)                               # (9, N, N)

    wb = _pick_window_block(nwin, max_wb)
    grid = (nwin // wb,)

    full2 = lambda i: (0, 0)
    full3 = lambda i: (0, 0, 0)

    y_win = pl.pallas_call(
        _window_attn_kernel,
        out_shape=jax.ShapeDtypeStruct((nwin, C, N), x.dtype),
        grid_spec=pltpu.PrefetchScalarGridSpec(
            num_scalar_prefetch=0,
            grid=grid,
            in_specs=[
                pl.BlockSpec((wb, C, N), lambda i: (i, 0, 0)),   # x windows
                pl.BlockSpec((C, C), full2),                     # wq
                pl.BlockSpec((C, C), full2),                     # wk
                pl.BlockSpec((C, C), full2),                     # wv
                pl.BlockSpec((C, 1), full2),                     # bq
                pl.BlockSpec((C, 1), full2),                     # bk
                pl.BlockSpec((C, 1), full2),                     # bv
                pl.BlockSpec((9, C, 1), full3),                  # conv weights
                pl.BlockSpec((C, 1), full2),                     # conv bias
                pl.BlockSpec((9, N, N), full3),                  # shift matrices
                pl.BlockSpec((C, C), full2),                     # proj weight
                pl.BlockSpec((C, 1), full2),                     # proj bias
            ],
            out_specs=pl.BlockSpec((wb, C, N), lambda i: (i, 0, 0)),
        ),
        compiler_params=pltpu.CompilerParams(
            dimension_semantics=("parallel",),
        ),
    )(x_win, wq, wk, wv, bq, bk, bv, cw, cb, shifts, wproj, bp)

    # per-window (C, N) -> NCHW (window_reverse + final permute fused).
    y = y_win.reshape(B, nWh, nWw, C, ws, ws)
    y = jnp.transpose(y, (0, 3, 1, 4, 2, 5)).reshape(B, C, H, W)
    return y


# ---------------------------------------------------------------------------
# Pure-JAX reference (mirrors the torch forward; dropout p=0 is identity)
# ---------------------------------------------------------------------------
def _reference_forward(x, wqkv, bqkv, conv_w, conv_b, wproj, bproj, ws):
    B, C, H, W = x.shape
    nWh, nWw = H // ws, W // ws
    N = ws * ws
    xp = jnp.transpose(x, (0, 2, 3, 1))                          # (B, H, W, C)
    xw = xp.reshape(B, nWh, ws, nWw, ws, C)
    xw = jnp.transpose(xw, (0, 1, 3, 2, 4, 5)).reshape(-1, N, C)  # (B', N, C)
    qkv = xw @ wqkv.T + bqkv
    q, k, v = qkv[..., :C], qkv[..., C:2 * C], qkv[..., 2 * C:]
    v_sp = jnp.transpose(v, (0, 2, 1)).reshape(-1, C, ws, ws)
    lepe_sp = jax.lax.conv_general_dilated(
        v_sp, conv_w, window_strides=(1, 1), padding=((1, 1), (1, 1)),
        dimension_numbers=("NCHW", "OIHW", "NCHW"), feature_group_count=C)
    lepe_sp = lepe_sp + conv_b.reshape(1, C, 1, 1)
    lepe = jnp.transpose(lepe_sp.reshape(-1, C, N), (0, 2, 1))   # (B', N, C)
    scale = C ** (-0.5)
    attn = jnp.einsum("bnc,bmc->bnm", q, k) * scale
    attn = jax.nn.softmax(attn, axis=-1)
    out = jnp.einsum("bnm,bmc->bnc", attn, v) + lepe
    y = out @ wproj.T + bproj
    y = y.reshape(B, nWh, nWw, ws, ws, C)
    y = jnp.transpose(y, (0, 1, 3, 2, 4, 5)).reshape(B, H, W, C)
    return jnp.transpose(y, (0, 3, 1, 2))


if __name__ == "__main__":
    # Module config: downsample_vit(dim=4, window_size=8); x: (2, 4, 16, 16)
    dim = 4
    window_size = 8
    B, C, H, W = 2, dim, 16, 16

    key = jax.random.PRNGKey(0)
    kx, k1, k2, k3, k4, k5, k6 = jax.random.split(key, 7)

    x = jax.random.normal(kx, (B, C, H, W), dtype=jnp.float32)
    wqkv = jax.random.normal(k1, (3 * dim, dim), dtype=jnp.float32) * 0.2
    bqkv = jax.random.normal(k2, (3 * dim,), dtype=jnp.float32) * 0.1
    conv_w = jax.random.normal(k3, (dim, 1, 3, 3), dtype=jnp.float32) * 0.2
    conv_b = jax.random.normal(k4, (dim,), dtype=jnp.float32) * 0.1
    wproj = jax.random.normal(k5, (dim, dim), dtype=jnp.float32) * 0.2
    bproj = jax.random.normal(k6, (dim,), dtype=jnp.float32) * 0.1

    out = downsample_vit_forward(x, wqkv, bqkv, conv_w, conv_b, wproj, bproj,
                                 window_size=window_size)
    jax.block_until_ready(out)

    ref = _reference_forward(x, wqkv, bqkv, conv_w, conv_b, wproj, bproj,
                             window_size)
    assert out.shape == (B, C, H, W)
    assert jnp.allclose(out, ref, atol=1e-4, rtol=1e-4), \
        float(jnp.max(jnp.abs(out - ref)))

    print("KERNEL_OK")
</pallas_src>

<mosaic_0001>
module attributes {stable_mosaic.version = 11 : i64} {
  func.func @_window_attn_kernel(%arg0: i32, %arg1: memref<4x4x64xf32, #tpu.memory_space<vmem>>, %arg2: memref<4x4xf32, #tpu.memory_space<vmem>>, %arg3: memref<4x4xf32, #tpu.memory_space<vmem>>, %arg4: memref<4x4xf32, #tpu.memory_space<vmem>>, %arg5: memref<4x1xf32, #tpu.memory_space<vmem>>, %arg6: memref<4x1xf32, #tpu.memory_space<vmem>>, %arg7: memref<4x1xf32, #tpu.memory_space<vmem>>, %arg8: memref<9x4x1xf32, #tpu.memory_space<vmem>>, %arg9: memref<4x1xf32, #tpu.memory_space<vmem>>, %arg10: memref<9x64x64xf32, #tpu.memory_space<vmem>>, %arg11: memref<4x4xf32, #tpu.memory_space<vmem>>, %arg12: memref<4x1xf32, #tpu.memory_space<vmem>>, %arg13: memref<4x4x64xf32, #tpu.memory_space<vmem>>) attributes {dimension_semantics = [#tpu.dimension_semantics<parallel>], iteration_bounds = array<i64: 2>, scalar_prefetch = 0 : i64, scratch_operands = 0 : i64, tpu.core_type = #tpu.core_type<tc>, window_params = [{transform_indices = @transform_0, window_bounds = array<i64: 4, 4, 64>}, {pipeline_mode = #tpu.pipeline_mode<synchronous>, transform_indices = @transform_1, window_bounds = array<i64: 4, 4>}, {pipeline_mode = #tpu.pipeline_mode<synchronous>, transform_indices = @transform_2, window_bounds = array<i64: 4, 4>}, {pipeline_mode = #tpu.pipeline_mode<synchronous>, transform_indices = @transform_3, window_bounds = array<i64: 4, 4>}, {pipeline_mode = #tpu.pipeline_mode<synchronous>, transform_indices = @transform_4, window_bounds = array<i64: 4, 1>}, {pipeline_mode = #tpu.pipeline_mode<synchronous>, transform_indices = @transform_5, window_bounds = array<i64: 4, 1>}, {pipeline_mode = #tpu.pipeline_mode<synchronous>, transform_indices = @transform_6, window_bounds = array<i64: 4, 1>}, {pipeline_mode = #tpu.pipeline_mode<synchronous>, transform_indices = @transform_7, window_bounds = array<i64: 9, 4, 1>}, {pipeline_mode = #tpu.pipeline_mode<synchronous>, transform_indices = @transform_8, window_bounds = array<i64: 4, 1>}, {pipeline_mode = #tpu.pipeline_mode<synchronous>, transform_indices = @transform_9, window_bounds = array<i64: 9, 64, 64>}, {pipeline_mode = #tpu.pipeline_mode<synchronous>, transform_indices = @transform_10, window_bounds = array<i64: 4, 4>}, {pipeline_mode = #tpu.pipeline_mode<synchronous>, transform_indices = @transform_11, window_bounds = array<i64: 4, 1>}, {transform_indices = @transform_12, window_bounds = array<i64: 4, 4, 64>}]} {
    %c0 = arith.constant 0 : index
    %c0_0 = arith.constant 0 : index
    %0 = vector.load %arg2[%c0, %c0_0] : memref<4x4xf32, #tpu.memory_space<vmem>>, vector<4x4xf32>
    %c0_1 = arith.constant 0 : index
    %c0_2 = arith.constant 0 : index
    %1 = vector.load %arg3[%c0_1, %c0_2] : memref<4x4xf32, #tpu.memory_space<vmem>>, vector<4x4xf32>
    %c0_3 = arith.constant 0 : index
    %c0_4 = arith.constant 0 : index
    %2 = vector.load %arg4[%c0_3, %c0_4] : memref<4x4xf32, #tpu.memory_space<vmem>>, vector<4x4xf32>
    %c0_5 = arith.constant 0 : index
    %c0_6 = arith.constant 0 : index
    %3 = vector.load %arg11[%c0_5, %c0_6] : memref<4x4xf32, #tpu.memory_space<vmem>>, vector<4x4xf32>
    %c0_7 = arith.constant 0 : index
    %c0_8 = arith.constant 0 : index
    %4 = vector.load %arg5[%c0_7, %c0_8] : memref<4x1xf32, #tpu.memory_space<vmem>>, vector<4x1xf32>
    %c0_9 = arith.constant 0 : index
    %c0_10 = arith.constant 0 : index
    %5 = vector.load %arg6[%c0_9, %c0_10] : memref<4x1xf32, #tpu.memory_space<vmem>>, vector<4x1xf32>
    %c0_11 = arith.constant 0 : index
    %c0_12 = arith.constant 0 : index
    %6 = vector.load %arg7[%c0_11, %c0_12] : memref<4x1xf32, #tpu.memory_space<vmem>>, vector<4x1xf32>
    %c0_13 = arith.constant 0 : index
    %c0_14 = arith.constant 0 : index
    %7 = vector.load %arg9[%c0_13, %c0_14] : memref<4x1xf32, #tpu.memory_space<vmem>>, vector<4x1xf32>
    %c0_15 = arith.constant 0 : index
    %c0_16 = arith.constant 0 : index
    %8 = vector.load %arg12[%c0_15, %c0_16] : memref<4x1xf32, #tpu.memory_space<vmem>>, vector<4x1xf32>
    %c0_17 = arith.constant 0 : index
    %c0_18 = arith.constant 0 : index
    %c0_19 = arith.constant 0 : index
    %9 = vector.load %arg1[%c0_17, %c0_18, %c0_19] : memref<4x4x64xf32, #tpu.memory_space<vmem>>, vector<1x4x64xf32>
    %10 = vector.shape_cast %9 : vector<1x4x64xf32> to vector<4x64xf32>
    %cst = arith.constant dense<0.000000e+00> : vector<4x64xf32>
    %11 = tpu.matmul %0, %10, %cst {dimension_numbers = #tpu.dot_dimension_numbers<[1], [0], [0], [1], [0, 0, 1, 1], [], []>} : vector<4x4xf32>, vector<4x64xf32>, vector<4x64xf32> -> vector<4x64xf32>
    %12 = vector.broadcast %4 : vector<4x1xf32> to vector<4x64xf32>
    %13 = arith.addf %11, %12 : vector<4x64xf32>
    %cst_20 = arith.constant dense<0.000000e+00> : vector<4x64xf32>
    %14 = tpu.matmul %1, %10, %cst_20 {dimension_numbers = #tpu.dot_dimension_numbers<[1], [0], [0], [1], [0, 0, 1, 1], [], []>} : vector<4x4xf32>, vector<4x64xf32>, vector<4x64xf32> -> vector<4x64xf32>
    %15 = vector.broadcast %5 : vector<4x1xf32> to vector<4x64xf32>
    %16 = arith.addf %14, %15 : vector<4x64xf32>
    %cst_21 = arith.constant dense<0.000000e+00> : vector<4x64xf32>
    %17 = tpu.matmul %2, %10, %cst_21 {dimension_numbers = #tpu.dot_dimension_numbers<[1], [0], [0], [1], [0, 0, 1, 1], [], []>} : vector<4x4xf32>, vector<4x64xf32>, vector<4x64xf32> -> vector<4x64xf32>
    %18 = vector.broadcast %6 : vector<4x1xf32> to vector<4x64xf32>
    %19 = arith.addf %17, %18 : vector<4x64xf32>
    %cst_22 = arith.constant dense<0.000000e+00> : vector<64x64xf32>
    %20 = tpu.matmul %13, %16, %cst_22 {dimension_numbers = #tpu.dot_dimension_numbers<[0], [0], [1], [1], [0, 1, 1, 1], [], []>} : vector<4x64xf32>, vector<4x64xf32>, vector<64x64xf32> -> vector<64x64xf32>
    %cst_23 = arith.constant 5.000000e-01 : f32
    %21 = vector.broadcast %cst_23 : f32 to vector<64x64xf32>
    %22 = arith.mulf %20, %21 : vector<64x64xf32>
    %cst_24 = arith.constant dense<0xFF800000> : vector<64xf32>
    %23 = vector.multi_reduction <maximumf>, %22, %cst_24 [1] : vector<64x64xf32> to vector<64xf32>
    %24 = vector.shape_cast %23 : vector<64xf32> to vector<64x1xf32>
    %25 = vector.broadcast %24 : vector<64x1xf32> to vector<64x64xf32>
    %26 = arith.subf %22, %25 : vector<64x64xf32>
    %27 = math.exp %26 : vector<64x64xf32>
    %cst_25 = arith.constant dense<0.000000e+00> : vector<64xf32>
    %28 = vector.multi_reduction <add>, %27, %cst_25 [1] : vector<64x64xf32> to vector<64xf32>
    %29 = vector.shape_cast %28 : vector<64xf32> to vector<64x1xf32>
    %30 = vector.broadcast %29 : vector<64x1xf32> to vector<64x64xf32>
    %31 = arith.divf %27, %30 : vector<64x64xf32>
    %c0_26 = arith.constant 0 : index
    %c0_27 = arith.constant 0 : index
    %c0_28 = arith.constant 0 : index
    %32 = vector.load %arg10[%c0_26, %c0_27, %c0_28] : memref<9x64x64xf32, #tpu.memory_space<vmem>>, vector<1x64x64xf32>
    %33 = vector.shape_cast %32 : vector<1x64x64xf32> to vector<64x64xf32>
    %cst_29 = arith.constant dense<0.000000e+00> : vector<4x64xf32>
    %34 = tpu.matmul %19, %33, %cst_29 {dimension_numbers = #tpu.dot_dimension_numbers<[1], [1], [0], [0], [0, 0, 1, 0], [], []>} : vector<4x64xf32>, vector<64x64xf32>, vector<4x64xf32> -> vector<4x64xf32>
    %c0_30 = arith.constant 0 : index
    %c0_31 = arith.constant 0 : index
    %c0_32 = arith.constant 0 : index
    %35 = vector.load %arg8[%c0_30, %c0_31, %c0_32] : memref<9x4x1xf32, #tpu.memory_space<vmem>>, vector<1x4x1xf32>
    %36 = vector.shape_cast %35 : vector<1x4x1xf32> to vector<4x1xf32>
    %37 = vector.broadcast %36 : vector<4x1xf32> to vector<4x64xf32>
    %38 = arith.mulf %34, %37 : vector<4x64xf32>
    %39 = vector.broadcast %7 : vector<4x1xf32> to vector<4x64xf32>
    %40 = arith.addf %39, %38 : vector<4x64xf32>
    %c1 = arith.constant 1 : index
    %c0_33 = arith.constant 0 : index
    %c0_34 = arith.constant 0 : index
    %41 = vector.load %arg10[%c1, %c0_33, %c0_34] : memref<9x64x64xf32, #tpu.memory_space<vmem>>, vector<1x64x64xf32>
    %42 = vector.shape_cast %41 : vector<1x64x64xf32> to vector<64x64xf32>
    %cst_35 = arith.constant dense<0.000000e+00> : vector<4x64xf32>
    %43 = tpu.matmul %19, %42, %cst_35 {dimension_numbers = #tpu.dot_dimension_numbers<[1], [1], [0], [0], [0, 0, 1, 0], [], []>} : vector<4x64xf32>, vector<64x64xf32>, vector<4x64xf32> -> vector<4x64xf32>
    %c1_36 = arith.constant 1 : index
    %c0_37 = arith.constant 0 : index
    %c0_38 = arith.constant 0 : index
    %44 = vector.load %arg8[%c1_36, %c0_37, %c0_38] : memref<9x4x1xf32, #tpu.memory_space<vmem>>, vector<1x4x1xf32>
    %45 = vector.shape_cast %44 : vector<1x4x1xf32> to vector<4x1xf32>
    %46 = vector.broadcast %45 : vector<4x1xf32> to vector<4x64xf32>
    %47 = arith.mulf %43, %46 : vector<4x64xf32>
    %48 = arith.addf %40, %47 : vector<4x64xf32>
    %c2 = arith.constant 2 : index
    %c0_39 = arith.constant 0 : index
    %c0_40 = arith.constant 0 : index
    %49 = vector.load %arg10[%c2, %c0_39, %c0_40] : memref<9x64x64xf32, #tpu.memory_space<vmem>>, vector<1x64x64xf32>
    %50 = vector.shape_cast %49 : vector<1x64x64xf32> to vector<64x64xf32>
    %cst_41 = arith.constant dense<0.000000e+00> : vector<4x64xf32>
    %51 = tpu.matmul %19, %50, %cst_41 {dimension_numbers = #tpu.dot_dimension_numbers<[1], [1], [0], [0], [0, 0, 1, 0], [], []>} : vector<4x64xf32>, vector<64x64xf32>, vector<4x64xf32> -> vector<4x64xf32>
    %c2_42 = arith.constant 2 : index
    %c0_43 = arith.constant 0 : index
    %c0_44 = arith.constant 0 : index
    %52 = vector.load %arg8[%c2_42, %c0_43, %c0_44] : memref<9x4x1xf32, #tpu.memory_space<vmem>>, vector<1x4x1xf32>
    %53 = vector.shape_cast %52 : vector<1x4x1xf32> to vector<4x1xf32>
    %54 = vector.broadcast %53 : vector<4x1xf32> to vector<4x64xf32>
    %55 = arith.mulf %51, %54 : vector<4x64xf32>
    %56 = arith.addf %48, %55 : vector<4x64xf32>
    %c3 = arith.constant 3 : index
    %c0_45 = arith.constant 0 : index
    %c0_46 = arith.constant 0 : index
    %57 = vector.load %arg10[%c3, %c0_45, %c0_46] : memref<9x64x64xf32, #tpu.memory_space<vmem>>, vector<1x64x64xf32>
    %58 = vector.shape_cast %57 : vector<1x64x64xf32> to vector<64x64xf32>
    %cst_47 = arith.constant dense<0.000000e+00> : vector<4x64xf32>
    %59 = tpu.matmul %19, %58, %cst_47 {dimension_numbers = #tpu.dot_dimension_numbers<[1], [1], [0], [0], [0, 0, 1, 0], [], []>} : vector<4x64xf32>, vector<64x64xf32>, vector<4x64xf32> -> vector<4x64xf32>
    %c3_48 = arith.constant 3 : index
    %c0_49 = arith.constant 0 : index
    %c0_50 = arith.constant 0 : index
    %60 = vector.load %arg8[%c3_48, %c0_49, %c0_50] : memref<9x4x1xf32, #tpu.memory_space<vmem>>, vector<1x4x1xf32>
    %61 = vector.shape_cast %60 : vector<1x4x1xf32> to vector<4x1xf32>
    %62 = vector.broadcast %61 : vector<4x1xf32> to vector<4x64xf32>
    %63 = arith.mulf %59, %62 : vector<4x64xf32>
    %64 = arith.addf %56, %63 : vector<4x64xf32>
    %c4 = arith.constant 4 : index
    %c0_51 = arith.constant 0 : index
    %c0_52 = arith.constant 0 : index
    %65 = vector.load %arg10[%c4, %c0_51, %c0_52] : memref<9x64x64xf32, #tpu.memory_space<vmem>>, vector<1x64x64xf32>
    %66 = vector.shape_cast %65 : vector<1x64x64xf32> to vector<64x64xf32>
    %cst_53 = arith.constant dense<0.000000e+00> : vector<4x64xf32>
    %67 = tpu.matmul %19, %66, %cst_53 {dimension_numbers = #tpu.dot_dimension_numbers<[1], [1], [0], [0], [0, 0, 1, 0], [], []>} : vector<4x64xf32>, vector<64x64xf32>, vector<4x64xf32> -> vector<4x64xf32>
    %c4_54 = arith.constant 4 : index
    %c0_55 = arith.constant 0 : index
    %c0_56 = arith.constant 0 : index
    %68 = vector.load %arg8[%c4_54, %c0_55, %c0_56] : memref<9x4x1xf32, #tpu.memory_space<vmem>>, vector<1x4x1xf32>
    %69 = vector.shape_cast %68 : vector<1x4x1xf32> to vector<4x1xf32>
    %70 = vector.broadcast %69 : vector<4x1xf32> to vector<4x64xf32>
    %71 = arith.mulf %67, %70 : vector<4x64xf32>
    %72 = arith.addf %64, %71 : vector<4x64xf32>
    %c5 = arith.constant 5 : index
    %c0_57 = arith.constant 0 : index
    %c0_58 = arith.constant 0 : index
    %73 = vector.load %arg10[%c5, %c0_57, %c0_58] : memref<9x64x64xf32, #tpu.memory_space<vmem>>, vector<1x64x64xf32>
    %74 = vector.shape_cast %73 : vector<1x64x64xf32> to vector<64x64xf32>
    %cst_59 = arith.constant dense<0.000000e+00> : vector<4x64xf32>
    %75 = tpu.matmul %19, %74, %cst_59 {dimension_numbers = #tpu.dot_dimension_numbers<[1], [1], [0], [0], [0, 0, 1, 0], [], []>} : vector<4x64xf32>, vector<64x64xf32>, vector<4x64xf32> -> vector<4x64xf32>
    %c5_60 = arith.constant 5 : index
    %c0_61 = arith.constant 0 : index
    %c0_62 = arith.constant 0 : index
    %76 = vector.load %arg8[%c5_60, %c0_61, %c0_62] : memref<9x4x1xf32, #tpu.memory_space<vmem>>, vector<1x4x1xf32>
    %77 = vector.shape_cast %76 : vector<1x4x1xf32> to vector<4x1xf32>
    %78 = vector.broadcast %77 : vector<4x1xf32> to vector<4x64xf32>
    %79 = arith.mulf %75, %78 : vector<4x64xf32>
    %80 = arith.addf %72, %79 : vector<4x64xf32>
    %c6 = arith.constant 6 : index
    %c0_63 = arith.constant 0 : index
    %c0_64 = arith.constant 0 : index
    %81 = vector.load %arg10[%c6, %c0_63, %c0_64] : memref<9x64x64xf32, #tpu.memory_space<vmem>>, vector<1x64x64xf32>
    %82 = vector.shape_cast %81 : vector<1x64x64xf32> to vector<64x64xf32>
    %cst_65 = arith.constant dense<0.000000e+00> : vector<4x64xf32>
    %83 = tpu.matmul %19, %82, %cst_65 {dimension_numbers = #tpu.dot_dimension_numbers<[1], [1], [0], [0], [0, 0, 1, 0], [], []>} : vector<4x64xf32>, vector<64x64xf32>, vector<4x64xf32> -> vector<4x64xf32>
    %c6_66 = arith.constant 6 : index
    %c0_67 = arith.constant 0 : index
    %c0_68 = arith.constant 0 : index
    %84 = vector.load %arg8[%c6_66, %c0_67, %c0_68] : memref<9x4x1xf32, #tpu.memory_space<vmem>>, vector<1x4x1xf32>
    %85 = vector.shape_cast %84 : vector<1x4x1xf32> to vector<4x1xf32>
    %86 = vector.broadcast %85 : vector<4x1xf32> to vector<4x64xf32>
    %87 = arith.mulf %83, %86 : vector<4x64xf32>
    %88 = arith.addf %80, %87 : vector<4x64xf32>
    %c7 = arith.constant 7 : index
    %c0_69 = arith.constant 0 : index
    %c0_70 = arith.constant 0 : index
    %89 = vector.load %arg10[%c7, %c0_69, %c0_70] : memref<9x64x64xf32, #tpu.memory_space<vmem>>, vector<1x64x64xf32>
    %90 = vector.shape_cast %89 : vector<1x64x64xf32> to vector<64x64xf32>
    %cst_71 = arith.constant dense<0.000000e+00> : vector<4x64xf32>
    %91 = tpu.matmul %19, %90, %cst_71 {dimension_numbers = #tpu.dot_dimension_numbers<[1], [1], [0], [0], [0, 0, 1, 0], [], []>} : vector<4x64xf32>, vector<64x64xf32>, vector<4x64xf32> -> vector<4x64xf32>
    %c7_72 = arith.constant 7 : index
    %c0_73 = arith.constant 0 : index
    %c0_74 = arith.constant 0 : index
    %92 = vector.load %arg8[%c7_72, %c0_73, %c0_74] : memref<9x4x1xf32, #tpu.memory_space<vmem>>, vector<1x4x1xf32>
    %93 = vector.shape_cast %92 : vector<1x4x1xf32> to vector<4x1xf32>
    %94 = vector.broadcast %93 : vector<4x1xf32> to vector<4x64xf32>
    %95 = arith.mulf %91, %94 : vector<4x64xf32>
    %96 = arith.addf %88, %95 : vector<4x64xf32>
    %c8 = arith.constant 8 : index
    %c0_75 = arith.constant 0 : index
    %c0_76 = arith.constant 0 : index
    %97 = vector.load %arg10[%c8, %c0_75, %c0_76] : memref<9x64x64xf32, #tpu.memory_space<vmem>>, vector<1x64x64xf32>
    %98 = vector.shape_cast %97 : vector<1x64x64xf32> to vector<64x64xf32>
    %cst_77 = arith.constant dense<0.000000e+00> : vector<4x64xf32>
    %99 = tpu.matmul %19, %98, %cst_77 {dimension_numbers = #tpu.dot_dimension_numbers<[1], [1], [0], [0], [0, 0, 1, 0], [], []>} : vector<4x64xf32>, vector<64x64xf32>, vector<4x64xf32> -> vector<4x64xf32>
    %c8_78 = arith.constant 8 : index
    %c0_79 = arith.constant 0 : index
    %c0_80 = arith.constant 0 : index
    %100 = vector.load %arg8[%c8_78, %c0_79, %c0_80] : memref<9x4x1xf32, #tpu.memory_space<vmem>>, vector<1x4x1xf32>
    %101 = vector.shape_cast %100 : vector<1x4x1xf32> to vector<4x1xf32>
    %102 = vector.broadcast %101 : vector<4x1xf32> to vector<4x64xf32>
    %103 = arith.mulf %99, %102 : vector<4x64xf32>
    %104 = arith.addf %96, %103 : vector<4x64xf32>
    %cst_81 = arith.constant dense<0.000000e+00> : vector<4x64xf32>
    %105 = tpu.matmul %19, %31, %cst_81 {dimension_numbers = #tpu.dot_dimension_numbers<[1], [1], [0], [0], [0, 0, 1, 0], [], []>} : vector<4x64xf32>, vector<64x64xf32>, vector<4x64xf32> -> vector<4x64xf32>
    %106 = arith.addf %105, %104 : vector<4x64xf32>
    %cst_82 = arith.constant dense<0.000000e+00> : vector<4x64xf32>
    %107 = tpu.matmul %3, %106, %cst_82 {dimension_numbers = #tpu.dot_dimension_numbers<[1], [0], [0], [1], [0, 0, 1, 1], [], []>} : vector<4x4xf32>, vector<4x64xf32>, vector<4x64xf32> -> vector<4x64xf32>
    %108 = vector.broadcast %8 : vector<4x1xf32> to vector<4x64xf32>
    %109 = arith.addf %107, %108 : vector<4x64xf32>
    %c0_83 = arith.constant 0 : index
    %c0_84 = arith.constant 0 : index
    %c0_85 = arith.constant 0 : index
    %110 = vector.load %arg13[%c0_83, %c0_84, %c0_85] : memref<4x4x64xf32, #tpu.memory_space<vmem>>, vector<1x4x64xf32>
    %111 = vector.shape_cast %110 : vector<1x4x64xf32> to vector<4x64xf32>
    %112 = vector.shape_cast %109 : vector<4x64xf32> to vector<1x4x64xf32>
    tpu.vector_store %arg13[%c0_83, %c0_84, %c0_85], %112 {strides = array<i32>} : memref<4x4x64xf32, #tpu.memory_space<vmem>>, vector<1x4x64xf32>,
    %c1_86 = arith.constant 1 : index
    %c0_87 = arith.constant 0 : index
    %c0_88 = arith.constant 0 : index
    %113 = vector.load %arg1[%c1_86, %c0_87, %c0_88] : memref<4x4x64xf32, #tpu.memory_space<vmem>>, vector<1x4x64xf32>
    %114 = vector.shape_cast %113 : vector<1x4x64xf32> to vector<4x64xf32>
    %cst_89 = arith.constant dense<0.000000e+00> : vector<4x64xf32>
    %115 = tpu.matmul %0, %114, %cst_89 {dimension_numbers = #tpu.dot_dimension_numbers<[1], [0], [0], [1], [0, 0, 1, 1], [], []>} : vector<4x4xf32>, vector<4x64xf32>, vector<4x64xf32> -> vector<4x64xf32>
    %116 = vector.broadcast %4 : vector<4x1xf32> to vector<4x64xf32>
    %117 = arith.addf %115, %116 : vector<4x64xf32>
    %cst_90 = arith.constant dense<0.000000e+00> : vector<4x64xf32>
    %118 = tpu.matmul %1, %114, %cst_90 {dimension_numbers = #tpu.dot_dimension_numbers<[1], [0], [0], [1], [0, 0, 1, 1], [], []>} : vector<4x4xf32>, vector<4x64xf32>, vector<4x64xf32> -> vector<4x64xf32>
    %119 = vector.broadcast %5 : vector<4x1xf32> to vector<4x64xf32>
    %120 = arith.addf %118, %119 : vector<4x64xf32>
    %cst_91 = arith.constant dense<0.000000e+00> : vector<4x64xf32>
    %121 = tpu.matmul %2, %114, %cst_91 {dimension_numbers = #tpu.dot_dimension_numbers<[1], [0], [0], [1], [0, 0, 1, 1], [], []>} : vector<4x4xf32>, vector<4x64xf32>, vector<4x64xf32> -> vector<4x64xf32>
    %122 = vector.broadcast %6 : vector<4x1xf32> to vector<4x64xf32>
    %123 = arith.addf %121, %122 : vector<4x64xf32>
    %cst_92 = arith.constant dense<0.000000e+00> : vector<64x64xf32>
    %124 = tpu.matmul %117, %120, %cst_92 {dimension_numbers = #tpu.dot_dimension_numbers<[0], [0], [1], [1], [0, 1, 1, 1], [], []>} : vector<4x64xf32>, vector<4x64xf32>, vector<64x64xf32> -> vector<64x64xf32>
    %cst_93 = arith.constant 5.000000e-01 : f32
    %125 = vector.broadcast %cst_93 : f32 to vector<64x64xf32>
    %126 = arith.mulf %124, %125 : vector<64x64xf32>
    %cst_94 = arith.constant dense<0xFF800000> : vector<64xf32>
    %127 = vector.multi_reduction <maximumf>, %126, %cst_94 [1] : vector<64x64xf32> to vector<64xf32>
    %128 = vector.shape_cast %127 : vector<64xf32> to vector<64x1xf32>
    %129 = vector.broadcast %128 : vector<64x1xf32> to vector<64x64xf32>
    %130 = arith.subf %126, %129 : vector<64x64xf32>
    %131 = math.exp %130 : vector<64x64xf32>
    %cst_95 = arith.constant dense<0.000000e+00> : vector<64xf32>
    %132 = vector.multi_reduction <add>, %131, %cst_95 [1] : vector<64x64xf32> to vector<64xf32>
    %133 = vector.shape_cast %132 : vector<64xf32> to vector<64x1xf32>
    %134 = vector.broadcast %133 : vector<64x1xf32> to vector<64x64xf32>
    %135 = arith.divf %131, %134 : vector<64x64xf32>
    %c0_96 = arith.constant 0 : index
    %c0_97 = arith.constant 0 : index
    %c0_98 = arith.constant 0 : index
    %136 = vector.load %arg10[%c0_96, %c0_97, %c0_98] : memref<9x64x64xf32, #tpu.memory_space<vmem>>, vector<1x64x64xf32>
    %137 = vector.shape_cast %136 : vector<1x64x64xf32> to vector<64x64xf32>
    %cst_99 = arith.constant dense<0.000000e+00> : vector<4x64xf32>
    %138 = tpu.matmul %123, %137, %cst_99 {dimension_numbers = #tpu.dot_dimension_numbers<[1], [1], [0], [0], [0, 0, 1, 0], [], []>} : vector<4x64xf32>, vector<64x64xf32>, vector<4x64xf32> -> vector<4x64xf32>
    %c0_100 = arith.constant 0 : index
    %c0_101 = arith.constant 0 : index
    %c0_102 = arith.constant 0 : index
    %139 = vector.load %arg8[%c0_100, %c0_101, %c0_102] : memref<9x4x1xf32, #tpu.memory_space<vmem>>, vector<1x4x1xf32>
    %140 = vector.shape_cast %139 : vector<1x4x1xf32> to vector<4x1xf32>
    %141 = vector.broadcast %140 : vector<4x1xf32> to vector<4x64xf32>
    %142 = arith.mulf %138, %141 : vector<4x64xf32>
    %143 = vector.broadcast %7 : vector<4x1xf32> to vector<4x64xf32>
    %144 = arith.addf %143, %142 : vector<4x64xf32>
    %c1_103 = arith.constant 1 : index
    %c0_104 = arith.constant 0 : index
    %c0_105 = arith.constant 0 : index
    %145 = vector.load %arg10[%c1_103, %c0_104, %c0_105] : memref<9x64x64xf32, #tpu.memory_space<vmem>>, vector<1x64x64xf32>
    %146 = vector.shape_cast %145 : vector<1x64x64xf32> to vector<64x64xf32>
    %cst_106 = arith.constant dense<0.000000e+00> : vector<4x64xf32>
    %147 = tpu.matmul %123, %146, %cst_106 {dimension_numbers = #tpu.dot_dimension_numbers<[1], [1], [0], [0], [0, 0, 1, 0], [], []>} : vector<4x64xf32>, vector<64x64xf32>, vector<4x64xf32> -> vector<4x64xf32>
    %c1_107 = arith.constant 1 : index
    %c0_108 = arith.constant 0 : index
    %c0_109 = arith.constant 0 : index
    %148 = vector.load %arg8[%c1_107, %c0_108, %c0_109] : memref<9x4x1xf32, #tpu.memory_space<vmem>>, vector<1x4x1xf32>
    %149 = vector.shape_cast %148 : vector<1x4x1xf32> to vector<4x1xf32>
    %150 = vector.broadcast %149 : vector<4x1xf32> to vector<4x64xf32>
    %151 = arith.mulf %147, %150 : vector<4x64xf32>
    %152 = arith.addf %144, %151 : vector<4x64xf32>
    %c2_110 = arith.constant 2 : index
    %c0_111 = arith.constant 0 : index
    %c0_112 = arith.constant 0 : index
    %153 = vector.load %arg10[%c2_110, %c0_111, %c0_112] : memref<9x64x64xf32, #tpu.memory_space<vmem>>, vector<1x64x64xf32>
    %154 = vector.shape_cast %153 : vector<1x64x64xf32> to vector<64x64xf32>
    %cst_113 = arith.constant dense<0.000000e+00> : vector<4x64xf32>
    %155 = tpu.matmul %123, %154, %cst_113 {dimension_numbers = #tpu.dot_dimension_numbers<[1], [1], [0], [0], [0, 0, 1, 0], [], []>} : vector<4x64xf32>, vector<64x64xf32>, vector<4x64xf32> -> vector<4x64xf32>
    %c2_114 = arith.constant 2 : index
    %c0_115 = arith.constant 0 : index
    %c0_116 = arith.constant 0 : index
    %156 = vector.load %arg8[%c2_114, %c0_115, %c0_116] : memref<9x4x1xf32, #tpu.memory_space<vmem>>, vector<1x4x1xf32>
    %157 = vector.shape_cast %156 : vector<1x4x1xf32> to vector<4x1xf32>
    %158 = vector.broadcast %157 : vector<4x1xf32> to vector<4x64xf32>
    %159 = arith.mulf %155, %158 : vector<4x64xf32>
    %160 = arith.addf %152, %159 : vector<4x64xf32>
    %c3_117 = arith.constant 3 : index
    %c0_118 = arith.constant 0 : index
    %c0_119 = arith.constant 0 : index
    %161 = vector.load %arg10[%c3_117, %c0_118, %c0_119] : memref<9x64x64xf32, #tpu.memory_space<vmem>>, vector<1x64x64xf32>
    %162 = vector.shape_cast %161 : vector<1x64x64xf32> to vector<64x64xf32>
    %cst_120 = arith.constant dense<0.000000e+00> : vector<4x64xf32>
    %163 = tpu.matmul %123, %162, %cst_120 {dimension_numbers = #tpu.dot_dimension_numbers<[1], [1], [0], [0], [0, 0, 1, 0], [], []>} : vector<4x64xf32>, vector<64x64xf32>, vector<4x64xf32> -> vector<4x64xf32>
    %c3_121 = arith.constant 3 : index
    %c0_122 = arith.constant 0 : index
    %c0_123 = arith.constant 0 : index
    %164 = vector.load %arg8[%c3_121, %c0_122, %c0_123] : memref<9x4x1xf32, #tpu.memory_space<vmem>>, vector<1x4x1xf32>
    %165 = vector.shape_cast %164 : vector<1x4x1xf32> to vector<4x1xf32>
    %166 = vector.broadcast %165 : vector<4x1xf32> to vector<4x64xf32>
    %167 = arith.mulf %163, %166 : vector<4x64xf32>
    %168 = arith.addf %160, %167 : vector<4x64xf32>
    %c4_124 = arith.constant 4 : index
    %c0_125 = arith.constant 0 : index
    %c0_126 = arith.constant 0 : index
    %169 = vector.load %arg10[%c4_124, %c0_125, %c0_126] : memref<9x64x64xf32, #tpu.memory_space<vmem>>, vector<1x64x64xf32>
    %170 = vector.shape_cast %169 : vector<1x64x64xf32> to vector<64x64xf32>
    %cst_127 = arith.constant dense<0.000000e+00> : vector<4x64xf32>
    %171 = tpu.matmul %123, %170, %cst_127 {dimension_numbers = #tpu.dot_dimension_numbers<[1], [1], [0], [0], [0, 0, 1, 0], [], []>} : vector<4x64xf32>, vector<64x64xf32>, vector<4x64xf32> -> vector<4x64xf32>
    %c4_128 = arith.constant 4 : index
    %c0_129 = arith.constant 0 : index
    %c0_130 = arith.constant 0 : index
    %172 = vector.load %arg8[%c4_128, %c0_129, %c0_130] : memref<9x4x1xf32, #tpu.memory_space<vmem>>, vector<1x4x1xf32>
    %173 = vector.shape_cast %172 : vector<1x4x1xf32> to vector<4x1xf32>
    %174 = vector.broadcast %173 : vector<4x1xf32> to vector<4x64xf32>
    %175 = arith.mulf %171, %174 : vector<4x64xf32>
    %176 = arith.addf %168, %175 : vector<4x64xf32>
    %c5_131 = arith.constant 5 : index
    %c0_132 = arith.constant 0 : index
    %c0_133 = arith.constant 0 : index
    %177 = vector.load %arg10[%c5_131, %c0_132, %c0_133] : memref<9x64x64xf32, #tpu.memory_space<vmem>>, vector<1x64x64xf32>
    %178 = vector.shape_cast %177 : vector<1x64x64xf32> to vector<64x64xf32>
    %cst_134 = arith.constant dense<0.000000e+00> : vector<4x64xf32>
    %179 = tpu.matmul %123, %178, %cst_134 {dimension_numbers = #tpu.dot_dimension_numbers<[1], [1], [0], [0], [0, 0, 1, 0], [], []>} : vector<4x64xf32>, vector<64x64xf32>, vector<4x64xf32> -> vector<4x64xf32>
    %c5_135 = arith.constant 5 : index
    %c0_136 = arith.constant 0 : index
    %c0_137 = arith.constant 0 : index
    %180 = vector.load %arg8[%c5_135, %c0_136, %c0_137] : memref<9x4x1xf32, #tpu.memory_space<vmem>>, vector<1x4x1xf32>
    %181 = vector.shape_cast %180 : vector<1x4x1xf32> to vector<4x1xf32>
    %182 = vector.broadcast %181 : vector<4x1xf32> to vector<4x64xf32>
    %183 = arith.mulf %179, %182 : vector<4x64xf32>
    %184 = arith.addf %176, %183 : vector<4x64xf32>
    %c6_138 = arith.constant 6 : index
    %c0_139 = arith.constant 0 : index
    %c0_140 = arith.constant 0 : index
    %185 = vector.load %arg10[%c6_138, %c0_139, %c0_140] : memref<9x64x64xf32, #tpu.memory_space<vmem>>, vector<1x64x64xf32>
    %186 = vector.shape_cast %185 : vector<1x64x64xf32> to vector<64x64xf32>
    %cst_141 = arith.constant dense<0.000000e+00> : vector<4x64xf32>
    %187 = tpu.matmul %123, %186, %cst_141 {dimension_numbers = #tpu.dot_dimension_numbers<[1], [1], [0], [0], [0, 0, 1, 0], [], []>} : vector<4x64xf32>, vector<64x64xf32>, vector<4x64xf32> -> vector<4x64xf32>
    %c6_142 = arith.constant 6 : index
    %c0_143 = arith.constant 0 : index
    %c0_144 = arith.constant 0 : index
    %188 = vector.load %arg8[%c6_142, %c0_143, %c0_144] : memref<9x4x1xf32, #tpu.memory_space<vmem>>, vector<1x4x1xf32>
    %189 = vector.shape_cast %188 : vector<1x4x1xf32> to vector<4x1xf32>
    %190 = vector.broadcast %189 : vector<4x1xf32> to vector<4x64xf32>
    %191 = arith.mulf %187, %190 : vector<4x64xf32>
    %192 = arith.addf %184, %191 : vector<4x64xf32>
    %c7_145 = arith.constant 7 : index
    %c0_146 = arith.constant 0 : index
    %c0_147 = arith.constant 0 : index
    %193 = vector.load %arg10[%c7_145, %c0_146, %c0_147] : memref<9x64x64xf32, #tpu.memory_space<vmem>>, vector<1x64x64xf32>
    %194 = vector.shape_cast %193 : vector<1x64x64xf32> to vector<64x64xf32>
    %cst_148 = arith.constant dense<0.000000e+00> : vector<4x64xf32>
    %195 = tpu.matmul %123, %194, %cst_148 {dimension_numbers = #tpu.dot_dimension_numbers<[1], [1], [0], [0], [0, 0, 1, 0], [], []>} : vector<4x64xf32>, vector<64x64xf32>, vector<4x64xf32> -> vector<4x64xf32>
    %c7_149 = arith.constant 7 : index
    %c0_150 = arith.constant 0 : index
    %c0_151 = arith.constant 0 : index
    %196 = vector.load %arg8[%c7_149, %c0_150, %c0_151] : memref<9x4x1xf32, #tpu.memory_space<vmem>>, vector<1x4x1xf32>
    %197 = vector.shape_cast %196 : vector<1x4x1xf32> to vector<4x1xf32>
    %198 = vector.broadcast %197 : vector<4x1xf32> to vector<4x64xf32>
    %199 = arith.mulf %195, %198 : vector<4x64xf32>
    %200 = arith.addf %192, %199 : vector<4x64xf32>
    %c8_152 = arith.constant 8 : index
    %c0_153 = arith.constant 0 : index
    %c0_154 = arith.constant 0 : index
    %201 = vector.load %arg10[%c8_152, %c0_153, %c0_154] : memref<9x64x64xf32, #tpu.memory_space<vmem>>, vector<1x64x64xf32>
    %202 = vector.shape_cast %201 : vector<1x64x64xf32> to vector<64x64xf32>
    %cst_155 = arith.constant dense<0.000000e+00> : vector<4x64xf32>
    %203 = tpu.matmul %123, %202, %cst_155 {dimension_numbers = #tpu.dot_dimension_numbers<[1], [1], [0], [0], [0, 0, 1, 0], [], []>} : vector<4x64xf32>, vector<64x64xf32>, vector<4x64xf32> -> vector<4x64xf32>
    %c8_156 = arith.constant 8 : index
    %c0_157 = arith.constant 0 : index
    %c0_158 = arith.constant 0 : index
    %204 = vector.load %arg8[%c8_156, %c0_157, %c0_158] : memref<9x4x1xf32, #tpu.memory_space<vmem>>, vector<1x4x1xf32>
    %205 = vector.shape_cast %204 : vector<1x4x1xf32> to vector<4x1xf32>
    %206 = vector.broadcast %205 : vector<4x1xf32> to vector<4x64xf32>
    %207 = arith.mulf %203, %206 : vector<4x64xf32>
    %208 = arith.addf %200, %207 : vector<4x64xf32>
    %cst_159 = arith.constant dense<0.000000e+00> : vector<4x64xf32>
    %209 = tpu.matmul %123, %135, %cst_159 {dimension_numbers = #tpu.dot_dimension_numbers<[1], [1], [0], [0], [0, 0, 1, 0], [], []>} : vector<4x64xf32>, vector<64x64xf32>, vector<4x64xf32> -> vector<4x64xf32>
    %210 = arith.addf %209, %208 : vector<4x64xf32>
    %cst_160 = arith.constant dense<0.000000e+00> : vector<4x64xf32>
    %211 = tpu.matmul %3, %210, %cst_160 {dimension_numbers = #tpu.dot_dimension_numbers<[1], [0], [0], [1], [0, 0, 1, 1], [], []>} : vector<4x4xf32>, vector<4x64xf32>, vector<4x64xf32> -> vector<4x64xf32>
    %212 = vector.broadcast %8 : vector<4x1xf32> to vector<4x64xf32>
    %213 = arith.addf %211, %212 : vector<4x64xf32>
    %c1_161 = arith.constant 1 : index
    %c0_162 = arith.constant 0 : index
    %c0_163 = arith.constant 0 : index
    %214 = vector.load %arg13[%c1_161, %c0_162, %c0_163] : memref<4x4x64xf32, #tpu.memory_space<vmem>>, vector<1x4x64xf32>
    %215 = vector.shape_cast %214 : vector<1x4x64xf32> to vector<4x64xf32>
    %216 = vector.shape_cast %213 : vector<4x64xf32> to vector<1x4x64xf32>
    tpu.vector_store %arg13[%c1_161, %c0_162, %c0_163], %216 {strides = array<i32>} : memref<4x4x64xf32, #tpu.memory_space<vmem>>, vector<1x4x64xf32>,
    %c2_164 = arith.constant 2 : index
    %c0_165 = arith.constant 0 : index
    %c0_166 = arith.constant 0 : index
    %217 = vector.load %arg1[%c2_164, %c0_165, %c0_166] : memref<4x4x64xf32, #tpu.memory_space<vmem>>, vector<1x4x64xf32>
    %218 = vector.shape_cast %217 : vector<1x4x64xf32> to vector<4x64xf32>
    %cst_167 = arith.constant dense<0.000000e+00> : vector<4x64xf32>
    %219 = tpu.matmul %0, %218, %cst_167 {dimension_numbers = #tpu.dot_dimension_numbers<[1], [0], [0], [1], [0, 0, 1, 1], [], []>} : vector<4x4xf32>, vector<4x64xf32>, vector<4x64xf32> -> vector<4x64xf32>
    %220 = vector.broadcast %4 : vector<4x1xf32> to vector<4x64xf32>
    %221 = arith.addf %219, %220 : vector<4x64xf32>
    %cst_168 = arith.constant dense<0.000000e+00> : vector<4x64xf32>
    %222 = tpu.matmul %1, %218, %cst_168 {dimension_numbers = #tpu.dot_dimension_numbers<[1], [0], [0], [1], [0, 0, 1, 1], [], []>} : vector<4x4xf32>, vector<4x64xf32>, vector<4x64xf32> -> vector<4x64xf32>
    %223 = vector.broadcast %5 : vector<4x1xf32> to vector<4x64xf32>
    %224 = arith.addf %222, %223 : vector<4x64xf32>
    %cst_169 = arith.constant dense<0.000000e+00> : vector<4x64xf32>
    %225 = tpu.matmul %2, %218, %cst_169 {dimension_numbers = #tpu.dot_dimension_numbers<[1], [0], [0], [1], [0, 0, 1, 1], [], []>} : vector<4x4xf32>, vector<4x64xf32>, vector<4x64xf32> -> vector<4x64xf32>
    %226 = vector.broadcast %6 : vector<4x1xf32> to vector<4x64xf32>
    %227 = arith.addf %225, %226 : vector<4x64xf32>
    %cst_170 = arith.constant dense<0.000000e+00> : vector<64x64xf32>
    %228 = tpu.matmul %221, %224, %cst_170 {dimension_numbers = #tpu.dot_dimension_numbers<[0], [0], [1], [1], [0, 1, 1, 1], [], []>} : vector<4x64xf32>, vector<4x64xf32>, vector<64x64xf32> -> vector<64x64xf32>
    %cst_171 = arith.constant 5.000000e-01 : f32
    %229 = vector.broadcast %cst_171 : f32 to vector<64x64xf32>
    %230 = arith.mulf %228, %229 : vector<64x64xf32>
    %cst_172 = arith.constant dense<0xFF800000> : vector<64xf32>
    %231 = vector.multi_reduction <maximumf>, %230, %cst_172 [1] : vector<64x64xf32> to vector<64xf32>
    %232 = vector.shape_cast %231 : vector<64xf32> to vector<64x1xf32>
    %233 = vector.broadcast %232 : vector<64x1xf32> to vector<64x64xf32>
    %234 = arith.subf %230, %233 : vector<64x64xf32>
    %235 = math.exp %234 : vector<64x64xf32>
    %cst_173 = arith.constant dense<0.000000e+00> : vector<64xf32>
    %236 = vector.multi_reduction <add>, %235, %cst_173 [1] : vector<64x64xf32> to vector<64xf32>
    %237 = vector.shape_cast %236 : vector<64xf32> to vector<64x1xf32>
    %238 = vector.broadcast %237 : vector<64x1xf32> to vector<64x64xf32>
    %239 = arith.divf %235, %238 : vector<64x64xf32>
    %c0_174 = arith.constant 0 : index
    %c0_175 = arith.constant 0 : index
    %c0_176 = arith.constant 0 : index
    %240 = vector.load %arg10[%c0_174, %c0_175, %c0_176] : memref<9x64x64xf32, #tpu.memory_space<vmem>>, vector<1x64x64xf32>
    %241 = vector.shape_cast %240 : vector<1x64x64xf32> to vector<64x64xf32>
    %cst_177 = arith.constant dense<0.000000e+00> : vector<4x64xf32>
    %242 = tpu.matmul %227, %241, %cst_177 {dimension_numbers = #tpu.dot_dimension_numbers<[1], [1], [0], [0], [0, 0, 1, 0], [], []>} : vector<4x64xf32>, vector<64x64xf32>, vector<4x64xf32> -> vector<4x64xf32>
    %c0_178 = arith.constant 0 : index
    %c0_179 = arith.constant 0 : index
    %c0_180 = arith.constant 0 : index
    %243 = vector.load %arg8[%c0_178, %c0_179, %c0_180] : memref<9x4x1xf32, #tpu.memory_space<vmem>>, vector<1x4x1xf32>
    %244 = vector.shape_cast %243 : vector<1x4x1xf32> to vector<4x1xf32>
    %245 = vector.broadcast %244 : vector<4x1xf32> to vector<4x64xf32>
    %246 = arith.mulf %242, %245 : vector<4x64xf32>
    %247 = vector.broadcast %7 : vector<4x1xf32> to vector<4x64xf32>
    %248 = arith.addf %247, %246 : vector<4x64xf32>
    %c1_181 = arith.constant 1 : index
    %c0_182 = arith.constant 0 : index
    %c0_183 = arith.constant 0 : index
    %249 = vector.load %arg10[%c1_181, %c0_182, %c0_183] : memref<9x64x64xf32, #tpu.memory_space<vmem>>, vector<1x64x64xf32>
    %250 = vector.shape_cast %249 : vector<1x64x64xf32> to vector<64x64xf32>
    %cst_184 = arith.constant dense<0.000000e+00> : vector<4x64xf32>
    %251 = tpu.matmul %227, %250, %cst_184 {dimension_numbers = #tpu.dot_dimension_numbers<[1], [1], [0], [0], [0, 0, 1, 0], [], []>} : vector<4x64xf32>, vector<64x64xf32>, vector<4x64xf32> -> vector<4x64xf32>
    %c1_185 = arith.constant 1 : index
    %c0_186 = arith.constant 0 : index
    %c0_187 = arith.constant 0 : index
    %252 = vector.load %arg8[%c1_185, %c0_186, %c0_187] : memref<9x4x1xf32, #tpu.memory_space<vmem>>, vector<1x4x1xf32>
    %253 = vector.shape_cast %252 : vector<1x4x1xf32> to vector<4x1xf32>
    %254 = vector.broadcast %253 : vector<4x1xf32> to vector<4x64xf32>
    %255 = arith.mulf %251, %254 : vector<4x64xf32>
    %256 = arith.addf %248, %255 : vector<4x64xf32>
    %c2_188 = arith.constant 2 : index
    %c0_189 = arith.constant 0 : index
    %c0_190 = arith.constant 0 : index
    %257 = vector.load %arg10[%c2_188, %c0_189, %c0_190] : memref<9x64x64xf32, #tpu.memory_space<vmem>>, vector<1x64x64xf32>
    %258 = vector.shape_cast %257 : vector<1x64x64xf32> to vector<64x64xf32>
    %cst_191 = arith.constant dense<0.000000e+00> : vector<4x64xf32>
    %259 = tpu.matmul %227, %258, %cst_191 {dimension_numbers = #tpu.dot_dimension_numbers<[1], [1], [0], [0], [0, 0, 1, 0], [], []>} : vector<4x64xf32>, vector<64x64xf32>, vector<4x64xf32> -> vector<4x64xf32>
    %c2_192 = arith.constant 2 : index
    %c0_193 = arith.constant 0 : index
    %c0_194 = arith.constant 0 : index
    %260 = vector.load %arg8[%c2_192, %c0_193, %c0_194] : memref<9x4x1xf32, #tpu.memory_space<vmem>>, vector<1x4x1xf32>
    %261 = vector.shape_cast %260 : vector<1x4x1xf32> to vector<4x1xf32>
    %262 = vector.broadcast %261 : vector<4x1xf32> to vector<4x64xf32>
    %263 = arith.mulf %259, %262 : vector<4x64xf32>
    %264 = arith.addf %256, %263 : vector<4x64xf32>
    %c3_195 = arith.constant 3 : index
    %c0_196 = arith.constant 0 : index
    %c0_197 = arith.constant 0 : index
    %265 = vector.load %arg10[%c3_195, %c0_196, %c0_197] : memref<9x64x64xf32, #tpu.memory_space<vmem>>, vector<1x64x64xf32>
    %266 = vector.shape_cast %265 : vector<1x64x64xf32> to vector<64x64xf32>
    %cst_198 = arith.constant dense<0.000000e+00> : vector<4x64xf32>
    %267 = tpu.matmul %227, %266, %cst_198 {dimension_numbers = #tpu.dot_dimension_numbers<[1], [1], [0], [0], [0, 0, 1, 0], [], []>} : vector<4x64xf32>, vector<64x64xf32>, vector<4x64xf32> -> vector<4x64xf32>
    %c3_199 = arith.constant 3 : index
    %c0_200 = arith.constant 0 : index
    %c0_201 = arith.constant 0 : index
    %268 = vector.load %arg8[%c3_199, %c0_200, %c0_201] : memref<9x4x1xf32, #tpu.memory_space<vmem>>, vector<1x4x1xf32>
    %269 = vector.shape_cast %268 : vector<1x4x1xf32> to vector<4x1xf32>
    %270 = vector.broadcast %269 : vector<4x1xf32> to vector<4x64xf32>
    %271 = arith.mulf %267, %270 : vector<4x64xf32>
    %272 = arith.addf %264, %271 : vector<4x64xf32>
    %c4_202 = arith.constant 4 : index
    %c0_203 = arith.constant 0 : index
    %c0_204 = arith.constant 0 : index
    %273 = vector.load %arg10[%c4_202, %c0_203, %c0_204] : memref<9x64x64xf32, #tpu.memory_space<vmem>>, vector<1x64x64xf32>
    %274 = vector.shape_cast %273 : vector<1x64x64xf32> to vector<64x64xf32>
    %cst_205 = arith.constant dense<0.000000e+00> : vector<4x64xf32>
    %275 = tpu.matmul %227, %274, %cst_205 {dimension_numbers = #tpu.dot_dimension_numbers<[1], [1], [0], [0], [0, 0, 1, 0], [], []>} : vector<4x64xf32>, vector<64x64xf32>, vector<4x64xf32> -> vector<4x64xf32>
    %c4_206 = arith.constant 4 : index
    %c0_207 = arith.constant 0 : index
    %c0_208 = arith.constant 0 : index
    %276 = vector.load %arg8[%c4_206, %c0_207, %c0_208] : memref<9x4x1xf32, #tpu.memory_space<vmem>>, vector<1x4x1xf32>
    %277 = vector.shape_cast %276 : vector<1x4x1xf32> to vector<4x1xf32>
    %278 = vector.broadcast %277 : vector<4x1xf32> to vector<4x64xf32>
    %279 = arith.mulf %275, %278 : vector<4x64xf32>
    %280 = arith.addf %272, %279 : vector<4x64xf32>
    %c5_209 = arith.constant 5 : index
    %c0_210 = arith.constant 0 : index
    %c0_211 = arith.constant 0 : index
    %281 = vector.load %arg10[%c5_209, %c0_210, %c0_211] : memref<9x64x64xf32, #tpu.memory_space<vmem>>, vector<1x64x64xf32>
    %282 = vector.shape_cast %281 : vector<1x64x64xf32> to vector<64x64xf32>
    %cst_212 = arith.constant dense<0.000000e+00> : vector<4x64xf32>
    %283 = tpu.matmul %227, %282, %cst_212 {dimension_numbers = #tpu.dot_dimension_numbers<[1], [1], [0], [0], [0, 0, 1, 0], [], []>} : vector<4x64xf32>, vector<64x64xf32>, vector<4x64xf32> -> vector<4x64xf32>
    %c5_213 = arith.constant 5 : index
    %c0_214 = arith.constant 0 : index
    %c0_215 = arith.constant 0 : index
    %284 = vector.load %arg8[%c5_213, %c0_214, %c0_215] : memref<9x4x1xf32, #tpu.memory_space<vmem>>, vector<1x4x1xf32>
    %285 = vector.shape_cast %284 : vector<1x4x1xf32> to vector<4x1xf32>
    %286 = vector.broadcast %285 : vector<4x1xf32> to vector<4x64xf32>
    %287 = arith.mulf %283, %286 : vector<4x64xf32>
    %288 = arith.addf %280, %287 : vector<4x64xf32>
    %c6_216 = arith.constant 6 : index
    %c0_217 = arith.constant 0 : index
    %c0_218 = arith.constant 0 : index
    %289 = vector.load %arg10[%c6_216, %c0_217, %c0_218] : memref<9x64x64xf32, #tpu.memory_space<vmem>>, vector<1x64x64xf32>
    %290 = vector.shape_cast %289 : vector<1x64x64xf32> to vector<64x64xf32>
    %cst_219 = arith.constant dense<0.000000e+00> : vector<4x64xf32>
    %291 = tpu.matmul %227, %290, %cst_219 {dimension_numbers = #tpu.dot_dimension_numbers<[1], [1], [0], [0], [0, 0, 1, 0], [], []>} : vector<4x64xf32>, vector<64x64xf32>, vector<4x64xf32> -> vector<4x64xf32>
    %c6_220 = arith.constant 6 : index
    %c0_221 = arith.constant 0 : index
    %c0_222 = arith.constant 0 : index
    %292 = vector.load %arg8[%c6_220, %c0_221, %c0_222] : memref<9x4x1xf32, #tpu.memory_space<vmem>>, vector<1x4x1xf32>
    %293 = vector.shape_cast %292 : vector<1x4x1xf32> to vector<4x1xf32>
    %294 = vector.broadcast %293 : vector<4x1xf32> to vector<4x64xf32>
    %295 = arith.mulf %291, %294 : vector<4x64xf32>
    %296 = arith.addf %288, %295 : vector<4x64xf32>
    %c7_223 = arith.constant 7 : index
    %c0_224 = arith.constant 0 : index
    %c0_225 = arith.constant 0 : index
    %297 = vector.load %arg10[%c7_223, %c0_224, %c0_225] : memref<9x64x64xf32, #tpu.memory_space<vmem>>, vector<1x64x64xf32>
    %298 = vector.shape_cast %297 : vector<1x64x64xf32> to vector<64x64xf32>
    %cst_226 = arith.constant dense<0.000000e+00> : vector<4x64xf32>
    %299 = tpu.matmul %227, %298, %cst_226 {dimension_numbers = #tpu.dot_dimension_numbers<[1], [1], [0], [0], [0, 0, 1, 0], [], []>} : vector<4x64xf32>, vector<64x64xf32>, vector<4x64xf32> -> vector<4x64xf32>
    %c7_227 = arith.constant 7 : index
    %c0_228 = arith.constant 0 : index
    %c0_229 = arith.constant 0 : index
    %300 = vector.load %arg8[%c7_227, %c0_228, %c0_229] : memref<9x4x1xf32, #tpu.memory_space<vmem>>, vector<1x4x1xf32>
    %301 = vector.shape_cast %300 : vector<1x4x1xf32> to vector<4x1xf32>
    %302 = vector.broadcast %301 : vector<4x1xf32> to vector<4x64xf32>
    %303 = arith.mulf %299, %302 : vector<4x64xf32>
    %304 = arith.addf %296, %303 : vector<4x64xf32>
    %c8_230 = arith.constant 8 : index
    %c0_231 = arith.constant 0 : index
    %c0_232 = arith.constant 0 : index
    %305 = vector.load %arg10[%c8_230, %c0_231, %c0_232] : memref<9x64x64xf32, #tpu.memory_space<vmem>>, vector<1x64x64xf32>
    %306 = vector.shape_cast %305 : vector<1x64x64xf32> to vector<64x64xf32>
    %cst_233 = arith.constant dense<0.000000e+00> : vector<4x64xf32>
    %307 = tpu.matmul %227, %306, %cst_233 {dimension_numbers = #tpu.dot_dimension_numbers<[1], [1], [0], [0], [0, 0, 1, 0], [], []>} : vector<4x64xf32>, vector<64x64xf32>, vector<4x64xf32> -> vector<4x64xf32>
    %c8_234 = arith.constant 8 : index
    %c0_235 = arith.constant 0 : index
    %c0_236 = arith.constant 0 : index
    %308 = vector.load %arg8[%c8_234, %c0_235, %c0_236] : memref<9x4x1xf32, #tpu.memory_space<vmem>>, vector<1x4x1xf32>
    %309 = vector.shape_cast %308 : vector<1x4x1xf32> to vector<4x1xf32>
    %310 = vector.broadcast %309 : vector<4x1xf32> to vector<4x64xf32>
    %311 = arith.mulf %307, %310 : vector<4x64xf32>
    %312 = arith.addf %304, %311 : vector<4x64xf32>
    %cst_237 = arith.constant dense<0.000000e+00> : vector<4x64xf32>
    %313 = tpu.matmul %227, %239, %cst_237 {dimension_numbers = #tpu.dot_dimension_numbers<[1], [1], [0], [0], [0, 0, 1, 0], [], []>} : vector<4x64xf32>, vector<64x64xf32>, vector<4x64xf32> -> vector<4x64xf32>
    %314 = arith.addf %313, %312 : vector<4x64xf32>
    %cst_238 = arith.constant dense<0.000000e+00> : vector<4x64xf32>
    %315 = tpu.matmul %3, %314, %cst_238 {dimension_numbers = #tpu.dot_dimension_numbers<[1], [0], [0], [1], [0, 0, 1, 1], [], []>} : vector<4x4xf32>, vector<4x64xf32>, vector<4x64xf32> -> vector<4x64xf32>
    %316 = vector.broadcast %8 : vector<4x1xf32> to vector<4x64xf32>
    %317 = arith.addf %315, %316 : vector<4x64xf32>
    %c2_239 = arith.constant 2 : index
    %c0_240 = arith.constant 0 : index
    %c0_241 = arith.constant 0 : index
    %318 = vector.load %arg13[%c2_239, %c0_240, %c0_241] : memref<4x4x64xf32, #tpu.memory_space<vmem>>, vector<1x4x64xf32>
    %319 = vector.shape_cast %318 : vector<1x4x64xf32> to vector<4x64xf32>
    %320 = vector.shape_cast %317 : vector<4x64xf32> to vector<1x4x64xf32>
    tpu.vector_store %arg13[%c2_239, %c0_240, %c0_241], %320 {strides = array<i32>} : memref<4x4x64xf32, #tpu.memory_space<vmem>>, vector<1x4x64xf32>,
    %c3_242 = arith.constant 3 : index
    %c0_243 = arith.constant 0 : index
    %c0_244 = arith.constant 0 : index
    %321 = vector.load %arg1[%c3_242, %c0_243, %c0_244] : memref<4x4x64xf32, #tpu.memory_space<vmem>>, vector<1x4x64xf32>
    %322 = vector.shape_cast %321 : vector<1x4x64xf32> to vector<4x64xf32>
    %cst_245 = arith.constant dense<0.000000e+00> : vector<4x64xf32>
    %323 = tpu.matmul %0, %322, %cst_245 {dimension_numbers = #tpu.dot_dimension_numbers<[1], [0], [0], [1], [0, 0, 1, 1], [], []>} : vector<4x4xf32>, vector<4x64xf32>, vector<4x64xf32> -> vector<4x64xf32>
    %324 = vector.broadcast %4 : vector<4x1xf32> to vector<4x64xf32>
    %325 = arith.addf %323, %324 : vector<4x64xf32>
    %cst_246 = arith.constant dense<0.000000e+00> : vector<4x64xf32>
    %326 = tpu.matmul %1, %322, %cst_246 {dimension_numbers = #tpu.dot_dimension_numbers<[1], [0], [0], [1], [0, 0, 1, 1], [], []>} : vector<4x4xf32>, vector<4x64xf32>, vector<4x64xf32> -> vector<4x64xf32>
    %327 = vector.broadcast %5 : vector<4x1xf32> to vector<4x64xf32>
    %328 = arith.addf %326, %327 : vector<4x64xf32>
    %cst_247 = arith.constant dense<0.000000e+00> : vector<4x64xf32>
    %329 = tpu.matmul %2, %322, %cst_247 {dimension_numbers = #tpu.dot_dimension_numbers<[1], [0], [0], [1], [0, 0, 1, 1], [], []>} : vector<4x4xf32>, vector<4x64xf32>, vector<4x64xf32> -> vector<4x64xf32>
    %330 = vector.broadcast %6 : vector<4x1xf32> to vector<4x64xf32>
    %331 = arith.addf %329, %330 : vector<4x64xf32>
    %cst_248 = arith.constant dense<0.000000e+00> : vector<64x64xf32>
    %332 = tpu.matmul %325, %328, %cst_248 {dimension_numbers = #tpu.dot_dimension_numbers<[0], [0], [1], [1], [0, 1, 1, 1], [], []>} : vector<4x64xf32>, vector<4x64xf32>, vector<64x64xf32> -> vector<64x64xf32>
    %cst_249 = arith.constant 5.000000e-01 : f32
    %333 = vector.broadcast %cst_249 : f32 to vector<64x64xf32>
    %334 = arith.mulf %332, %333 : vector<64x64xf32>
    %cst_250 = arith.constant dense<0xFF800000> : vector<64xf32>
    %335 = vector.multi_reduction <maximumf>, %334, %cst_250 [1] : vector<64x64xf32> to vector<64xf32>
    %336 = vector.shape_cast %335 : vector<64xf32> to vector<64x1xf32>
    %337 = vector.broadcast %336 : vector<64x1xf32> to vector<64x64xf32>
    %338 = arith.subf %334, %337 : vector<64x64xf32>
    %339 = math.exp %338 : vector<64x64xf32>
    %cst_251 = arith.constant dense<0.000000e+00> : vector<64xf32>
    %340 = vector.multi_reduction <add>, %339, %cst_251 [1] : vector<64x64xf32> to vector<64xf32>
    %341 = vector.shape_cast %340 : vector<64xf32> to vector<64x1xf32>
    %342 = vector.broadcast %341 : vector<64x1xf32> to vector<64x64xf32>
    %343 = arith.divf %339, %342 : vector<64x64xf32>
    %c0_252 = arith.constant 0 : index
    %c0_253 = arith.constant 0 : index
    %c0_254 = arith.constant 0 : index
    %344 = vector.load %arg10[%c0_252, %c0_253, %c0_254] : memref<9x64x64xf32, #tpu.memory_space<vmem>>, vector<1x64x64xf32>
    %345 = vector.shape_cast %344 : vector<1x64x64xf32> to vector<64x64xf32>
    %cst_255 = arith.constant dense<0.000000e+00> : vector<4x64xf32>
    %346 = tpu.matmul %331, %345, %cst_255 {dimension_numbers = #tpu.dot_dimension_numbers<[1], [1], [0], [0], [0, 0, 1, 0], [], []>} : vector<4x64xf32>, vector<64x64xf32>, vector<4x64xf32> -> vector<4x64xf32>
    %c0_256 = arith.constant 0 : index
    %c0_257 = arith.constant 0 : index
    %c0_258 = arith.constant 0 : index
    %347 = vector.load %arg8[%c0_256, %c0_257, %c0_258] : memref<9x4x1xf32, #tpu.memory_space<vmem>>, vector<1x4x1xf32>
    %348 = vector.shape_cast %347 : vector<1x4x1xf32> to vector<4x1xf32>
    %349 = vector.broadcast %348 : vector<4x1xf32> to vector<4x64xf32>
    %350 = arith.mulf %346, %349 : vector<4x64xf32>
    %351 = vector.broadcast %7 : vector<4x1xf32> to vector<4x64xf32>
    %352 = arith.addf %351, %350 : vector<4x64xf32>
    %c1_259 = arith.constant 1 : index
    %c0_260 = arith.constant 0 : index
    %c0_261 = arith.constant 0 : index
    %353 = vector.load %arg10[%c1_259, %c0_260, %c0_261] : memref<9x64x64xf32, #tpu.memory_space<vmem>>, vector<1x64x64xf32>
    %354 = vector.shape_cast %353 : vector<1x64x64xf32> to vector<64x64xf32>
    %cst_262 = arith.constant dense<0.000000e+00> : vector<4x64xf32>
    %355 = tpu.matmul %331, %354, %cst_262 {dimension_numbers = #tpu.dot_dimension_numbers<[1], [1], [0], [0], [0, 0, 1, 0], [], []>} : vector<4x64xf32>, vector<64x64xf32>, vector<4x64xf32> -> vector<4x64xf32>
    %c1_263 = arith.constant 1 : index
    %c0_264 = arith.constant 0 : index
    %c0_265 = arith.constant 0 : index
    %356 = vector.load %arg8[%c1_263, %c0_264, %c0_265] : memref<9x4x1xf32, #tpu.memory_space<vmem>>, vector<1x4x1xf32>
    %357 = vector.shape_cast %356 : vector<1x4x1xf32> to vector<4x1xf32>
    %358 = vector.broadcast %357 : vector<4x1xf32> to vector<4x64xf32>
    %359 = arith.mulf %355, %358 : vector<4x64xf32>
    %360 = arith.addf %352, %359 : vector<4x64xf32>
    %c2_266 = arith.constant 2 : index
    %c0_267 = arith.constant 0 : index
    %c0_268 = arith.constant 0 : index
    %361 = vector.load %arg10[%c2_266, %c0_267, %c0_268] : memref<9x64x64xf32, #tpu.memory_space<vmem>>, vector<1x64x64xf32>
    %362 = vector.shape_cast %361 : vector<1x64x64xf32> to vector<64x64xf32>
    %cst_269 = arith.constant dense<0.000000e+00> : vector<4x64xf32>
    %363 = tpu.matmul %331, %362, %cst_269 {dimension_numbers = #tpu.dot_dimension_numbers<[1], [1], [0], [0], [0, 0, 1, 0], [], []>} : vector<4x64xf32>, vector<64x64xf32>, vector<4x64xf32> -> vector<4x64xf32>
    %c2_270 = arith.constant 2 : index
    %c0_271 = arith.constant 0 : index
    %c0_272 = arith.constant 0 : index
    %364 = vector.load %arg8[%c2_270, %c0_271, %c0_272] : memref<9x4x1xf32, #tpu.memory_space<vmem>>, vector<1x4x1xf32>
    %365 = vector.shape_cast %364 : vector<1x4x1xf32> to vector<4x1xf32>
    %366 = vector.broadcast %365 : vector<4x1xf32> to vector<4x64xf32>
    %367 = arith.mulf %363, %366 : vector<4x64xf32>
    %368 = arith.addf %360, %367 : vector<4x64xf32>
    %c3_273 = arith.constant 3 : index
    %c0_274 = arith.constant 0 : index
    %c0_275 = arith.constant 0 : index
    %369 = vector.load %arg10[%c3_273, %c0_274, %c0_275] : memref<9x64x64xf32, #tpu.memory_space<vmem>>, vector<1x64x64xf32>
    %370 = vector.shape_cast %369 : vector<1x64x64xf32> to vector<64x64xf32>
    %cst_276 = arith.constant dense<0.000000e+00> : vector<4x64xf32>
    %371 = tpu.matmul %331, %370, %cst_276 {dimension_numbers = #tpu.dot_dimension_numbers<[1], [1], [0], [0], [0, 0, 1, 0], [], []>} : vector<4x64xf32>, vector<64x64xf32>, vector<4x64xf32> -> vector<4x64xf32>
    %c3_277 = arith.constant 3 : index
    %c0_278 = arith.constant 0 : index
    %c0_279 = arith.constant 0 : index
    %372 = vector.load %arg8[%c3_277, %c0_278, %c0_279] : memref<9x4x1xf32, #tpu.memory_space<vmem>>, vector<1x4x1xf32>
    %373 = vector.shape_cast %372 : vector<1x4x1xf32> to vector<4x1xf32>
    %374 = vector.broadcast %373 : vector<4x1xf32> to vector<4x64xf32>
    %375 = arith.mulf %371, %374 : vector<4x64xf32>
    %376 = arith.addf %368, %375 : vector<4x64xf32>
    %c4_280 = arith.constant 4 : index
    %c0_281 = arith.constant 0 : index
    %c0_282 = arith.constant 0 : index
    %377 = vector.load %arg10[%c4_280, %c0_281, %c0_282] : memref<9x64x64xf32, #tpu.memory_space<vmem>>, vector<1x64x64xf32>
    %378 = vector.shape_cast %377 : vector<1x64x64xf32> to vector<64x64xf32>
    %cst_283 = arith.constant dense<0.000000e+00> : vector<4x64xf32>
    %379 = tpu.matmul %331, %378, %cst_283 {dimension_numbers = #tpu.dot_dimension_numbers<[1], [1], [0], [0], [0, 0, 1, 0], [], []>} : vector<4x64xf32>, vector<64x64xf32>, vector<4x64xf32> -> vector<4x64xf32>
    %c4_284 = arith.constant 4 : index
    %c0_285 = arith.constant 0 : index
    %c0_286 = arith.constant 0 : index
    %380 = vector.load %arg8[%c4_284, %c0_285, %c0_286] : memref<9x4x1xf32, #tpu.memory_space<vmem>>, vector<1x4x1xf32>
    %381 = vector.shape_cast %380 : vector<1x4x1xf32> to vector<4x1xf32>
    %382 = vector.broadcast %381 : vector<4x1xf32> to vector<4x64xf32>
    %383 = arith.mulf %379, %382 : vector<4x64xf32>
    %384 = arith.addf %376, %383 : vector<4x64xf32>
    %c5_287 = arith.constant 5 : index
    %c0_288 = arith.constant 0 : index
    %c0_289 = arith.constant 0 : index
    %385 = vector.load %arg10[%c5_287, %c0_288, %c0_289] : memref<9x64x64xf32, #tpu.memory_space<vmem>>, vector<1x64x64xf32>
    %386 = vector.shape_cast %385 : vector<1x64x64xf32> to vector<64x64xf32>
    %cst_290 = arith.constant dense<0.000000e+00> : vector<4x64xf32>
    %387 = tpu.matmul %331, %386, %cst_290 {dimension_numbers = #tpu.dot_dimension_numbers<[1], [1], [0], [0], [0, 0, 1, 0], [], []>} : vector<4x64xf32>, vector<64x64xf32>, vector<4x64xf32> -> vector<4x64xf32>
    %c5_291 = arith.constant 5 : index
    %c0_292 = arith.constant 0 : index
    %c0_293 = arith.constant 0 : index
    %388 = vector.load %arg8[%c5_291, %c0_292, %c0_293] : memref<9x4x1xf32, #tpu.memory_space<vmem>>, vector<1x4x1xf32>
    %389 = vector.shape_cast %388 : vector<1x4x1xf32> to vector<4x1xf32>
    %390 = vector.broadcast %389 : vector<4x1xf32> to vector<4x64xf32>
    %391 = arith.mulf %387, %390 : vector<4x64xf32>
    %392 = arith.addf %384, %391 : vector<4x64xf32>
    %c6_294 = arith.constant 6 : index
    %c0_295 = arith.constant 0 : index
    %c0_296 = arith.constant 0 : index
    %393 = vector.load %arg10[%c6_294, %c0_295, %c0_296] : memref<9x64x64xf32, #tpu.memory_space<vmem>>, vector<1x64x64xf32>
    %394 = vector.shape_cast %393 : vector<1x64x64xf32> to vector<64x64xf32>
    %cst_297 = arith.constant dense<0.000000e+00> : vector<4x64xf32>
    %395 = tpu.matmul %331, %394, %cst_297 {dimension_numbers = #tpu.dot_dimension_numbers<[1], [1], [0], [0], [0, 0, 1, 0], [], []>} : vector<4x64xf32>, vector<64x64xf32>, vector<4x64xf32> -> vector<4x64xf32>
    %c6_298 = arith.constant 6 : index
    %c0_299 = arith.constant 0 : index
    %c0_300 = arith.constant 0 : index
    %396 = vector.load %arg8[%c6_298, %c0_299, %c0_300] : memref<9x4x1xf32, #tpu.memory_space<vmem>>, vector<1x4x1xf32>
    %397 = vector.shape_cast %396 : vector<1x4x1xf32> to vector<4x1xf32>
    %398 = vector.broadcast %397 : vector<4x1xf32> to vector<4x64xf32>
    %399 = arith.mulf %395, %398 : vector<4x64xf32>
    %400 = arith.addf %392, %399 : vector<4x64xf32>
    %c7_301 = arith.constant 7 : index
    %c0_302 = arith.constant 0 : index
    %c0_303 = arith.constant 0 : index
    %401 = vector.load %arg10[%c7_301, %c0_302, %c0_303] : memref<9x64x64xf32, #tpu.memory_space<vmem>>, vector<1x64x64xf32>
    %402 = vector.shape_cast %401 : vector<1x64x64xf32> to vector<64x64xf32>
    %cst_304 = arith.constant dense<0.000000e+00> : vector<4x64xf32>
    %403 = tpu.matmul %331, %402, %cst_304 {dimension_numbers = #tpu.dot_dimension_numbers<[1], [1], [0], [0], [0, 0, 1, 0], [], []>} : vector<4x64xf32>, vector<64x64xf32>, vector<4x64xf32> -> vector<4x64xf32>
    %c7_305 = arith.constant 7 : index
    %c0_306 = arith.constant 0 : index
    %c0_307 = arith.constant 0 : index
    %404 = vector.load %arg8[%c7_305, %c0_306, %c0_307] : memref<9x4x1xf32, #tpu.memory_space<vmem>>, vector<1x4x1xf32>
    %405 = vector.shape_cast %404 : vector<1x4x1xf32> to vector<4x1xf32>
    %406 = vector.broadcast %405 : vector<4x1xf32> to vector<4x64xf32>
    %407 = arith.mulf %403, %406 : vector<4x64xf32>
    %408 = arith.addf %400, %407 : vector<4x64xf32>
    %c8_308 = arith.constant 8 : index
    %c0_309 = arith.constant 0 : index
    %c0_310 = arith.constant 0 : index
    %409 = vector.load %arg10[%c8_308, %c0_309, %c0_310] : memref<9x64x64xf32, #tpu.memory_space<vmem>>, vector<1x64x64xf32>
    %410 = vector.shape_cast %409 : vector<1x64x64xf32> to vector<64x64xf32>
    %cst_311 = arith.constant dense<0.000000e+00> : vector<4x64xf32>
    %411 = tpu.matmul %331, %410, %cst_311 {dimension_numbers = #tpu.dot_dimension_numbers<[1], [1], [0], [0], [0, 0, 1, 0], [], []>} : vector<4x64xf32>, vector<64x64xf32>, vector<4x64xf32> -> vector<4x64xf32>
    %c8_312 = arith.constant 8 : index
    %c0_313 = arith.constant 0 : index
    %c0_314 = arith.constant 0 : index
    %412 = vector.load %arg8[%c8_312, %c0_313, %c0_314] : memref<9x4x1xf32, #tpu.memory_space<vmem>>, vector<1x4x1xf32>
    %413 = vector.shape_cast %412 : vector<1x4x1xf32> to vector<4x1xf32>
    %414 = vector.broadcast %413 : vector<4x1xf32> to vector<4x64xf32>
    %415 = arith.mulf %411, %414 : vector<4x64xf32>
    %416 = arith.addf %408, %415 : vector<4x64xf32>
    %cst_315 = arith.constant dense<0.000000e+00> : vector<4x64xf32>
    %417 = tpu.matmul %331, %343, %cst_315 {dimension_numbers = #tpu.dot_dimension_numbers<[1], [1], [0], [0], [0, 0, 1, 0], [], []>} : vector<4x64xf32>, vector<64x64xf32>, vector<4x64xf32> -> vector<4x64xf32>
    %418 = arith.addf %417, %416 : vector<4x64xf32>
    %cst_316 = arith.constant dense<0.000000e+00> : vector<4x64xf32>
    %419 = tpu.matmul %3, %418, %cst_316 {dimension_numbers = #tpu.dot_dimension_numbers<[1], [0], [0], [1], [0, 0, 1, 1], [], []>} : vector<4x4xf32>, vector<4x64xf32>, vector<4x64xf32> -> vector<4x64xf32>
    %420 = vector.broadcast %8 : vector<4x1xf32> to vector<4x64xf32>
    %421 = arith.addf %419, %420 : vector<4x64xf32>
    %c3_317 = arith.constant 3 : index
    %c0_318 = arith.constant 0 : index
    %c0_319 = arith.constant 0 : index
    %422 = vector.load %arg13[%c3_317, %c0_318, %c0_319] : memref<4x4x64xf32, #tpu.memory_space<vmem>>, vector<1x4x64xf32>
    %423 = vector.shape_cast %422 : vector<1x4x64xf32> to vector<4x64xf32>
    %424 = vector.shape_cast %421 : vector<4x64xf32> to vector<1x4x64xf32>
    tpu.vector_store %arg13[%c3_317, %c0_318, %c0_319], %424 {strides = array<i32>} : memref<4x4x64xf32, #tpu.memory_space<vmem>>, vector<1x4x64xf32>,
    return
  }
  func.func @transform_0(%arg0: i32) -> (i32, i32, i32) {
    %c0_i32 = arith.constant 0 : i32
    %c0_i32_0 = arith.constant 0 : i32
    %c0_i32_1 = arith.constant 0 : i32
    return %arg0, %c0_i32, %c0_i32_0 : i32, i32, i32
  }
  func.func @transform_1(%arg0: i32) -> (i32, i32) {
    %c0_i32 = arith.constant 0 : i32
    %c0_i32_0 = arith.constant 0 : i32
    %c0_i32_1 = arith.constant 0 : i32
    return %c0_i32, %c0_i32_0 : i32, i32
  }
  func.func @transform_2(%arg0: i32) -> (i32, i32) {
    %c0_i32 = arith.constant 0 : i32
    %c0_i32_0 = arith.constant 0 : i32
    %c0_i32_1 = arith.constant 0 : i32
    return %c0_i32, %c0_i32_0 : i32, i32
  }
  func.func @transform_3(%arg0: i32) -> (i32, i32) {
    %c0_i32 = arith.constant 0 : i32
    %c0_i32_0 = arith.constant 0 : i32
    %c0_i32_1 = arith.constant 0 : i32
    return %c0_i32, %c0_i32_0 : i32, i32
  }
  func.func @transform_4(%arg0: i32) -> (i32, i32) {
    %c0_i32 = arith.constant 0 : i32
    %c0_i32_0 = arith.constant 0 : i32
    %c0_i32_1 = arith.constant 0 : i32
    return %c0_i32, %c0_i32_0 : i32, i32
  }
  func.func @transform_5(%arg0: i32) -> (i32, i32) {
    %c0_i32 = arith.constant 0 : i32
    %c0_i32_0 = arith.constant 0 : i32
    %c0_i32_1 = arith.constant 0 : i32
    return %c0_i32, %c0_i32_0 : i32, i32
  }
  func.func @transform_6(%arg0: i32) -> (i32, i32) {
    %c0_i32 = arith.constant 0 : i32
    %c0_i32_0 = arith.constant 0 : i32
    %c0_i32_1 = arith.constant 0 : i32
    return %c0_i32, %c0_i32_0 : i32, i32
  }
  func.func @transform_7(%arg0: i32) -> (i32, i32, i32) {
    %c0_i32 = arith.constant 0 : i32
    %c0_i32_0 = arith.constant 0 : i32
    %c0_i32_1 = arith.constant 0 : i32
    %c0_i32_2 = arith.constant 0 : i32
    return %c0_i32, %c0_i32_0, %c0_i32_1 : i32, i32, i32
  }
  func.func @transform_8(%arg0: i32) -> (i32, i32) {
    %c0_i32 = arith.constant 0 : i32
    %c0_i32_0 = arith.constant 0 : i32
    %c0_i32_1 = arith.constant 0 : i32
    return %c0_i32, %c0_i32_0 : i32, i32
  }
  func.func @transform_9(%arg0: i32) -> (i32, i32, i32) {
    %c0_i32 = arith.constant 0 : i32
    %c0_i32_0 = arith.constant 0 : i32
    %c0_i32_1 = arith.constant 0 : i32
    %c0_i32_2 = arith.constant 0 : i32
    return %c0_i32, %c0_i32_0, %c0_i32_1 : i32, i32, i32
  }
  func.func @transform_10(%arg0: i32) -> (i32, i32) {
    %c0_i32 = arith.constant 0 : i32
    %c0_i32_0 = arith.constant 0 : i32
    %c0_i32_1 = arith.constant 0 : i32
    return %c0_i32, %c0_i32_0 : i32, i32
  }
  func.func @transform_11(%arg0: i32) -> (i32, i32) {
    %c0_i32 = arith.constant 0 : i32
    %c0_i32_0 = arith.constant 0 : i32
    %c0_i32_1 = arith.constant 0 : i32
    return %c0_i32, %c0_i32_0 : i32, i32
  }
  func.func @transform_12(%arg0: i32) -> (i32, i32, i32) {
    %c0_i32 = arith.constant 0 : i32
    %c0_i32_0 = arith.constant 0 : i32
    %c0_i32_1 = arith.constant 0 : i32
    return %arg0, %c0_i32, %c0_i32_0 : i32, i32, i32
  }
}

</mosaic_0001>

<llo_original>
// kernel: tpu_custom_call.1
$region0: #{tpu_custom_call.1}
  #allocation0 [shape = 'u32[]', space=smem, size = 0x4, offset = 0x4, fixed_abs, tag = 'smem constant byte address 0x4 - core index']
  #allocation1 [shape = 'u32[144,128]{1,0:T(1,128)}', space=vmem, size = 0x12000, scoped, tag = 'internal scratch']
  %s0 = inlined_call_operand.vmem [shape: f32[8,4,64], index: 0, kind: input, shape index: {}]
  %s1 = inlined_call_operand.vmem [shape: f32[4,4], index: 1, kind: input, shape index: {}]
  %s2 = inlined_call_operand.vmem [shape: f32[4,4], index: 2, kind: input, shape index: {}]
  %s3 = inlined_call_operand.vmem [shape: f32[4,4], index: 3, kind: input, shape index: {}]
  %s4 = inlined_call_operand.vmem [shape: f32[4,1], index: 4, kind: input, shape index: {}]
  %s5 = inlined_call_operand.vmem [shape: f32[4,1], index: 5, kind: input, shape index: {}]
  %s6 = inlined_call_operand.vmem [shape: f32[4,1], index: 6, kind: input, shape index: {}]
  %s7 = inlined_call_operand.vmem [shape: f32[9,4,1], index: 7, kind: input, shape index: {}]
  %s8 = inlined_call_operand.vmem [shape: f32[4,1], index: 8, kind: input, shape index: {}]
  %s9 = inlined_call_operand.hbm [shape: f32[9,64,64], index: 9, kind: input, shape index: {}]
  %s10 = inlined_call_operand.vmem [shape: f32[4,4], index: 10, kind: input, shape index: {}]
  %s11 = inlined_call_operand.vmem [shape: f32[4,1], index: 11, kind: input, shape index: {}]
  %s12 = inlined_call_operand.hbm [shape: f32[8,4,64], index: 12, kind: output, shape index: {}]
  %s13 = sld [smem:[#allocation0]]
  $region85: #{tpu_custom_call.1} parent=0
    _
  %s15 = ssub.s32 1, %s13
  %s16 = scalar_select 0, %s15, %s13
  $region1: #{tpu_custom_call.1} parent=0
    #allocation2 [shape = 'u8[294912]{0}', space=vmem, size = 0x48000, scoped, tag = 'input window, operand 9, single buffered']
    #allocation3 [shape = 's32[2]{0}', space=sflag, size = 0x8, scoped, tag = 'scoped memory for tpu_custom_call.1']
    #allocation4 [shape = 's32[2]{0}', space=sflag, size = 0x8, scoped, tag = 'scoped memory for tpu_custom_call.1']
    #allocation5 [shape = 'u8[16384]{0}', space=vmem, size = 0x4000, scoped, tag = 'output window, operand 0']
    %17 = vsyncpa [#allocation3], 0
    %18 = vsyncpa [#allocation4], 0
    %s19 = scalar_lea.sflag [#allocation4], 1
    %20 = vsyncpa %s19, 0
    loop: start=0, step=1, limit=4
    $region2: #{tpu_custom_call.1} parent=1 // loop_pre_header
      _
    $region3: #{tpu_custom_call.1} parent=1 // loop_header
      %s22 = sphi 0, %s26
      %p23 = scmp.ge.s32.totalorder %s22, 4
      %s32 = sphi 0, %s34
      %s35 = sphi 0, %s32
      %s36 = sphi 0, %s35
      %s52 = sphi 0, %s36
      %s56 = sphi 0, %s56
      %s58 = sphi 0, %s56
      %s59 = sphi 0, %s58
      %s73 = sphi 0, %s59
      %s77 = sphi 0, %s77
      %s79 = sphi 0, %s77
      %s80 = sphi 0, %s79
      %s94 = sphi 0, %s80
      %s98 = sphi 0, %s98
      %s100 = sphi 0, %s98
      %s101 = sphi 0, %s100
      %s115 = sphi 0, %s101
      %s119 = sphi 0, %s119
      %s121 = sphi 0, %s119
      %s122 = sphi 0, %s121
      %s136 = sphi 0, %s122
      %s140 = sphi 0, %s140
      %s142 = sphi 0, %s140
      %s143 = sphi 0, %s142
      %s157 = sphi 0, %s143
      %s161 = sphi 0, %s161
      %s163 = sphi 0, %s161
      %s164 = sphi 0, %s163
      %s178 = sphi 0, %s164
      %s182 = sphi 0, %s182
      %s184 = sphi 0, %s182
      %s185 = sphi 0, %s184
      %s199 = sphi 0, %s185
      %s203 = sphi 0, %s203
      %s205 = sphi 0, %s203
      %s206 = sphi 0, %s205
      %s220 = sphi 0, %s206
      %s224 = sphi 0, %s224
      %s226 = sphi 0, %s224
      %s227 = sphi 0, %s226
      %s241 = sphi 0, %s227
      %s245 = sphi 0, %s245
      %s247 = sphi 0, %s245
      %s248 = sphi 0, %s247
      %s262 = sphi 0, %s248
      %s266 = sphi 0, %s266
      %s268 = sphi 0, %s266
      %s269 = sphi 0, %s268
      %s283 = sphi 0, %s269
      %s289 = sphi 0, %s291
      %s292 = sphi 0, %s289
      %s293 = sphi 0, %s292
      %s309 = sphi 0, %s293
    $region4: #{tpu_custom_call.1} parent=1 // loop_header_branch
      %25 = sbr.rel (%p23) target = $region8
    $region5: #{tpu_custom_call.1} parent=1 // loop_body
      %s27 = ssub.s32 %s22, 1
      %s28 = ssub.s32 %s22, 2
      %s29 = sadd.s32 %s22, 1
      %s30 = ssub.s32 %s22, %s29
      %p31 = scmp.eq.s32.totalorder %s30, 0
      %s33 = sadd.s32 %s32, 1
      %s34 = scalar_select %p31, %s32, %s33
      %p37 = pneg %p31
      %p38 = scmp.eq.s32.totalorder %s22, 1
      %p39 = por %p37, %p38
      %p40 = scmp.ne.s32.totalorder %s32, %s35
      %p41 = scmp.eq.s32.totalorder %s22, 0
      %p42 = por %p40, %p41
      %p43 = scmp.ne.s32.totalorder %s32, %s35
      %p44 = scmp.eq.s32.totalorder %s27, 1
      %p45 = por %p43, %p44
      %p46 = scmp.ne.s32.totalorder %s35, %s36
      %p47 = scmp.eq.s32.totalorder %s27, 0
      %p48 = por %p46, %p47
      %p49 = scmp.ne.s32.totalorder %s35, %s36
      %p50 = scmp.eq.s32.totalorder %s28, 1
      %p51 = por %p49, %p50
      %p53 = scmp.ne.s32.totalorder %s36, %s52
      %p54 = scmp.eq.s32.totalorder %s28, 0
      %p55 = por %p53, %p54
      %s57 = sadd.s32 %s56, 1
      %p60 = scmp.eq.s32.totalorder %s22, 1
      %p61 = scmp.ne.s32.totalorder %s56, %s58
      %p62 = scmp.eq.s32.totalorder %s22, 0
      %p63 = por %p61, %p62
      %p64 = scmp.ne.s32.totalorder %s56, %s58
      %p65 = scmp.eq.s32.totalorder %s27, 1
      %p66 = por %p64, %p65
      %p67 = scmp.ne.s32.totalorder %s58, %s59
      %p68 = scmp.eq.s32.totalorder %s27, 0
      %p69 = por %p67, %p68
      %p70 = scmp.ne.s32.totalorder %s58, %s59
      %p71 = scmp.eq.s32.totalorder %s28, 1
      %p72 = por %p70, %p71
      %p74 = scmp.ne.s32.totalorder %s59, %s73
      %p75 = scmp.eq.s32.totalorder %s28, 0
      %p76 = por %p74, %p75
      %s78 = sadd.s32 %s77, 1
      %p81 = scmp.eq.s32.totalorder %s22, 1
      %p82 = scmp.ne.s32.totalorder %s77, %s79
      %p83 = scmp.eq.s32.totalorder %s22, 0
      %p84 = por %p82, %p83
      %p85 = scmp.ne.s32.totalorder %s77, %s79
      %p86 = scmp.eq.s32.totalorder %s27, 1
      %p87 = por %p85, %p86
      %p88 = scmp.ne.s32.totalorder %s79, %s80
      %p89 = scmp.eq.s32.totalorder %s27, 0
      %p90 = por %p88, %p89
      %p91 = scmp.ne.s32.totalorder %s79, %s80
      %p92 = scmp.eq.s32.totalorder %s28, 1
      %p93 = por %p91, %p92
      %p95 = scmp.ne.s32.totalorder %s80, %s94
      %p96 = scmp.eq.s32.totalorder %s28, 0
      %p97 = por %p95, %p96
      %s99 = sadd.s32 %s98, 1
      %p102 = scmp.eq.s32.totalorder %s22, 1
      %p103 = scmp.ne.s32.totalorder %s98, %s100
      %p104 = scmp.eq.s32.totalorder %s22, 0
      %p105 = por %p103, %p104
      %p106 = scmp.ne.s32.totalorder %s98, %s100
      %p107 = scmp.eq.s32.totalorder %s27, 1
      %p108 = por %p106, %p107
      %p109 = scmp.ne.s32.totalorder %s100, %s101
      %p110 = scmp.eq.s32.totalorder %s27, 0
      %p111 = por %p109, %p110
      %p112 = scmp.ne.s32.totalorder %s100, %s101
      %p113 = scmp.eq.s32.totalorder %s28, 1
      %p114 = por %p112, %p113
      %p116 = scmp.ne.s32.totalorder %s101, %s115
      %p117 = scmp.eq.s32.totalorder %s28, 0
      %p118 = por %p116, %p117
      %s120 = sadd.s32 %s119, 1
      %p123 = scmp.eq.s32.totalorder %s22, 1
      %p124 = scmp.ne.s32.totalorder %s119, %s121
      %p125 = scmp.eq.s32.totalorder %s22, 0
      %p126 = por %p124, %p125
      %p127 = scmp.ne.s32.totalorder %s119, %s121
      %p128 = scmp.eq.s32.totalorder %s27, 1
      %p129 = por %p127, %p128
      %p130 = scmp.ne.s32.totalorder %s121, %s122
      %p131 = scmp.eq.s32.totalorder %s27, 0
      %p132 = por %p130, %p131
      %p133 = scmp.ne.s32.totalorder %s121, %s122
      %p134 = scmp.eq.s32.totalorder %s28, 1
      %p135 = por %p133, %p134
      %p137 = scmp.ne.s32.totalorder %s122, %s136
      %p138 = scmp.eq.s32.totalorder %s28, 0
      %p139 = por %p137, %p138
      %s141 = sadd.s32 %s140, 1
      %p144 = scmp.eq.s32.totalorder %s22, 1
      %p145 = scmp.ne.s32.totalorder %s140, %s142
      %p146 = scmp.eq.s32.totalorder %s22, 0
      %p147 = por %p145, %p146
      %p148 = scmp.ne.s32.totalorder %s140, %s142
      %p149 = scmp.eq.s32.totalorder %s27, 1
      %p150 = por %p148, %p149
      %p151 = scmp.ne.s32.totalorder %s142, %s143
      %p152 = scmp.eq.s32.totalorder %s27, 0
      %p153 = por %p151, %p152
      %p154 = scmp.ne.s32.totalorder %s142, %s143
      %p155 = scmp.eq.s32.totalorder %s28, 1
      %p156 = por %p154, %p155
      %p158 = scmp.ne.s32.totalorder %s143, %s157
      %p159 = scmp.eq.s32.totalorder %s28, 0
      %p160 = por %p158, %p159
      %s162 = sadd.s32 %s161, 1
      %p165 = scmp.eq.s32.totalorder %s22, 1
      %p166 = scmp.ne.s32.totalorder %s161, %s163
      %p167 = scmp.eq.s32.totalorder %s22, 0
      %p168 = por %p166, %p167
      %p169 = scmp.ne.s32.totalorder %s161, %s163
      %p170 = scmp.eq.s32.totalorder %s27, 1
      %p171 = por %p169, %p170
      %p172 = scmp.ne.s32.totalorder %s163, %s164
      %p173 = scmp.eq.s32.totalorder %s27, 0
      %p174 = por %p172, %p173
      %p175 = scmp.ne.s32.totalorder %s163, %s164
      %p176 = scmp.eq.s32.totalorder %s28, 1
      %p177 = por %p175, %p176
      %p179 = scmp.ne.s32.totalorder %s164, %s178
      %p180 = scmp.eq.s32.totalorder %s28, 0
      %p181 = por %p179, %p180
      %s183 = sadd.s32 %s182, 1
      %p186 = scmp.eq.s32.totalorder %s22, 1
      %p187 = scmp.ne.s32.totalorder %s182, %s184
      %p188 = scmp.eq.s32.totalorder %s22, 0
      %p189 = por %p187, %p188
      %p190 = scmp.ne.s32.totalorder %s182, %s184
      %p191 = scmp.eq.s32.totalorder %s27, 1
      %p192 = por %p190, %p191
      %p193 = scmp.ne.s32.totalorder %s184, %s185
      %p194 = scmp.eq.s32.totalorder %s27, 0
      %p195 = por %p193, %p194
      %p196 = scmp.ne.s32.totalorder %s184, %s185
      %p197 = scmp.eq.s32.totalorder %s28, 1
      %p198 = por %p196, %p197
      %p200 = scmp.ne.s32.totalorder %s185, %s199
      %p201 = scmp.eq.s32.totalorder %s28, 0
      %p202 = por %p200, %p201
      %s204 = sadd.s32 %s203, 1
      %p207 = scmp.eq.s32.totalorder %s22, 1
      %p208 = scmp.ne.s32.totalorder %s203, %s205
      %p209 = scmp.eq.s32.totalorder %s22, 0
      %p210 = por %p208, %p209
      %p211 = scmp.ne.s32.totalorder %s203, %s205
      %p212 = scmp.eq.s32.totalorder %s27, 1
      %p213 = por %p211, %p212
      %p214 = scmp.ne.s32.totalorder %s205, %s206
      %p215 = scmp.eq.s32.totalorder %s27, 0
      %p216 = por %p214, %p215
      %p217 = scmp.ne.s32.totalorder %s205, %s206
      %p218 = scmp.eq.s32.totalorder %s28, 1
      %p219 = por %p217, %p218
      %p221 = scmp.ne.s32.totalorder %s206, %s220
      %p222 = scmp.eq.s32.totalorder %s28, 0
      %p223 = por %p221, %p222
      %s225 = sadd.s32 %s224, 1
      %p228 = scmp.eq.s32.totalorder %s22, 1
      %p229 = scmp.ne.s32.totalorder %s224, %s226
      %p230 = scmp.eq.s32.totalorder %s22, 0
      %p231 = por %p229, %p230
      %p232 = scmp.ne.s32.totalorder %s224, %s226
      %p233 = scmp.eq.s32.totalorder %s27, 1
      %p234 = por %p232, %p233
      %p235 = scmp.ne.s32.totalorder %s226, %s227
      %p236 = scmp.eq.s32.totalorder %s27, 0
      %p237 = por %p235, %p236
      %p238 = scmp.ne.s32.totalorder %s226, %s227
      %p239 = scmp.eq.s32.totalorder %s28, 1
      %p240 = por %p238, %p239
      %p242 = scmp.ne.s32.totalorder %s227, %s241
      %p243 = scmp.eq.s32.totalorder %s28, 0
      %p244 = por %p242, %p243
      %s246 = sadd.s32 %s245, 1
      %p249 = scmp.eq.s32.totalorder %s22, 1
      %p250 = scmp.ne.s32.totalorder %s245, %s247
      %p251 = scmp.eq.s32.totalorder %s22, 0
      %p252 = por %p250, %p251
      %p253 = scmp.ne.s32.totalorder %s245, %s247
      %p254 = scmp.eq.s32.totalorder %s27, 1
      %p255 = por %p253, %p254
      %p256 = scmp.ne.s32.totalorder %s247, %s248
      %p257 = scmp.eq.s32.totalorder %s27, 0
      %p258 = por %p256, %p257
      %p259 = scmp.ne.s32.totalorder %s247, %s248
      %p260 = scmp.eq.s32.totalorder %s28, 1
      %p261 = por %p259, %p260
      %p263 = scmp.ne.s32.totalorder %s248, %s262
      %p264 = scmp.eq.s32.totalorder %s28, 0
      %p265 = por %p263, %p264
      %s267 = sadd.s32 %s266, 1
      %p270 = scmp.eq.s32.totalorder %s22, 1
      %p271 = scmp.ne.s32.totalorder %s266, %s268
      %p272 = scmp.eq.s32.totalorder %s22, 0
      %p273 = por %p271, %p272
      %p274 = scmp.ne.s32.totalorder %s266, %s268
      %p275 = scmp.eq.s32.totalorder %s27, 1
      %p276 = por %p274, %p275
      %p277 = scmp.ne.s32.totalorder %s268, %s269
      %p278 = scmp.eq.s32.totalorder %s27, 0
      %p279 = por %p277, %p278
      %p280 = scmp.ne.s32.totalorder %s268, %s269
      %p281 = scmp.eq.s32.totalorder %s28, 1
      %p282 = por %p280, %p281
      %p284 = scmp.ne.s32.totalorder %s269, %s283
      %p285 = scmp.eq.s32.totalorder %s28, 0
      %p286 = por %p284, %p285
      %s287 = ssub.s32 %s22, %s29
      %p288 = scmp.eq.s32.totalorder %s287, 0
      %s290 = sadd.s32 %s289, 1
      %s291 = scalar_select %p288, %s289, %s290
      %p294 = pneg %p288
      %p295 = scmp.eq.s32.totalorder %s22, 1
      %p296 = por %p294, %p295
      %p297 = scmp.ne.s32.totalorder %s289, %s292
      %p298 = scmp.eq.s32.totalorder %s22, 0
      %p299 = por %p297, %p298
      %p300 = scmp.ne.s32.totalorder %s289, %s292
      %p301 = scmp.eq.s32.totalorder %s27, 1
      %p302 = por %p300, %p301
      %p303 = scmp.ne.s32.totalorder %s292, %s293
      %p304 = scmp.eq.s32.totalorder %s27, 0
      %p305 = por %p303, %p304
      %p306 = scmp.ne.s32.totalorder %s292, %s293
      %p307 = scmp.eq.s32.totalorder %s28, 1
      %p308 = por %p306, %p307
      %p310 = scmp.ne.s32.totalorder %s293, %s309
      %p311 = scmp.eq.s32.totalorder %s28, 0
      %p312 = por %p310, %p311
      %p313 = scmp.le.s32.totalorder 1, %s22
      %p314 = scmp.lt.s32.totalorder %s22, 3
      %p315 = pnand %p313, %p314
      %p316 = pneg %p315
      // Predicated region
      $region9: #{tpu_custom_call.1} parent=5 // pred_check
        _
      $region10: #{tpu_custom_call.1} parent=5 // pred_check_branch
        %318 = sbr.rel (%p315) target = $region12
      $region11: #{tpu_custom_call.1} parent=5 // pred_region
        %s319 = ssub.s32 %s22, 1
        // Predicated region
        $region13: #{tpu_custom_call.1} parent=11 // pred_check
          %p320 = pneg %p69
        $region14: #{tpu_custom_call.1} parent=11 // pred_check_branch
          %322 = sbr.rel (%p320) target = $region16
        $region15: #{tpu_custom_call.1} parent=11 // pred_region
          _
        $region16: #{tpu_custom_call.1} parent=11 // pred_fallthru
          _
        // Predicated region
        $region17: #{tpu_custom_call.1} parent=11 // pred_check
          %p323 = pneg %p90
        $region18: #{tpu_custom_call.1} parent=11 // pred_check_branch
          %325 = sbr.rel (%p323) target = $region20
        $region19: #{tpu_custom_call.1} parent=11 // pred_region
          _
        $region20: #{tpu_custom_call.1} parent=11 // pred_fallthru
          _
        // Predicated region
        $region21: #{tpu_custom_call.1} parent=11 // pred_check
          %p326 = pneg %p111
        $region22: #{tpu_custom_call.1} parent=11 // pred_check_branch
          %328 = sbr.rel (%p326) target = $region24
        $region23: #{tpu_custom_call.1} parent=11 // pred_region
          _
        $region24: #{tpu_custom_call.1} parent=11 // pred_fallthru
          _
        // Predicated region
        $region25: #{tpu_custom_call.1} parent=11 // pred_check
          %p329 = pneg %p132
        $region26: #{tpu_custom_call.1} parent=11 // pred_check_branch
          %331 = sbr.rel (%p329) target = $region28
        $region27: #{tpu_custom_call.1} parent=11 // pred_region
          _
        $region28: #{tpu_custom_call.1} parent=11 // pred_fallthru
          _
        // Predicated region
        $region29: #{tpu_custom_call.1} parent=11 // pred_check
          %p332 = pneg %p153
        $region30: #{tpu_custom_call.1} parent=11 // pred_check_branch
          %334 = sbr.rel (%p332) target = $region32
        $region31: #{tpu_custom_call.1} parent=11 // pred_region
          _
        $region32: #{tpu_custom_call.1} parent=11 // pred_fallthru
          _
        // Predicated region
        $region33: #{tpu_custom_call.1} parent=11 // pred_check
          %p335 = pneg %p174
        $region34: #{tpu_custom_call.1} parent=11 // pred_check_branch
          %337 = sbr.rel (%p335) target = $region36
        $region35: #{tpu_custom_call.1} parent=11 // pred_region
          _
        $region36: #{tpu_custom_call.1} parent=11 // pred_fallthru
          _
        // Predicated region
        $region37: #{tpu_custom_call.1} parent=11 // pred_check
          %p338 = pneg %p195
        $region38: #{tpu_custom_call.1} parent=11 // pred_check_branch
          %340 = sbr.rel (%p338) target = $region40
        $region39: #{tpu_custom_call.1} parent=11 // pred_region
          _
        $region40: #{tpu_custom_call.1} parent=11 // pred_fallthru
          _
        // Predicated region
        $region41: #{tpu_custom_call.1} parent=11 // pred_check
          %p341 = pneg %p216
        $region42: #{tpu_custom_call.1} parent=11 // pred_check_branch
          %343 = sbr.rel (%p341) target = $region44
        $region43: #{tpu_custom_call.1} parent=11 // pred_region
          _
        $region44: #{tpu_custom_call.1} parent=11 // pred_fallthru
          _
        // Predicated region
        $region45: #{tpu_custom_call.1} parent=11 // pred_check
          %p344 = pneg %p237
        $region46: #{tpu_custom_call.1} parent=11 // pred_check_branch
          %346 = sbr.rel (%p344) target = $region48
        $region47: #{tpu_custom_call.1} parent=11 // pred_region
          %s348 = ssub.s32 9216, 9216
          %349 = vsyncadd [#allocation3], %s348
          %s350 = sshll.u32 [#allocation2], 4
          %s351 = int_to_ptr.vmem [resolvable:$true] %s350
          %356 = dma.hbm_to_vmem [thread:$0]  %s9, 9216, %s351, [#allocation3], 128, 128, 8
        $region48: #{tpu_custom_call.1} parent=11 // pred_fallthru
          _
        // Predicated region
        $region49: #{tpu_custom_call.1} parent=11 // pred_check
          %p357 = pneg %p258
        $region50: #{tpu_custom_call.1} parent=11 // pred_check_branch
          %359 = sbr.rel (%p357) target = $region52
        $region51: #{tpu_custom_call.1} parent=11 // pred_region
          _
        $region52: #{tpu_custom_call.1} parent=11 // pred_fallthru
          _
        // Predicated region
        $region53: #{tpu_custom_call.1} parent=11 // pred_check
          %p360 = pneg %p279
        $region54: #{tpu_custom_call.1} parent=11 // pred_check_branch
          %362 = sbr.rel (%p360) target = $region56
        $region55: #{tpu_custom_call.1} parent=11 // pred_region
          _
        $region56: #{tpu_custom_call.1} parent=11 // pred_fallthru
          _
      $region12: #{tpu_custom_call.1} parent=5 // pred_fallthru
        _
      %p363 = scmp.lt.s32.totalorder %s22, 2
      // Predicated region
      $region57: #{tpu_custom_call.1} parent=5 // pred_check
        %p364 = pneg %p363
      $region58: #{tpu_custom_call.1} parent=5 // pred_check_branch
        %366 = sbr.rel (%p364) target = $region60
      $region59: #{tpu_custom_call.1} parent=5 // pred_region
        // Predicated region
        $region61: #{tpu_custom_call.1} parent=59 // pred_check
          %p367 = pneg %p42
        $region62: #{tpu_custom_call.1} parent=59 // pred_check_branch
          %369 = sbr.rel (%p367) target = $region64
        $region63: #{tpu_custom_call.1} parent=59 // pred_region
          %s370 = smul.u32 4, %s22
          %p371 = scmp.lt.s32.totalorder %s370, 7
          %s372 = scalar_select %p371, %s370, 7
          %s373 = smul.addr %s372, 4
          %s374 = scalar_lea.vmem %s0, %s373
          %s375 = smul.u32 4, %s22
        $region64: #{tpu_custom_call.1} parent=59 // pred_fallthru
          _
      $region60: #{tpu_custom_call.1} parent=5 // pred_fallthru
        _
      %p376 = scmp.le.s32.totalorder 1, %s22
      %p377 = scmp.lt.s32.totalorder %s22, 3
      %p378 = pnand %p376, %p377
      %p379 = pneg %p378
      // Predicated region
      $region65: #{tpu_custom_call.1} parent=5 // pred_check
        _
      $region66: #{tpu_custom_call.1} parent=5 // pred_check_branch
        %381 = sbr.rel (%p378) target = $region68
      $region67: #{tpu_custom_call.1} parent=5 // pred_region
        %s382 = ssub.s32 %s22, 1
        // Predicated region
        $region69: #{tpu_custom_call.1} parent=67 // pred_check
          %p383 = pneg %p237
        $region70: #{tpu_custom_call.1} parent=67 // pred_check_branch
          %385 = sbr.rel (%p383) target = $region72
        $region71: #{tpu_custom_call.1} parent=67 // pred_region
          %386 = dma.done [#allocation3], 9216
        $region72: #{tpu_custom_call.1} parent=67 // pred_fallthru
          _
        %s387 = smul.u32 4, %s27
        %p388 = scmp.lt.s32.totalorder %s387, 7
        %s389 = scalar_select %p388, %s387, 7
        %s390 = smul.addr %s389, 4
        %s391 = scalar_lea.vmem %s0, %s390
        %p392 = pneg %p48
        %p393 = pneg %p45
        %p394 = pneg %p69
        %p395 = pneg %p66
        %p396 = pneg %p90
        %p397 = pneg %p87
        %p398 = pneg %p111
        %p399 = pneg %p108
        %p400 = pneg %p132
        %p401 = pneg %p129
        %p402 = pneg %p153
        %p403 = pneg %p150
        %p404 = pneg %p174
        %p405 = pneg %p171
        %p406 = pneg %p195
        %p407 = pneg %p192
        %p408 = pneg %p216
        %p409 = pneg %p213
        %p410 = pneg %p237
        %p411 = pneg %p234
        %p412 = pneg %p258
        %p413 = pneg %p255
        %p414 = pneg %p279
        %p415 = pneg %p276
        %p416 = pneg %p305
        %p417 = pneg %p302
        %s418 = sand.u32 %s292, 1
        %s419 = scalar_lea.sflag [#allocation4], %s418
        %s420 = sand.u32 %s292, 1
        %s421 = smul.addr %s420, 16
        %s422 = scalar_lea.vmem [#allocation5], %s421
        %s423 = smul.u32 4, %s27
        %p424 = scmp.lt.s32.totalorder %s423, 7
        %s425 = scalar_select %p424, %s423, 7
        %s426 = smul.addr %s425, 4
        %s427 = scalar_lea.vmem %s0, %s426
        %s428 = smul.u32 4, %s27
        %s429 = smul.u32 4, %s27
        %v430 = vld [vmem:[%s1] sm:$0xf]
        %v431 = vld [vmem:[%s2] sm:$0xf]
        %v432 = vld [vmem:[%s3] sm:$0xf]
        %v433 = vld [vmem:[%s10] sm:$0xf]
        %v434 = vld [vmem:[%s4] sm:$0xf]
        %v435 = vld [vmem:[%s5] sm:$0xf]
        %v436 = vld [vmem:[%s6] sm:$0xf]
        %v437 = vld [vmem:[%s8] sm:$0xf]
        %v438 = vld [vmem:[%s11] sm:$0xf]
        %v439 = vld [vmem:[%s427] sm:$0xf]
        %441 = vset.pattern.permute.xlu0 0
        %442 = vperm.xlu0 %441, %v434
        %v443 = vpop.permute.xlu0 %442
        %vm445 = vcmask 31744
        %v447 = vsel %vm445, %v430, 0
        %vm449 = vcmask 1043456
        %v451 = vsel %vm449, %v439, 0
        %453 = vmatprep.subr.mxu0 0.0
        %454 = vmatpush1.msra.mxu0 %v451
        %455 = vmatprep.subr.mxu0 0.0
        %456 = vmatpush1.msra.mxu0 0.0
        %457 = vmatprep.subr.mxu0 0.0
        %458 = vmatpush1.msra.mxu0 0.0
        %459 = vmatprep.subr.mxu0 0.0
        %460 = vmatpush1.msra.mxu0 0.0
        %461 = vmatprep.subr.mxu0 0.0
        %462 = vmatpush1.msra.mxu0 0.0
        %463 = vmatprep.subr.mxu0 0.0
        %464 = vmatpush1.msra.mxu0 0.0
        %465 = vmatprep.subr.mxu0 0.0
        %466 = vmatpush1.msra.mxu0 0.0
        %467 = vmatprep.subr.mxu0 0.0
        %468 = vmatpush1.msra.mxu0 0.0
        %469 = vmatprep.subr.mxu0 0.0
        %470 = vmatpush1.msra.mxu0 0.0
        %471 = vmatprep.subr.mxu0 0.0
        %472 = vmatpush1.msra.mxu0 0.0
        %473 = vmatprep.subr.mxu0 0.0
        %474 = vmatpush1.msra.mxu0 0.0
        %475 = vmatprep.subr.mxu0 0.0
        %476 = vmatpush1.msra.mxu0 0.0
        %477 = vmatprep.subr.mxu0 0.0
        %478 = vmatpush1.msra.mxu0 0.0
        %479 = vmatprep.subr.mxu0 0.0
        %480 = vmatpush1.msra.mxu0 0.0
        %481 = vmatprep.subr.mxu0 0.0
        %482 = vmatpush1.msra.mxu0 0.0
        %483 = vmatprep.subr.mxu0 0.0
        %484 = vmatpush1.msra.mxu0 0.0
        %485 = vmatprep.subr.mxu0 0.0
        %486 = vmatpush1.msra.mxu0 0.0
        %487 = vmatprep.subr.mxu0 0.0
        %488 = vmatpush1.msra.mxu0 0.0
        %489 = vmatprep.subr.mxu0 0.0
        %490 = vmatpush1.msra.mxu0 0.0
        %491 = vmatprep.subr.mxu0 0.0
        %492 = vmatpush1.msra.mxu0 0.0
        %493 = vmatprep.subr.mxu0 0.0
        %494 = vmatpush1.msra.mxu0 0.0
        %495 = vmatprep.subr.mxu0 0.0
        %496 = vmatpush1.msra.mxu0 0.0
        %497 = vmatprep.subr.mxu0 0.0
        %498 = vmatpush1.msra.mxu0 0.0
        %499 = vmatprep.subr.mxu0 0.0
        %500 = vmatpush1.msra.mxu0 0.0
        %501 = vmatprep.subr.mxu0 0.0
        %502 = vmatpush1.msra.mxu0 0.0
        %503 = vmatprep.subr.mxu0 0.0
        %504 = vmatpush1.msra.mxu0 0.0
        %505 = vmatprep.subr.mxu0 0.0
        %506 = vmatpush1.msra.mxu0 0.0
        %507 = vmatprep.subr.mxu0 0.0
        %508 = vmatpush1.msra.mxu0 0.0
        %509 = vmatprep.subr.mxu0 0.0
        %510 = vmatpush1.msra.mxu0 0.0
        %511 = vmatprep.subr.mxu0 0.0
        %512 = vmatpush1.msra.mxu0 0.0
        %513 = vmatprep.subr.mxu0 0.0
        %514 = vmatpush1.msra.mxu0 0.0
        %515 = vmatprep.subr.mxu0 0.0
        %516 = vmatpush1.msra.mxu0 0.0
        %517 = vmatprep.mubr.f32.mxu0 0.0
        %518 = vmatmul.mubr.f32.gmra.mrb[0].mxu0 %v447
        %v519 = vpop.f32.mrb[0].mxu0
        %v520 = vadd.f32 %v443, %v519
        %v521 = vpop.f32.mrb[0].mxu0
        %522 = vdwg.mxu0
        %524 = vset.pattern.permute.xlu0 0
        %525 = vperm.xlu0 %524, %v435
        %v526 = vpop.permute.xlu0 %525
        %v529 = vsel %vm445, %v431, 0
        %531 = vmatprep.subr.mxu0 0.0
        %532 = vmatpush1.msra.mxu0 %v451
        %533 = vmatprep.subr.mxu0 0.0
        %534 = vmatpush1.msra.mxu0 0.0
        %535 = vmatprep.subr.mxu0 0.0
        %536 = vmatpush1.msra.mxu0 0.0
        %537 = vmatprep.subr.mxu0 0.0
        %538 = vmatpush1.msra.mxu0 0.0
        %539 = vmatprep.subr.mxu0 0.0
        %540 = vmatpush1.msra.mxu0 0.0
        %541 = vmatprep.subr.mxu0 0.0
        %542 = vmatpush1.msra.mxu0 0.0
        %543 = vmatprep.subr.mxu0 0.0
        %544 = vmatpush1.msra.mxu0 0.0
        %545 = vmatprep.subr.mxu0 0.0
        %546 = vmatpush1.msra.mxu0 0.0
        %547 = vmatprep.subr.mxu0 0.0
        %548 = vmatpush1.msra.mxu0 0.0
        %549 = vmatprep.subr.mxu0 0.0
        %550 = vmatpush1.msra.mxu0 0.0
        %551 = vmatprep.subr.mxu0 0.0
        %552 = vmatpush1.msra.mxu0 0.0
        %553 = vmatprep.subr.mxu0 0.0
        %554 = vmatpush1.msra.mxu0 0.0
        %555 = vmatprep.subr.mxu0 0.0
        %556 = vmatpush1.msra.mxu0 0.0
        %557 = vmatprep.subr.mxu0 0.0
        %558 = vmatpush1.msra.mxu0 0.0
        %559 = vmatprep.subr.mxu0 0.0
        %560 = vmatpush1.msra.mxu0 0.0
        %561 = vmatprep.subr.mxu0 0.0
        %562 = vmatpush1.msra.mxu0 0.0
        %563 = vmatprep.subr.mxu0 0.0
        %564 = vmatpush1.msra.mxu0 0.0
        %565 = vmatprep.subr.mxu0 0.0
        %566 = vmatpush1.msra.mxu0 0.0
        %567 = vmatprep.subr.mxu0 0.0
        %568 = vmatpush1.msra.mxu0 0.0
        %569 = vmatprep.subr.mxu0 0.0
        %570 = vmatpush1.msra.mxu0 0.0
        %571 = vmatprep.subr.mxu0 0.0
        %572 = vmatpush1.msra.mxu0 0.0
        %573 = vmatprep.subr.mxu0 0.0
        %574 = vmatpush1.msra.mxu0 0.0
        %575 = vmatprep.subr.mxu0 0.0
        %576 = vmatpush1.msra.mxu0 0.0
        %577 = vmatprep.subr.mxu0 0.0
        %578 = vmatpush1.msra.mxu0 0.0
        %579 = vmatprep.subr.mxu0 0.0
        %580 = vmatpush1.msra.mxu0 0.0
        %581 = vmatprep.subr.mxu0 0.0
        %582 = vmatpush1.msra.mxu0 0.0
        %583 = vmatprep.subr.mxu0 0.0
        %584 = vmatpush1.msra.mxu0 0.0
        %585 = vmatprep.subr.mxu0 0.0
        %586 = vmatpush1.msra.mxu0 0.0
        %587 = vmatprep.subr.mxu0 0.0
        %588 = vmatpush1.msra.mxu0 0.0
        %589 = vmatprep.subr.mxu0 0.0
        %590 = vmatpush1.msra.mxu0 0.0
        %591 = vmatprep.subr.mxu0 0.0
        %592 = vmatpush1.msra.mxu0 0.0
        %593 = vmatprep.subr.mxu0 0.0
        %594 = vmatpush1.msra.mxu0 0.0
        %595 = vmatprep.mubr.f32.mxu0 0.0
        %596 = vmatmul.mubr.f32.gmra.mrb[0].mxu0 %v529
        %v597 = vpop.f32.mrb[0].mxu0
        %v598 = vadd.f32 %v526, %v597
        %v599 = vpop.f32.mrb[0].mxu0
        %600 = vdwg.mxu0
        %602 = vset.pattern.permute.xlu0 0
        %603 = vperm.xlu0 %602, %v436
        %v604 = vpop.permute.xlu0 %603
        %v607 = vsel %vm445, %v432, 0
        %609 = vmatprep.subr.mxu0 0.0
        %610 = vmatpush1.msra.mxu0 %v451
        %611 = vmatprep.subr.mxu0 0.0
        %612 = vmatpush1.msra.mxu0 0.0
        %613 = vmatprep.subr.mxu0 0.0
        %614 = vmatpush1.msra.mxu0 0.0
        %615 = vmatprep.subr.mxu0 0.0
        %616 = vmatpush1.msra.mxu0 0.0
        %617 = vmatprep.subr.mxu0 0.0
        %618 = vmatpush1.msra.mxu0 0.0
        %619 = vmatprep.subr.mxu0 0.0
        %620 = vmatpush1.msra.mxu0 0.0
        %621 = vmatprep.subr.mxu0 0.0
        %622 = vmatpush1.msra.mxu0 0.0
        %623 = vmatprep.subr.mxu0 0.0
        %624 = vmatpush1.msra.mxu0 0.0
        %625 = vmatprep.subr.mxu0 0.0
        %626 = vmatpush1.msra.mxu0 0.0
        %627 = vmatprep.subr.mxu0 0.0
        %628 = vmatpush1.msra.mxu0 0.0
        %629 = vmatprep.subr.mxu0 0.0
        %630 = vmatpush1.msra.mxu0 0.0
        %631 = vmatprep.subr.mxu0 0.0
        %632 = vmatpush1.msra.mxu0 0.0
        %633 = vmatprep.subr.mxu0 0.0
        %634 = vmatpush1.msra.mxu0 0.0
        %635 = vmatprep.subr.mxu0 0.0
        %636 = vmatpush1.msra.mxu0 0.0
        %637 = vmatprep.subr.mxu0 0.0
        %638 = vmatpush1.msra.mxu0 0.0
        %639 = vmatprep.subr.mxu0 0.0
        %640 = vmatpush1.msra.mxu0 0.0
        %641 = vmatprep.subr.mxu0 0.0
        %642 = vmatpush1.msra.mxu0 0.0
        %643 = vmatprep.subr.mxu0 0.0
        %644 = vmatpush1.msra.mxu0 0.0
        %645 = vmatprep.subr.mxu0 0.0
        %646 = vmatpush1.msra.mxu0 0.0
        %647 = vmatprep.subr.mxu0 0.0
        %648 = vmatpush1.msra.mxu0 0.0
        %649 = vmatprep.subr.mxu0 0.0
        %650 = vmatpush1.msra.mxu0 0.0
        %651 = vmatprep.subr.mxu0 0.0
        %652 = vmatpush1.msra.mxu0 0.0
        %653 = vmatprep.subr.mxu0 0.0
        %654 = vmatpush1.msra.mxu0 0.0
        %655 = vmatprep.subr.mxu0 0.0
        %656 = vmatpush1.msra.mxu0 0.0
        %657 = vmatprep.subr.mxu0 0.0
        %658 = vmatpush1.msra.mxu0 0.0
        %659 = vmatprep.subr.mxu0 0.0
        %660 = vmatpush1.msra.mxu0 0.0
        %661 = vmatprep.subr.mxu0 0.0
        %662 = vmatpush1.msra.mxu0 0.0
        %663 = vmatprep.subr.mxu0 0.0
        %664 = vmatpush1.msra.mxu0 0.0
        %665 = vmatprep.subr.mxu0 0.0
        %666 = vmatpush1.msra.mxu0 0.0
        %667 = vmatprep.subr.mxu0 0.0
        %668 = vmatpush1.msra.mxu0 0.0
        %669 = vmatprep.subr.mxu0 0.0
        %670 = vmatpush1.msra.mxu0 0.0
        %671 = vmatprep.subr.mxu0 0.0
        %672 = vmatpush1.msra.mxu0 0.0
        %673 = vmatprep.mubr.f32.mxu0 0.0
        %674 = vmatmul.mubr.f32.gmra.mrb[0].mxu0 %v607
        %v675 = vpop.f32.mrb[0].mxu0
        %v676 = vadd.f32 %v604, %v675
        %v677 = vpop.f32.mrb[0].mxu0
        %678 = vdwg.mxu0
        %679 = vxpose.xlu0.b32.start [1/16] %v520, 128
        %680 = vxpose.xlu0.b32.cont [2/16] 0.0, 128
        %681 = vxpose.xlu0.b32.cont [3/16] 0.0, 128
        %682 = vxpose.xlu0.b32.cont [4/16] 0.0, 128
        %683 = vxpose.xlu0.b32.cont [5/16] 0.0, 128
        %684 = vxpose.xlu0.b32.cont [6/16] 0.0, 128
        %685 = vxpose.xlu0.b32.cont [7/16] 0.0, 128
        %686 = vxpose.xlu0.b32.cont [8/16] 0.0, 128
        %687 = vxpose.xlu0.b32.cont [9/16] 0.0, 128
        %688 = vxpose.xlu0.b32.cont [10/16] 0.0, 128
        %689 = vxpose.xlu0.b32.cont [11/16] 0.0, 128
        %690 = vxpose.xlu0.b32.cont [12/16] 0.0, 128
        %691 = vxpose.xlu0.b32.cont [13/16] 0.0, 128
        %692 = vxpose.xlu0.b32.cont [14/16] 0.0, 128
        %693 = vxpose.xlu0.b32.cont [15/16] 0.0, 128
        %694 = vxpose.xlu0.b32.end [16/16] 0.0, 128
        %v695 = vpop.trf.xlu0
        %v696 = vpop.trf.xlu0
        %v697 = vpop.trf.xlu0
        %v698 = vpop.trf.xlu0
        %v699 = vpop.trf.xlu0
        %v700 = vpop.trf.xlu0
        %v701 = vpop.trf.xlu0
        %v702 = vpop.trf.xlu0
        %v703 = vpop.trf.xlu0
        %v704 = vpop.trf.xlu0
        %v705 = vpop.trf.xlu0
        %v706 = vpop.trf.xlu0
        %v707 = vpop.trf.xlu0
        %v708 = vpop.trf.xlu0
        %v709 = vpop.trf.xlu0
        %v710 = vpop.trf.xlu0
        %v712 = vsel %vm445, %v695, 0
        %v715 = vsel %vm445, %v696, 0
        %v718 = vsel %vm445, %v697, 0
        %v721 = vsel %vm445, %v698, 0
        %v724 = vsel %vm445, %v699, 0
        %v727 = vsel %vm445, %v700, 0
        %v730 = vsel %vm445, %v701, 0
        %v733 = vsel %vm445, %v702, 0
        %v736 = vsel %vm449, %v598, 0
        %738 = vmatprep.subr.mxu0 0.0
        %739 = vmatpush1.msra.mxu0 %v736
        %740 = vmatprep.subr.mxu0 0.0
        %741 = vmatpush1.msra.mxu0 0.0
        %742 = vmatprep.subr.mxu0 0.0
        %743 = vmatpush1.msra.mxu0 0.0
        %744 = vmatprep.subr.mxu0 0.0
        %745 = vmatpush1.msra.mxu0 0.0
        %746 = vmatprep.subr.mxu0 0.0
        %747 = vmatpush1.msra.mxu0 0.0
        %748 = vmatprep.subr.mxu0 0.0
        %749 = vmatpush1.msra.mxu0 0.0
        %750 = vmatprep.subr.mxu0 0.0
        %751 = vmatpush1.msra.mxu0 0.0
        %752 = vmatprep.subr.mxu0 0.0
        %753 = vmatpush1.msra.mxu0 0.0
        %754 = vmatprep.subr.mxu0 0.0
        %755 = vmatpush1.msra.mxu0 0.0
        %756 = vmatprep.subr.mxu0 0.0
        %757 = vmatpush1.msra.mxu0 0.0
        %758 = vmatprep.subr.mxu0 0.0
        %759 = vmatpush1.msra.mxu0 0.0
        %760 = vmatprep.subr.mxu0 0.0
        %761 = vmatpush1.msra.mxu0 0.0
        %762 = vmatprep.subr.mxu0 0.0
        %763 = vmatpush1.msra.mxu0 0.0
        %764 = vmatprep.subr.mxu0 0.0
        %765 = vmatpush1.msra.mxu0 0.0
        %766 = vmatprep.subr.mxu0 0.0
        %767 = vmatpush1.msra.mxu0 0.0
        %768 = vmatprep.subr.mxu0 0.0
        %769 = vmatpush1.msra.mxu0 0.0
        %770 = vmatprep.subr.mxu0 0.0
        %771 = vmatpush1.msra.mxu0 0.0
        %772 = vmatprep.subr.mxu0 0.0
        %773 = vmatpush1.msra.mxu0 0.0
        %774 = vmatprep.subr.mxu0 0.0
        %775 = vmatpush1.msra.mxu0 0.0
        %776 = vmatprep.subr.mxu0 0.0
        %777 = vmatpush1.msra.mxu0 0.0
        %778 = vmatprep.subr.mxu0 0.0
        %779 = vmatpush1.msra.mxu0 0.0
        %780 = vmatprep.subr.mxu0 0.0
        %781 = vmatpush1.msra.mxu0 0.0
        %782 = vmatprep.subr.mxu0 0.0
        %783 = vmatpush1.msra.mxu0 0.0
        %784 = vmatprep.subr.mxu0 0.0
        %785 = vmatpush1.msra.mxu0 0.0
        %786 = vmatprep.subr.mxu0 0.0
        %787 = vmatpush1.msra.mxu0 0.0
        %788 = vmatprep.subr.mxu0 0.0
        %789 = vmatpush1.msra.mxu0 0.0
        %790 = vmatprep.subr.mxu0 0.0
        %791 = vmatpush1.msra.mxu0 0.0
        %792 = vmatprep.subr.mxu0 0.0
        %793 = vmatpush1.msra.mxu0 0.0
        %794 = vmatprep.subr.mxu0 0.0
        %795 = vmatpush1.msra.mxu0 0.0
        %796 = vmatprep.subr.mxu0 0.0
        %797 = vmatpush1.msra.mxu0 0.0
        %798 = vmatprep.subr.mxu0 0.0
        %799 = vmatpush1.msra.mxu0 0.0
        %800 = vmatprep.subr.mxu0 0.0
        %801 = vmatpush1.msra.mxu0 0.0
        %802 = vmatprep.mubr.f32.mxu0 0.0
        %803 = vmatmul.mubr.f32.gmra.mrb[0].mxu0 %v712
        %v804 = vpop.f32.mrb[0].mxu0
        %v805 = vadd.f32 0.0, %v804
        %v806 = vpop.f32.mrb[0].mxu0
        %807 = vmatprep.mubr.f32.mxu0 0.0
        %808 = vmatmul.mubr.f32.gmra.mrb[0].mxu0 %v715
        %v809 = vpop.f32.mrb[0].mxu0
        %v810 = vadd.f32 0.0, %v809
        %v811 = vpop.f32.mrb[0].mxu0
        %812 = vmatprep.mubr.f32.mxu0 0.0
        %813 = vmatmul.mubr.f32.gmra.mrb[0].mxu0 %v718
        %v814 = vpop.f32.mrb[0].mxu0
        %v815 = vadd.f32 0.0, %v814
        %v816 = vpop.f32.mrb[0].mxu0
        %817 = vmatprep.mubr.f32.mxu0 0.0
        %818 = vmatmul.mubr.f32.gmra.mrb[0].mxu0 %v721
        %v819 = vpop.f32.mrb[0].mxu0
        %v820 = vadd.f32 0.0, %v819
        %v821 = vpop.f32.mrb[0].mxu0
        %822 = vmatprep.mubr.f32.mxu0 0.0
        %823 = vmatmul.mubr.f32.gmra.mrb[0].mxu0 %v724
        %v824 = vpop.f32.mrb[0].mxu0
        %v825 = vadd.f32 0.0, %v824
        %v826 = vpop.f32.mrb[0].mxu0
        %827 = vmatprep.mubr.f32.mxu0 0.0
        %828 = vmatmul.mubr.f32.gmra.mrb[0].mxu0 %v727
        %v829 = vpop.f32.mrb[0].mxu0
        %v830 = vadd.f32 0.0, %v829
        %v831 = vpop.f32.mrb[0].mxu0
        %832 = vmatprep.mubr.f32.mxu0 0.0
        %833 = vmatmul.mubr.f32.gmra.mrb[0].mxu0 %v730
        %v834 = vpop.f32.mrb[0].mxu0
        %v835 = vadd.f32 0.0, %v834
        %v836 = vpop.f32.mrb[0].mxu0
        %837 = vmatprep.mubr.f32.mxu0 0.0
        %838 = vmatmul.mubr.f32.gmra.mrb[0].mxu0 %v733
        %v839 = vpop.f32.mrb[0].mxu0
        %v840 = vadd.f32 0.0, %v839
        %v841 = vpop.f32.mrb[0].mxu0
        %842 = vdwg.mxu0
        %v843 = vmul.f32 %v805, 0.5
        %v844 = vmul.f32 %v810, 0.5
        %v845 = vmul.f32 %v815, 0.5
        %v846 = vmul.f32 %v820, 0.5
        %v847 = vmul.f32 %v825, 0.5
        %v848 = vmul.f32 %v830, 0.5
        %v849 = vmul.f32 %v835, 0.5
        %v850 = vmul.f32 %v840, 0.5
        %vm851 = vcmask 523264
        %v852 = vsel %vm851, %v843, -inf
        %853 = vmax.xlane.f32.xlu0 %v852
        %v854 = vpop.xlane.xlu0 %853
        %v855 = vsel %vm851, %v844, -inf
        %856 = vmax.xlane.f32.xlu0 %v855
        %v857 = vpop.xlane.xlu0 %856
        %v858 = vsel %vm851, %v845, -inf
        %859 = vmax.xlane.f32.xlu0 %v858
        %v860 = vpop.xlane.xlu0 %859
        %v861 = vsel %vm851, %v846, -inf
        %862 = vmax.xlane.f32.xlu0 %v861
        %v863 = vpop.xlane.xlu0 %862
        %v864 = vsel %vm851, %v847, -inf
        %865 = vmax.xlane.f32.xlu0 %v864
        %v866 = vpop.xlane.xlu0 %865
        %v867 = vsel %vm851, %v848, -inf
        %868 = vmax.xlane.f32.xlu0 %v867
        %v869 = vpop.xlane.xlu0 %868
        %v870 = vsel %vm851, %v849, -inf
        %871 = vmax.xlane.f32.xlu0 %v870
        %v872 = vpop.xlane.xlu0 %871
        %v873 = vsel %vm851, %v850, -inf
        %874 = vmax.xlane.f32.xlu0 %v873
        %v875 = vpop.xlane.xlu0 %874
        %v876 = vsub.f32 %v843, %v854
        %v877 = vsub.f32 %v844, %v857
        %v878 = vsub.f32 %v845, %v860
        %v879 = vsub.f32 %v846, %v863
        %v880 = vsub.f32 %v847, %v866
        %v881 = vsub.f32 %v848, %v869
        %v882 = vsub.f32 %v849, %v872
        %v883 = vsub.f32 %v850, %v875
        %v884 = vmul.f32 %v876, 1.442695
        %v885 = vpow.pop %v884
        %v886 = vmul.f32 %v877, 1.442695
        %v887 = vpow.pop %v886
        %v888 = vmul.f32 %v878, 1.442695
        %v889 = vpow.pop %v888
        %v890 = vmul.f32 %v879, 1.442695
        %v891 = vpow.pop %v890
        %v892 = vmul.f32 %v880, 1.442695
        %v893 = vpow.pop %v892
        %v894 = vmul.f32 %v881, 1.442695
        %v895 = vpow.pop %v894
        %v896 = vmul.f32 %v882, 1.442695
        %v897 = vpow.pop %v896
        %v898 = vmul.f32 %v883, 1.442695
        %v899 = vpow.pop %v898
        %v900 = vsel %vm851, %v885, 0.0
        %901 = vadd.xlane.f32.xlu0 %v900
        %v902 = vpop.xlane.xlu0 %901
        %v903 = vsel %vm851, %v887, 0.0
        %904 = vadd.xlane.f32.xlu0 %v903
        %v905 = vpop.xlane.xlu0 %904
        %v906 = vsel %vm851, %v889, 0.0
        %907 = vadd.xlane.f32.xlu0 %v906
        %v908 = vpop.xlane.xlu0 %907
        %v909 = vsel %vm851, %v891, 0.0
        %910 = vadd.xlane.f32.xlu0 %v909
        %v911 = vpop.xlane.xlu0 %910
        %v912 = vsel %vm851, %v893, 0.0
        %913 = vadd.xlane.f32.xlu0 %v912
        %v914 = vpop.xlane.xlu0 %913
        %v915 = vsel %vm851, %v895, 0.0
        %916 = vadd.xlane.f32.xlu0 %v915
        %v917 = vpop.xlane.xlu0 %916
        %v918 = vsel %vm851, %v897, 0.0
        %919 = vadd.xlane.f32.xlu0 %v918
        %v920 = vpop.xlane.xlu0 %919
        %v921 = vsel %vm851, %v899, 0.0
        %922 = vadd.xlane.f32.xlu0 %v921
        %v923 = vpop.xlane.xlu0 %922
        %v924 = vrcp.pop %v902
        %v925 = vmul.f32 %v885, %v924
        %v926 = vrcp.pop %v905
        %v927 = vmul.f32 %v887, %v926
        %v928 = vrcp.pop %v908
        %v929 = vmul.f32 %v889, %v928
        %v930 = vrcp.pop %v911
        %v931 = vmul.f32 %v891, %v930
        %v932 = vrcp.pop %v914
        %v933 = vmul.f32 %v893, %v932
        %v934 = vrcp.pop %v917
        %v935 = vmul.f32 %v895, %v934
        %v936 = vrcp.pop %v920
        %v937 = vmul.f32 %v897, %v936
        %v938 = vrcp.pop %v923
        %v939 = vmul.f32 %v899, %v938
        %v940 = vld [vmem:[#allocation2] sm:$0xff]
        %v941 = vld [vmem:[#allocation2 + $0x8] sm:$0xff]
        %v942 = vld [vmem:[#allocation2 + $0x10] sm:$0xff]
        %v943 = vld [vmem:[#allocation2 + $0x18] sm:$0xff]
        %v944 = vld [vmem:[#allocation2 + $0x20] sm:$0xff]
        %v945 = vld [vmem:[#allocation2 + $0x28] sm:$0xff]
        %v946 = vld [vmem:[#allocation2 + $0x30] sm:$0xff]
        %v947 = vld [vmem:[#allocation2 + $0x38] sm:$0xff]
        %v949 = vsel %vm851, %v676, 0
        %v952 = vsel %vm851, %v940, 0
        %v955 = vsel %vm851, %v941, 0
        %v958 = vsel %vm851, %v942, 0
        %v961 = vsel %vm851, %v943, 0
        %v964 = vsel %vm851, %v944, 0
        %v967 = vsel %vm851, %v945, 0
        %v970 = vsel %vm851, %v946, 0
        %v973 = vsel %vm851, %v947, 0
        %975 = vmatprep.subr.mxu0 0.0
        %976 = vmatpush1.xpose.msra.mxu0 %v952
        %977 = vmatprep.subr.mxu0 0.0
        %978 = vmatpush1.xpose.msra.mxu0 %v955
        %979 = vmatprep.subr.mxu0 0.0
        %980 = vmatpush1.xpose.msra.mxu0 %v958
        %981 = vmatprep.subr.mxu0 0.0
        %982 = vmatpush1.xpose.msra.mxu0 %v961
        %983 = vmatprep.subr.mxu0 0.0
        %984 = vmatpush1.xpose.msra.mxu0 %v964
        %985 = vmatprep.subr.mxu0 0.0
        %986 = vmatpush1.xpose.msra.mxu0 %v967
        %987 = vmatprep.subr.mxu0 0.0
        %988 = vmatpush1.xpose.msra.mxu0 %v970
        %989 = vmatprep.subr.mxu0 0.0
        %990 = vmatpush1.xpose.msra.mxu0 %v973
        %991 = vmatprep.subr.mxu0 0.0
        %992 = vmatpush1.xpose.msra.mxu0 0.0
        %993 = vmatprep.subr.mxu0 0.0
        %994 = vmatpush1.xpose.msra.mxu0 0.0
        %995 = vmatprep.subr.mxu0 0.0
        %996 = vmatpush1.xpose.msra.mxu0 0.0
        %997 = vmatprep.subr.mxu0 0.0
        %998 = vmatpush1.xpose.msra.mxu0 0.0
        %999 = vmatprep.subr.mxu0 0.0
        %1000 = vmatpush1.xpose.msra.mxu0 0.0
        %1001 = vmatprep.subr.mxu0 0.0
        %1002 = vmatpush1.xpose.msra.mxu0 0.0
        %1003 = vmatprep.subr.mxu0 0.0
        %1004 = vmatpush1.xpose.msra.mxu0 0.0
        %1005 = vmatprep.subr.mxu0 0.0
        %1006 = vmatpush1.xpose.msra.mxu0 0.0
        %1007 = vmatprep.subr.mxu0 0.0
        %1008 = vmatpush1.xpose.msra.mxu0 0.0
        %1009 = vmatprep.subr.mxu0 0.0
        %1010 = vmatpush1.xpose.msra.mxu0 0.0
        %1011 = vmatprep.subr.mxu0 0.0
        %1012 = vmatpush1.xpose.msra.mxu0 0.0
        %1013 = vmatprep.subr.mxu0 0.0
        %1014 = vmatpush1.xpose.msra.mxu0 0.0
        %1015 = vmatprep.subr.mxu0 0.0
        %1016 = vmatpush1.xpose.msra.mxu0 0.0
        %1017 = vmatprep.subr.mxu0 0.0
        %1018 = vmatpush1.xpose.msra.mxu0 0.0
        %1019 = vmatprep.subr.mxu0 0.0
        %1020 = vmatpush1.xpose.msra.mxu0 0.0
        %1021 = vmatprep.subr.mxu0 0.0
        %1022 = vmatpush1.xpose.msra.mxu0 0.0
        %1023 = vmatprep.subr.mxu0 0.0
        %1024 = vmatpush1.xpose.msra.mxu0 0.0
        %1025 = vmatprep.subr.mxu0 0.0
        %1026 = vmatpush1.xpose.msra.mxu0 0.0
        %1027 = vmatprep.subr.mxu0 0.0
        %1028 = vmatpush1.xpose.msra.mxu0 0.0
        %1029 = vmatprep.subr.mxu0 0.0
        %1030 = vmatpush1.xpose.msra.mxu0 0.0
        %1031 = vmatprep.subr.mxu0 0.0
        %1032 = vmatpush1.xpose.msra.mxu0 0.0
        %1033 = vmatprep.subr.mxu0 0.0
        %1034 = vmatpush1.xpose.msra.mxu0 0.0
        %1035 = vmatprep.subr.mxu0 0.0
        %1036 = vmatpush1.xpose.msra.mxu0 0.0
        %1037 = vmatprep.subr.mxu0 0.0
        %1038 = vmatpush1.xpose.msra.mxu0 0.0
        %1039 = vmatprep.mubr.f32.mxu0 0.0
        %1040 = vmatmul.mubr.f32.gmra.mrb[0].mxu0 %v949
        %v1041 = vpop.f32.mrb[0].mxu0
        %v1042 = vadd.f32 0.0, %v1041
        %v1043 = vpop.f32.mrb[0].mxu0
        %1044 = vdwg.mxu0
        %v1045 = vld [vmem:[%s7] sm:$0xf]
        %1047 = vset.pattern.permute.xlu0 0
        %1048 = vperm.xlu0 %1047, %v1045
        %v1049 = vpop.permute.xlu0 %1048
        %v1051 = vmul.f32 %v1042, %v1049
        %1053 = vset.pattern.permute.xlu0 0
        %1054 = vperm.xlu0 %1053, %v437
        %v1055 = vpop.permute.xlu0 %1054
        %v1057 = vadd.f32 %v1055, %v1051
        %s1058 = scalar_lea.vmem [#allocation2], 64
        %v1059 = vld [vmem:[%s1058] sm:$0xff]
        %v1060 = vld [vmem:[%s1058 + $0x8] sm:$0xff]
        %v1061 = vld [vmem:[%s1058 + $0x10] sm:$0xff]
        %v1062 = vld [vmem:[%s1058 + $0x18] sm:$0xff]
        %v1063 = vld [vmem:[%s1058 + $0x20] sm:$0xff]
        %v1064 = vld [vmem:[%s1058 + $0x28] sm:$0xff]
        %v1065 = vld [vmem:[%s1058 + $0x30] sm:$0xff]
        %v1066 = vld [vmem:[%s1058 + $0x38] sm:$0xff]
        %v1068 = vsel %vm851, %v1059, 0
        %v1071 = vsel %vm851, %v1060, 0
        %v1074 = vsel %vm851, %v1061, 0
        %v1077 = vsel %vm851, %v1062, 0
        %v1080 = vsel %vm851, %v1063, 0
        %v1083 = vsel %vm851, %v1064, 0
        %v1086 = vsel %vm851, %v1065, 0
        %v1089 = vsel %vm851, %v1066, 0
        %1091 = vmatprep.subr.mxu0 0.0
        %1092 = vmatpush1.xpose.msra.mxu0 %v1068
        %1093 = vmatprep.subr.mxu0 0.0
        %1094 = vmatpush1.xpose.msra.mxu0 %v1071
        %1095 = vmatprep.subr.mxu0 0.0
        %1096 = vmatpush1.xpose.msra.mxu0 %v1074
        %1097 = vmatprep.subr.mxu0 0.0
        %1098 = vmatpush1.xpose.msra.mxu0 %v1077
        %1099 = vmatprep.subr.mxu0 0.0
        %1100 = vmatpush1.xpose.msra.mxu0 %v1080
        %1101 = vmatprep.subr.mxu0 0.0
        %1102 = vmatpush1.xpose.msra.mxu0 %v1083
        %1103 = vmatprep.subr.mxu0 0.0
        %1104 = vmatpush1.xpose.msra.mxu0 %v1086
        %1105 = vmatprep.subr.mxu0 0.0
        %1106 = vmatpush1.xpose.msra.mxu0 %v1089
        %1107 = vmatprep.subr.mxu0 0.0
        %1108 = vmatpush1.xpose.msra.mxu0 0.0
        %1109 = vmatprep.subr.mxu0 0.0
        %1110 = vmatpush1.xpose.msra.mxu0 0.0
        %1111 = vmatprep.subr.mxu0 0.0
        %1112 = vmatpush1.xpose.msra.mxu0 0.0
        %1113 = vmatprep.subr.mxu0 0.0
        %1114 = vmatpush1.xpose.msra.mxu0 0.0
        %1115 = vmatprep.subr.mxu0 0.0
        %1116 = vmatpush1.xpose.msra.mxu0 0.0
        %1117 = vmatprep.subr.mxu0 0.0
        %1118 = vmatpush1.xpose.msra.mxu0 0.0
        %1119 = vmatprep.subr.mxu0 0.0
        %1120 = vmatpush1.xpose.msra.mxu0 0.0
        %1121 = vmatprep.subr.mxu0 0.0
        %1122 = vmatpush1.xpose.msra.mxu0 0.0
        %1123 = vmatprep.subr.mxu0 0.0
        %1124 = vmatpush1.xpose.msra.mxu0 0.0
        %1125 = vmatprep.subr.mxu0 0.0
        %1126 = vmatpush1.xpose.msra.mxu0 0.0
        %1127 = vmatprep.subr.mxu0 0.0
        %1128 = vmatpush1.xpose.msra.mxu0 0.0
        %1129 = vmatprep.subr.mxu0 0.0
        %1130 = vmatpush1.xpose.msra.mxu0 0.0
        %1131 = vmatprep.subr.mxu0 0.0
        %1132 = vmatpush1.xpose.msra.mxu0 0.0
        %1133 = vmatprep.subr.mxu0 0.0
        %1134 = vmatpush1.xpose.msra.mxu0 0.0
        %1135 = vmatprep.subr.mxu0 0.0
        %1136 = vmatpush1.xpose.msra.mxu0 0.0
        %1137 = vmatprep.subr.mxu0 0.0
        %1138 = vmatpush1.xpose.msra.mxu0 0.0
        %1139 = vmatprep.subr.mxu0 0.0
        %1140 = vmatpush1.xpose.msra.mxu0 0.0
        %1141 = vmatprep.subr.mxu0 0.0
        %1142 = vmatpush1.xpose.msra.mxu0 0.0
        %1143 = vmatprep.subr.mxu0 0.0
        %1144 = vmatpush1.xpose.msra.mxu0 0.0
        %1145 = vmatprep.subr.mxu0 0.0
        %1146 = vmatpush1.xpose.msra.mxu0 0.0
        %1147 = vmatprep.subr.mxu0 0.0
        %1148 = vmatpush1.xpose.msra.mxu0 0.0
        %1149 = vmatprep.subr.mxu0 0.0
        %1150 = vmatpush1.xpose.msra.mxu0 0.0
        %1151 = vmatprep.subr.mxu0 0.0
        %1152 = vmatpush1.xpose.msra.mxu0 0.0
        %1153 = vmatprep.subr.mxu0 0.0
        %1154 = vmatpush1.xpose.msra.mxu0 0.0
        %1155 = vmatprep.mubr.f32.mxu0 0.0
        %1156 = vmatmul.mubr.f32.gmra.mrb[0].mxu0 %v949
        %v1157 = vpop.f32.mrb[0].mxu0
        %v1158 = vadd.f32 0.0, %v1157
        %v1159 = vpop.f32.mrb[0].mxu0
        %1160 = vdwg.mxu0
        %s1161 = scalar_lea.vmem %s7, 4
        %v1162 = vld [vmem:[%s1161] sm:$0xf]
        %1164 = vset.pattern.permute.xlu0 0
        %1165 = vperm.xlu0 %1164, %v1162
        %v1166 = vpop.permute.xlu0 %1165
        %v1168 = vmul.f32 %v1158, %v1166
        %v1169 = vadd.f32 %v1057, %v1168
        %s1170 = scalar_lea.vmem [#allocation2], 128
        %v1171 = vld [vmem:[%s1170] sm:$0xff]
        %v1172 = vld [vmem:[%s1170 + $0x8] sm:$0xff]
        %v1173 = vld [vmem:[%s1170 + $0x10] sm:$0xff]
        %v1174 = vld [vmem:[%s1170 + $0x18] sm:$0xff]
        %v1175 = vld [vmem:[%s1170 + $0x20] sm:$0xff]
        %v1176 = vld [vmem:[%s1170 + $0x28] sm:$0xff]
        %v1177 = vld [vmem:[%s1170 + $0x30] sm:$0xff]
        %v1178 = vld [vmem:[%s1170 + $0x38] sm:$0xff]
        %v1180 = vsel %vm851, %v1171, 0
        %v1183 = vsel %vm851, %v1172, 0
        %v1186 = vsel %vm851, %v1173, 0
        %v1189 = vsel %vm851, %v1174, 0
        %v1192 = vsel %vm851, %v1175, 0
        %v1195 = vsel %vm851, %v1176, 0
        %v1198 = vsel %vm851, %v1177, 0
        %v1201 = vsel %vm851, %v1178, 0
        %1203 = vmatprep.subr.mxu0 0.0
        %1204 = vmatpush1.xpose.msra.mxu0 %v1180
        %1205 = vmatprep.subr.mxu0 0.0
        %1206 = vmatpush1.xpose.msra.mxu0 %v1183
        %1207 = vmatprep.subr.mxu0 0.0
        %1208 = vmatpush1.xpose.msra.mxu0 %v1186
        %1209 = vmatprep.subr.mxu0 0.0
        %1210 = vmatpush1.xpose.msra.mxu0 %v1189
        %1211 = vmatprep.subr.mxu0 0.0
        %1212 = vmatpush1.xpose.msra.mxu0 %v1192
        %1213 = vmatprep.subr.mxu0 0.0
        %1214 = vmatpush1.xpose.msra.mxu0 %v1195
        %1215 = vmatprep.subr.mxu0 0.0
        %1216 = vmatpush1.xpose.msra.mxu0 %v1198
        %1217 = vmatprep.subr.mxu0 0.0
        %1218 = vmatpush1.xpose.msra.mxu0 %v1201
        %1219 = vmatprep.subr.mxu0 0.0
        %1220 = vmatpush1.xpose.msra.mxu0 0.0
        %1221 = vmatprep.subr.mxu0 0.0
        %1222 = vmatpush1.xpose.msra.mxu0 0.0
        %1223 = vmatprep.subr.mxu0 0.0
        %1224 = vmatpush1.xpose.msra.mxu0 0.0
        %1225 = vmatprep.subr.mxu0 0.0
        %1226 = vmatpush1.xpose.msra.mxu0 0.0
        %1227 = vmatprep.subr.mxu0 0.0
        %1228 = vmatpush1.xpose.msra.mxu0 0.0
        %1229 = vmatprep.subr.mxu0 0.0
        %1230 = vmatpush1.xpose.msra.mxu0 0.0
        %1231 = vmatprep.subr.mxu0 0.0
        %1232 = vmatpush1.xpose.msra.mxu0 0.0
        %1233 = vmatprep.subr.mxu0 0.0
        %1234 = vmatpush1.xpose.msra.mxu0 0.0
        %1235 = vmatprep.subr.mxu0 0.0
        %1236 = vmatpush1.xpose.msra.mxu0 0.0
        %1237 = vmatprep.subr.mxu0 0.0
        %1238 = vmatpush1.xpose.msra.mxu0 0.0
        %1239 = vmatprep.subr.mxu0 0.0
        %1240 = vmatpush1.xpose.msra.mxu0 0.0
        %1241 = vmatprep.subr.mxu0 0.0
        %1242 = vmatpush1.xpose.msra.mxu0 0.0
        %1243 = vmatprep.subr.mxu0 0.0
        %1244 = vmatpush1.xpose.msra.mxu0 0.0
        %1245 = vmatprep.subr.mxu0 0.0
        %1246 = vmatpush1.xpose.msra.mxu0 0.0
        %1247 = vmatprep.subr.mxu0 0.0
        %1248 = vmatpush1.xpose.msra.mxu0 0.0
        %1249 = vmatprep.subr.mxu0 0.0
        %1250 = vmatpush1.xpose.msra.mxu0 0.0
        %1251 = vmatprep.subr.mxu0 0.0
        %1252 = vmatpush1.xpose.msra.mxu0 0.0
        %1253 = vmatprep.subr.mxu0 0.0
        %1254 = vmatpush1.xpose.msra.mxu0 0.0
        %1255 = vmatprep.subr.mxu0 0.0
        %1256 = vmatpush1.xpose.msra.mxu0 0.0
        %1257 = vmatprep.subr.mxu0 0.0
        %1258 = vmatpush1.xpose.msra.mxu0 0.0
        %1259 = vmatprep.subr.mxu0 0.0
        %1260 = vmatpush1.xpose.msra.mxu0 0.0
        %1261 = vmatprep.subr.mxu0 0.0
        %1262 = vmatpush1.xpose.msra.mxu0 0.0
        %1263 = vmatprep.subr.mxu0 0.0
        %1264 = vmatpush1.xpose.msra.mxu0 0.0
        %1265 = vmatprep.subr.mxu0 0.0
        %1266 = vmatpush1.xpose.msra.mxu0 0.0
        %1267 = vmatprep.mubr.f32.mxu0 0.0
        %1268 = vmatmul.mubr.f32.gmra.mrb[0].mxu0 %v949
        %v1269 = vpop.f32.mrb[0].mxu0
        %v1270 = vadd.f32 0.0, %v1269
        %v1271 = vpop.f32.mrb[0].mxu0
        %1272 = vdwg.mxu0
        %s1273 = scalar_lea.vmem %s7, 8
        %v1274 = vld [vmem:[%s1273] sm:$0xf]
        %1276 = vset.pattern.permute.xlu0 0
        %1277 = vperm.xlu0 %1276, %v1274
        %v1278 = vpop.permute.xlu0 %1277
        %v1280 = vmul.f32 %v1270, %v1278
        %v1281 = vadd.f32 %v1169, %v1280
        %s1282 = scalar_lea.vmem [#allocation2], 192
        %v1283 = vld [vmem:[%s1282] sm:$0xff]
        %v1284 = vld [vmem:[%s1282 + $0x8] sm:$0xff]
        %v1285 = vld [vmem:[%s1282 + $0x10] sm:$0xff]
        %v1286 = vld [vmem:[%s1282 + $0x18] sm:$0xff]
        %v1287 = vld [vmem:[%s1282 + $0x20] sm:$0xff]
        %v1288 = vld [vmem:[%s1282 + $0x28] sm:$0xff]
        %v1289 = vld [vmem:[%s1282 + $0x30] sm:$0xff]
        %v1290 = vld [vmem:[%s1282 + $0x38] sm:$0xff]
        %v1292 = vsel %vm851, %v1283, 0
        %v1295 = vsel %vm851, %v1284, 0
        %v1298 = vsel %vm851, %v1285, 0
        %v1301 = vsel %vm851, %v1286, 0
        %v1304 = vsel %vm851, %v1287, 0
        %v1307 = vsel %vm851, %v1288, 0
        %v1310 = vsel %vm851, %v1289, 0
        %v1313 = vsel %vm851, %v1290, 0
        %1315 = vmatprep.subr.mxu0 0.0
        %1316 = vmatpush1.xpose.msra.mxu0 %v1292
        %1317 = vmatprep.subr.mxu0 0.0
        %1318 = vmatpush1.xpose.msra.mxu0 %v1295
        %1319 = vmatprep.subr.mxu0 0.0
        %1320 = vmatpush1.xpose.msra.mxu0 %v1298
        %1321 = vmatprep.subr.mxu0 0.0
        %1322 = vmatpush1.xpose.msra.mxu0 %v1301
        %1323 = vmatprep.subr.mxu0 0.0
        %1324 = vmatpush1.xpose.msra.mxu0 %v1304
        %1325 = vmatprep.subr.mxu0 0.0
        %1326 = vmatpush1.xpose.msra.mxu0 %v1307
        %1327 = vmatprep.subr.mxu0 0.0
        %1328 = vmatpush1.xpose.msra.mxu0 %v1310
        %1329 = vmatprep.subr.mxu0 0.0
        %1330 = vmatpush1.xpose.msra.mxu0 %v1313
        %1331 = vmatprep.subr.mxu0 0.0
        %1332 = vmatpush1.xpose.msra.mxu0 0.0
        %1333 = vmatprep.subr.mxu0 0.0
        %1334 = vmatpush1.xpose.msra.mxu0 0.0
        %1335 = vmatprep.subr.mxu0 0.0
        %1336 = vmatpush1.xpose.msra.mxu0 0.0
        %1337 = vmatprep.subr.mxu0 0.0
        %1338 = vmatpush1.xpose.msra.mxu0 0.0
        %1339 = vmatprep.subr.mxu0 0.0
        %1340 = vmatpush1.xpose.msra.mxu0 0.0
        %1341 = vmatprep.subr.mxu0 0.0
        %1342 = vmatpush1.xpose.msra.mxu0 0.0
        %1343 = vmatprep.subr.mxu0 0.0
        %1344 = vmatpush1.xpose.msra.mxu0 0.0
        %1345 = vmatprep.subr.mxu0 0.0
        %1346 = vmatpush1.xpose.msra.mxu0 0.0
        %1347 = vmatprep.subr.mxu0 0.0
        %1348 = vmatpush1.xpose.msra.mxu0 0.0
        %1349 = vmatprep.subr.mxu0 0.0
        %1350 = vmatpush1.xpose.msra.mxu0 0.0
        %1351 = vmatprep.subr.mxu0 0.0
        %1352 = vmatpush1.xpose.msra.mxu0 0.0
        %1353 = vmatprep.subr.mxu0 0.0
        %1354 = vmatpush1.xpose.msra.mxu0 0.0
        %1355 = vmatprep.subr.mxu0 0.0
        %1356 = vmatpush1.xpose.msra.mxu0 0.0
        %1357 = vmatprep.subr.mxu0 0.0
        %1358 = vmatpush1.xpose.msra.mxu0 0.0
        %1359 = vmatprep.subr.mxu0 0.0
        %1360 = vmatpush1.xpose.msra.mxu0 0.0
        %1361 = vmatprep.subr.mxu0 0.0
        %1362 = vmatpush1.xpose.msra.mxu0 0.0
        %1363 = vmatprep.subr.mxu0 0.0
        %1364 = vmatpush1.xpose.msra.mxu0 0.0
        %1365 = vmatprep.subr.mxu0 0.0
        %1366 = vmatpush1.xpose.msra.mxu0 0.0
        %1367 = vmatprep.subr.mxu0 0.0
        %1368 = vmatpush1.xpose.msra.mxu0 0.0
        %1369 = vmatprep.subr.mxu0 0.0
        %1370 = vmatpush1.xpose.msra.mxu0 0.0
        %1371 = vmatprep.subr.mxu0 0.0
        %1372 = vmatpush1.xpose.msra.mxu0 0.0
        %1373 = vmatprep.subr.mxu0 0.0
        %1374 = vmatpush1.xpose.msra.mxu0 0.0
        %1375 = vmatprep.subr.mxu0 0.0
        %1376 = vmatpush1.xpose.msra.mxu0 0.0
        %1377 = vmatprep.subr.mxu0 0.0
        %1378 = vmatpush1.xpose.msra.mxu0 0.0
        %1379 = vmatprep.mubr.f32.mxu0 0.0
        %1380 = vmatmul.mubr.f32.gmra.mrb[0].mxu0 %v949
        %v1381 = vpop.f32.mrb[0].mxu0
        %v1382 = vadd.f32 0.0, %v1381
        %v1383 = vpop.f32.mrb[0].mxu0
        %1384 = vdwg.mxu0
        %s1385 = scalar_lea.vmem %s7, 12
        %v1386 = vld [vmem:[%s1385] sm:$0xf]
        %1388 = vset.pattern.permute.xlu0 0
        %1389 = vperm.xlu0 %1388, %v1386
        %v1390 = vpop.permute.xlu0 %1389
        %v1392 = vmul.f32 %v1382, %v1390
        %v1393 = vadd.f32 %v1281, %v1392
        %s1394 = scalar_lea.vmem [#allocation2], 256
        %v1395 = vld [vmem:[%s1394] sm:$0xff]
        %v1396 = vld [vmem:[%s1394 + $0x8] sm:$0xff]
        %v1397 = vld [vmem:[%s1394 + $0x10] sm:$0xff]
        %v1398 = vld [vmem:[%s1394 + $0x18] sm:$0xff]
        %v1399 = vld [vmem:[%s1394 + $0x20] sm:$0xff]
        %v1400 = vld [vmem:[%s1394 + $0x28] sm:$0xff]
        %v1401 = vld [vmem:[%s1394 + $0x30] sm:$0xff]
        %v1402 = vld [vmem:[%s1394 + $0x38] sm:$0xff]
        %v1404 = vsel %vm851, %v1395, 0
        %v1407 = vsel %vm851, %v1396, 0
        %v1410 = vsel %vm851, %v1397, 0
        %v1413 = vsel %vm851, %v1398, 0
        %v1416 = vsel %vm851, %v1399, 0
        %v1419 = vsel %vm851, %v1400, 0
        %v1422 = vsel %vm851, %v1401, 0
        %v1425 = vsel %vm851, %v1402, 0
        %1427 = vmatprep.subr.mxu0 0.0
        %1428 = vmatpush1.xpose.msra.mxu0 %v1404
        %1429 = vmatprep.subr.mxu0 0.0
        %1430 = vmatpush1.xpose.msra.mxu0 %v1407
        %1431 = vmatprep.subr.mxu0 0.0
        %1432 = vmatpush1.xpose.msra.mxu0 %v1410
        %1433 = vmatprep.subr.mxu0 0.0
        %1434 = vmatpush1.xpose.msra.mxu0 %v1413
        %1435 = vmatprep.subr.mxu0 0.0
        %1436 = vmatpush1.xpose.msra.mxu0 %v1416
        %1437 = vmatprep.subr.mxu0 0.0
        %1438 = vmatpush1.xpose.msra.mxu0 %v1419
        %1439 = vmatprep.subr.mxu0 0.0
        %1440 = vmatpush1.xpose.msra.mxu0 %v1422
        %1441 = vmatprep.subr.mxu0 0.0
        %1442 = vmatpush1.xpose.msra.mxu0 %v1425
        %1443 = vmatprep.subr.mxu0 0.0
        %1444 = vmatpush1.xpose.msra.mxu0 0.0
        %1445 = vmatprep.subr.mxu0 0.0
        %1446 = vmatpush1.xpose.msra.mxu0 0.0
        %1447 = vmatprep.subr.mxu0 0.0
        %1448 = vmatpush1.xpose.msra.mxu0 0.0
        %1449 = vmatprep.subr.mxu0 0.0
        %1450 = vmatpush1.xpose.msra.mxu0 0.0
        %1451 = vmatprep.subr.mxu0 0.0
        %1452 = vmatpush1.xpose.msra.mxu0 0.0
        %1453 = vmatprep.subr.mxu0 0.0
        %1454 = vmatpush1.xpose.msra.mxu0 0.0
        %1455 = vmatprep.subr.mxu0 0.0
        %1456 = vmatpush1.xpose.msra.mxu0 0.0
        %1457 = vmatprep.subr.mxu0 0.0
        %1458 = vmatpush1.xpose.msra.mxu0 0.0
        %1459 = vmatprep.subr.mxu0 0.0
        %1460 = vmatpush1.xpose.msra.mxu0 0.0
        %1461 = vmatprep.subr.mxu0 0.0
        %1462 = vmatpush1.xpose.msra.mxu0 0.0
        %1463 = vmatprep.subr.mxu0 0.0
        %1464 = vmatpush1.xpose.msra.mxu0 0.0
        %1465 = vmatprep.subr.mxu0 0.0
        %1466 = vmatpush1.xpose.msra.mxu0 0.0
        %1467 = vmatprep.subr.mxu0 0.0
        %1468 = vmatpush1.xpose.msra.mxu0 0.0
        %1469 = vmatprep.subr.mxu0 0.0
        %1470 = vmatpush1.xpose.msra.mxu0 0.0
        %1471 = vmatprep.subr.mxu0 0.0
        %1472 = vmatpush1.xpose.msra.mxu0 0.0
        %1473 = vmatprep.subr.mxu0 0.0
        %1474 = vmatpush1.xpose.msra.mxu0 0.0
        %1475 = vmatprep.subr.mxu0 0.0
        %1476 = vmatpush1.xpose.msra.mxu0 0.0
        %1477 = vmatprep.subr.mxu0 0.0
        %1478 = vmatpush1.xpose.msra.mxu0 0.0
        %1479 = vmatprep.subr.mxu0 0.0
        %1480 = vmatpush1.xpose.msra.mxu0 0.0
        %1481 = vmatprep.subr.mxu0 0.0
        %1482 = vmatpush1.xpose.msra.mxu0 0.0
        %1483 = vmatprep.subr.mxu0 0.0
        %1484 = vmatpush1.xpose.msra.mxu0 0.0
        %1485 = vmatprep.subr.mxu0 0.0
        %1486 = vmatpush1.xpose.msra.mxu0 0.0
        %1487 = vmatprep.subr.mxu0 0.0
        %1488 = vmatpush1.xpose.msra.mxu0 0.0
        %1489 = vmatprep.subr.mxu0 0.0
        %1490 = vmatpush1.xpose.msra.mxu0 0.0
        %1491 = vmatprep.mubr.f32.mxu0 0.0
        %1492 = vmatmul.mubr.f32.gmra.mrb[0].mxu0 %v949
        %v1493 = vpop.f32.mrb[0].mxu0
        %v1494 = vadd.f32 0.0, %v1493
        %v1495 = vpop.f32.mrb[0].mxu0
        %1496 = vdwg.mxu0
        %s1497 = scalar_lea.vmem %s7, 16
        %v1498 = vld [vmem:[%s1497] sm:$0xf]
        %1500 = vset.pattern.permute.xlu0 0
        %1501 = vperm.xlu0 %1500, %v1498
        %v1502 = vpop.permute.xlu0 %1501
        %v1504 = vmul.f32 %v1494, %v1502
        %v1505 = vadd.f32 %v1393, %v1504
        %s1506 = scalar_lea.vmem [#allocation2], 320
        %v1507 = vld [vmem:[%s1506] sm:$0xff]
        %v1508 = vld [vmem:[%s1506 + $0x8] sm:$0xff]
        %v1509 = vld [vmem:[%s1506 + $0x10] sm:$0xff]
        %v1510 = vld [vmem:[%s1506 + $0x18] sm:$0xff]
        %v1511 = vld [vmem:[%s1506 + $0x20] sm:$0xff]
        %v1512 = vld [vmem:[%s1506 + $0x28] sm:$0xff]
        %v1513 = vld [vmem:[%s1506 + $0x30] sm:$0xff]
        %v1514 = vld [vmem:[%s1506 + $0x38] sm:$0xff]
        %v1516 = vsel %vm851, %v1507, 0
        %v1519 = vsel %vm851, %v1508, 0
        %v1522 = vsel %vm851, %v1509, 0
        %v1525 = vsel %vm851, %v1510, 0
        %v1528 = vsel %vm851, %v1511, 0
        %v1531 = vsel %vm851, %v1512, 0
        %v1534 = vsel %vm851, %v1513, 0
        %v1537 = vsel %vm851, %v1514, 0
        %1539 = vmatprep.subr.mxu0 0.0
        %1540 = vmatpush1.xpose.msra.mxu0 %v1516
        %1541 = vmatprep.subr.mxu0 0.0
        %1542 = vmatpush1.xpose.msra.mxu0 %v1519
        %1543 = vmatprep.subr.mxu0 0.0
        %1544 = vmatpush1.xpose.msra.mxu0 %v1522
        %1545 = vmatprep.subr.mxu0 0.0
        %1546 = vmatpush1.xpose.msra.mxu0 %v1525
        %1547 = vmatprep.subr.mxu0 0.0
        %1548 = vmatpush1.xpose.msra.mxu0 %v1528
        %1549 = vmatprep.subr.mxu0 0.0
        %1550 = vmatpush1.xpose.msra.mxu0 %v1531
        %1551 = vmatprep.subr.mxu0 0.0
        %1552 = vmatpush1.xpose.msra.mxu0 %v1534
        %1553 = vmatprep.subr.mxu0 0.0
        %1554 = vmatpush1.xpose.msra.mxu0 %v1537
        %1555 = vmatprep.subr.mxu0 0.0
        %1556 = vmatpush1.xpose.msra.mxu0 0.0
        %1557 = vmatprep.subr.mxu0 0.0
        %1558 = vmatpush1.xpose.msra.mxu0 0.0
        %1559 = vmatprep.subr.mxu0 0.0
        %1560 = vmatpush1.xpose.msra.mxu0 0.0
        %1561 = vmatprep.subr.mxu0 0.0
        %1562 = vmatpush1.xpose.msra.mxu0 0.0
        %1563 = vmatprep.subr.mxu0 0.0
        %1564 = vmatpush1.xpose.msra.mxu0 0.0
        %1565 = vmatprep.subr.mxu0 0.0
        %1566 = vmatpush1.xpose.msra.mxu0 0.0
        %1567 = vmatprep.subr.mxu0 0.0
        %1568 = vmatpush1.xpose.msra.mxu0 0.0
        %1569 = vmatprep.subr.mxu0 0.0
        %1570 = vmatpush1.xpose.msra.mxu0 0.0
        %1571 = vmatprep.subr.mxu0 0.0
        %1572 = vmatpush1.xpose.msra.mxu0 0.0
        %1573 = vmatprep.subr.mxu0 0.0
        %1574 = vmatpush1.xpose.msra.mxu0 0.0
        %1575 = vmatprep.subr.mxu0 0.0
        %1576 = vmatpush1.xpose.msra.mxu0 0.0
        %1577 = vmatprep.subr.mxu0 0.0
        %1578 = vmatpush1.xpose.msra.mxu0 0.0
        %1579 = vmatprep.subr.mxu0 0.0
        %1580 = vmatpush1.xpose.msra.mxu0 0.0
        %1581 = vmatprep.subr.mxu0 0.0
        %1582 = vmatpush1.xpose.msra.mxu0 0.0
        %1583 = vmatprep.subr.mxu0 0.0
        %1584 = vmatpush1.xpose.msra.mxu0 0.0
        %1585 = vmatprep.subr.mxu0 0.0
        %1586 = vmatpush1.xpose.msra.mxu0 0.0
        %1587 = vmatprep.subr.mxu0 0.0
        %1588 = vmatpush1.xpose.msra.mxu0 0.0
        %1589 = vmatprep.subr.mxu0 0.0
        %1590 = vmatpush1.xpose.msra.mxu0 0.0
        %1591 = vmatprep.subr.mxu0 0.0
        %1592 = vmatpush1.xpose.msra.mxu0 0.0
        %1593 = vmatprep.subr.mxu0 0.0
        %1594 = vmatpush1.xpose.msra.mxu0 0.0
        %1595 = vmatprep.subr.mxu0 0.0
        %1596 = vmatpush1.xpose.msra.mxu0 0.0
        %1597 = vmatprep.subr.mxu0 0.0
        %1598 = vmatpush1.xpose.msra.mxu0 0.0
        %1599 = vmatprep.subr.mxu0 0.0
        %1600 = vmatpush1.xpose.msra.mxu0 0.0
        %1601 = vmatprep.subr.mxu0 0.0
        %1602 = vmatpush1.xpose.msra.mxu0 0.0
        %1603 = vmatprep.mubr.f32.mxu0 0.0
        %1604 = vmatmul.mubr.f32.gmra.mrb[0].mxu0 %v949
        %v1605 = vpop.f32.mrb[0].mxu0
        %v1606 = vadd.f32 0.0, %v1605
        %v1607 = vpop.f32.mrb[0].mxu0
        %1608 = vdwg.mxu0
        %s1609 = scalar_lea.vmem %s7, 20
        %v1610 = vld [vmem:[%s1609] sm:$0xf]
        %1612 = vset.pattern.permute.xlu0 0
        %1613 = vperm.xlu0 %1612, %v1610
        %v1614 = vpop.permute.xlu0 %1613
        %v1616 = vmul.f32 %v1606, %v1614
        %v1617 = vadd.f32 %v1505, %v1616
        %s1618 = scalar_lea.vmem [#allocation2], 384
        %v1619 = vld [vmem:[%s1618] sm:$0xff]
        %v1620 = vld [vmem:[%s1618 + $0x8] sm:$0xff]
        %v1621 = vld [vmem:[%s1618 + $0x10] sm:$0xff]
        %v1622 = vld [vmem:[%s1618 + $0x18] sm:$0xff]
        %v1623 = vld [vmem:[%s1618 + $0x20] sm:$0xff]
        %v1624 = vld [vmem:[%s1618 + $0x28] sm:$0xff]
        %v1625 = vld [vmem:[%s1618 + $0x30] sm:$0xff]
        %v1626 = vld [vmem:[%s1618 + $0x38] sm:$0xff]
        %v1628 = vsel %vm851, %v1619, 0
        %v1631 = vsel %vm851, %v1620, 0
        %v1634 = vsel %vm851, %v1621, 0
        %v1637 = vsel %vm851, %v1622, 0
        %v1640 = vsel %vm851, %v1623, 0
        %v1643 = vsel %vm851, %v1624, 0
        %v1646 = vsel %vm851, %v1625, 0
        %v1649 = vsel %vm851, %v1626, 0
        %1651 = vmatprep.subr.mxu0 0.0
        %1652 = vmatpush1.xpose.msra.mxu0 %v1628
        %1653 = vmatprep.subr.mxu0 0.0
        %1654 = vmatpush1.xpose.msra.mxu0 %v1631
        %1655 = vmatprep.subr.mxu0 0.0
        %1656 = vmatpush1.xpose.msra.mxu0 %v1634
        %1657 = vmatprep.subr.mxu0 0.0
        %1658 = vmatpush1.xpose.msra.mxu0 %v1637
        %1659 = vmatprep.subr.mxu0 0.0
        %1660 = vmatpush1.xpose.msra.mxu0 %v1640
        %1661 = vmatprep.subr.mxu0 0.0
        %1662 = vmatpush1.xpose.msra.mxu0 %v1643
        %1663 = vmatprep.subr.mxu0 0.0
        %1664 = vmatpush1.xpose.msra.mxu0 %v1646
        %1665 = vmatprep.subr.mxu0 0.0
        %1666 = vmatpush1.xpose.msra.mxu0 %v1649
        %1667 = vmatprep.subr.mxu0 0.0
        %1668 = vmatpush1.xpose.msra.mxu0 0.0
        %1669 = vmatprep.subr.mxu0 0.0
        %1670 = vmatpush1.xpose.msra.mxu0 0.0
        %1671 = vmatprep.subr.mxu0 0.0
        %1672 = vmatpush1.xpose.msra.mxu0 0.0
        %1673 = vmatprep.subr.mxu0 0.0
        %1674 = vmatpush1.xpose.msra.mxu0 0.0
        %1675 = vmatprep.subr.mxu0 0.0
        %1676 = vmatpush1.xpose.msra.mxu0 0.0
        %1677 = vmatprep.subr.mxu0 0.0
        %1678 = vmatpush1.xpose.msra.mxu0 0.0
        %1679 = vmatprep.subr.mxu0 0.0
        %1680 = vmatpush1.xpose.msra.mxu0 0.0
        %1681 = vmatprep.subr.mxu0 0.0
        %1682 = vmatpush1.xpose.msra.mxu0 0.0
        %1683 = vmatprep.subr.mxu0 0.0
        %1684 = vmatpush1.xpose.msra.mxu0 0.0
        %1685 = vmatprep.subr.mxu0 0.0
        %1686 = vmatpush1.xpose.msra.mxu0 0.0
        %1687 = vmatprep.subr.mxu0 0.0
        %1688 = vmatpush1.xpose.msra.mxu0 0.0
        %1689 = vmatprep.subr.mxu0 0.0
        %1690 = vmatpush1.xpose.msra.mxu0 0.0
        %1691 = vmatprep.subr.mxu0 0.0
        %1692 = vmatpush1.xpose.msra.mxu0 0.0
        %1693 = vmatprep.subr.mxu0 0.0
        %1694 = vmatpush1.xpose.msra.mxu0 0.0
        %1695 = vmatprep.subr.mxu0 0.0
        %1696 = vmatpush1.xpose.msra.mxu0 0.0
        %1697 = vmatprep.subr.mxu0 0.0
        %1698 = vmatpush1.xpose.msra.mxu0 0.0
        %1699 = vmatprep.subr.mxu0 0.0
        %1700 = vmatpush1.xpose.msra.mxu0 0.0
        %1701 = vmatprep.subr.mxu0 0.0
        %1702 = vmatpush1.xpose.msra.mxu0 0.0
        %1703 = vmatprep.subr.mxu0 0.0
        %1704 = vmatpush1.xpose.msra.mxu0 0.0
        %1705 = vmatprep.subr.mxu0 0.0
        %1706 = vmatpush1.xpose.msra.mxu0 0.0
        %1707 = vmatprep.subr.mxu0 0.0
        %1708 = vmatpush1.xpose.msra.mxu0 0.0
        %1709 = vmatprep.subr.mxu0 0.0
        %1710 = vmatpush1.xpose.msra.mxu0 0.0
        %1711 = vmatprep.subr.mxu0 0.0
        %1712 = vmatpush1.xpose.msra.mxu0 0.0
        %1713 = vmatprep.subr.mxu0 0.0
        %1714 = vmatpush1.xpose.msra.mxu0 0.0
        %1715 = vmatprep.mubr.f32.mxu0 0.0
        %1716 = vmatmul.mubr.f32.gmra.mrb[0].mxu0 %v949
        %v1717 = vpop.f32.mrb[0].mxu0
        %v1718 = vadd.f32 0.0, %v1717
        %v1719 = vpop.f32.mrb[0].mxu0
        %1720 = vdwg.mxu0
        %s1721 = scalar_lea.vmem %s7, 24
        %v1722 = vld [vmem:[%s1721] sm:$0xf]
        %1724 = vset.pattern.permute.xlu0 0
        %1725 = vperm.xlu0 %1724, %v1722
        %v1726 = vpop.permute.xlu0 %1725
        %v1728 = vmul.f32 %v1718, %v1726
        %v1729 = vadd.f32 %v1617, %v1728
        %s1730 = scalar_lea.vmem [#allocation2], 448
        %v1731 = vld [vmem:[%s1730] sm:$0xff]
        %v1732 = vld [vmem:[%s1730 + $0x8] sm:$0xff]
        %v1733 = vld [vmem:[%s1730 + $0x10] sm:$0xff]
        %v1734 = vld [vmem:[%s1730 + $0x18] sm:$0xff]
        %v1735 = vld [vmem:[%s1730 + $0x20] sm:$0xff]
        %v1736 = vld [vmem:[%s1730 + $0x28] sm:$0xff]
        %v1737 = vld [vmem:[%s1730 + $0x30] sm:$0xff]
        %v1738 = vld [vmem:[%s1730 + $0x38] sm:$0xff]
        %v1740 = vsel %vm851, %v1731, 0
        %v1743 = vsel %vm851, %v1732, 0
        %v1746 = vsel %vm851, %v1733, 0
        %v1749 = vsel %vm851, %v1734, 0
        %v1752 = vsel %vm851, %v1735, 0
        %v1755 = vsel %vm851, %v1736, 0
        %v1758 = vsel %vm851, %v1737, 0
        %v1761 = vsel %vm851, %v1738, 0
        %1763 = vmatprep.subr.mxu0 0.0
        %1764 = vmatpush1.xpose.msra.mxu0 %v1740
        %1765 = vmatprep.subr.mxu0 0.0
        %1766 = vmatpush1.xpose.msra.mxu0 %v1743
        %1767 = vmatprep.subr.mxu0 0.0
        %1768 = vmatpush1.xpose.msra.mxu0 %v1746
        %1769 = vmatprep.subr.mxu0 0.0
        %1770 = vmatpush1.xpose.msra.mxu0 %v1749
        %1771 = vmatprep.subr.mxu0 0.0
        %1772 = vmatpush1.xpose.msra.mxu0 %v1752
        %1773 = vmatprep.subr.mxu0 0.0
        %1774 = vmatpush1.xpose.msra.mxu0 %v1755
        %1775 = vmatprep.subr.mxu0 0.0
        %1776 = vmatpush1.xpose.msra.mxu0 %v1758
        %1777 = vmatprep.subr.mxu0 0.0
        %1778 = vmatpush1.xpose.msra.mxu0 %v1761
        %1779 = vmatprep.subr.mxu0 0.0
        %1780 = vmatpush1.xpose.msra.mxu0 0.0
        %1781 = vmatprep.subr.mxu0 0.0
        %1782 = vmatpush1.xpose.msra.mxu0 0.0
        %1783 = vmatprep.subr.mxu0 0.0
        %1784 = vmatpush1.xpose.msra.mxu0 0.0
        %1785 = vmatprep.subr.mxu0 0.0
        %1786 = vmatpush1.xpose.msra.mxu0 0.0
        %1787 = vmatprep.subr.mxu0 0.0
        %1788 = vmatpush1.xpose.msra.mxu0 0.0
        %1789 = vmatprep.subr.mxu0 0.0
        %1790 = vmatpush1.xpose.msra.mxu0 0.0
        %1791 = vmatprep.subr.mxu0 0.0
        %1792 = vmatpush1.xpose.msra.mxu0 0.0
        %1793 = vmatprep.subr.mxu0 0.0
        %1794 = vmatpush1.xpose.msra.mxu0 0.0
        %1795 = vmatprep.subr.mxu0 0.0
        %1796 = vmatpush1.xpose.msra.mxu0 0.0
        %1797 = vmatprep.subr.mxu0 0.0
        %1798 = vmatpush1.xpose.msra.mxu0 0.0
        %1799 = vmatprep.subr.mxu0 0.0
        %1800 = vmatpush1.xpose.msra.mxu0 0.0
        %1801 = vmatprep.subr.mxu0 0.0
        %1802 = vmatpush1.xpose.msra.mxu0 0.0
        %1803 = vmatprep.subr.mxu0 0.0
        %1804 = vmatpush1.xpose.msra.mxu0 0.0
        %1805 = vmatprep.subr.mxu0 0.0
        %1806 = vmatpush1.xpose.msra.mxu0 0.0
        %1807 = vmatprep.subr.mxu0 0.0
        %1808 = vmatpush1.xpose.msra.mxu0 0.0
        %1809 = vmatprep.subr.mxu0 0.0
        %1810 = vmatpush1.xpose.msra.mxu0 0.0
        %1811 = vmatprep.subr.mxu0 0.0
        %1812 = vmatpush1.xpose.msra.mxu0 0.0
        %1813 = vmatprep.subr.mxu0 0.0
        %1814 = vmatpush1.xpose.msra.mxu0 0.0
        %1815 = vmatprep.subr.mxu0 0.0
        %1816 = vmatpush1.xpose.msra.mxu0 0.0
        %1817 = vmatprep.subr.mxu0 0.0
        %1818 = vmatpush1.xpose.msra.mxu0 0.0
        %1819 = vmatprep.subr.mxu0 0.0
        %1820 = vmatpush1.xpose.msra.mxu0 0.0
        %1821 = vmatprep.subr.mxu0 0.0
        %1822 = vmatpush1.xpose.msra.mxu0 0.0
        %1823 = vmatprep.subr.mxu0 0.0
        %1824 = vmatpush1.xpose.msra.mxu0 0.0
        %1825 = vmatprep.subr.mxu0 0.0
        %1826 = vmatpush1.xpose.msra.mxu0 0.0
        %1827 = vmatprep.mubr.f32.mxu0 0.0
        %1828 = vmatmul.mubr.f32.gmra.mrb[0].mxu0 %v949
        %v1829 = vpop.f32.mrb[0].mxu0
        %v1830 = vadd.f32 0.0, %v1829
        %v1831 = vpop.f32.mrb[0].mxu0
        %1832 = vdwg.mxu0
        %s1833 = scalar_lea.vmem %s7, 28
        %v1834 = vld [vmem:[%s1833] sm:$0xf]
        %1836 = vset.pattern.permute.xlu0 0
        %1837 = vperm.xlu0 %1836, %v1834
        %v1838 = vpop.permute.xlu0 %1837
        %v1840 = vmul.f32 %v1830, %v1838
        %v1841 = vadd.f32 %v1729, %v1840
        %s1842 = scalar_lea.vmem [#allocation2], 512
        %v1843 = vld [vmem:[%s1842] sm:$0xff]
        %v1844 = vld [vmem:[%s1842 + $0x8] sm:$0xff]
        %v1845 = vld [vmem:[%s1842 + $0x10] sm:$0xff]
        %v1846 = vld [vmem:[%s1842 + $0x18] sm:$0xff]
        %v1847 = vld [vmem:[%s1842 + $0x20] sm:$0xff]
        %v1848 = vld [vmem:[%s1842 + $0x28] sm:$0xff]
        %v1849 = vld [vmem:[%s1842 + $0x30] sm:$0xff]
        %v1850 = vld [vmem:[%s1842 + $0x38] sm:$0xff]
        %v1852 = vsel %vm851, %v1843, 0
        %v1855 = vsel %vm851, %v1844, 0
        %v1858 = vsel %vm851, %v1845, 0
        %v1861 = vsel %vm851, %v1846, 0
        %v1864 = vsel %vm851, %v1847, 0
        %v1867 = vsel %vm851, %v1848, 0
        %v1870 = vsel %vm851, %v1849, 0
        %v1873 = vsel %vm851, %v1850, 0
        %1875 = vmatprep.subr.mxu0 0.0
        %1876 = vmatpush1.xpose.msra.mxu0 %v1852
        %1877 = vmatprep.subr.mxu0 0.0
        %1878 = vmatpush1.xpose.msra.mxu0 %v1855
        %1879 = vmatprep.subr.mxu0 0.0
        %1880 = vmatpush1.xpose.msra.mxu0 %v1858
        %1881 = vmatprep.subr.mxu0 0.0
        %1882 = vmatpush1.xpose.msra.mxu0 %v1861
        %1883 = vmatprep.subr.mxu0 0.0
        %1884 = vmatpush1.xpose.msra.mxu0 %v1864
        %1885 = vmatprep.subr.mxu0 0.0
        %1886 = vmatpush1.xpose.msra.mxu0 %v1867
        %1887 = vmatprep.subr.mxu0 0.0
        %1888 = vmatpush1.xpose.msra.mxu0 %v1870
        %1889 = vmatprep.subr.mxu0 0.0
        %1890 = vmatpush1.xpose.msra.mxu0 %v1873
        %1891 = vmatprep.subr.mxu0 0.0
        %1892 = vmatpush1.xpose.msra.mxu0 0.0
        %1893 = vmatprep.subr.mxu0 0.0
        %1894 = vmatpush1.xpose.msra.mxu0 0.0
        %1895 = vmatprep.subr.mxu0 0.0
        %1896 = vmatpush1.xpose.msra.mxu0 0.0
        %1897 = vmatprep.subr.mxu0 0.0
        %1898 = vmatpush1.xpose.msra.mxu0 0.0
        %1899 = vmatprep.subr.mxu0 0.0
        %1900 = vmatpush1.xpose.msra.mxu0 0.0
        %1901 = vmatprep.subr.mxu0 0.0
        %1902 = vmatpush1.xpose.msra.mxu0 0.0
        %1903 = vmatprep.subr.mxu0 0.0
        %1904 = vmatpush1.xpose.msra.mxu0 0.0
        %1905 = vmatprep.subr.mxu0 0.0
        %1906 = vmatpush1.xpose.msra.mxu0 0.0
        %1907 = vmatprep.subr.mxu0 0.0
        %1908 = vmatpush1.xpose.msra.mxu0 0.0
        %1909 = vmatprep.subr.mxu0 0.0
        %1910 = vmatpush1.xpose.msra.mxu0 0.0
        %1911 = vmatprep.subr.mxu0 0.0
        %1912 = vmatpush1.xpose.msra.mxu0 0.0
        %1913 = vmatprep.subr.mxu0 0.0
        %1914 = vmatpush1.xpose.msra.mxu0 0.0
        %1915 = vmatprep.subr.mxu0 0.0
        %1916 = vmatpush1.xpose.msra.mxu0 0.0
        %1917 = vmatprep.subr.mxu0 0.0
        %1918 = vmatpush1.xpose.msra.mxu0 0.0
        %1919 = vmatprep.subr.mxu0 0.0
        %1920 = vmatpush1.xpose.msra.mxu0 0.0
        %1921 = vmatprep.subr.mxu0 0.0
        %1922 = vmatpush1.xpose.msra.mxu0 0.0
        %1923 = vmatprep.subr.mxu0 0.0
        %1924 = vmatpush1.xpose.msra.mxu0 0.0
        %1925 = vmatprep.subr.mxu0 0.0
        %1926 = vmatpush1.xpose.msra.mxu0 0.0
        %1927 = vmatprep.subr.mxu0 0.0
        %1928 = vmatpush1.xpose.msra.mxu0 0.0
        %1929 = vmatprep.subr.mxu0 0.0
        %1930 = vmatpush1.xpose.msra.mxu0 0.0
        %1931 = vmatprep.subr.mxu0 0.0
        %1932 = vmatpush1.xpose.msra.mxu0 0.0
        %1933 = vmatprep.subr.mxu0 0.0
        %1934 = vmatpush1.xpose.msra.mxu0 0.0
        %1935 = vmatprep.subr.mxu0 0.0
        %1936 = vmatpush1.xpose.msra.mxu0 0.0
        %1937 = vmatprep.subr.mxu0 0.0
        %1938 = vmatpush1.xpose.msra.mxu0 0.0
        %1939 = vmatprep.mubr.f32.mxu0 0.0
        %1940 = vmatmul.mubr.f32.gmra.mrb[0].mxu0 %v949
        %v1941 = vpop.f32.mrb[0].mxu0
        %v1942 = vadd.f32 0.0, %v1941
        %v1943 = vpop.f32.mrb[0].mxu0
        %1944 = vdwg.mxu0
        %s1945 = scalar_lea.vmem %s7, 32
        %v1946 = vld [vmem:[%s1945] sm:$0xf]
        %1948 = vset.pattern.permute.xlu0 0
        %1949 = vperm.xlu0 %1948, %v1946
        %v1950 = vpop.permute.xlu0 %1949
        %v1952 = vmul.f32 %v1942, %v1950
        %v1953 = vadd.f32 %v1841, %v1952
        %v1955 = vsel %vm851, %v925, 0
        %v1958 = vsel %vm851, %v927, 0
        %v1961 = vsel %vm851, %v929, 0
        %v1964 = vsel %vm851, %v931, 0
        %v1967 = vsel %vm851, %v933, 0
        %v1970 = vsel %vm851, %v935, 0
        %v1973 = vsel %vm851, %v937, 0
        %v1976 = vsel %vm851, %v939, 0
        %1978 = vmatprep.subr.mxu0 0.0
        %1979 = vmatpush1.xpose.msra.mxu0 %v1955
        %1980 = vmatprep.subr.mxu0 0.0
        %1981 = vmatpush1.xpose.msra.mxu0 %v1958
        %1982 = vmatprep.subr.mxu0 0.0
        %1983 = vmatpush1.xpose.msra.mxu0 %v1961
        %1984 = vmatprep.subr.mxu0 0.0
        %1985 = vmatpush1.xpose.msra.mxu0 %v1964
        %1986 = vmatprep.subr.mxu0 0.0
        %1987 = vmatpush1.xpose.msra.mxu0 %v1967
        %1988 = vmatprep.subr.mxu0 0.0
        %1989 = vmatpush1.xpose.msra.mxu0 %v1970
        %1990 = vmatprep.subr.mxu0 0.0
        %1991 = vmatpush1.xpose.msra.mxu0 %v1973
        %1992 = vmatprep.subr.mxu0 0.0
        %1993 = vmatpush1.xpose.msra.mxu0 %v1976
        %1994 = vmatprep.subr.mxu0 0.0
        %1995 = vmatpush1.xpose.msra.mxu0 0.0
        %1996 = vmatprep.subr.mxu0 0.0
        %1997 = vmatpush1.xpose.msra.mxu0 0.0
        %1998 = vmatprep.subr.mxu0 0.0
        %1999 = vmatpush1.xpose.msra.mxu0 0.0
        %2000 = vmatprep.subr.mxu0 0.0
        %2001 = vmatpush1.xpose.msra.mxu0 0.0
        %2002 = vmatprep.subr.mxu0 0.0
        %2003 = vmatpush1.xpose.msra.mxu0 0.0
        %2004 = vmatprep.subr.mxu0 0.0
        %2005 = vmatpush1.xpose.msra.mxu0 0.0
        %2006 = vmatprep.subr.mxu0 0.0
        %2007 = vmatpush1.xpose.msra.mxu0 0.0
        %2008 = vmatprep.subr.mxu0 0.0
        %2009 = vmatpush1.xpose.msra.mxu0 0.0
        %2010 = vmatprep.subr.mxu0 0.0
        %2011 = vmatpush1.xpose.msra.mxu0 0.0
        %2012 = vmatprep.subr.mxu0 0.0
        %2013 = vmatpush1.xpose.msra.mxu0 0.0
        %2014 = vmatprep.subr.mxu0 0.0
        %2015 = vmatpush1.xpose.msra.mxu0 0.0
        %2016 = vmatprep.subr.mxu0 0.0
        %2017 = vmatpush1.xpose.msra.mxu0 0.0
        %2018 = vmatprep.subr.mxu0 0.0
        %2019 = vmatpush1.xpose.msra.mxu0 0.0
        %2020 = vmatprep.subr.mxu0 0.0
        %2021 = vmatpush1.xpose.msra.mxu0 0.0
        %2022 = vmatprep.subr.mxu0 0.0
        %2023 = vmatpush1.xpose.msra.mxu0 0.0
        %2024 = vmatprep.subr.mxu0 0.0
        %2025 = vmatpush1.xpose.msra.mxu0 0.0
        %2026 = vmatprep.subr.mxu0 0.0
        %2027 = vmatpush1.xpose.msra.mxu0 0.0
        %2028 = vmatprep.subr.mxu0 0.0
        %2029 = vmatpush1.xpose.msra.mxu0 0.0
        %2030 = vmatprep.subr.mxu0 0.0
        %2031 = vmatpush1.xpose.msra.mxu0 0.0
        %2032 = vmatprep.subr.mxu0 0.0
        %2033 = vmatpush1.xpose.msra.mxu0 0.0
        %2034 = vmatprep.subr.mxu0 0.0
        %2035 = vmatpush1.xpose.msra.mxu0 0.0
        %2036 = vmatprep.subr.mxu0 0.0
        %2037 = vmatpush1.xpose.msra.mxu0 0.0
        %2038 = vmatprep.subr.mxu0 0.0
        %2039 = vmatpush1.xpose.msra.mxu0 0.0
        %2040 = vmatprep.subr.mxu0 0.0
        %2041 = vmatpush1.xpose.msra.mxu0 0.0
        %2042 = vmatprep.mubr.f32.mxu0 0.0
        %2043 = vmatmul.mubr.f32.gmra.mrb[0].mxu0 %v949
        %v2044 = vpop.f32.mrb[0].mxu0
        %v2045 = vadd.f32 %v1953, %v2044
        %v2046 = vpop.f32.mrb[0].mxu0
        %2047 = vdwg.mxu0
        %2049 = vset.pattern.permute.xlu0 0
        %2050 = vperm.xlu0 %2049, %v438
        %v2051 = vpop.permute.xlu0 %2050
        %v2054 = vsel %vm445, %v433, 0
        %v2057 = vsel %vm449, %v2045, 0
        %2059 = vmatprep.subr.mxu0 0.0
        %2060 = vmatpush1.msra.mxu0 %v2057
        %2061 = vmatprep.subr.mxu0 0.0
        %2062 = vmatpush1.msra.mxu0 0.0
        %2063 = vmatprep.subr.mxu0 0.0
        %2064 = vmatpush1.msra.mxu0 0.0
        %2065 = vmatprep.subr.mxu0 0.0
        %2066 = vmatpush1.msra.mxu0 0.0
        %2067 = vmatprep.subr.mxu0 0.0
        %2068 = vmatpush1.msra.mxu0 0.0
        %2069 = vmatprep.subr.mxu0 0.0
        %2070 = vmatpush1.msra.mxu0 0.0
        %2071 = vmatprep.subr.mxu0 0.0
        %2072 = vmatpush1.msra.mxu0 0.0
        %2073 = vmatprep.subr.mxu0 0.0
        %2074 = vmatpush1.msra.mxu0 0.0
        %2075 = vmatprep.subr.mxu0 0.0
        %2076 = vmatpush1.msra.mxu0 0.0
        %2077 = vmatprep.subr.mxu0 0.0
        %2078 = vmatpush1.msra.mxu0 0.0
        %2079 = vmatprep.subr.mxu0 0.0
        %2080 = vmatpush1.msra.mxu0 0.0
        %2081 = vmatprep.subr.mxu0 0.0
        %2082 = vmatpush1.msra.mxu0 0.0
        %2083 = vmatprep.subr.mxu0 0.0
        %2084 = vmatpush1.msra.mxu0 0.0
        %2085 = vmatprep.subr.mxu0 0.0
        %2086 = vmatpush1.msra.mxu0 0.0
        %2087 = vmatprep.subr.mxu0 0.0
        %2088 = vmatpush1.msra.mxu0 0.0
        %2089 = vmatprep.subr.mxu0 0.0
        %2090 = vmatpush1.msra.mxu0 0.0
        %2091 = vmatprep.subr.mxu0 0.0
        %2092 = vmatpush1.msra.mxu0 0.0
        %2093 = vmatprep.subr.mxu0 0.0
        %2094 = vmatpush1.msra.mxu0 0.0
        %2095 = vmatprep.subr.mxu0 0.0
        %2096 = vmatpush1.msra.mxu0 0.0
        %2097 = vmatprep.subr.mxu0 0.0
        %2098 = vmatpush1.msra.mxu0 0.0
        %2099 = vmatprep.subr.mxu0 0.0
        %2100 = vmatpush1.msra.mxu0 0.0
        %2101 = vmatprep.subr.mxu0 0.0
        %2102 = vmatpush1.msra.mxu0 0.0
        %2103 = vmatprep.subr.mxu0 0.0
        %2104 = vmatpush1.msra.mxu0 0.0
        %2105 = vmatprep.subr.mxu0 0.0
        %2106 = vmatpush1.msra.mxu0 0.0
        %2107 = vmatprep.subr.mxu0 0.0
        %2108 = vmatpush1.msra.mxu0 0.0
        %2109 = vmatprep.subr.mxu0 0.0
        %2110 = vmatpush1.msra.mxu0 0.0
        %2111 = vmatprep.subr.mxu0 0.0
        %2112 = vmatpush1.msra.mxu0 0.0
        %2113 = vmatprep.subr.mxu0 0.0
        %2114 = vmatpush1.msra.mxu0 0.0
        %2115 = vmatprep.subr.mxu0 0.0
        %2116 = vmatpush1.msra.mxu0 0.0
        %2117 = vmatprep.subr.mxu0 0.0
        %2118 = vmatpush1.msra.mxu0 0.0
        %2119 = vmatprep.subr.mxu0 0.0
        %2120 = vmatpush1.msra.mxu0 0.0
        %2121 = vmatprep.subr.mxu0 0.0
        %2122 = vmatpush1.msra.mxu0 0.0
        %2123 = vmatprep.mubr.f32.mxu0 0.0
        %2124 = vmatmul.mubr.f32.gmra.mrb[0].mxu0 %v2054
        %v2125 = vpop.f32.mrb[0].mxu0
        %v2126 = vadd.f32 %v2051, %v2125
        %v2127 = vpop.f32.mrb[0].mxu0
        %2128 = vdwg.mxu0
        %vm2129 = vcmask 519168
        %2130 = vst.msk [vmem:[%s422] sm:$0xf] %vm2129, %v2126
        %s2131 = scalar_lea.vmem %s427, 4
        %v2132 = vld [vmem:[%s2131] sm:$0xf]
        %v2134 = vsel %vm449, %v2132, 0
        %2136 = vmatprep.subr.mxu0 0.0
        %2137 = vmatpush1.msra.mxu0 %v2134
        %2138 = vmatprep.subr.mxu0 0.0
        %2139 = vmatpush1.msra.mxu0 0.0
        %2140 = vmatprep.subr.mxu0 0.0
        %2141 = vmatpush1.msra.mxu0 0.0
        %2142 = vmatprep.subr.mxu0 0.0
        %2143 = vmatpush1.msra.mxu0 0.0
        %2144 = vmatprep.subr.mxu0 0.0
        %2145 = vmatpush1.msra.mxu0 0.0
        %2146 = vmatprep.subr.mxu0 0.0
        %2147 = vmatpush1.msra.mxu0 0.0
        %2148 = vmatprep.subr.mxu0 0.0
        %2149 = vmatpush1.msra.mxu0 0.0
        %2150 = vmatprep.subr.mxu0 0.0
        %2151 = vmatpush1.msra.mxu0 0.0
        %2152 = vmatprep.subr.mxu0 0.0
        %2153 = vmatpush1.msra.mxu0 0.0
        %2154 = vmatprep.subr.mxu0 0.0
        %2155 = vmatpush1.msra.mxu0 0.0
        %2156 = vmatprep.subr.mxu0 0.0
        %2157 = vmatpush1.msra.mxu0 0.0
        %2158 = vmatprep.subr.mxu0 0.0
        %2159 = vmatpush1.msra.mxu0 0.0
        %2160 = vmatprep.subr.mxu0 0.0
        %2161 = vmatpush1.msra.mxu0 0.0
        %2162 = vmatprep.subr.mxu0 0.0
        %2163 = vmatpush1.msra.mxu0 0.0
        %2164 = vmatprep.subr.mxu0 0.0
        %2165 = vmatpush1.msra.mxu0 0.0
        %2166 = vmatprep.subr.mxu0 0.0
        %2167 = vmatpush1.msra.mxu0 0.0
        %2168 = vmatprep.subr.mxu0 0.0
        %2169 = vmatpush1.msra.mxu0 0.0
        %2170 = vmatprep.subr.mxu0 0.0
        %2171 = vmatpush1.msra.mxu0 0.0
        %2172 = vmatprep.subr.mxu0 0.0
        %2173 = vmatpush1.msra.mxu0 0.0
        %2174 = vmatprep.subr.mxu0 0.0
        %2175 = vmatpush1.msra.mxu0 0.0
        %2176 = vmatprep.subr.mxu0 0.0
        %2177 = vmatpush1.msra.mxu0 0.0
        %2178 = vmatprep.subr.mxu0 0.0
        %2179 = vmatpush1.msra.mxu0 0.0
        %2180 = vmatprep.subr.mxu0 0.0
        %2181 = vmatpush1.msra.mxu0 0.0
        %2182 = vmatprep.subr.mxu0 0.0
        %2183 = vmatpush1.msra.mxu0 0.0
        %2184 = vmatprep.subr.mxu0 0.0
        %2185 = vmatpush1.msra.mxu0 0.0
        %2186 = vmatprep.subr.mxu0 0.0
        %2187 = vmatpush1.msra.mxu0 0.0
        %2188 = vmatprep.subr.mxu0 0.0
        %2189 = vmatpush1.msra.mxu0 0.0
        %2190 = vmatprep.subr.mxu0 0.0
        %2191 = vmatpush1.msra.mxu0 0.0
        %2192 = vmatprep.subr.mxu0 0.0
        %2193 = vmatpush1.msra.mxu0 0.0
        %2194 = vmatprep.subr.mxu0 0.0
        %2195 = vmatpush1.msra.mxu0 0.0
        %2196 = vmatprep.subr.mxu0 0.0
        %2197 = vmatpush1.msra.mxu0 0.0
        %2198 = vmatprep.subr.mxu0 0.0
        %2199 = vmatpush1.msra.mxu0 0.0
        %2200 = vmatprep.mubr.f32.mxu0 0.0
        %2201 = vmatmul.mubr.f32.gmra.mrb[0].mxu0 %v447
        %v2202 = vpop.f32.mrb[0].mxu0
        %v2203 = vadd.f32 %v443, %v2202
        %v2204 = vpop.f32.mrb[0].mxu0
        %2205 = vdwg.mxu0
        %2206 = vmatprep.subr.mxu0 0.0
        %2207 = vmatpush1.msra.mxu0 %v2134
        %2208 = vmatprep.subr.mxu0 0.0
        %2209 = vmatpush1.msra.mxu0 0.0
        %2210 = vmatprep.subr.mxu0 0.0
        %2211 = vmatpush1.msra.mxu0 0.0
        %2212 = vmatprep.subr.mxu0 0.0
        %2213 = vmatpush1.msra.mxu0 0.0
        %2214 = vmatprep.subr.mxu0 0.0
        %2215 = vmatpush1.msra.mxu0 0.0
        %2216 = vmatprep.subr.mxu0 0.0
        %2217 = vmatpush1.msra.mxu0 0.0
        %2218 = vmatprep.subr.mxu0 0.0
        %2219 = vmatpush1.msra.mxu0 0.0
        %2220 = vmatprep.subr.mxu0 0.0
        %2221 = vmatpush1.msra.mxu0 0.0
        %2222 = vmatprep.subr.mxu0 0.0
        %2223 = vmatpush1.msra.mxu0 0.0
        %2224 = vmatprep.subr.mxu0 0.0
        %2225 = vmatpush1.msra.mxu0 0.0
        %2226 = vmatprep.subr.mxu0 0.0
        %2227 = vmatpush1.msra.mxu0 0.0
        %2228 = vmatprep.subr.mxu0 0.0
        %2229 = vmatpush1.msra.mxu0 0.0
        %2230 = vmatprep.subr.mxu0 0.0
        %2231 = vmatpush1.msra.mxu0 0.0
        %2232 = vmatprep.subr.mxu0 0.0
        %2233 = vmatpush1.msra.mxu0 0.0
        %2234 = vmatprep.subr.mxu0 0.0
        %2235 = vmatpush1.msra.mxu0 0.0
        %2236 = vmatprep.subr.mxu0 0.0
        %2237 = vmatpush1.msra.mxu0 0.0
        %2238 = vmatprep.subr.mxu0 0.0
        %2239 = vmatpush1.msra.mxu0 0.0
        %2240 = vmatprep.subr.mxu0 0.0
        %2241 = vmatpush1.msra.mxu0 0.0
        %2242 = vmatprep.subr.mxu0 0.0
        %2243 = vmatpush1.msra.mxu0 0.0
        %2244 = vmatprep.subr.mxu0 0.0
        %2245 = vmatpush1.msra.mxu0 0.0
        %2246 = vmatprep.subr.mxu0 0.0
        %2247 = vmatpush1.msra.mxu0 0.0
        %2248 = vmatprep.subr.mxu0 0.0
        %2249 = vmatpush1.msra.mxu0 0.0
        %2250 = vmatprep.subr.mxu0 0.0
        %2251 = vmatpush1.msra.mxu0 0.0
        %2252 = vmatprep.subr.mxu0 0.0
        %2253 = vmatpush1.msra.mxu0 0.0
        %2254 = vmatprep.subr.mxu0 0.0
        %2255 = vmatpush1.msra.mxu0 0.0
        %2256 = vmatprep.subr.mxu0 0.0
        %2257 = vmatpush1.msra.mxu0 0.0
        %2258 = vmatprep.subr.mxu0 0.0
        %2259 = vmatpush1.msra.mxu0 0.0
        %2260 = vmatprep.subr.mxu0 0.0
        %2261 = vmatpush1.msra.mxu0 0.0
        %2262 = vmatprep.subr.mxu0 0.0
        %2263 = vmatpush1.msra.mxu0 0.0
        %2264 = vmatprep.subr.mxu0 0.0
        %2265 = vmatpush1.msra.mxu0 0.0
        %2266 = vmatprep.subr.mxu0 0.0
        %2267 = vmatpush1.msra.mxu0 0.0
        %2268 = vmatprep.subr.mxu0 0.0
        %2269 = vmatpush1.msra.mxu0 0.0
        %2270 = vmatprep.mubr.f32.mxu0 0.0
        %2271 = vmatmul.mubr.f32.gmra.mrb[0].mxu0 %v529
        %v2272 = vpop.f32.mrb[0].mxu0
        %v2273 = vadd.f32 %v526, %v2272
        %v2274 = vpop.f32.mrb[0].mxu0
        %2275 = vdwg.mxu0
        %2276 = vmatprep.subr.mxu0 0.0
        %2277 = vmatpush1.msra.mxu0 %v2134
        %2278 = vmatprep.subr.mxu0 0.0
        %2279 = vmatpush1.msra.mxu0 0.0
        %2280 = vmatprep.subr.mxu0 0.0
        %2281 = vmatpush1.msra.mxu0 0.0
        %2282 = vmatprep.subr.mxu0 0.0
        %2283 = vmatpush1.msra.mxu0 0.0
        %2284 = vmatprep.subr.mxu0 0.0
        %2285 = vmatpush1.msra.mxu0 0.0
        %2286 = vmatprep.subr.mxu0 0.0
        %2287 = vmatpush1.msra.mxu0 0.0
        %2288 = vmatprep.subr.mxu0 0.0
        %2289 = vmatpush1.msra.mxu0 0.0
        %2290 = vmatprep.subr.mxu0 0.0
        %2291 = vmatpush1.msra.mxu0 0.0
        %2292 = vmatprep.subr.mxu0 0.0
        %2293 = vmatpush1.msra.mxu0 0.0
        %2294 = vmatprep.subr.mxu0 0.0
        %2295 = vmatpush1.msra.mxu0 0.0
        %2296 = vmatprep.subr.mxu0 0.0
        %2297 = vmatpush1.msra.mxu0 0.0
        %2298 = vmatprep.subr.mxu0 0.0
        %2299 = vmatpush1.msra.mxu0 0.0
        %2300 = vmatprep.subr.mxu0 0.0
        %2301 = vmatpush1.msra.mxu0 0.0
        %2302 = vmatprep.subr.mxu0 0.0
        %2303 = vmatpush1.msra.mxu0 0.0
        %2304 = vmatprep.subr.mxu0 0.0
        %2305 = vmatpush1.msra.mxu0 0.0
        %2306 = vmatprep.subr.mxu0 0.0
        %2307 = vmatpush1.msra.mxu0 0.0
        %2308 = vmatprep.subr.mxu0 0.0
        %2309 = vmatpush1.msra.mxu0 0.0
        %2310 = vmatprep.subr.mxu0 0.0
        %2311 = vmatpush1.msra.mxu0 0.0
        %2312 = vmatprep.subr.mxu0 0.0
        %2313 = vmatpush1.msra.mxu0 0.0
        %2314 = vmatprep.subr.mxu0 0.0
        %2315 = vmatpush1.msra.mxu0 0.0
        %2316 = vmatprep.subr.mxu0 0.0
        %2317 = vmatpush1.msra.mxu0 0.0
        %2318 = vmatprep.subr.mxu0 0.0
        %2319 = vmatpush1.msra.mxu0 0.0
        %2320 = vmatprep.subr.mxu0 0.0
        %2321 = vmatpush1.msra.mxu0 0.0
        %2322 = vmatprep.subr.mxu0 0.0
        %2323 = vmatpush1.msra.mxu0 0.0
        %2324 = vmatprep.subr.mxu0 0.0
        %2325 = vmatpush1.msra.mxu0 0.0
        %2326 = vmatprep.subr.mxu0 0.0
        %2327 = vmatpush1.msra.mxu0 0.0
        %2328 = vmatprep.subr.mxu0 0.0
        %2329 = vmatpush1.msra.mxu0 0.0
        %2330 = vmatprep.subr.mxu0 0.0
        %2331 = vmatpush1.msra.mxu0 0.0
        %2332 = vmatprep.subr.mxu0 0.0
        %2333 = vmatpush1.msra.mxu0 0.0
        %2334 = vmatprep.subr.mxu0 0.0
        %2335 = vmatpush1.msra.mxu0 0.0
        %2336 = vmatprep.subr.mxu0 0.0
        %2337 = vmatpush1.msra.mxu0 0.0
        %2338 = vmatprep.subr.mxu0 0.0
        %2339 = vmatpush1.msra.mxu0 0.0
        %2340 = vmatprep.mubr.f32.mxu0 0.0
        %2341 = vmatmul.mubr.f32.gmra.mrb[0].mxu0 %v607
        %v2342 = vpop.f32.mrb[0].mxu0
        %v2343 = vadd.f32 %v604, %v2342
        %v2344 = vpop.f32.mrb[0].mxu0
        %2345 = vdwg.mxu0
        %2346 = vxpose.xlu0.b32.start [1/16] %v2203, 128
        %2347 = vxpose.xlu0.b32.cont [2/16] 0.0, 128
        %2348 = vxpose.xlu0.b32.cont [3/16] 0.0, 128
        %2349 = vxpose.xlu0.b32.cont [4/16] 0.0, 128
        %2350 = vxpose.xlu0.b32.cont [5/16] 0.0, 128
        %2351 = vxpose.xlu0.b32.cont [6/16] 0.0, 128
        %2352 = vxpose.xlu0.b32.cont [7/16] 0.0, 128
        %2353 = vxpose.xlu0.b32.cont [8/16] 0.0, 128
        %2354 = vxpose.xlu0.b32.cont [9/16] 0.0, 128
        %2355 = vxpose.xlu0.b32.cont [10/16] 0.0, 128
        %2356 = vxpose.xlu0.b32.cont [11/16] 0.0, 128
        %2357 = vxpose.xlu0.b32.cont [12/16] 0.0, 128
        %2358 = vxpose.xlu0.b32.cont [13/16] 0.0, 128
        %2359 = vxpose.xlu0.b32.cont [14/16] 0.0, 128
        %2360 = vxpose.xlu0.b32.cont [15/16] 0.0, 128
        %2361 = vxpose.xlu0.b32.end [16/16] 0.0, 128
        %v2362 = vpop.trf.xlu0
        %v2363 = vpop.trf.xlu0
        %v2364 = vpop.trf.xlu0
        %v2365 = vpop.trf.xlu0
        %v2366 = vpop.trf.xlu0
        %v2367 = vpop.trf.xlu0
        %v2368 = vpop.trf.xlu0
        %v2369 = vpop.trf.xlu0
        %v2370 = vpop.trf.xlu0
        %v2371 = vpop.trf.xlu0
        %v2372 = vpop.trf.xlu0
        %v2373 = vpop.trf.xlu0
        %v2374 = vpop.trf.xlu0
        %v2375 = vpop.trf.xlu0
        %v2376 = vpop.trf.xlu0
        %v2377 = vpop.trf.xlu0
        %v2379 = vsel %vm445, %v2362, 0
        %v2382 = vsel %vm445, %v2363, 0
        %v2385 = vsel %vm445, %v2364, 0
        %v2388 = vsel %vm445, %v2365, 0
        %v2391 = vsel %vm445, %v2366, 0
        %v2394 = vsel %vm445, %v2367, 0
        %v2397 = vsel %vm445, %v2368, 0
        %v2400 = vsel %vm445, %v2369, 0
        %v2403 = vsel %vm449, %v2273, 0
        %2405 = vmatprep.subr.mxu0 0.0
        %2406 = vmatpush1.msra.mxu0 %v2403
        %2407 = vmatprep.subr.mxu0 0.0
        %2408 = vmatpush1.msra.mxu0 0.0
        %2409 = vmatprep.subr.mxu0 0.0
        %2410 = vmatpush1.msra.mxu0 0.0
        %2411 = vmatprep.subr.mxu0 0.0
        %2412 = vmatpush1.msra.mxu0 0.0
        %2413 = vmatprep.subr.mxu0 0.0
        %2414 = vmatpush1.msra.mxu0 0.0
        %2415 = vmatprep.subr.mxu0 0.0
        %2416 = vmatpush1.msra.mxu0 0.0
        %2417 = vmatprep.subr.mxu0 0.0
        %2418 = vmatpush1.msra.mxu0 0.0
        %2419 = vmatprep.subr.mxu0 0.0
        %2420 = vmatpush1.msra.mxu0 0.0
        %2421 = vmatprep.subr.mxu0 0.0
        %2422 = vmatpush1.msra.mxu0 0.0
        %2423 = vmatprep.subr.mxu0 0.0
        %2424 = vmatpush1.msra.mxu0 0.0
        %2425 = vmatprep.subr.mxu0 0.0
        %2426 = vmatpush1.msra.mxu0 0.0
        %2427 = vmatprep.subr.mxu0 0.0
        %2428 = vmatpush1.msra.mxu0 0.0
        %2429 = vmatprep.subr.mxu0 0.0
        %2430 = vmatpush1.msra.mxu0 0.0
        %2431 = vmatprep.subr.mxu0 0.0
        %2432 = vmatpush1.msra.mxu0 0.0
        %2433 = vmatprep.subr.mxu0 0.0
        %2434 = vmatpush1.msra.mxu0 0.0
        %2435 = vmatprep.subr.mxu0 0.0
        %2436 = vmatpush1.msra.mxu0 0.0
        %2437 = vmatprep.subr.mxu0 0.0
        %2438 = vmatpush1.msra.mxu0 0.0
        %2439 = vmatprep.subr.mxu0 0.0
        %2440 = vmatpush1.msra.mxu0 0.0
        %2441 = vmatprep.subr.mxu0 0.0
        %2442 = vmatpush1.msra.mxu0 0.0
        %2443 = vmatprep.subr.mxu0 0.0
        %2444 = vmatpush1.msra.mxu0 0.0
        %2445 = vmatprep.subr.mxu0 0.0
        %2446 = vmatpush1.msra.mxu0 0.0
        %2447 = vmatprep.subr.mxu0 0.0
        %2448 = vmatpush1.msra.mxu0 0.0
        %2449 = vmatprep.subr.mxu0 0.0
        %2450 = vmatpush1.msra.mxu0 0.0
        %2451 = vmatprep.subr.mxu0 0.0
        %2452 = vmatpush1.msra.mxu0 0.0
        %2453 = vmatprep.subr.mxu0 0.0
        %2454 = vmatpush1.msra.mxu0 0.0
        %2455 = vmatprep.subr.mxu0 0.0
        %2456 = vmatpush1.msra.mxu0 0.0
        %2457 = vmatprep.subr.mxu0 0.0
        %2458 = vmatpush1.msra.mxu0 0.0
        %2459 = vmatprep.subr.mxu0 0.0
        %2460 = vmatpush1.msra.mxu0 0.0
        %2461 = vmatprep.subr.mxu0 0.0
        %2462 = vmatpush1.msra.mxu0 0.0
        %2463 = vmatprep.subr.mxu0 0.0
        %2464 = vmatpush1.msra.mxu0 0.0
        %2465 = vmatprep.subr.mxu0 0.0
        %2466 = vmatpush1.msra.mxu0 0.0
        %2467 = vmatprep.subr.mxu0 0.0
        %2468 = vmatpush1.msra.mxu0 0.0
        %2469 = vmatprep.mubr.f32.mxu0 0.0
        %2470 = vmatmul.mubr.f32.gmra.mrb[0].mxu0 %v2379
        %v2471 = vpop.f32.mrb[0].mxu0
        %v2472 = vadd.f32 0.0, %v2471
        %v2473 = vpop.f32.mrb[0].mxu0
        %2474 = vmatprep.mubr.f32.mxu0 0.0
        %2475 = vmatmul.mubr.f32.gmra.mrb[0].mxu0 %v2382
        %v2476 = vpop.f32.mrb[0].mxu0
        %v2477 = vadd.f32 0.0, %v2476
        %v2478 = vpop.f32.mrb[0].mxu0
        %2479 = vmatprep.mubr.f32.mxu0 0.0
        %2480 = vmatmul.mubr.f32.gmra.mrb[0].mxu0 %v2385
        %v2481 = vpop.f32.mrb[0].mxu0
        %v2482 = vadd.f32 0.0, %v2481
        %v2483 = vpop.f32.mrb[0].mxu0
        %2484 = vmatprep.mubr.f32.mxu0 0.0
        %2485 = vmatmul.mubr.f32.gmra.mrb[0].mxu0 %v2388
        %v2486 = vpop.f32.mrb[0].mxu0
        %v2487 = vadd.f32 0.0, %v2486
        %v2488 = vpop.f32.mrb[0].mxu0
        %2489 = vmatprep.mubr.f32.mxu0 0.0
        %2490 = vmatmul.mubr.f32.gmra.mrb[0].mxu0 %v2391
        %v2491 = vpop.f32.mrb[0].mxu0
        %v2492 = vadd.f32 0.0, %v2491
        %v2493 = vpop.f32.mrb[0].mxu0
        %2494 = vmatprep.mubr.f32.mxu0 0.0
        %2495 = vmatmul.mubr.f32.gmra.mrb[0].mxu0 %v2394
        %v2496 = vpop.f32.mrb[0].mxu0
        %v2497 = vadd.f32 0.0, %v2496
        %v2498 = vpop.f32.mrb[0].mxu0
        %2499 = vmatprep.mubr.f32.mxu0 0.0
        %2500 = vmatmul.mubr.f32.gmra.mrb[0].mxu0 %v2397
        %v2501 = vpop.f32.mrb[0].mxu0
        %v2502 = vadd.f32 0.0, %v2501
        %v2503 = vpop.f32.mrb[0].mxu0
        %2504 = vmatprep.mubr.f32.mxu0 0.0
        %2505 = vmatmul.mubr.f32.gmra.mrb[0].mxu0 %v2400
        %v2506 = vpop.f32.mrb[0].mxu0
        %v2507 = vadd.f32 0.0, %v2506
        %v2508 = vpop.f32.mrb[0].mxu0
        %2509 = vdwg.mxu0
        %v2510 = vmul.f32 %v2472, 0.5
        %v2511 = vmul.f32 %v2477, 0.5
        %v2512 = vmul.f32 %v2482, 0.5
        %v2513 = vmul.f32 %v2487, 0.5
        %v2514 = vmul.f32 %v2492, 0.5
        %v2515 = vmul.f32 %v2497, 0.5
        %v2516 = vmul.f32 %v2502, 0.5
        %v2517 = vmul.f32 %v2507, 0.5
        %v2518 = vsel %vm851, %v2510, -inf
        %2519 = vmax.xlane.f32.xlu0 %v2518
        %v2520 = vpop.xlane.xlu0 %2519
        %v2521 = vsel %vm851, %v2511, -inf
        %2522 = vmax.xlane.f32.xlu0 %v2521
        %v2523 = vpop.xlane.xlu0 %2522
        %v2524 = vsel %vm851, %v2512, -inf
        %2525 = vmax.xlane.f32.xlu0 %v2524
        %v2526 = vpop.xlane.xlu0 %2525
        %v2527 = vsel %vm851, %v2513, -inf
        %2528 = vmax.xlane.f32.xlu0 %v2527
        %v2529 = vpop.xlane.xlu0 %2528
        %v2530 = vsel %vm851, %v2514, -inf
        %2531 = vmax.xlane.f32.xlu0 %v2530
        %v2532 = vpop.xlane.xlu0 %2531
        %v2533 = vsel %vm851, %v2515, -inf
        %2534 = vmax.xlane.f32.xlu0 %v2533
        %v2535 = vpop.xlane.xlu0 %2534
        %v2536 = vsel %vm851, %v2516, -inf
        %2537 = vmax.xlane.f32.xlu0 %v2536
        %v2538 = vpop.xlane.xlu0 %2537
        %v2539 = vsel %vm851, %v2517, -inf
        %2540 = vmax.xlane.f32.xlu0 %v2539
        %v2541 = vpop.xlane.xlu0 %2540
        %v2542 = vsub.f32 %v2510, %v2520
        %v2543 = vsub.f32 %v2511, %v2523
        %v2544 = vsub.f32 %v2512, %v2526
        %v2545 = vsub.f32 %v2513, %v2529
        %v2546 = vsub.f32 %v2514, %v2532
        %v2547 = vsub.f32 %v2515, %v2535
        %v2548 = vsub.f32 %v2516, %v2538
        %v2549 = vsub.f32 %v2517, %v2541
        %v2550 = vmul.f32 %v2542, 1.442695
        %v2551 = vpow.pop %v2550
        %v2552 = vmul.f32 %v2543, 1.442695
        %v2553 = vpow.pop %v2552
        %v2554 = vmul.f32 %v2544, 1.442695
        %v2555 = vpow.pop %v2554
        %v2556 = vmul.f32 %v2545, 1.442695
        %v2557 = vpow.pop %v2556
        %v2558 = vmul.f32 %v2546, 1.442695
        %v2559 = vpow.pop %v2558
        %v2560 = vmul.f32 %v2547, 1.442695
        %v2561 = vpow.pop %v2560
        %v2562 = vmul.f32 %v2548, 1.442695
        %v2563 = vpow.pop %v2562
        %v2564 = vmul.f32 %v2549, 1.442695
        %v2565 = vpow.pop %v2564
        %v2566 = vsel %vm851, %v2551, 0.0
        %2567 = vadd.xlane.f32.xlu0 %v2566
        %v2568 = vpop.xlane.xlu0 %2567
        %v2569 = vsel %vm851, %v2553, 0.0
        %2570 = vadd.xlane.f32.xlu0 %v2569
        %v2571 = vpop.xlane.xlu0 %2570
        %v2572 = vsel %vm851, %v2555, 0.0
        %2573 = vadd.xlane.f32.xlu0 %v2572
        %v2574 = vpop.xlane.xlu0 %2573
        %v2575 = vsel %vm851, %v2557, 0.0
        %2576 = vadd.xlane.f32.xlu0 %v2575
        %v2577 = vpop.xlane.xlu0 %2576
        %v2578 = vsel %vm851, %v2559, 0.0
        %2579 = vadd.xlane.f32.xlu0 %v2578
        %v2580 = vpop.xlane.xlu0 %2579
        %v2581 = vsel %vm851, %v2561, 0.0
        %2582 = vadd.xlane.f32.xlu0 %v2581
        %v2583 = vpop.xlane.xlu0 %2582
        %v2584 = vsel %vm851, %v2563, 0.0
        %2585 = vadd.xlane.f32.xlu0 %v2584
        %v2586 = vpop.xlane.xlu0 %2585
        %v2587 = vsel %vm851, %v2565, 0.0
        %2588 = vadd.xlane.f32.xlu0 %v2587
        %v2589 = vpop.xlane.xlu0 %2588
        %v2590 = vrcp.pop %v2568
        %v2591 = vmul.f32 %v2551, %v2590
        %v2592 = vrcp.pop %v2571
        %v2593 = vmul.f32 %v2553, %v2592
        %v2594 = vrcp.pop %v2574
        %v2595 = vmul.f32 %v2555, %v2594
        %v2596 = vrcp.pop %v2577
        %v2597 = vmul.f32 %v2557, %v2596
        %v2598 = vrcp.pop %v2580
        %v2599 = vmul.f32 %v2559, %v2598
        %v2600 = vrcp.pop %v2583
        %v2601 = vmul.f32 %v2561, %v2600
        %v2602 = vrcp.pop %v2586
        %v2603 = vmul.f32 %v2563, %v2602
        %v2604 = vrcp.pop %v2589
        %v2605 = vmul.f32 %v2565, %v2604
        %v2606 = vld [vmem:[#allocation2] sm:$0xff]
        %v2607 = vld [vmem:[#allocation2 + $0x8] sm:$0xff]
        %v2608 = vld [vmem:[#allocation2 + $0x10] sm:$0xff]
        %v2609 = vld [vmem:[#allocation2 + $0x18] sm:$0xff]
        %v2610 = vld [vmem:[#allocation2 + $0x20] sm:$0xff]
        %v2611 = vld [vmem:[#allocation2 + $0x28] sm:$0xff]
        %v2612 = vld [vmem:[#allocation2 + $0x30] sm:$0xff]
        %v2613 = vld [vmem:[#allocation2 + $0x38] sm:$0xff]
        %v2615 = vsel %vm851, %v2343, 0
        %v2618 = vsel %vm851, %v2606, 0
        %v2621 = vsel %vm851, %v2607, 0
        %v2624 = vsel %vm851, %v2608, 0
        %v2627 = vsel %vm851, %v2609, 0
        %v2630 = vsel %vm851, %v2610, 0
        %v2633 = vsel %vm851, %v2611, 0
        %v2636 = vsel %vm851, %v2612, 0
        %v2639 = vsel %vm851, %v2613, 0
        %2641 = vmatprep.subr.mxu0 0.0
        %2642 = vmatpush1.xpose.msra.mxu0 %v2618
        %2643 = vmatprep.subr.mxu0 0.0
        %2644 = vmatpush1.xpose.msra.mxu0 %v2621
        %2645 = vmatprep.subr.mxu0 0.0
        %2646 = vmatpush1.xpose.msra.mxu0 %v2624
        %2647 = vmatprep.subr.mxu0 0.0
        %2648 = vmatpush1.xpose.msra.mxu0 %v2627
        %2649 = vmatprep.subr.mxu0 0.0
        %2650 = vmatpush1.xpose.msra.mxu0 %v2630
        %2651 = vmatprep.subr.mxu0 0.0
        %2652 = vmatpush1.xpose.msra.mxu0 %v2633
        %2653 = vmatprep.subr.mxu0 0.0
        %2654 = vmatpush1.xpose.msra.mxu0 %v2636
        %2655 = vmatprep.subr.mxu0 0.0
        %2656 = vmatpush1.xpose.msra.mxu0 %v2639
        %2657 = vmatprep.subr.mxu0 0.0
        %2658 = vmatpush1.xpose.msra.mxu0 0.0
        %2659 = vmatprep.subr.mxu0 0.0
        %2660 = vmatpush1.xpose.msra.mxu0 0.0
        %2661 = vmatprep.subr.mxu0 0.0
        %2662 = vmatpush1.xpose.msra.mxu0 0.0
        %2663 = vmatprep.subr.mxu0 0.0
        %2664 = vmatpush1.xpose.msra.mxu0 0.0
        %2665 = vmatprep.subr.mxu0 0.0
        %2666 = vmatpush1.xpose.msra.mxu0 0.0
        %2667 = vmatprep.subr.mxu0 0.0
        %2668 = vmatpush1.xpose.msra.mxu0 0.0
        %2669 = vmatprep.subr.mxu0 0.0
        %2670 = vmatpush1.xpose.msra.mxu0 0.0
        %2671 = vmatprep.subr.mxu0 0.0
        %2672 = vmatpush1.xpose.msra.mxu0 0.0
        %2673 = vmatprep.subr.mxu0 0.0
        %2674 = vmatpush1.xpose.msra.mxu0 0.0
        %2675 = vmatprep.subr.mxu0 0.0
        %2676 = vmatpush1.xpose.msra.mxu0 0.0
        %2677 = vmatprep.subr.mxu0 0.0
        %2678 = vmatpush1.xpose.msra.mxu0 0.0
        %2679 = vmatprep.subr.mxu0 0.0
        %2680 = vmatpush1.xpose.msra.mxu0 0.0
        %2681 = vmatprep.subr.mxu0 0.0
        %2682 = vmatpush1.xpose.msra.mxu0 0.0
        %2683 = vmatprep.subr.mxu0 0.0
        %2684 = vmatpush1.xpose.msra.mxu0 0.0
        %2685 = vmatprep.subr.mxu0 0.0
        %2686 = vmatpush1.xpose.msra.mxu0 0.0
        %2687 = vmatprep.subr.mxu0 0.0
        %2688 = vmatpush1.xpose.msra.mxu0 0.0
        %2689 = vmatprep.subr.mxu0 0.0
        %2690 = vmatpush1.xpose.msra.mxu0 0.0
        %2691 = vmatprep.subr.mxu0 0.0
        %2692 = vmatpush1.xpose.msra.mxu0 0.0
        %2693 = vmatprep.subr.mxu0 0.0
        %2694 = vmatpush1.xpose.msra.mxu0 0.0
        %2695 = vmatprep.subr.mxu0 0.0
        %2696 = vmatpush1.xpose.msra.mxu0 0.0
        %2697 = vmatprep.subr.mxu0 0.0
        %2698 = vmatpush1.xpose.msra.mxu0 0.0
        %2699 = vmatprep.subr.mxu0 0.0
        %2700 = vmatpush1.xpose.msra.mxu0 0.0
        %2701 = vmatprep.subr.mxu0 0.0
        %2702 = vmatpush1.xpose.msra.mxu0 0.0
        %2703 = vmatprep.subr.mxu0 0.0
        %2704 = vmatpush1.xpose.msra.mxu0 0.0
        %2705 = vmatprep.mubr.f32.mxu0 0.0
        %2706 = vmatmul.mubr.f32.gmra.mrb[0].mxu0 %v2615
        %v2707 = vpop.f32.mrb[0].mxu0
        %v2708 = vadd.f32 0.0, %v2707
        %v2709 = vpop.f32.mrb[0].mxu0
        %2710 = vdwg.mxu0
        %v2711 = vld [vmem:[%s7] sm:$0xf]
        %2713 = vset.pattern.permute.xlu0 0
        %2714 = vperm.xlu0 %2713, %v2711
        %v2715 = vpop.permute.xlu0 %2714
        %v2717 = vmul.f32 %v2708, %v2715
        %v2718 = vadd.f32 %v1055, %v2717
        %v2719 = vld [vmem:[%s1058] sm:$0xff]
        %v2720 = vld [vmem:[%s1058 + $0x8] sm:$0xff]
        %v2721 = vld [vmem:[%s1058 + $0x10] sm:$0xff]
        %v2722 = vld [vmem:[%s1058 + $0x18] sm:$0xff]
        %v2723 = vld [vmem:[%s1058 + $0x20] sm:$0xff]
        %v2724 = vld [vmem:[%s1058 + $0x28] sm:$0xff]
        %v2725 = vld [vmem:[%s1058 + $0x30] sm:$0xff]
        %v2726 = vld [vmem:[%s1058 + $0x38] sm:$0xff]
        %v2728 = vsel %vm851, %v2719, 0
        %v2731 = vsel %vm851, %v2720, 0
        %v2734 = vsel %vm851, %v2721, 0
        %v2737 = vsel %vm851, %v2722, 0
        %v2740 = vsel %vm851, %v2723, 0
        %v2743 = vsel %vm851, %v2724, 0
        %v2746 = vsel %vm851, %v2725, 0
        %v2749 = vsel %vm851, %v2726, 0
        %2751 = vmatprep.subr.mxu0 0.0
        %2752 = vmatpush1.xpose.msra.mxu0 %v2728
        %2753 = vmatprep.subr.mxu0 0.0
        %2754 = vmatpush1.xpose.msra.mxu0 %v2731
        %2755 = vmatprep.subr.mxu0 0.0
        %2756 = vmatpush1.xpose.msra.mxu0 %v2734
        %2757 = vmatprep.subr.mxu0 0.0
        %2758 = vmatpush1.xpose.msra.mxu0 %v2737
        %2759 = vmatprep.subr.mxu0 0.0
        %2760 = vmatpush1.xpose.msra.mxu0 %v2740
        %2761 = vmatprep.subr.mxu0 0.0
        %2762 = vmatpush1.xpose.msra.mxu0 %v2743
        %2763 = vmatprep.subr.mxu0 0.0
        %2764 = vmatpush1.xpose.msra.mxu0 %v2746
        %2765 = vmatprep.subr.mxu0 0.0
        %2766 = vmatpush1.xpose.msra.mxu0 %v2749
        %2767 = vmatprep.subr.mxu0 0.0
        %2768 = vmatpush1.xpose.msra.mxu0 0.0
        %2769 = vmatprep.subr.mxu0 0.0
        %2770 = vmatpush1.xpose.msra.mxu0 0.0
        %2771 = vmatprep.subr.mxu0 0.0
        %2772 = vmatpush1.xpose.msra.mxu0 0.0
        %2773 = vmatprep.subr.mxu0 0.0
        %2774 = vmatpush1.xpose.msra.mxu0 0.0
        %2775 = vmatprep.subr.mxu0 0.0
        %2776 = vmatpush1.xpose.msra.mxu0 0.0
        %2777 = vmatprep.subr.mxu0 0.0
        %2778 = vmatpush1.xpose.msra.mxu0 0.0
        %2779 = vmatprep.subr.mxu0 0.0
        %2780 = vmatpush1.xpose.msra.mxu0 0.0
        %2781 = vmatprep.subr.mxu0 0.0
        %2782 = vmatpush1.xpose.msra.mxu0 0.0
        %2783 = vmatprep.subr.mxu0 0.0
        %2784 = vmatpush1.xpose.msra.mxu0 0.0
        %2785 = vmatprep.subr.mxu0 0.0
        %2786 = vmatpush1.xpose.msra.mxu0 0.0
        %2787 = vmatprep.subr.mxu0 0.0
        %2788 = vmatpush1.xpose.msra.mxu0 0.0
        %2789 = vmatprep.subr.mxu0 0.0
        %2790 = vmatpush1.xpose.msra.mxu0 0.0
        %2791 = vmatprep.subr.mxu0 0.0
        %2792 = vmatpush1.xpose.msra.mxu0 0.0
        %2793 = vmatprep.subr.mxu0 0.0
        %2794 = vmatpush1.xpose.msra.mxu0 0.0
        %2795 = vmatprep.subr.mxu0 0.0
        %2796 = vmatpush1.xpose.msra.mxu0 0.0
        %2797 = vmatprep.subr.mxu0 0.0
        %2798 = vmatpush1.xpose.msra.mxu0 0.0
        %2799 = vmatprep.subr.mxu0 0.0
        %2800 = vmatpush1.xpose.msra.mxu0 0.0
        %2801 = vmatprep.subr.mxu0 0.0
        %2802 = vmatpush1.xpose.msra.mxu0 0.0
        %2803 = vmatprep.subr.mxu0 0.0
        %2804 = vmatpush1.xpose.msra.mxu0 0.0
        %2805 = vmatprep.subr.mxu0 0.0
        %2806 = vmatpush1.xpose.msra.mxu0 0.0
        %2807 = vmatprep.subr.mxu0 0.0
        %2808 = vmatpush1.xpose.msra.mxu0 0.0
        %2809 = vmatprep.subr.mxu0 0.0
        %2810 = vmatpush1.xpose.msra.mxu0 0.0
        %2811 = vmatprep.subr.mxu0 0.0
        %2812 = vmatpush1.xpose.msra.mxu0 0.0
        %2813 = vmatprep.subr.mxu0 0.0
        %2814 = vmatpush1.xpose.msra.mxu0 0.0
        %2815 = vmatprep.mubr.f32.mxu0 0.0
        %2816 = vmatmul.mubr.f32.gmra.mrb[0].mxu0 %v2615
        %v2817 = vpop.f32.mrb[0].mxu0
        %v2818 = vadd.f32 0.0, %v2817
        %v2819 = vpop.f32.mrb[0].mxu0
        %2820 = vdwg.mxu0
        %v2821 = vld [vmem:[%s1161] sm:$0xf]
        %2823 = vset.pattern.permute.xlu0 0
        %2824 = vperm.xlu0 %2823, %v2821
        %v2825 = vpop.permute.xlu0 %2824
        %v2827 = vmul.f32 %v2818, %v2825
        %v2828 = vadd.f32 %v2718, %v2827
        %v2829 = vld [vmem:[%s1170] sm:$0xff]
        %v2830 = vld [vmem:[%s1170 + $0x8] sm:$0xff]
        %v2831 = vld [vmem:[%s1170 + $0x10] sm:$0xff]
        %v2832 = vld [vmem:[%s1170 + $0x18] sm:$0xff]
        %v2833 = vld [vmem:[%s1170 + $0x20] sm:$0xff]
        %v2834 = vld [vmem:[%s1170 + $0x28] sm:$0xff]
        %v2835 = vld [vmem:[%s1170 + $0x30] sm:$0xff]
        %v2836 = vld [vmem:[%s1170 + $0x38] sm:$0xff]
        %v2838 = vsel %vm851, %v2829, 0
        %v2841 = vsel %vm851, %v2830, 0
        %v2844 = vsel %vm851, %v2831, 0
        %v2847 = vsel %vm851, %v2832, 0
        %v2850 = vsel %vm851, %v2833, 0
        %v2853 = vsel %vm851, %v2834, 0
        %v2856 = vsel %vm851, %v2835, 0
        %v2859 = vsel %vm851, %v2836, 0
        %2861 = vmatprep.subr.mxu0 0.0
        %2862 = vmatpush1.xpose.msra.mxu0 %v2838
        %2863 = vmatprep.subr.mxu0 0.0
        %2864 = vmatpush1.xpose.msra.mxu0 %v2841
        %2865 = vmatprep.subr.mxu0 0.0
        %2866 = vmatpush1.xpose.msra.mxu0 %v2844
        %2867 = vmatprep.subr.mxu0 0.0
        %2868 = vmatpush1.xpose.msra.mxu0 %v2847
        %2869 = vmatprep.subr.mxu0 0.0
        %2870 = vmatpush1.xpose.msra.mxu0 %v2850
        %2871 = vmatprep.subr.mxu0 0.0
        %2872 = vmatpush1.xpose.msra.mxu0 %v2853
        %2873 = vmatprep.subr.mxu0 0.0
        %2874 = vmatpush1.xpose.msra.mxu0 %v2856
        %2875 = vmatprep.subr.mxu0 0.0
        %2876 = vmatpush1.xpose.msra.mxu0 %v2859
        %2877 = vmatprep.subr.mxu0 0.0
        %2878 = vmatpush1.xpose.msra.mxu0 0.0
        %2879 = vmatprep.subr.mxu0 0.0
        %2880 = vmatpush1.xpose.msra.mxu0 0.0
        %2881 = vmatprep.subr.mxu0 0.0
        %2882 = vmatpush1.xpose.msra.mxu0 0.0
        %2883 = vmatprep.subr.mxu0 0.0
        %2884 = vmatpush1.xpose.msra.mxu0 0.0
        %2885 = vmatprep.subr.mxu0 0.0
        %2886 = vmatpush1.xpose.msra.mxu0 0.0
        %2887 = vmatprep.subr.mxu0 0.0
        %2888 = vmatpush1.xpose.msra.mxu0 0.0
        %2889 = vmatprep.subr.mxu0 0.0
        %2890 = vmatpush1.xpose.msra.mxu0 0.0
        %2891 = vmatprep.subr.mxu0 0.0
        %2892 = vmatpush1.xpose.msra.mxu0 0.0
        %2893 = vmatprep.subr.mxu0 0.0
        %2894 = vmatpush1.xpose.msra.mxu0 0.0
        %2895 = vmatprep.subr.mxu0 0.0
        %2896 = vmatpush1.xpose.msra.mxu0 0.0
        %2897 = vmatprep.subr.mxu0 0.0
        %2898 = vmatpush1.xpose.msra.mxu0 0.0
        %2899 = vmatprep.subr.mxu0 0.0
        %2900 = vmatpush1.xpose.msra.mxu0 0.0
        %2901 = vmatprep.subr.mxu0 0.0
        %2902 = vmatpush1.xpose.msra.mxu0 0.0
        %2903 = vmatprep.subr.mxu0 0.0
        %2904 = vmatpush1.xpose.msra.mxu0 0.0
        %2905 = vmatprep.subr.mxu0 0.0
        %2906 = vmatpush1.xpose.msra.mxu0 0.0
        %2907 = vmatprep.subr.mxu0 0.0
        %2908 = vmatpush1.xpose.msra.mxu0 0.0
        %2909 = vmatprep.subr.mxu0 0.0
        %2910 = vmatpush1.xpose.msra.mxu0 0.0
        %2911 = vmatprep.subr.mxu0 0.0
        %2912 = vmatpush1.xpose.msra.mxu0 0.0
        %2913 = vmatprep.subr.mxu0 0.0
        %2914 = vmatpush1.xpose.msra.mxu0 0.0
        %2915 = vmatprep.subr.mxu0 0.0
        %2916 = vmatpush1.xpose.msra.mxu0 0.0
        %2917 = vmatprep.subr.mxu0 0.0
        %2918 = vmatpush1.xpose.msra.mxu0 0.0
        %2919 = vmatprep.subr.mxu0 0.0
        %2920 = vmatpush1.xpose.msra.mxu0 0.0
        %2921 = vmatprep.subr.mxu0 0.0
        %2922 = vmatpush1.xpose.msra.mxu0 0.0
        %2923 = vmatprep.subr.mxu0 0.0
        %2924 = vmatpush1.xpose.msra.mxu0 0.0
        %2925 = vmatprep.mubr.f32.mxu0 0.0
        %2926 = vmatmul.mubr.f32.gmra.mrb[0].mxu0 %v2615
        %v2927 = vpop.f32.mrb[0].mxu0
        %v2928 = vadd.f32 0.0, %v2927
        %v2929 = vpop.f32.mrb[0].mxu0
        %2930 = vdwg.mxu0
        %v2931 = vld [vmem:[%s1273] sm:$0xf]
        %2933 = vset.pattern.permute.xlu0 0
        %2934 = vperm.xlu0 %2933, %v2931
        %v2935 = vpop.permute.xlu0 %2934
        %v2937 = vmul.f32 %v2928, %v2935
        %v2938 = vadd.f32 %v2828, %v2937
        %v2939 = vld [vmem:[%s1282] sm:$0xff]
        %v2940 = vld [vmem:[%s1282 + $0x8] sm:$0xff]
        %v2941 = vld [vmem:[%s1282 + $0x10] sm:$0xff]
        %v2942 = vld [vmem:[%s1282 + $0x18] sm:$0xff]
        %v2943 = vld [vmem:[%s1282 + $0x20] sm:$0xff]
        %v2944 = vld [vmem:[%s1282 + $0x28] sm:$0xff]
        %v2945 = vld [vmem:[%s1282 + $0x30] sm:$0xff]
        %v2946 = vld [vmem:[%s1282 + $0x38] sm:$0xff]
        %v2948 = vsel %vm851, %v2939, 0
        %v2951 = vsel %vm851, %v2940, 0
        %v2954 = vsel %vm851, %v2941, 0
        %v2957 = vsel %vm851, %v2942, 0
        %v2960 = vsel %vm851, %v2943, 0
        %v2963 = vsel %vm851, %v2944, 0
        %v2966 = vsel %vm851, %v2945, 0
        %v2969 = vsel %vm851, %v2946, 0
        %2971 = vmatprep.subr.mxu0 0.0
        %2972 = vmatpush1.xpose.msra.mxu0 %v2948
        %2973 = vmatprep.subr.mxu0 0.0
        %2974 = vmatpush1.xpose.msra.mxu0 %v2951
        %2975 = vmatprep.subr.mxu0 0.0
        %2976 = vmatpush1.xpose.msra.mxu0 %v2954
        %2977 = vmatprep.subr.mxu0 0.0
        %2978 = vmatpush1.xpose.msra.mxu0 %v2957
        %2979 = vmatprep.subr.mxu0 0.0
        %2980 = vmatpush1.xpose.msra.mxu0 %v2960
        %2981 = vmatprep.subr.mxu0 0.0
        %2982 = vmatpush1.xpose.msra.mxu0 %v2963
        %2983 = vmatprep.subr.mxu0 0.0
        %2984 = vmatpush1.xpose.msra.mxu0 %v2966
        %2985 = vmatprep.subr.mxu0 0.0
        %2986 = vmatpush1.xpose.msra.mxu0 %v2969
        %2987 = vmatprep.subr.mxu0 0.0
        %2988 = vmatpush1.xpose.msra.mxu0 0.0
        %2989 = vmatprep.subr.mxu0 0.0
        %2990 = vmatpush1.xpose.msra.mxu0 0.0
        %2991 = vmatprep.subr.mxu0 0.0
        %2992 = vmatpush1.xpose.msra.mxu0 0.0
        %2993 = vmatprep.subr.mxu0 0.0
        %2994 = vmatpush1.xpose.msra.mxu0 0.0
        %2995 = vmatprep.subr.mxu0 0.0
        %2996 = vmatpush1.xpose.msra.mxu0 0.0
        %2997 = vmatprep.subr.mxu0 0.0
        %2998 = vmatpush1.xpose.msra.mxu0 0.0
        %2999 = vmatprep.subr.mxu0 0.0
        %3000 = vmatpush1.xpose.msra.mxu0 0.0
        %3001 = vmatprep.subr.mxu0 0.0
        %3002 = vmatpush1.xpose.msra.mxu0 0.0
        %3003 = vmatprep.subr.mxu0 0.0
        %3004 = vmatpush1.xpose.msra.mxu0 0.0
        %3005 = vmatprep.subr.mxu0 0.0
        %3006 = vmatpush1.xpose.msra.mxu0 0.0
        %3007 = vmatprep.subr.mxu0 0.0
        %3008 = vmatpush1.xpose.msra.mxu0 0.0
        %3009 = vmatprep.subr.mxu0 0.0
        %3010 = vmatpush1.xpose.msra.mxu0 0.0
        %3011 = vmatprep.subr.mxu0 0.0
        %3012 = vmatpush1.xpose.msra.mxu0 0.0
        %3013 = vmatprep.subr.mxu0 0.0
        %3014 = vmatpush1.xpose.msra.mxu0 0.0
        %3015 = vmatprep.subr.mxu0 0.0
        %3016 = vmatpush1.xpose.msra.mxu0 0.0
        %3017 = vmatprep.subr.mxu0 0.0
        %3018 = vmatpush1.xpose.msra.mxu0 0.0
        %3019 = vmatprep.subr.mxu0 0.0
        %3020 = vmatpush1.xpose.msra.mxu0 0.0
        %3021 = vmatprep.subr.mxu0 0.0
        %3022 = vmatpush1.xpose.msra.mxu0 0.0
        %3023 = vmatprep.subr.mxu0 0.0
        %3024 = vmatpush1.xpose.msra.mxu0 0.0
        %3025 = vmatprep.subr.mxu0 0.0
        %3026 = vmatpush1.xpose.msra.mxu0 0.0
        %3027 = vmatprep.subr.mxu0 0.0
        %3028 = vmatpush1.xpose.msra.mxu0 0.0
        %3029 = vmatprep.subr.mxu0 0.0
        %3030 = vmatpush1.xpose.msra.mxu0 0.0
        %3031 = vmatprep.subr.mxu0 0.0
        %3032 = vmatpush1.xpose.msra.mxu0 0.0
        %3033 = vmatprep.subr.mxu0 0.0
        %3034 = vmatpush1.xpose.msra.mxu0 0.0
        %3035 = vmatprep.mubr.f32.mxu0 0.0
        %3036 = vmatmul.mubr.f32.gmra.mrb[0].mxu0 %v2615
        %v3037 = vpop.f32.mrb[0].mxu0
        %v3038 = vadd.f32 0.0, %v3037
        %v3039 = vpop.f32.mrb[0].mxu0
        %3040 = vdwg.mxu0
        %v3041 = vld [vmem:[%s1385] sm:$0xf]
        %3043 = vset.pattern.permute.xlu0 0
        %3044 = vperm.xlu0 %3043, %v3041
        %v3045 = vpop.permute.xlu0 %3044
        %v3047 = vmul.f32 %v3038, %v3045
        %v3048 = vadd.f32 %v2938, %v3047
        %v3049 = vld [vmem:[%s1394] sm:$0xff]
        %v3050 = vld [vmem:[%s1394 + $0x8] sm:$0xff]
        %v3051 = vld [vmem:[%s1394 + $0x10] sm:$0xff]
        %v3052 = vld [vmem:[%s1394 + $0x18] sm:$0xff]
        %v3053 = vld [vmem:[%s1394 + $0x20] sm:$0xff]
        %v3054 = vld [vmem:[%s1394 + $0x28] sm:$0xff]
        %v3055 = vld [vmem:[%s1394 + $0x30] sm:$0xff]
        %v3056 = vld [vmem:[%s1394 + $0x38] sm:$0xff]
        %v3058 = vsel %vm851, %v3049, 0
        %v3061 = vsel %vm851, %v3050, 0
        %v3064 = vsel %vm851, %v3051, 0
        %v3067 = vsel %vm851, %v3052, 0
        %v3070 = vsel %vm851, %v3053, 0
        %v3073 = vsel %vm851, %v3054, 0
        %v3076 = vsel %vm851, %v3055, 0
        %v3079 = vsel %vm851, %v3056, 0
        %3081 = vmatprep.subr.mxu0 0.0
        %3082 = vmatpush1.xpose.msra.mxu0 %v3058
        %3083 = vmatprep.subr.mxu0 0.0
        %3084 = vmatpush1.xpose.msra.mxu0 %v3061
        %3085 = vmatprep.subr.mxu0 0.0
        %3086 = vmatpush1.xpose.msra.mxu0 %v3064
        %3087 = vmatprep.subr.mxu0 0.0
        %3088 = vmatpush1.xpose.msra.mxu0 %v3067
        %3089 = vmatprep.subr.mxu0 0.0
        %3090 = vmatpush1.xpose.msra.mxu0 %v3070
        %3091 = vmatprep.subr.mxu0 0.0
        %3092 = vmatpush1.xpose.msra.mxu0 %v3073
        %3093 = vmatprep.subr.mxu0 0.0
        %3094 = vmatpush1.xpose.msra.mxu0 %v3076
        %3095 = vmatprep.subr.mxu0 0.0
        %3096 = vmatpush1.xpose.msra.mxu0 %v3079
        %3097 = vmatprep.subr.mxu0 0.0
        %3098 = vmatpush1.xpose.msra.mxu0 0.0
        %3099 = vmatprep.subr.mxu0 0.0
        %3100 = vmatpush1.xpose.msra.mxu0 0.0
        %3101 = vmatprep.subr.mxu0 0.0
        %3102 = vmatpush1.xpose.msra.mxu0 0.0
        %3103 = vmatprep.subr.mxu0 0.0
        %3104 = vmatpush1.xpose.msra.mxu0 0.0
        %3105 = vmatprep.subr.mxu0 0.0
        %3106 = vmatpush1.xpose.msra.mxu0 0.0
        %3107 = vmatprep.subr.mxu0 0.0
        %3108 = vmatpush1.xpose.msra.mxu0 0.0
        %3109 = vmatprep.subr.mxu0 0.0
        %3110 = vmatpush1.xpose.msra.mxu0 0.0
        %3111 = vmatprep.subr.mxu0 0.0
        %3112 = vmatpush1.xpose.msra.mxu0 0.0
        %3113 = vmatprep.subr.mxu0 0.0
        %3114 = vmatpush1.xpose.msra.mxu0 0.0
        %3115 = vmatprep.subr.mxu0 0.0
        %3116 = vmatpush1.xpose.msra.mxu0 0.0
        %3117 = vmatprep.subr.mxu0 0.0
        %3118 = vmatpush1.xpose.msra.mxu0 0.0
        %3119 = vmatprep.subr.mxu0 0.0
        %3120 = vmatpush1.xpose.msra.mxu0 0.0
        %3121 = vmatprep.subr.mxu0 0.0
        %3122 = vmatpush1.xpose.msra.mxu0 0.0
        %3123 = vmatprep.subr.mxu0 0.0
        %3124 = vmatpush1.xpose.msra.mxu0 0.0
        %3125 = vmatprep.subr.mxu0 0.0
        %3126 = vmatpush1.xpose.msra.mxu0 0.0
        %3127 = vmatprep.subr.mxu0 0.0
        %3128 = vmatpush1.xpose.msra.mxu0 0.0
        %3129 = vmatprep.subr.mxu0 0.0
        %3130 = vmatpush1.xpose.msra.mxu0 0.0
        %3131 = vmatprep.subr.mxu0 0.0
        %3132 = vmatpush1.xpose.msra.mxu0 0.0
        %3133 = vmatprep.subr.mxu0 0.0
        %3134 = vmatpush1.xpose.msra.mxu0 0.0
        %3135 = vmatprep.subr.mxu0 0.0
        %3136 = vmatpush1.xpose.msra.mxu0 0.0
        %3137 = vmatprep.subr.mxu0 0.0
        %3138 = vmatpush1.xpose.msra.mxu0 0.0
        %3139 = vmatprep.subr.mxu0 0.0
        %3140 = vmatpush1.xpose.msra.mxu0 0.0
        %3141 = vmatprep.subr.mxu0 0.0
        %3142 = vmatpush1.xpose.msra.mxu0 0.0
        %3143 = vmatprep.subr.mxu0 0.0
        %3144 = vmatpush1.xpose.msra.mxu0 0.0
        %3145 = vmatprep.mubr.f32.mxu0 0.0
        %3146 = vmatmul.mubr.f32.gmra.mrb[0].mxu0 %v2615
        %v3147 = vpop.f32.mrb[0].mxu0
        %v3148 = vadd.f32 0.0, %v3147
        %v3149 = vpop.f32.mrb[0].mxu0
        %3150 = vdwg.mxu0
        %v3151 = vld [vmem:[%s1497] sm:$0xf]
        %3153 = vset.pattern.permute.xlu0 0
        %3154 = vperm.xlu0 %3153, %v3151
        %v3155 = vpop.permute.xlu0 %3154
        %v3157 = vmul.f32 %v3148, %v3155
        %v3158 = vadd.f32 %v3048, %v3157
        %v3159 = vld [vmem:[%s1506] sm:$0xff]
        %v3160 = vld [vmem:[%s1506 + $0x8] sm:$0xff]
        %v3161 = vld [vmem:[%s1506 + $0x10] sm:$0xff]
        %v3162 = vld [vmem:[%s1506 + $0x18] sm:$0xff]
        %v3163 = vld [vmem:[%s1506 + $0x20] sm:$0xff]
        %v3164 = vld [vmem:[%s1506 + $0x28] sm:$0xff]
        %v3165 = vld [vmem:[%s1506 + $0x30] sm:$0xff]
        %v3166 = vld [vmem:[%s1506 + $0x38] sm:$0xff]
        %v3168 = vsel %vm851, %v3159, 0
        %v3171 = vsel %vm851, %v3160, 0
        %v3174 = vsel %vm851, %v3161, 0
        %v3177 = vsel %vm851, %v3162, 0
        %v3180 = vsel %vm851, %v3163, 0
        %v3183 = vsel %vm851, %v3164, 0
        %v3186 = vsel %vm851, %v3165, 0
        %v3189 = vsel %vm851, %v3166, 0
        %3191 = vmatprep.subr.mxu0 0.0
        %3192 = vmatpush1.xpose.msra.mxu0 %v3168
        %3193 = vmatprep.subr.mxu0 0.0
        %3194 = vmatpush1.xpose.msra.mxu0 %v3171
        %3195 = vmatprep.subr.mxu0 0.0
        %3196 = vmatpush1.xpose.msra.mxu0 %v3174
        %3197 = vmatprep.subr.mxu0 0.0
        %3198 = vmatpush1.xpose.msra.mxu0 %v3177
        %3199 = vmatprep.subr.mxu0 0.0
        %3200 = vmatpush1.xpose.msra.mxu0 %v3180
        %3201 = vmatprep.subr.mxu0 0.0
        %3202 = vmatpush1.xpose.msra.mxu0 %v3183
        %3203 = vmatprep.subr.mxu0 0.0
        %3204 = vmatpush1.xpose.msra.mxu0 %v3186
        %3205 = vmatprep.subr.mxu0 0.0
        %3206 = vmatpush1.xpose.msra.mxu0 %v3189
        %3207 = vmatprep.subr.mxu0 0.0
        %3208 = vmatpush1.xpose.msra.mxu0 0.0
        %3209 = vmatprep.subr.mxu0 0.0
        %3210 = vmatpush1.xpose.msra.mxu0 0.0
        %3211 = vmatprep.subr.mxu0 0.0
        %3212 = vmatpush1.xpose.msra.mxu0 0.0
        %3213 = vmatprep.subr.mxu0 0.0
        %3214 = vmatpush1.xpose.msra.mxu0 0.0
        %3215 = vmatprep.subr.mxu0 0.0
        %3216 = vmatpush1.xpose.msra.mxu0 0.0
        %3217 = vmatprep.subr.mxu0 0.0
        %3218 = vmatpush1.xpose.msra.mxu0 0.0
        %3219 = vmatprep.subr.mxu0 0.0
        %3220 = vmatpush1.xpose.msra.mxu0 0.0
        %3221 = vmatprep.subr.mxu0 0.0
        %3222 = vmatpush1.xpose.msra.mxu0 0.0
        %3223 = vmatprep.subr.mxu0 0.0
        %3224 = vmatpush1.xpose.msra.mxu0 0.0
        %3225 = vmatprep.subr.mxu0 0.0
        %3226 = vmatpush1.xpose.msra.mxu0 0.0
        %3227 = vmatprep.subr.mxu0 0.0
        %3228 = vmatpush1.xpose.msra.mxu0 0.0
        %3229 = vmatprep.subr.mxu0 0.0
        %3230 = vmatpush1.xpose.msra.mxu0 0.0
        %3231 = vmatprep.subr.mxu0 0.0
        %3232 = vmatpush1.xpose.msra.mxu0 0.0
        %3233 = vmatprep.subr.mxu0 0.0
        %3234 = vmatpush1.xpose.msra.mxu0 0.0
        %3235 = vmatprep.subr.mxu0 0.0
        %3236 = vmatpush1.xpose.msra.mxu0 0.0
        %3237 = vmatprep.subr.mxu0 0.0
        %3238 = vmatpush1.xpose.msra.mxu0 0.0
        %3239 = vmatprep.subr.mxu0 0.0
        %3240 = vmatpush1.xpose.msra.mxu0 0.0
        %3241 = vmatprep.subr.mxu0 0.0
        %3242 = vmatpush1.xpose.msra.mxu0 0.0
        %3243 = vmatprep.subr.mxu0 0.0
        %3244 = vmatpush1.xpose.msra.mxu0 0.0
        %3245 = vmatprep.subr.mxu0 0.0
        %3246 = vmatpush1.xpose.msra.mxu0 0.0
        %3247 = vmatprep.subr.mxu0 0.0
        %3248 = vmatpush1.xpose.msra.mxu0 0.0
        %3249 = vmatprep.subr.mxu0 0.0
        %3250 = vmatpush1.xpose.msra.mxu0 0.0
        %3251 = vmatprep.subr.mxu0 0.0
        %3252 = vmatpush1.xpose.msra.mxu0 0.0
        %3253 = vmatprep.subr.mxu0 0.0
        %3254 = vmatpush1.xpose.msra.mxu0 0.0
        %3255 = vmatprep.mubr.f32.mxu0 0.0
        %3256 = vmatmul.mubr.f32.gmra.mrb[0].mxu0 %v2615
        %v3257 = vpop.f32.mrb[0].mxu0
        %v3258 = vadd.f32 0.0, %v3257
        %v3259 = vpop.f32.mrb[0].mxu0
        %3260 = vdwg.mxu0
        %v3261 = vld [vmem:[%s1609] sm:$0xf]
        %3263 = vset.pattern.permute.xlu0 0
        %3264 = vperm.xlu0 %3263, %v3261
        %v3265 = vpop.permute.xlu0 %3264
        %v3267 = vmul.f32 %v3258, %v3265
        %v3268 = vadd.f32 %v3158, %v3267
        %v3269 = vld [vmem:[%s1618] sm:$0xff]
        %v3270 = vld [vmem:[%s1618 + $0x8] sm:$0xff]
        %v3271 = vld [vmem:[%s1618 + $0x10] sm:$0xff]
        %v3272 = vld [vmem:[%s1618 + $0x18] sm:$0xff]
        %v3273 = vld [vmem:[%s1618 + $0x20] sm:$0xff]
        %v3274 = vld [vmem:[%s1618 + $0x28] sm:$0xff]
        %v3275 = vld [vmem:[%s1618 + $0x30] sm:$0xff]
        %v3276 = vld [vmem:[%s1618 + $0x38] sm:$0xff]
        %v3278 = vsel %vm851, %v3269, 0
        %v3281 = vsel %vm851, %v3270, 0
        %v3284 = vsel %vm851, %v3271, 0
        %v3287 = vsel %vm851, %v3272, 0
        %v3290 = vsel %vm851, %v3273, 0
        %v3293 = vsel %vm851, %v3274, 0
        %v3296 = vsel %vm851, %v3275, 0
        %v3299 = vsel %vm851, %v3276, 0
        %3301 = vmatprep.subr.mxu0 0.0
        %3302 = vmatpush1.xpose.msra.mxu0 %v3278
        %3303 = vmatprep.subr.mxu0 0.0
        %3304 = vmatpush1.xpose.msra.mxu0 %v3281
        %3305 = vmatprep.subr.mxu0 0.0
        %3306 = vmatpush1.xpose.msra.mxu0 %v3284
        %3307 = vmatprep.subr.mxu0 0.0
        %3308 = vmatpush1.xpose.msra.mxu0 %v3287
        %3309 = vmatprep.subr.mxu0 0.0
        %3310 = vmatpush1.xpose.msra.mxu0 %v3290
        %3311 = vmatprep.subr.mxu0 0.0
        %3312 = vmatpush1.xpose.msra.mxu0 %v3293
        %3313 = vmatprep.subr.mxu0 0.0
        %3314 = vmatpush1.xpose.msra.mxu0 %v3296
        %3315 = vmatprep.subr.mxu0 0.0
        %3316 = vmatpush1.xpose.msra.mxu0 %v3299
        %3317 = vmatprep.subr.mxu0 0.0
        %3318 = vmatpush1.xpose.msra.mxu0 0.0
        %3319 = vmatprep.subr.mxu0 0.0
        %3320 = vmatpush1.xpose.msra.mxu0 0.0
        %3321 = vmatprep.subr.mxu0 0.0
        %3322 = vmatpush1.xpose.msra.mxu0 0.0
        %3323 = vmatprep.subr.mxu0 0.0
        %3324 = vmatpush1.xpose.msra.mxu0 0.0
        %3325 = vmatprep.subr.mxu0 0.0
        %3326 = vmatpush1.xpose.msra.mxu0 0.0
        %3327 = vmatprep.subr.mxu0 0.0
        %3328 = vmatpush1.xpose.msra.mxu0 0.0
        %3329 = vmatprep.subr.mxu0 0.0
        %3330 = vmatpush1.xpose.msra.mxu0 0.0
        %3331 = vmatprep.subr.mxu0 0.0
        %3332 = vmatpush1.xpose.msra.mxu0 0.0
        %3333 = vmatprep.subr.mxu0 0.0
        %3334 = vmatpush1.xpose.msra.mxu0 0.0
        %3335 = vmatprep.subr.mxu0 0.0
        %3336 = vmatpush1.xpose.msra.mxu0 0.0
        %3337 = vmatprep.subr.mxu0 0.0
        %3338 = vmatpush1.xpose.msra.mxu0 0.0
        %3339 = vmatprep.subr.mxu0 0.0
        %3340 = vmatpush1.xpose.msra.mxu0 0.0
        %3341 = vmatprep.subr.mxu0 0.0
        %3342 = vmatpush1.xpose.msra.mxu0 0.0
        %3343 = vmatprep.subr.mxu0 0.0
        %3344 = vmatpush1.xpose.msra.mxu0 0.0
        %3345 = vmatprep.subr.mxu0 0.0
        %3346 = vmatpush1.xpose.msra.mxu0 0.0
        %3347 = vmatprep.subr.mxu0 0.0
        %3348 = vmatpush1.xpose.msra.mxu0 0.0
        %3349 = vmatprep.subr.mxu0 0.0
        %3350 = vmatpush1.xpose.msra.mxu0 0.0
        %3351 = vmatprep.subr.mxu0 0.0
        %3352 = vmatpush1.xpose.msra.mxu0 0.0
        %3353 = vmatprep.subr.mxu0 0.0
        %3354 = vmatpush1.xpose.msra.mxu0 0.0
        %3355 = vmatprep.subr.mxu0 0.0
        %3356 = vmatpush1.xpose.msra.mxu0 0.0
        %3357 = vmatprep.subr.mxu0 0.0
        %3358 = vmatpush1.xpose.msra.mxu0 0.0
        %3359 = vmatprep.subr.mxu0 0.0
        %3360 = vmatpush1.xpose.msra.mxu0 0.0
        %3361 = vmatprep.subr.mxu0 0.0
        %3362 = vmatpush1.xpose.msra.mxu0 0.0
        %3363 = vmatprep.subr.mxu0 0.0
        %3364 = vmatpush1.xpose.msra.mxu0 0.0
        %3365 = vmatprep.mubr.f32.mxu0 0.0
        %3366 = vmatmul.mubr.f32.gmra.mrb[0].mxu0 %v2615
        %v3367 = vpop.f32.mrb[0].mxu0
        %v3368 = vadd.f32 0.0, %v3367
        %v3369 = vpop.f32.mrb[0].mxu0
        %3370 = vdwg.mxu0
        %v3371 = vld [vmem:[%s1721] sm:$0xf]
        %3373 = vset.pattern.permute.xlu0 0
        %3374 = vperm.xlu0 %3373, %v3371
        %v3375 = vpop.permute.xlu0 %3374
        %v3377 = vmul.f32 %v3368, %v3375
        %v3378 = vadd.f32 %v3268, %v3377
        %v3379 = vld [vmem:[%s1730] sm:$0xff]
        %v3380 = vld [vmem:[%s1730 + $0x8] sm:$0xff]
        %v3381 = vld [vmem:[%s1730 + $0x10] sm:$0xff]
        %v3382 = vld [vmem:[%s1730 + $0x18] sm:$0xff]
        %v3383 = vld [vmem:[%s1730 + $0x20] sm:$0xff]
        %v3384 = vld [vmem:[%s1730 + $0x28] sm:$0xff]
        %v3385 = vld [vmem:[%s1730 + $0x30] sm:$0xff]
        %v3386 = vld [vmem:[%s1730 + $0x38] sm:$0xff]
        %v3388 = vsel %vm851, %v3379, 0
        %v3391 = vsel %vm851, %v3380, 0
        %v3394 = vsel %vm851, %v3381, 0
        %v3397 = vsel %vm851, %v3382, 0
        %v3400 = vsel %vm851, %v3383, 0
        %v3403 = vsel %vm851, %v3384, 0
        %v3406 = vsel %vm851, %v3385, 0
        %v3409 = vsel %vm851, %v3386, 0
        %3411 = vmatprep.subr.mxu0 0.0
        %3412 = vmatpush1.xpose.msra.mxu0 %v3388
        %3413 = vmatprep.subr.mxu0 0.0
        %3414 = vmatpush1.xpose.msra.mxu0 %v3391
        %3415 = vmatprep.subr.mxu0 0.0
        %3416 = vmatpush1.xpose.msra.mxu0 %v3394
        %3417 = vmatprep.subr.mxu0 0.0
        %3418 = vmatpush1.xpose.msra.mxu0 %v3397
        %3419 = vmatprep.subr.mxu0 0.0
        %3420 = vmatpush1.xpose.msra.mxu0 %v3400
        %3421 = vmatprep.subr.mxu0 0.0
        %3422 = vmatpush1.xpose.msra.mxu0 %v3403
        %3423 = vmatprep.subr.mxu0 0.0
        %3424 = vmatpush1.xpose.msra.mxu0 %v3406
        %3425 = vmatprep.subr.mxu0 0.0
        %3426 = vmatpush1.xpose.msra.mxu0 %v3409
        %3427 = vmatprep.subr.mxu0 0.0
        %3428 = vmatpush1.xpose.msra.mxu0 0.0
        %3429 = vmatprep.subr.mxu0 0.0
        %3430 = vmatpush1.xpose.msra.mxu0 0.0
        %3431 = vmatprep.subr.mxu0 0.0
        %3432 = vmatpush1.xpose.msra.mxu0 0.0
        %3433 = vmatprep.subr.mxu0 0.0
        %3434 = vmatpush1.xpose.msra.mxu0 0.0
        %3435 = vmatprep.subr.mxu0 0.0
        %3436 = vmatpush1.xpose.msra.mxu0 0.0
        %3437 = vmatprep.subr.mxu0 0.0
        %3438 = vmatpush1.xpose.msra.mxu0 0.0
        %3439 = vmatprep.subr.mxu0 0.0
        %3440 = vmatpush1.xpose.msra.mxu0 0.0
        %3441 = vmatprep.subr.mxu0 0.0
        %3442 = vmatpush1.xpose.msra.mxu0 0.0
        %3443 = vmatprep.subr.mxu0 0.0
        %3444 = vmatpush1.xpose.msra.mxu0 0.0
        %3445 = vmatprep.subr.mxu0 0.0
        %3446 = vmatpush1.xpose.msra.mxu0 0.0
        %3447 = vmatprep.subr.mxu0 0.0
        %3448 = vmatpush1.xpose.msra.mxu0 0.0
        %3449 = vmatprep.subr.mxu0 0.0
        %3450 = vmatpush1.xpose.msra.mxu0 0.0
        %3451 = vmatprep.subr.mxu0 0.0
        %3452 = vmatpush1.xpose.msra.mxu0 0.0
        %3453 = vmatprep.subr.mxu0 0.0
        %3454 = vmatpush1.xpose.msra.mxu0 0.0
        %3455 = vmatprep.subr.mxu0 0.0
        %3456 = vmatpush1.xpose.msra.mxu0 0.0
        %3457 = vmatprep.subr.mxu0 0.0
        %3458 = vmatpush1.xpose.msra.mxu0 0.0
        %3459 = vmatprep.subr.mxu0 0.0
        %3460 = vmatpush1.xpose.msra.mxu0 0.0
        %3461 = vmatprep.subr.mxu0 0.0
        %3462 = vmatpush1.xpose.msra.mxu0 0.0
        %3463 = vmatprep.subr.mxu0 0.0
        %3464 = vmatpush1.xpose.msra.mxu0 0.0
        %3465 = vmatprep.subr.mxu0 0.0
        %3466 = vmatpush1.xpose.msra.mxu0 0.0
        %3467 = vmatprep.subr.mxu0 0.0
        %3468 = vmatpush1.xpose.msra.mxu0 0.0
        %3469 = vmatprep.subr.mxu0 0.0
        %3470 = vmatpush1.xpose.msra.mxu0 0.0
        %3471 = vmatprep.subr.mxu0 0.0
        %3472 = vmatpush1.xpose.msra.mxu0 0.0
        %3473 = vmatprep.subr.mxu0 0.0
        %3474 = vmatpush1.xpose.msra.mxu0 0.0
        %3475 = vmatprep.mubr.f32.mxu0 0.0
        %3476 = vmatmul.mubr.f32.gmra.mrb[0].mxu0 %v2615
        %v3477 = vpop.f32.mrb[0].mxu0
        %v3478 = vadd.f32 0.0, %v3477
        %v3479 = vpop.f32.mrb[0].mxu0
        %3480 = vdwg.mxu0
        %v3481 = vld [vmem:[%s1833] sm:$0xf]
        %3483 = vset.pattern.permute.xlu0 0
        %3484 = vperm.xlu0 %3483, %v3481
        %v3485 = vpop.permute.xlu0 %3484
        %v3487 = vmul.f32 %v3478, %v3485
        %v3488 = vadd.f32 %v3378, %v3487
        %v3489 = vld [vmem:[%s1842] sm:$0xff]
        %v3490 = vld [vmem:[%s1842 + $0x8] sm:$0xff]
        %v3491 = vld [vmem:[%s1842 + $0x10] sm:$0xff]
        %v3492 = vld [vmem:[%s1842 + $0x18] sm:$0xff]
        %v3493 = vld [vmem:[%s1842 + $0x20] sm:$0xff]
        %v3494 = vld [vmem:[%s1842 + $0x28] sm:$0xff]
        %v3495 = vld [vmem:[%s1842 + $0x30] sm:$0xff]
        %v3496 = vld [vmem:[%s1842 + $0x38] sm:$0xff]
        %v3498 = vsel %vm851, %v3489, 0
        %v3501 = vsel %vm851, %v3490, 0
        %v3504 = vsel %vm851, %v3491, 0
        %v3507 = vsel %vm851, %v3492, 0
        %v3510 = vsel %vm851, %v3493, 0
        %v3513 = vsel %vm851, %v3494, 0
        %v3516 = vsel %vm851, %v3495, 0
        %v3519 = vsel %vm851, %v3496, 0
        %3521 = vmatprep.subr.mxu0 0.0
        %3522 = vmatpush1.xpose.msra.mxu0 %v3498
        %3523 = vmatprep.subr.mxu0 0.0
        %3524 = vmatpush1.xpose.msra.mxu0 %v3501
        %3525 = vmatprep.subr.mxu0 0.0
        %3526 = vmatpush1.xpose.msra.mxu0 %v3504
        %3527 = vmatprep.subr.mxu0 0.0
        %3528 = vmatpush1.xpose.msra.mxu0 %v3507
        %3529 = vmatprep.subr.mxu0 0.0
        %3530 = vmatpush1.xpose.msra.mxu0 %v3510
        %3531 = vmatprep.subr.mxu0 0.0
        %3532 = vmatpush1.xpose.msra.mxu0 %v3513
        %3533 = vmatprep.subr.mxu0 0.0
        %3534 = vmatpush1.xpose.msra.mxu0 %v3516
        %3535 = vmatprep.subr.mxu0 0.0
        %3536 = vmatpush1.xpose.msra.mxu0 %v3519
        %3537 = vmatprep.subr.mxu0 0.0
        %3538 = vmatpush1.xpose.msra.mxu0 0.0
        %3539 = vmatprep.subr.mxu0 0.0
        %3540 = vmatpush1.xpose.msra.mxu0 0.0
        %3541 = vmatprep.subr.mxu0 0.0
        %3542 = vmatpush1.xpose.msra.mxu0 0.0
        %3543 = vmatprep.subr.mxu0 0.0
        %3544 = vmatpush1.xpose.msra.mxu0 0.0
        %3545 = vmatprep.subr.mxu0 0.0
        %3546 = vmatpush1.xpose.msra.mxu0 0.0
        %3547 = vmatprep.subr.mxu0 0.0
        %3548 = vmatpush1.xpose.msra.mxu0 0.0
        %3549 = vmatprep.subr.mxu0 0.0
        %3550 = vmatpush1.xpose.msra.mxu0 0.0
        %3551 = vmatprep.subr.mxu0 0.0
        %3552 = vmatpush1.xpose.msra.mxu0 0.0
        %3553 = vmatprep.subr.mxu0 0.0
        %3554 = vmatpush1.xpose.msra.mxu0 0.0
        %3555 = vmatprep.subr.mxu0 0.0
        %3556 = vmatpush1.xpose.msra.mxu0 0.0
        %3557 = vmatprep.subr.mxu0 0.0
        %3558 = vmatpush1.xpose.msra.mxu0 0.0
        %3559 = vmatprep.subr.mxu0 0.0
        %3560 = vmatpush1.xpose.msra.mxu0 0.0
        %3561 = vmatprep.subr.mxu0 0.0
        %3562 = vmatpush1.xpose.msra.mxu0 0.0
        %3563 = vmatprep.subr.mxu0 0.0
        %3564 = vmatpush1.xpose.msra.mxu0 0.0
        %3565 = vmatprep.subr.mxu0 0.0
        %3566 = vmatpush1.xpose.msra.mxu0 0.0
        %3567 = vmatprep.subr.mxu0 0.0
        %3568 = vmatpush1.xpose.msra.mxu0 0.0
        %3569 = vmatprep.subr.mxu0 0.0
        %3570 = vmatpush1.xpose.msra.mxu0 0.0
        %3571 = vmatprep.subr.mxu0 0.0
        %3572 = vmatpush1.xpose.msra.mxu0 0.0
        %3573 = vmatprep.subr.mxu0 0.0
        %3574 = vmatpush1.xpose.msra.mxu0 0.0
        %3575 = vmatprep.subr.mxu0 0.0
        %3576 = vmatpush1.xpose.msra.mxu0 0.0
        %3577 = vmatprep.subr.mxu0 0.0
        %3578 = vmatpush1.xpose.msra.mxu0 0.0
        %3579 = vmatprep.subr.mxu0 0.0
        %3580 = vmatpush1.xpose.msra.mxu0 0.0
        %3581 = vmatprep.subr.mxu0 0.0
        %3582 = vmatpush1.xpose.msra.mxu0 0.0
        %3583 = vmatprep.subr.mxu0 0.0
        %3584 = vmatpush1.xpose.msra.mxu0 0.0
        %3585 = vmatprep.mubr.f32.mxu0 0.0
        %3586 = vmatmul.mubr.f32.gmra.mrb[0].mxu0 %v2615
        %v3587 = vpop.f32.mrb[0].mxu0
        %v3588 = vadd.f32 0.0, %v3587
        %v3589 = vpop.f32.mrb[0].mxu0
        %3590 = vdwg.mxu0
        %v3591 = vld [vmem:[%s1945] sm:$0xf]
        %3593 = vset.pattern.permute.xlu0 0
        %3594 = vperm.xlu0 %3593, %v3591
        %v3595 = vpop.permute.xlu0 %3594
        %v3597 = vmul.f32 %v3588, %v3595
        %v3598 = vadd.f32 %v3488, %v3597
        %v3600 = vsel %vm851, %v2591, 0
        %v3603 = vsel %vm851, %v2593, 0
        %v3606 = vsel %vm851, %v2595, 0
        %v3609 = vsel %vm851, %v2597, 0
        %v3612 = vsel %vm851, %v2599, 0
        %v3615 = vsel %vm851, %v2601, 0
        %v3618 = vsel %vm851, %v2603, 0
        %v3621 = vsel %vm851, %v2605, 0
        %3623 = vmatprep.subr.mxu0 0.0
        %3624 = vmatpush1.xpose.msra.mxu0 %v3600
        %3625 = vmatprep.subr.mxu0 0.0
        %3626 = vmatpush1.xpose.msra.mxu0 %v3603
        %3627 = vmatprep.subr.mxu0 0.0
        %3628 = vmatpush1.xpose.msra.mxu0 %v3606
        %3629 = vmatprep.subr.mxu0 0.0
        %3630 = vmatpush1.xpose.msra.mxu0 %v3609
        %3631 = vmatprep.subr.mxu0 0.0
        %3632 = vmatpush1.xpose.msra.mxu0 %v3612
        %3633 = vmatprep.subr.mxu0 0.0
        %3634 = vmatpush1.xpose.msra.mxu0 %v3615
        %3635 = vmatprep.subr.mxu0 0.0
        %3636 = vmatpush1.xpose.msra.mxu0 %v3618
        %3637 = vmatprep.subr.mxu0 0.0
        %3638 = vmatpush1.xpose.msra.mxu0 %v3621
        %3639 = vmatprep.subr.mxu0 0.0
        %3640 = vmatpush1.xpose.msra.mxu0 0.0
        %3641 = vmatprep.subr.mxu0 0.0
        %3642 = vmatpush1.xpose.msra.mxu0 0.0
        %3643 = vmatprep.subr.mxu0 0.0
        %3644 = vmatpush1.xpose.msra.mxu0 0.0
        %3645 = vmatprep.subr.mxu0 0.0
        %3646 = vmatpush1.xpose.msra.mxu0 0.0
        %3647 = vmatprep.subr.mxu0 0.0
        %3648 = vmatpush1.xpose.msra.mxu0 0.0
        %3649 = vmatprep.subr.mxu0 0.0
        %3650 = vmatpush1.xpose.msra.mxu0 0.0
        %3651 = vmatprep.subr.mxu0 0.0
        %3652 = vmatpush1.xpose.msra.mxu0 0.0
        %3653 = vmatprep.subr.mxu0 0.0
        %3654 = vmatpush1.xpose.msra.mxu0 0.0
        %3655 = vmatprep.subr.mxu0 0.0
        %3656 = vmatpush1.xpose.msra.mxu0 0.0
        %3657 = vmatprep.subr.mxu0 0.0
        %3658 = vmatpush1.xpose.msra.mxu0 0.0
        %3659 = vmatprep.subr.mxu0 0.0
        %3660 = vmatpush1.xpose.msra.mxu0 0.0
        %3661 = vmatprep.subr.mxu0 0.0
        %3662 = vmatpush1.xpose.msra.mxu0 0.0
        %3663 = vmatprep.subr.mxu0 0.0
        %3664 = vmatpush1.xpose.msra.mxu0 0.0
        %3665 = vmatprep.subr.mxu0 0.0
        %3666 = vmatpush1.xpose.msra.mxu0 0.0
        %3667 = vmatprep.subr.mxu0 0.0
        %3668 = vmatpush1.xpose.msra.mxu0 0.0
        %3669 = vmatprep.subr.mxu0 0.0
        %3670 = vmatpush1.xpose.msra.mxu0 0.0
        %3671 = vmatprep.subr.mxu0 0.0
        %3672 = vmatpush1.xpose.msra.mxu0 0.0
        %3673 = vmatprep.subr.mxu0 0.0
        %3674 = vmatpush1.xpose.msra.mxu0 0.0
        %3675 = vmatprep.subr.mxu0 0.0
        %3676 = vmatpush1.xpose.msra.mxu0 0.0
        %3677 = vmatprep.subr.mxu0 0.0
        %3678 = vmatpush1.xpose.msra.mxu0 0.0
        %3679 = vmatprep.subr.mxu0 0.0
        %3680 = vmatpush1.xpose.msra.mxu0 0.0
        %3681 = vmatprep.subr.mxu0 0.0
        %3682 = vmatpush1.xpose.msra.mxu0 0.0
        %3683 = vmatprep.subr.mxu0 0.0
        %3684 = vmatpush1.xpose.msra.mxu0 0.0
        %3685 = vmatprep.subr.mxu0 0.0
        %3686 = vmatpush1.xpose.msra.mxu0 0.0
        %3687 = vmatprep.mubr.f32.mxu0 0.0
        %3688 = vmatmul.mubr.f32.gmra.mrb[0].mxu0 %v2615
        %v3689 = vpop.f32.mrb[0].mxu0
        %v3690 = vadd.f32 %v3598, %v3689
        %v3691 = vpop.f32.mrb[0].mxu0
        %3692 = vdwg.mxu0
        %v3694 = vsel %vm449, %v3690, 0
        %3696 = vmatprep.subr.mxu0 0.0
        %3697 = vmatpush1.msra.mxu0 %v3694
        %3698 = vmatprep.subr.mxu0 0.0
        %3699 = vmatpush1.msra.mxu0 0.0
        %3700 = vmatprep.subr.mxu0 0.0
        %3701 = vmatpush1.msra.mxu0 0.0
        %3702 = vmatprep.subr.mxu0 0.0
        %3703 = vmatpush1.msra.mxu0 0.0
        %3704 = vmatprep.subr.mxu0 0.0
        %3705 = vmatpush1.msra.mxu0 0.0
        %3706 = vmatprep.subr.mxu0 0.0
        %3707 = vmatpush1.msra.mxu0 0.0
        %3708 = vmatprep.subr.mxu0 0.0
        %3709 = vmatpush1.msra.mxu0 0.0
        %3710 = vmatprep.subr.mxu0 0.0
        %3711 = vmatpush1.msra.mxu0 0.0
        %3712 = vmatprep.subr.mxu0 0.0
        %3713 = vmatpush1.msra.mxu0 0.0
        %3714 = vmatprep.subr.mxu0 0.0
        %3715 = vmatpush1.msra.mxu0 0.0
        %3716 = vmatprep.subr.mxu0 0.0
        %3717 = vmatpush1.msra.mxu0 0.0
        %3718 = vmatprep.subr.mxu0 0.0
        %3719 = vmatpush1.msra.mxu0 0.0
        %3720 = vmatprep.subr.mxu0 0.0
        %3721 = vmatpush1.msra.mxu0 0.0
        %3722 = vmatprep.subr.mxu0 0.0
        %3723 = vmatpush1.msra.mxu0 0.0
        %3724 = vmatprep.subr.mxu0 0.0
        %3725 = vmatpush1.msra.mxu0 0.0
        %3726 = vmatprep.subr.mxu0 0.0
        %3727 = vmatpush1.msra.mxu0 0.0
        %3728 = vmatprep.subr.mxu0 0.0
        %3729 = vmatpush1.msra.mxu0 0.0
        %3730 = vmatprep.subr.mxu0 0.0
        %3731 = vmatpush1.msra.mxu0 0.0
        %3732 = vmatprep.subr.mxu0 0.0
        %3733 = vmatpush1.msra.mxu0 0.0
        %3734 = vmatprep.subr.mxu0 0.0
        %3735 = vmatpush1.msra.mxu0 0.0
        %3736 = vmatprep.subr.mxu0 0.0
        %3737 = vmatpush1.msra.mxu0 0.0
        %3738 = vmatprep.subr.mxu0 0.0
        %3739 = vmatpush1.msra.mxu0 0.0
        %3740 = vmatprep.subr.mxu0 0.0
        %3741 = vmatpush1.msra.mxu0 0.0
        %3742 = vmatprep.subr.mxu0 0.0
        %3743 = vmatpush1.msra.mxu0 0.0
        %3744 = vmatprep.subr.mxu0 0.0
        %3745 = vmatpush1.msra.mxu0 0.0
        %3746 = vmatprep.subr.mxu0 0.0
        %3747 = vmatpush1.msra.mxu0 0.0
        %3748 = vmatprep.subr.mxu0 0.0
        %3749 = vmatpush1.msra.mxu0 0.0
        %3750 = vmatprep.subr.mxu0 0.0
        %3751 = vmatpush1.msra.mxu0 0.0
        %3752 = vmatprep.subr.mxu0 0.0
        %3753 = vmatpush1.msra.mxu0 0.0
        %3754 = vmatprep.subr.mxu0 0.0
        %3755 = vmatpush1.msra.mxu0 0.0
        %3756 = vmatprep.subr.mxu0 0.0
        %3757 = vmatpush1.msra.mxu0 0.0
        %3758 = vmatprep.subr.mxu0 0.0
        %3759 = vmatpush1.msra.mxu0 0.0
        %3760 = vmatprep.mubr.f32.mxu0 0.0
        %3761 = vmatmul.mubr.f32.gmra.mrb[0].mxu0 %v2054
        %v3762 = vpop.f32.mrb[0].mxu0
        %v3763 = vadd.f32 %v2051, %v3762
        %v3764 = vpop.f32.mrb[0].mxu0
        %3765 = vdwg.mxu0
        %s3766 = scalar_lea.vmem %s422, 4 [#allocation5]
        %3767 = vst.msk [vmem:[%s3766] sm:$0xf] %vm2129, %v3763
        %s3768 = scalar_lea.vmem %s427, 8
        %v3769 = vld [vmem:[%s3768] sm:$0xf]
        %v3771 = vsel %vm449, %v3769, 0
        %3773 = vmatprep.subr.mxu0 0.0
        %3774 = vmatpush1.msra.mxu0 %v3771
        %3775 = vmatprep.subr.mxu0 0.0
        %3776 = vmatpush1.msra.mxu0 0.0
        %3777 = vmatprep.subr.mxu0 0.0
        %3778 = vmatpush1.msra.mxu0 0.0
        %3779 = vmatprep.subr.mxu0 0.0
        %3780 = vmatpush1.msra.mxu0 0.0
        %3781 = vmatprep.subr.mxu0 0.0
        %3782 = vmatpush1.msra.mxu0 0.0
        %3783 = vmatprep.subr.mxu0 0.0
        %3784 = vmatpush1.msra.mxu0 0.0
        %3785 = vmatprep.subr.mxu0 0.0
        %3786 = vmatpush1.msra.mxu0 0.0
        %3787 = vmatprep.subr.mxu0 0.0
        %3788 = vmatpush1.msra.mxu0 0.0
        %3789 = vmatprep.subr.mxu0 0.0
        %3790 = vmatpush1.msra.mxu0 0.0
        %3791 = vmatprep.subr.mxu0 0.0
        %3792 = vmatpush1.msra.mxu0 0.0
        %3793 = vmatprep.subr.mxu0 0.0
        %3794 = vmatpush1.msra.mxu0 0.0
        %3795 = vmatprep.subr.mxu0 0.0
        %3796 = vmatpush1.msra.mxu0 0.0
        %3797 = vmatprep.subr.mxu0 0.0
        %3798 = vmatpush1.msra.mxu0 0.0
        %3799 = vmatprep.subr.mxu0 0.0
        %3800 = vmatpush1.msra.mxu0 0.0
        %3801 = vmatprep.subr.mxu0 0.0
        %3802 = vmatpush1.msra.mxu0 0.0
        %3803 = vmatprep.subr.mxu0 0.0
        %3804 = vmatpush1.msra.mxu0 0.0
        %3805 = vmatprep.subr.mxu0 0.0
        %3806 = vmatpush1.msra.mxu0 0.0
        %3807 = vmatprep.subr.mxu0 0.0
        %3808 = vmatpush1.msra.mxu0 0.0
        %3809 = vmatprep.subr.mxu0 0.0
        %3810 = vmatpush1.msra.mxu0 0.0
        %3811 = vmatprep.subr.mxu0 0.0
        %3812 = vmatpush1.msra.mxu0 0.0
        %3813 = vmatprep.subr.mxu0 0.0
        %3814 = vmatpush1.msra.mxu0 0.0
        %3815 = vmatprep.subr.mxu0 0.0
        %3816 = vmatpush1.msra.mxu0 0.0
        %3817 = vmatprep.subr.mxu0 0.0
        %3818 = vmatpush1.msra.mxu0 0.0
        %3819 = vmatprep.subr.mxu0 0.0
        %3820 = vmatpush1.msra.mxu0 0.0
        %3821 = vmatprep.subr.mxu0 0.0
        %3822 = vmatpush1.msra.mxu0 0.0
        %3823 = vmatprep.subr.mxu0 0.0
        %3824 = vmatpush1.msra.mxu0 0.0
        %3825 = vmatprep.subr.mxu0 0.0
        %3826 = vmatpush1.msra.mxu0 0.0
        %3827 = vmatprep.subr.mxu0 0.0
        %3828 = vmatpush1.msra.mxu0 0.0
        %3829 = vmatprep.subr.mxu0 0.0
        %3830 = vmatpush1.msra.mxu0 0.0
        %3831 = vmatprep.subr.mxu0 0.0
        %3832 = vmatpush1.msra.mxu0 0.0
        %3833 = vmatprep.subr.mxu0 0.0
        %3834 = vmatpush1.msra.mxu0 0.0
        %3835 = vmatprep.subr.mxu0 0.0
        %3836 = vmatpush1.msra.mxu0 0.0
        %3837 = vmatprep.mubr.f32.mxu0 0.0
        %3838 = vmatmul.mubr.f32.gmra.mrb[0].mxu0 %v447
        %v3839 = vpop.f32.mrb[0].mxu0
        %v3840 = vadd.f32 %v443, %v3839
        %v3841 = vpop.f32.mrb[0].mxu0
        %3842 = vdwg.mxu0
        %3843 = vmatprep.subr.mxu0 0.0
        %3844 = vmatpush1.msra.mxu0 %v3771
        %3845 = vmatprep.subr.mxu0 0.0
        %3846 = vmatpush1.msra.mxu0 0.0
        %3847 = vmatprep.subr.mxu0 0.0
        %3848 = vmatpush1.msra.mxu0 0.0
        %3849 = vmatprep.subr.mxu0 0.0
        %3850 = vmatpush1.msra.mxu0 0.0
        %3851 = vmatprep.subr.mxu0 0.0
        %3852 = vmatpush1.msra.mxu0 0.0
        %3853 = vmatprep.subr.mxu0 0.0
        %3854 = vmatpush1.msra.mxu0 0.0
        %3855 = vmatprep.subr.mxu0 0.0
        %3856 = vmatpush1.msra.mxu0 0.0
        %3857 = vmatprep.subr.mxu0 0.0
        %3858 = vmatpush1.msra.mxu0 0.0
        %3859 = vmatprep.subr.mxu0 0.0
        %3860 = vmatpush1.msra.mxu0 0.0
        %3861 = vmatprep.subr.mxu0 0.0
        %3862 = vmatpush1.msra.mxu0 0.0
        %3863 = vmatprep.subr.mxu0 0.0
        %3864 = vmatpush1.msra.mxu0 0.0
        %3865 = vmatprep.subr.mxu0 0.0
        %3866 = vmatpush1.msra.mxu0 0.0
        %3867 = vmatprep.subr.mxu0 0.0
        %3868 = vmatpush1.msra.mxu0 0.0
        %3869 = vmatprep.subr.mxu0 0.0
        %3870 = vmatpush1.msra.mxu0 0.0
        %3871 = vmatprep.subr.mxu0 0.0
        %3872 = vmatpush1.msra.mxu0 0.0
        %3873 = vmatprep.subr.mxu0 0.0
        %3874 = vmatpush1.msra.mxu0 0.0
        %3875 = vmatprep.subr.mxu0 0.0
        %3876 = vmatpush1.msra.mxu0 0.0
        %3877 = vmatprep.subr.mxu0 0.0
        %3878 = vmatpush1.msra.mxu0 0.0
        %3879 = vmatprep.subr.mxu0 0.0
        %3880 = vmatpush1.msra.mxu0 0.0
        %3881 = vmatprep.subr.mxu0 0.0
        %3882 = vmatpush1.msra.mxu0 0.0
        %3883 = vmatprep.subr.mxu0 0.0
        %3884 = vmatpush1.msra.mxu0 0.0
        %3885 = vmatprep.subr.mxu0 0.0
        %3886 = vmatpush1.msra.mxu0 0.0
        %3887 = vmatprep.subr.mxu0 0.0
        %3888 = vmatpush1.msra.mxu0 0.0
        %3889 = vmatprep.subr.mxu0 0.0
        %3890 = vmatpush1.msra.mxu0 0.0
        %3891 = vmatprep.subr.mxu0 0.0
        %3892 = vmatpush1.msra.mxu0 0.0
        %3893 = vmatprep.subr.mxu0 0.0
        %3894 = vmatpush1.msra.mxu0 0.0
        %3895 = vmatprep.subr.mxu0 0.0
        %3896 = vmatpush1.msra.mxu0 0.0
        %3897 = vmatprep.subr.mxu0 0.0
        %3898 = vmatpush1.msra.mxu0 0.0
        %3899 = vmatprep.subr.mxu0 0.0
        %3900 = vmatpush1.msra.mxu0 0.0
        %3901 = vmatprep.subr.mxu0 0.0
        %3902 = vmatpush1.msra.mxu0 0.0
        %3903 = vmatprep.subr.mxu0 0.0
        %3904 = vmatpush1.msra.mxu0 0.0
        %3905 = vmatprep.subr.mxu0 0.0
        %3906 = vmatpush1.msra.mxu0 0.0
        %3907 = vmatprep.mubr.f32.mxu0 0.0
        %3908 = vmatmul.mubr.f32.gmra.mrb[0].mxu0 %v529
        %v3909 = vpop.f32.mrb[0].mxu0
        %v3910 = vadd.f32 %v526, %v3909
        %v3911 = vpop.f32.mrb[0].mxu0
        %3912 = vdwg.mxu0
        %3913 = vmatprep.subr.mxu0 0.0
        %3914 = vmatpush1.msra.mxu0 %v3771
        %3915 = vmatprep.subr.mxu0 0.0
        %3916 = vmatpush1.msra.mxu0 0.0
        %3917 = vmatprep.subr.mxu0 0.0
        %3918 = vmatpush1.msra.mxu0 0.0
        %3919 = vmatprep.subr.mxu0 0.0
        %3920 = vmatpush1.msra.mxu0 0.0
        %3921 = vmatprep.subr.mxu0 0.0
        %3922 = vmatpush1.msra.mxu0 0.0
        %3923 = vmatprep.subr.mxu0 0.0
        %3924 = vmatpush1.msra.mxu0 0.0
        %3925 = vmatprep.subr.mxu0 0.0
        %3926 = vmatpush1.msra.mxu0 0.0
        %3927 = vmatprep.subr.mxu0 0.0
        %3928 = vmatpush1.msra.mxu0 0.0
        %3929 = vmatprep.subr.mxu0 0.0
        %3930 = vmatpush1.msra.mxu0 0.0
        %3931 = vmatprep.subr.mxu0 0.0
        %3932 = vmatpush1.msra.mxu0 0.0
        %3933 = vmatprep.subr.mxu0 0.0
        %3934 = vmatpush1.msra.mxu0 0.0
        %3935 = vmatprep.subr.mxu0 0.0
        %3936 = vmatpush1.msra.mxu0 0.0
        %3937 = vmatprep.subr.mxu0 0.0
        %3938 = vmatpush1.msra.mxu0 0.0
        %3939 = vmatprep.subr.mxu0 0.0
        %3940 = vmatpush1.msra.mxu0 0.0
        %3941 = vmatprep.subr.mxu0 0.0
        %3942 = vmatpush1.msra.mxu0 0.0
        %3943 = vmatprep.subr.mxu0 0.0
        %3944 = vmatpush1.msra.mxu0 0.0
        %3945 = vmatprep.subr.mxu0 0.0
        %3946 = vmatpush1.msra.mxu0 0.0
        %3947 = vmatprep.subr.mxu0 0.0
        %3948 = vmatpush1.msra.mxu0 0.0
        %3949 = vmatprep.subr.mxu0 0.0
        %3950 = vmatpush1.msra.mxu0 0.0
        %3951 = vmatprep.subr.mxu0 0.0
        %3952 = vmatpush1.msra.mxu0 0.0
        %3953 = vmatprep.subr.mxu0 0.0
        %3954 = vmatpush1.msra.mxu0 0.0
        %3955 = vmatprep.subr.mxu0 0.0
        %3956 = vmatpush1.msra.mxu0 0.0
        %3957 = vmatprep.subr.mxu0 0.0
        %3958 = vmatpush1.msra.mxu0 0.0
        %3959 = vmatprep.subr.mxu0 0.0
        %3960 = vmatpush1.msra.mxu0 0.0
        %3961 = vmatprep.subr.mxu0 0.0
        %3962 = vmatpush1.msra.mxu0 0.0
        %3963 = vmatprep.subr.mxu0 0.0
        %3964 = vmatpush1.msra.mxu0 0.0
        %3965 = vmatprep.subr.mxu0 0.0
        %3966 = vmatpush1.msra.mxu0 0.0
        %3967 = vmatprep.subr.mxu0 0.0
        %3968 = vmatpush1.msra.mxu0 0.0
        %3969 = vmatprep.subr.mxu0 0.0
        %3970 = vmatpush1.msra.mxu0 0.0
        %3971 = vmatprep.subr.mxu0 0.0
        %3972 = vmatpush1.msra.mxu0 0.0
        %3973 = vmatprep.subr.mxu0 0.0
        %3974 = vmatpush1.msra.mxu0 0.0
        %3975 = vmatprep.subr.mxu0 0.0
        %3976 = vmatpush1.msra.mxu0 0.0
        %3977 = vmatprep.mubr.f32.mxu0 0.0
        %3978 = vmatmul.mubr.f32.gmra.mrb[0].mxu0 %v607
        %v3979 = vpop.f32.mrb[0].mxu0
        %v3980 = vadd.f32 %v604, %v3979
        %v3981 = vpop.f32.mrb[0].mxu0
        %3982 = vdwg.mxu0
        %3983 = vxpose.xlu0.b32.start [1/16] %v3840, 128
        %3984 = vxpose.xlu0.b32.cont [2/16] 0.0, 128
        %3985 = vxpose.xlu0.b32.cont [3/16] 0.0, 128
        %3986 = vxpose.xlu0.b32.cont [4/16] 0.0, 128
        %3987 = vxpose.xlu0.b32.cont [5/16] 0.0, 128
        %3988 = vxpose.xlu0.b32.cont [6/16] 0.0, 128
        %3989 = vxpose.xlu0.b32.cont [7/16] 0.0, 128
        %3990 = vxpose.xlu0.b32.cont [8/16] 0.0, 128
        %3991 = vxpose.xlu0.b32.cont [9/16] 0.0, 128
        %3992 = vxpose.xlu0.b32.cont [10/16] 0.0, 128
        %3993 = vxpose.xlu0.b32.cont [11/16] 0.0, 128
        %3994 = vxpose.xlu0.b32.cont [12/16] 0.0, 128
        %3995 = vxpose.xlu0.b32.cont [13/16] 0.0, 128
        %3996 = vxpose.xlu0.b32.cont [14/16] 0.0, 128
        %3997 = vxpose.xlu0.b32.cont [15/16] 0.0, 128
        %3998 = vxpose.xlu0.b32.end [16/16] 0.0, 128
        %v3999 = vpop.trf.xlu0
        %v4000 = vpop.trf.xlu0
        %v4001 = vpop.trf.xlu0
        %v4002 = vpop.trf.xlu0
        %v4003 = vpop.trf.xlu0
        %v4004 = vpop.trf.xlu0
        %v4005 = vpop.trf.xlu0
        %v4006 = vpop.trf.xlu0
        %v4007 = vpop.trf.xlu0
        %v4008 = vpop.trf.xlu0
        %v4009 = vpop.trf.xlu0
        %v4010 = vpop.trf.xlu0
        %v4011 = vpop.trf.xlu0
        %v4012 = vpop.trf.xlu0
        %v4013 = vpop.trf.xlu0
        %v4014 = vpop.trf.xlu0
        %v4016 = vsel %vm445, %v3999, 0
        %v4019 = vsel %vm445, %v4000, 0
        %v4022 = vsel %vm445, %v4001, 0
        %v4025 = vsel %vm445, %v4002, 0
        %v4028 = vsel %vm445, %v4003, 0
        %v4031 = vsel %vm445, %v4004, 0
        %v4034 = vsel %vm445, %v4005, 0
        %v4037 = vsel %vm445, %v4006, 0
        %v4040 = vsel %vm449, %v3910, 0
        %4042 = vmatprep.subr.mxu0 0.0
        %4043 = vmatpush1.msra.mxu0 %v4040
        %4044 = vmatprep.subr.mxu0 0.0
        %4045 = vmatpush1.msra.mxu0 0.0
        %4046 = vmatprep.subr.mxu0 0.0
        %4047 = vmatpush1.msra.mxu0 0.0
        %4048 = vmatprep.subr.mxu0 0.0
        %4049 = vmatpush1.msra.mxu0 0.0
        %4050 = vmatprep.subr.mxu0 0.0
        %4051 = vmatpush1.msra.mxu0 0.0
        %4052 = vmatprep.subr.mxu0 0.0
        %4053 = vmatpush1.msra.mxu0 0.0
        %4054 = vmatprep.subr.mxu0 0.0
        %4055 = vmatpush1.msra.mxu0 0.0
        %4056 = vmatprep.subr.mxu0 0.0
        %4057 = vmatpush1.msra.mxu0 0.0
        %4058 = vmatprep.subr.mxu0 0.0
        %4059 = vmatpush1.msra.mxu0 0.0
        %4060 = vmatprep.subr.mxu0 0.0
        %4061 = vmatpush1.msra.mxu0 0.0
        %4062 = vmatprep.subr.mxu0 0.0
        %4063 = vmatpush1.msra.mxu0 0.0
        %4064 = vmatprep.subr.mxu0 0.0
        %4065 = vmatpush1.msra.mxu0 0.0
        %4066 = vmatprep.subr.mxu0 0.0
        %4067 = vmatpush1.msra.mxu0 0.0
        %4068 = vmatprep.subr.mxu0 0.0
        %4069 = vmatpush1.msra.mxu0 0.0
        %4070 = vmatprep.subr.mxu0 0.0
        %4071 = vmatpush1.msra.mxu0 0.0
        %4072 = vmatprep.subr.mxu0 0.0
        %4073 = vmatpush1.msra.mxu0 0.0
        %4074 = vmatprep.subr.mxu0 0.0
        %4075 = vmatpush1.msra.mxu0 0.0
        %4076 = vmatprep.subr.mxu0 0.0
        %4077 = vmatpush1.msra.mxu0 0.0
        %4078 = vmatprep.subr.mxu0 0.0
        %4079 = vmatpush1.msra.mxu0 0.0
        %4080 = vmatprep.subr.mxu0 0.0
        %4081 = vmatpush1.msra.mxu0 0.0
        %4082 = vmatprep.subr.mxu0 0.0
        %4083 = vmatpush1.msra.mxu0 0.0
        %4084 = vmatprep.subr.mxu0 0.0
        %4085 = vmatpush1.msra.mxu0 0.0
        %4086 = vmatprep.subr.mxu0 0.0
        %4087 = vmatpush1.msra.mxu0 0.0
        %4088 = vmatprep.subr.mxu0 0.0
        %4089 = vmatpush1.msra.mxu0 0.0
        %4090 = vmatprep.subr.mxu0 0.0
        %4091 = vmatpush1.msra.mxu0 0.0
        %4092 = vmatprep.subr.mxu0 0.0
        %4093 = vmatpush1.msra.mxu0 0.0
        %4094 = vmatprep.subr.mxu0 0.0
        %4095 = vmatpush1.msra.mxu0 0.0
        %4096 = vmatprep.subr.mxu0 0.0
        %4097 = vmatpush1.msra.mxu0 0.0
        %4098 = vmatprep.subr.mxu0 0.0
        %4099 = vmatpush1.msra.mxu0 0.0
        %4100 = vmatprep.subr.mxu0 0.0
        %4101 = vmatpush1.msra.mxu0 0.0
        %4102 = vmatprep.subr.mxu0 0.0
        %4103 = vmatpush1.msra.mxu0 0.0
        %4104 = vmatprep.subr.mxu0 0.0
        %4105 = vmatpush1.msra.mxu0 0.0
        %4106 = vmatprep.mubr.f32.mxu0 0.0
        %4107 = vmatmul.mubr.f32.gmra.mrb[0].mxu0 %v4016
        %v4108 = vpop.f32.mrb[0].mxu0
        %v4109 = vadd.f32 0.0, %v4108
        %v4110 = vpop.f32.mrb[0].mxu0
        %4111 = vmatprep.mubr.f32.mxu0 0.0
        %4112 = vmatmul.mubr.f32.gmra.mrb[0].mxu0 %v4019
        %v4113 = vpop.f32.mrb[0].mxu0
        %v4114 = vadd.f32 0.0, %v4113
        %v4115 = vpop.f32.mrb[0].mxu0
        %4116 = vmatprep.mubr.f32.mxu0 0.0
        %4117 = vmatmul.mubr.f32.gmra.mrb[0].mxu0 %v4022
        %v4118 = vpop.f32.mrb[0].mxu0
        %v4119 = vadd.f32 0.0, %v4118
        %v4120 = vpop.f32.mrb[0].mxu0
        %4121 = vmatprep.mubr.f32.mxu0 0.0
        %4122 = vmatmul.mubr.f32.gmra.mrb[0].mxu0 %v4025
        %v4123 = vpop.f32.mrb[0].mxu0
        %v4124 = vadd.f32 0.0, %v4123
        %v4125 = vpop.f32.mrb[0].mxu0
        %4126 = vmatprep.mubr.f32.mxu0 0.0
        %4127 = vmatmul.mubr.f32.gmra.mrb[0].mxu0 %v4028
        %v4128 = vpop.f32.mrb[0].mxu0
        %v4129 = vadd.f32 0.0, %v4128
        %v4130 = vpop.f32.mrb[0].mxu0
        %4131 = vmatprep.mubr.f32.mxu0 0.0
        %4132 = vmatmul.mubr.f32.gmra.mrb[0].mxu0 %v4031
        %v4133 = vpop.f32.mrb[0].mxu0
        %v4134 = vadd.f32 0.0, %v4133
        %v4135 = vpop.f32.mrb[0].mxu0
        %4136 = vmatprep.mubr.f32.mxu0 0.0
        %4137 = vmatmul.mubr.f32.gmra.mrb[0].mxu0 %v4034
        %v4138 = vpop.f32.mrb[0].mxu0
        %v4139 = vadd.f32 0.0, %v4138
        %v4140 = vpop.f32.mrb[0].mxu0
        %4141 = vmatprep.mubr.f32.mxu0 0.0
        %4142 = vmatmul.mubr.f32.gmra.mrb[0].mxu0 %v4037
        %v4143 = vpop.f32.mrb[0].mxu0
        %v4144 = vadd.f32 0.0, %v4143
        %v4145 = vpop.f32.mrb[0].mxu0
        %4146 = vdwg.mxu0
        %v4147 = vmul.f32 %v4109, 0.5
        %v4148 = vmul.f32 %v4114, 0.5
        %v4149 = vmul.f32 %v4119, 0.5
        %v4150 = vmul.f32 %v4124, 0.5
        %v4151 = vmul.f32 %v4129, 0.5
        %v4152 = vmul.f32 %v4134, 0.5
        %v4153 = vmul.f32 %v4139, 0.5
        %v4154 = vmul.f32 %v4144, 0.5
        %v4155 = vsel %vm851, %v4147, -inf
        %4156 = vmax.xlane.f32.xlu0 %v4155
        %v4157 = vpop.xlane.xlu0 %4156
        %v4158 = vsel %vm851, %v4148, -inf
        %4159 = vmax.xlane.f32.xlu0 %v4158
        %v4160 = vpop.xlane.xlu0 %4159
        %v4161 = vsel %vm851, %v4149, -inf
        %4162 = vmax.xlane.f32.xlu0 %v4161
        %v4163 = vpop.xlane.xlu0 %4162
        %v4164 = vsel %vm851, %v4150, -inf
        %4165 = vmax.xlane.f32.xlu0 %v4164
        %v4166 = vpop.xlane.xlu0 %4165
        %v4167 = vsel %vm851, %v4151, -inf
        %4168 = vmax.xlane.f32.xlu0 %v4167
        %v4169 = vpop.xlane.xlu0 %4168
        %v4170 = vsel %vm851, %v4152, -inf
        %4171 = vmax.xlane.f32.xlu0 %v4170
        %v4172 = vpop.xlane.xlu0 %4171
        %v4173 = vsel %vm851, %v4153, -inf
        %4174 = vmax.xlane.f32.xlu0 %v4173
        %v4175 = vpop.xlane.xlu0 %4174
        %v4176 = vsel %vm851, %v4154, -inf
        %4177 = vmax.xlane.f32.xlu0 %v4176
        %v4178 = vpop.xlane.xlu0 %4177
        %v4179 = vsub.f32 %v4147, %v4157
        %v4180 = vsub.f32 %v4148, %v4160
        %v4181 = vsub.f32 %v4149, %v4163
        %v4182 = vsub.f32 %v4150, %v4166
        %v4183 = vsub.f32 %v4151, %v4169
        %v4184 = vsub.f32 %v4152, %v4172
        %v4185 = vsub.f32 %v4153, %v4175
        %v4186 = vsub.f32 %v4154, %v4178
        %v4187 = vmul.f32 %v4179, 1.442695
        %v4188 = vpow.pop %v4187
        %v4189 = vmul.f32 %v4180, 1.442695
        %v4190 = vpow.pop %v4189
        %v4191 = vmul.f32 %v4181, 1.442695
        %v4192 = vpow.pop %v4191
        %v4193 = vmul.f32 %v4182, 1.442695
        %v4194 = vpow.pop %v4193
        %v4195 = vmul.f32 %v4183, 1.442695
        %v4196 = vpow.pop %v4195
        %v4197 = vmul.f32 %v4184, 1.442695
        %v4198 = vpow.pop %v4197
        %v4199 = vmul.f32 %v4185, 1.442695
        %v4200 = vpow.pop %v4199
        %v4201 = vmul.f32 %v4186, 1.442695
        %v4202 = vpow.pop %v4201
        %v4203 = vsel %vm851, %v4188, 0.0
        %4204 = vadd.xlane.f32.xlu0 %v4203
        %v4205 = vpop.xlane.xlu0 %4204
        %v4206 = vsel %vm851, %v4190, 0.0
        %4207 = vadd.xlane.f32.xlu0 %v4206
        %v4208 = vpop.xlane.xlu0 %4207
        %v4209 = vsel %vm851, %v4192, 0.0
        %4210 = vadd.xlane.f32.xlu0 %v4209
        %v4211 = vpop.xlane.xlu0 %4210
        %v4212 = vsel %vm851, %v4194, 0.0
        %4213 = vadd.xlane.f32.xlu0 %v4212
        %v4214 = vpop.xlane.xlu0 %4213
        %v4215 = vsel %vm851, %v4196, 0.0
        %4216 = vadd.xlane.f32.xlu0 %v4215
        %v4217 = vpop.xlane.xlu0 %4216
        %v4218 = vsel %vm851, %v4198, 0.0
        %4219 = vadd.xlane.f32.xlu0 %v4218
        %v4220 = vpop.xlane.xlu0 %4219
        %v4221 = vsel %vm851, %v4200, 0.0
        %4222 = vadd.xlane.f32.xlu0 %v4221
        %v4223 = vpop.xlane.xlu0 %4222
        %v4224 = vsel %vm851, %v4202, 0.0
        %4225 = vadd.xlane.f32.xlu0 %v4224
        %v4226 = vpop.xlane.xlu0 %4225
        %v4227 = vrcp.pop %v4205
        %v4228 = vmul.f32 %v4188, %v4227
        %v4229 = vrcp.pop %v4208
        %v4230 = vmul.f32 %v4190, %v4229
        %v4231 = vrcp.pop %v4211
        %v4232 = vmul.f32 %v4192, %v4231
        %v4233 = vrcp.pop %v4214
        %v4234 = vmul.f32 %v4194, %v4233
        %v4235 = vrcp.pop %v4217
        %v4236 = vmul.f32 %v4196, %v4235
        %v4237 = vrcp.pop %v4220
        %v4238 = vmul.f32 %v4198, %v4237
        %v4239 = vrcp.pop %v4223
        %v4240 = vmul.f32 %v4200, %v4239
        %v4241 = vrcp.pop %v4226
        %v4242 = vmul.f32 %v4202, %v4241
        %v4243 = vld [vmem:[#allocation2] sm:$0xff]
        %v4244 = vld [vmem:[#allocation2 + $0x8] sm:$0xff]
        %v4245 = vld [vmem:[#allocation2 + $0x10] sm:$0xff]
        %v4246 = vld [vmem:[#allocation2 + $0x18] sm:$0xff]
        %v4247 = vld [vmem:[#allocation2 + $0x20] sm:$0xff]
        %v4248 = vld [vmem:[#allocation2 + $0x28] sm:$0xff]
        %v4249 = vld [vmem:[#allocation2 + $0x30] sm:$0xff]
        %v4250 = vld [vmem:[#allocation2 + $0x38] sm:$0xff]
        %v4252 = vsel %vm851, %v3980, 0
        %v4255 = vsel %vm851, %v4243, 0
        %v4258 = vsel %vm851, %v4244, 0
        %v4261 = vsel %vm851, %v4245, 0
        %v4264 = vsel %vm851, %v4246, 0
        %v4267 = vsel %vm851, %v4247, 0
        %v4270 = vsel %vm851, %v4248, 0
        %v4273 = vsel %vm851, %v4249, 0
        %v4276 = vsel %vm851, %v4250, 0
        %4278 = vmatprep.subr.mxu0 0.0
        %4279 = vmatpush1.xpose.msra.mxu0 %v4255
        %4280 = vmatprep.subr.mxu0 0.0
        %4281 = vmatpush1.xpose.msra.mxu0 %v4258
        %4282 = vmatprep.subr.mxu0 0.0
        %4283 = vmatpush1.xpose.msra.mxu0 %v4261
        %4284 = vmatprep.subr.mxu0 0.0
        %4285 = vmatpush1.xpose.msra.mxu0 %v4264
        %4286 = vmatprep.subr.mxu0 0.0
        %4287 = vmatpush1.xpose.msra.mxu0 %v4267
        %4288 = vmatprep.subr.mxu0 0.0
        %4289 = vmatpush1.xpose.msra.mxu0 %v4270
        %4290 = vmatprep.subr.mxu0 0.0
        %4291 = vmatpush1.xpose.msra.mxu0 %v4273
        %4292 = vmatprep.subr.mxu0 0.0
        %4293 = vmatpush1.xpose.msra.mxu0 %v4276
        %4294 = vmatprep.subr.mxu0 0.0
        %4295 = vmatpush1.xpose.msra.mxu0 0.0
        %4296 = vmatprep.subr.mxu0 0.0
        %4297 = vmatpush1.xpose.msra.mxu0 0.0
        %4298 = vmatprep.subr.mxu0 0.0
        %4299 = vmatpush1.xpose.msra.mxu0 0.0
        %4300 = vmatprep.subr.mxu0 0.0
        %4301 = vmatpush1.xpose.msra.mxu0 0.0
        %4302 = vmatprep.subr.mxu0 0.0
        %4303 = vmatpush1.xpose.msra.mxu0 0.0
        %4304 = vmatprep.subr.mxu0 0.0
        %4305 = vmatpush1.xpose.msra.mxu0 0.0
        %4306 = vmatprep.subr.mxu0 0.0
        %4307 = vmatpush1.xpose.msra.mxu0 0.0
        %4308 = vmatprep.subr.mxu0 0.0
        %4309 = vmatpush1.xpose.msra.mxu0 0.0
        %4310 = vmatprep.subr.mxu0 0.0
        %4311 = vmatpush1.xpose.msra.mxu0 0.0
        %4312 = vmatprep.subr.mxu0 0.0
        %4313 = vmatpush1.xpose.msra.mxu0 0.0
        %4314 = vmatprep.subr.mxu0 0.0
        %4315 = vmatpush1.xpose.msra.mxu0 0.0
        %4316 = vmatprep.subr.mxu0 0.0
        %4317 = vmatpush1.xpose.msra.mxu0 0.0
        %4318 = vmatprep.subr.mxu0 0.0
        %4319 = vmatpush1.xpose.msra.mxu0 0.0
        %4320 = vmatprep.subr.mxu0 0.0
        %4321 = vmatpush1.xpose.msra.mxu0 0.0
        %4322 = vmatprep.subr.mxu0 0.0
        %4323 = vmatpush1.xpose.msra.mxu0 0.0
        %4324 = vmatprep.subr.mxu0 0.0
        %4325 = vmatpush1.xpose.msra.mxu0 0.0
        %4326 = vmatprep.subr.mxu0 0.0
        %4327 = vmatpush1.xpose.msra.mxu0 0.0
        %4328 = vmatprep.subr.mxu0 0.0
        %4329 = vmatpush1.xpose.msra.mxu0 0.0
        %4330 = vmatprep.subr.mxu0 0.0
        %4331 = vmatpush1.xpose.msra.mxu0 0.0
        %4332 = vmatprep.subr.mxu0 0.0
        %4333 = vmatpush1.xpose.msra.mxu0 0.0
        %4334 = vmatprep.subr.mxu0 0.0
        %4335 = vmatpush1.xpose.msra.mxu0 0.0
        %4336 = vmatprep.subr.mxu0 0.0
        %4337 = vmatpush1.xpose.msra.mxu0 0.0
        %4338 = vmatprep.subr.mxu0 0.0
        %4339 = vmatpush1.xpose.msra.mxu0 0.0
        %4340 = vmatprep.subr.mxu0 0.0
        %4341 = vmatpush1.xpose.msra.mxu0 0.0
        %4342 = vmatprep.mubr.f32.mxu0 0.0
        %4343 = vmatmul.mubr.f32.gmra.mrb[0].mxu0 %v4252
        %v4344 = vpop.f32.mrb[0].mxu0
        %v4345 = vadd.f32 0.0, %v4344
        %v4346 = vpop.f32.mrb[0].mxu0
        %4347 = vdwg.mxu0
        %v4348 = vld [vmem:[%s7] sm:$0xf]
        %4350 = vset.pattern.permute.xlu0 0
        %4351 = vperm.xlu0 %4350, %v4348
        %v4352 = vpop.permute.xlu0 %4351
        %v4354 = vmul.f32 %v4345, %v4352
        %v4355 = vadd.f32 %v1055, %v4354
        %v4356 = vld [vmem:[%s1058] sm:$0xff]
        %v4357 = vld [vmem:[%s1058 + $0x8] sm:$0xff]
        %v4358 = vld [vmem:[%s1058 + $0x10] sm:$0xff]
        %v4359 = vld [vmem:[%s1058 + $0x18] sm:$0xff]
        %v4360 = vld [vmem:[%s1058 + $0x20] sm:$0xff]
        %v4361 = vld [vmem:[%s1058 + $0x28] sm:$0xff]
        %v4362 = vld [vmem:[%s1058 + $0x30] sm:$0xff]
        %v4363 = vld [vmem:[%s1058 + $0x38] sm:$0xff]
        %v4365 = vsel %vm851, %v4356, 0
        %v4368 = vsel %vm851, %v4357, 0
        %v4371 = vsel %vm851, %v4358, 0
        %v4374 = vsel %vm851, %v4359, 0
        %v4377 = vsel %vm851, %v4360, 0
        %v4380 = vsel %vm851, %v4361, 0
        %v4383 = vsel %vm851, %v4362, 0
        %v4386 = vsel %vm851, %v4363, 0
        %4388 = vmatprep.subr.mxu0 0.0
        %4389 = vmatpush1.xpose.msra.mxu0 %v4365
        %4390 = vmatprep.subr.mxu0 0.0
        %4391 = vmatpush1.xpose.msra.mxu0 %v4368
        %4392 = vmatprep.subr.mxu0 0.0
        %4393 = vmatpush1.xpose.msra.mxu0 %v4371
        %4394 = vmatprep.subr.mxu0 0.0
        %4395 = vmatpush1.xpose.msra.mxu0 %v4374
        %4396 = vmatprep.subr.mxu0 0.0
        %4397 = vmatpush1.xpose.msra.mxu0 %v4377
        %4398 = vmatprep.subr.mxu0 0.0
        %4399 = vmatpush1.xpose.msra.mxu0 %v4380
        %4400 = vmatprep.subr.mxu0 0.0
        %4401 = vmatpush1.xpose.msra.mxu0 %v4383
        %4402 = vmatprep.subr.mxu0 0.0
        %4403 = vmatpush1.xpose.msra.mxu0 %v4386
        %4404 = vmatprep.subr.mxu0 0.0
        %4405 = vmatpush1.xpose.msra.mxu0 0.0
        %4406 = vmatprep.subr.mxu0 0.0
        %4407 = vmatpush1.xpose.msra.mxu0 0.0
        %4408 = vmatprep.subr.mxu0 0.0
        %4409 = vmatpush1.xpose.msra.mxu0 0.0
        %4410 = vmatprep.subr.mxu0 0.0
        %4411 = vmatpush1.xpose.msra.mxu0 0.0
        %4412 = vmatprep.subr.mxu0 0.0
        %4413 = vmatpush1.xpose.msra.mxu0 0.0
        %4414 = vmatprep.subr.mxu0 0.0
        %4415 = vmatpush1.xpose.msra.mxu0 0.0
        %4416 = vmatprep.subr.mxu0 0.0
        %4417 = vmatpush1.xpose.msra.mxu0 0.0
        %4418 = vmatprep.subr.mxu0 0.0
        %4419 = vmatpush1.xpose.msra.mxu0 0.0
        %4420 = vmatprep.subr.mxu0 0.0
        %4421 = vmatpush1.xpose.msra.mxu0 0.0
        %4422 = vmatprep.subr.mxu0 0.0
        %4423 = vmatpush1.xpose.msra.mxu0 0.0
        %4424 = vmatprep.subr.mxu0 0.0
        %4425 = vmatpush1.xpose.msra.mxu0 0.0
        %4426 = vmatprep.subr.mxu0 0.0
        %4427 = vmatpush1.xpose.msra.mxu0 0.0
        %4428 = vmatprep.subr.mxu0 0.0
        %4429 = vmatpush1.xpose.msra.mxu0 0.0
        %4430 = vmatprep.subr.mxu0 0.0
        %4431 = vmatpush1.xpose.msra.mxu0 0.0
        %4432 = vmatprep.subr.mxu0 0.0
        %4433 = vmatpush1.xpose.msra.mxu0 0.0
        %4434 = vmatprep.subr.mxu0 0.0
        %4435 = vmatpush1.xpose.msra.mxu0 0.0
        %4436 = vmatprep.subr.mxu0 0.0
        %4437 = vmatpush1.xpose.msra.mxu0 0.0
        %4438 = vmatprep.subr.mxu0 0.0
        %4439 = vmatpush1.xpose.msra.mxu0 0.0
        %4440 = vmatprep.subr.mxu0 0.0
        %4441 = vmatpush1.xpose.msra.mxu0 0.0
        %4442 = vmatprep.subr.mxu0 0.0
        %4443 = vmatpush1.xpose.msra.mxu0 0.0
        %4444 = vmatprep.subr.mxu0 0.0
        %4445 = vmatpush1.xpose.msra.mxu0 0.0
        %4446 = vmatprep.subr.mxu0 0.0
        %4447 = vmatpush1.xpose.msra.mxu0 0.0
        %4448 = vmatprep.subr.mxu0 0.0
        %4449 = vmatpush1.xpose.msra.mxu0 0.0
        %4450 = vmatprep.subr.mxu0 0.0
        %4451 = vmatpush1.xpose.msra.mxu0 0.0
        %4452 = vmatprep.mubr.f32.mxu0 0.0
        %4453 = vmatmul.mubr.f32.gmra.mrb[0].mxu0 %v4252
        %v4454 = vpop.f32.mrb[0].mxu0
        %v4455 = vadd.f32 0.0, %v4454
        %v4456 = vpop.f32.mrb[0].mxu0
        %4457 = vdwg.mxu0
        %v4458 = vld [vmem:[%s1161] sm:$0xf]
        %4460 = vset.pattern.permute.xlu0 0
        %4461 = vperm.xlu0 %4460, %v4458
        %v4462 = vpop.permute.xlu0 %4461
        %v4464 = vmul.f32 %v4455, %v4462
        %v4465 = vadd.f32 %v4355, %v4464
        %v4466 = vld [vmem:[%s1170] sm:$0xff]
        %v4467 = vld [vmem:[%s1170 + $0x8] sm:$0xff]
        %v4468 = vld [vmem:[%s1170 + $0x10] sm:$0xff]
        %v4469 = vld [vmem:[%s1170 + $0x18] sm:$0xff]
        %v4470 = vld [vmem:[%s1170 + $0x20] sm:$0xff]
        %v4471 = vld [vmem:[%s1170 + $0x28] sm:$0xff]
        %v4472 = vld [vmem:[%s1170 + $0x30] sm:$0xff]
        %v4473 = vld [vmem:[%s1170 + $0x38] sm:$0xff]
        %v4475 = vsel %vm851, %v4466, 0
        %v4478 = vsel %vm851, %v4467, 0
        %v4481 = vsel %vm851, %v4468, 0
        %v4484 = vsel %vm851, %v4469, 0
        %v4487 = vsel %vm851, %v4470, 0
        %v4490 = vsel %vm851, %v4471, 0
        %v4493 = vsel %vm851, %v4472, 0
        %v4496 = vsel %vm851, %v4473, 0
        %4498 = vmatprep.subr.mxu0 0.0
        %4499 = vmatpush1.xpose.msra.mxu0 %v4475
        %4500 = vmatprep.subr.mxu0 0.0
        %4501 = vmatpush1.xpose.msra.mxu0 %v4478
        %4502 = vmatprep.subr.mxu0 0.0
        %4503 = vmatpush1.xpose.msra.mxu0 %v4481
        %4504 = vmatprep.subr.mxu0 0.0
        %4505 = vmatpush1.xpose.msra.mxu0 %v4484
        %4506 = vmatprep.subr.mxu0 0.0
        %4507 = vmatpush1.xpose.msra.mxu0 %v4487
        %4508 = vmatprep.subr.mxu0 0.0
        %4509 = vmatpush1.xpose.msra.mxu0 %v4490
        %4510 = vmatprep.subr.mxu0 0.0
        %4511 = vmatpush1.xpose.msra.mxu0 %v4493
        %4512 = vmatprep.subr.mxu0 0.0
        %4513 = vmatpush1.xpose.msra.mxu0 %v4496
        %4514 = vmatprep.subr.mxu0 0.0
        %4515 = vmatpush1.xpose.msra.mxu0 0.0
        %4516 = vmatprep.subr.mxu0 0.0
        %4517 = vmatpush1.xpose.msra.mxu0 0.0
        %4518 = vmatprep.subr.mxu0 0.0
        %4519 = vmatpush1.xpose.msra.mxu0 0.0
        %4520 = vmatprep.subr.mxu0 0.0
        %4521 = vmatpush1.xpose.msra.mxu0 0.0
        %4522 = vmatprep.subr.mxu0 0.0
        %4523 = vmatpush1.xpose.msra.mxu0 0.0
        %4524 = vmatprep.subr.mxu0 0.0
        %4525 = vmatpush1.xpose.msra.mxu0 0.0
        %4526 = vmatprep.subr.mxu0 0.0
        %4527 = vmatpush1.xpose.msra.mxu0 0.0
        %4528 = vmatprep.subr.mxu0 0.0
        %4529 = vmatpush1.xpose.msra.mxu0 0.0
        %4530 = vmatprep.subr.mxu0 0.0
        %4531 = vmatpush1.xpose.msra.mxu0 0.0
        %4532 = vmatprep.subr.mxu0 0.0
        %4533 = vmatpush1.xpose.msra.mxu0 0.0
        %4534 = vmatprep.subr.mxu0 0.0
        %4535 = vmatpush1.xpose.msra.mxu0 0.0
        %4536 = vmatprep.subr.mxu0 0.0
        %4537 = vmatpush1.xpose.msra.mxu0 0.0
        %4538 = vmatprep.subr.mxu0 0.0
        %4539 = vmatpush1.xpose.msra.mxu0 0.0
        %4540 = vmatprep.subr.mxu0 0.0
        %4541 = vmatpush1.xpose.msra.mxu0 0.0
        %4542 = vmatprep.subr.mxu0 0.0
        %4543 = vmatpush1.xpose.msra.mxu0 0.0
        %4544 = vmatprep.subr.mxu0 0.0
        %4545 = vmatpush1.xpose.msra.mxu0 0.0
        %4546 = vmatprep.subr.mxu0 0.0
        %4547 = vmatpush1.xpose.msra.mxu0 0.0
        %4548 = vmatprep.subr.mxu0 0.0
        %4549 = vmatpush1.xpose.msra.mxu0 0.0
        %4550 = vmatprep.subr.mxu0 0.0
        %4551 = vmatpush1.xpose.msra.mxu0 0.0
        %4552 = vmatprep.subr.mxu0 0.0
        %4553 = vmatpush1.xpose.msra.mxu0 0.0
        %4554 = vmatprep.subr.mxu0 0.0
        %4555 = vmatpush1.xpose.msra.mxu0 0.0
        %4556 = vmatprep.subr.mxu0 0.0
        %4557 = vmatpush1.xpose.msra.mxu0 0.0
        %4558 = vmatprep.subr.mxu0 0.0
        %4559 = vmatpush1.xpose.msra.mxu0 0.0
        %4560 = vmatprep.subr.mxu0 0.0
        %4561 = vmatpush1.xpose.msra.mxu0 0.0
        %4562 = vmatprep.mubr.f32.mxu0 0.0
        %4563 = vmatmul.mubr.f32.gmra.mrb[0].mxu0 %v4252
        %v4564 = vpop.f32.mrb[0].mxu0
        %v4565 = vadd.f32 0.0, %v4564
        %v4566 = vpop.f32.mrb[0].mxu0
        %4567 = vdwg.mxu0
        %v4568 = vld [vmem:[%s1273] sm:$0xf]
        %4570 = vset.pattern.permute.xlu0 0
        %4571 = vperm.xlu0 %4570, %v4568
        %v4572 = vpop.permute.xlu0 %4571
        %v4574 = vmul.f32 %v4565, %v4572
        %v4575 = vadd.f32 %v4465, %v4574
        %v4576 = vld [vmem:[%s1282] sm:$0xff]
        %v4577 = vld [vmem:[%s1282 + $0x8] sm:$0xff]
        %v4578 = vld [vmem:[%s1282 + $0x10] sm:$0xff]
        %v4579 = vld [vmem:[%s1282 + $0x18] sm:$0xff]
        %v4580 = vld [vmem:[%s1282 + $0x20] sm:$0xff]
        %v4581 = vld [vmem:[%s1282 + $0x28] sm:$0xff]
        %v4582 = vld [vmem:[%s1282 + $0x30] sm:$0xff]
        %v4583 = vld [vmem:[%s1282 + $0x38] sm:$0xff]
        %v4585 = vsel %vm851, %v4576, 0
        %v4588 = vsel %vm851, %v4577, 0
        %v4591 = vsel %vm851, %v4578, 0
        %v4594 = vsel %vm851, %v4579, 0
        %v4597 = vsel %vm851, %v4580, 0
        %v4600 = vsel %vm851, %v4581, 0
        %v4603 = vsel %vm851, %v4582, 0
        %v4606 = vsel %vm851, %v4583, 0
        %4608 = vmatprep.subr.mxu0 0.0
        %4609 = vmatpush1.xpose.msra.mxu0 %v4585
        %4610 = vmatprep.subr.mxu0 0.0
        %4611 = vmatpush1.xpose.msra.mxu0 %v4588
        %4612 = vmatprep.subr.mxu0 0.0
        %4613 = vmatpush1.xpose.msra.mxu0 %v4591
        %4614 = vmatprep.subr.mxu0 0.0
        %4615 = vmatpush1.xpose.msra.mxu0 %v4594
        %4616 = vmatprep.subr.mxu0 0.0
        %4617 = vmatpush1.xpose.msra.mxu0 %v4597
        %4618 = vmatprep.subr.mxu0 0.0
        %4619 = vmatpush1.xpose.msra.mxu0 %v4600
        %4620 = vmatprep.subr.mxu0 0.0
        %4621 = vmatpush1.xpose.msra.mxu0 %v4603
        %4622 = vmatprep.subr.mxu0 0.0
        %4623 = vmatpush1.xpose.msra.mxu0 %v4606
        %4624 = vmatprep.subr.mxu0 0.0
        %4625 = vmatpush1.xpose.msra.mxu0 0.0
        %4626 = vmatprep.subr.mxu0 0.0
        %4627 = vmatpush1.xpose.msra.mxu0 0.0
        %4628 = vmatprep.subr.mxu0 0.0
        %4629 = vmatpush1.xpose.msra.mxu0 0.0
        %4630 = vmatprep.subr.mxu0 0.0
        %4631 = vmatpush1.xpose.msra.mxu0 0.0
        %4632 = vmatprep.subr.mxu0 0.0
        %4633 = vmatpush1.xpose.msra.mxu0 0.0
        %4634 = vmatprep.subr.mxu0 0.0
        %4635 = vmatpush1.xpose.msra.mxu0 0.0
        %4636 = vmatprep.subr.mxu0 0.0
        %4637 = vmatpush1.xpose.msra.mxu0 0.0
        %4638 = vmatprep.subr.mxu0 0.0
        %4639 = vmatpush1.xpose.msra.mxu0 0.0
        %4640 = vmatprep.subr.mxu0 0.0
        %4641 = vmatpush1.xpose.msra.mxu0 0.0
        %4642 = vmatprep.subr.mxu0 0.0
        %4643 = vmatpush1.xpose.msra.mxu0 0.0
        %4644 = vmatprep.subr.mxu0 0.0
        %4645 = vmatpush1.xpose.msra.mxu0 0.0
        %4646 = vmatprep.subr.mxu0 0.0
        %4647 = vmatpush1.xpose.msra.mxu0 0.0
        %4648 = vmatprep.subr.mxu0 0.0
        %4649 = vmatpush1.xpose.msra.mxu0 0.0
        %4650 = vmatprep.subr.mxu0 0.0
        %4651 = vmatpush1.xpose.msra.mxu0 0.0
        %4652 = vmatprep.subr.mxu0 0.0
        %4653 = vmatpush1.xpose.msra.mxu0 0.0
        %4654 = vmatprep.subr.mxu0 0.0
        %4655 = vmatpush1.xpose.msra.mxu0 0.0
        %4656 = vmatprep.subr.mxu0 0.0
        %4657 = vmatpush1.xpose.msra.mxu0 0.0
        %4658 = vmatprep.subr.mxu0 0.0
        %4659 = vmatpush1.xpose.msra.mxu0 0.0
        %4660 = vmatprep.subr.mxu0 0.0
        %4661 = vmatpush1.xpose.msra.mxu0 0.0
        %4662 = vmatprep.subr.mxu0 0.0
        %4663 = vmatpush1.xpose.msra.mxu0 0.0
        %4664 = vmatprep.subr.mxu0 0.0
        %4665 = vmatpush1.xpose.msra.mxu0 0.0
        %4666 = vmatprep.subr.mxu0 0.0
        %4667 = vmatpush1.xpose.msra.mxu0 0.0
        %4668 = vmatprep.subr.mxu0 0.0
        %4669 = vmatpush1.xpose.msra.mxu0 0.0
        %4670 = vmatprep.subr.mxu0 0.0
        %4671 = vmatpush1.xpose.msra.mxu0 0.0
        %4672 = vmatprep.mubr.f32.mxu0 0.0
        %4673 = vmatmul.mubr.f32.gmra.mrb[0].mxu0 %v4252
        %v4674 = vpop.f32.mrb[0].mxu0
        %v4675 = vadd.f32 0.0, %v4674
        %v4676 = vpop.f32.mrb[0].mxu0
        %4677 = vdwg.mxu0
        %v4678 = vld [vmem:[%s1385] sm:$0xf]
        %4680 = vset.pattern.permute.xlu0 0
        %4681 = vperm.xlu0 %4680, %v4678
        %v4682 = vpop.permute.xlu0 %4681
        %v4684 = vmul.f32 %v4675, %v4682
        %v4685 = vadd.f32 %v4575, %v4684
        %v4686 = vld [vmem:[%s1394] sm:$0xff]
        %v4687 = vld [vmem:[%s1394 + $0x8] sm:$0xff]
        %v4688 = vld [vmem:[%s1394 + $0x10] sm:$0xff]
        %v4689 = vld [vmem:[%s1394 + $0x18] sm:$0xff]
        %v4690 = vld [vmem:[%s1394 + $0x20] sm:$0xff]
        %v4691 = vld [vmem:[%s1394 + $0x28] sm:$0xff]
        %v4692 = vld [vmem:[%s1394 + $0x30] sm:$0xff]
        %v4693 = vld [vmem:[%s1394 + $0x38] sm:$0xff]
        %v4695 = vsel %vm851, %v4686, 0
        %v4698 = vsel %vm851, %v4687, 0
        %v4701 = vsel %vm851, %v4688, 0
        %v4704 = vsel %vm851, %v4689, 0
        %v4707 = vsel %vm851, %v4690, 0
        %v4710 = vsel %vm851, %v4691, 0
        %v4713 = vsel %vm851, %v4692, 0
        %v4716 = vsel %vm851, %v4693, 0
        %4718 = vmatprep.subr.mxu0 0.0
        %4719 = vmatpush1.xpose.msra.mxu0 %v4695
        %4720 = vmatprep.subr.mxu0 0.0
        %4721 = vmatpush1.xpose.msra.mxu0 %v4698
        %4722 = vmatprep.subr.mxu0 0.0
        %4723 = vmatpush1.xpose.msra.mxu0 %v4701
        %4724 = vmatprep.subr.mxu0 0.0
        %4725 = vmatpush1.xpose.msra.mxu0 %v4704
        %4726 = vmatprep.subr.mxu0 0.0
        %4727 = vmatpush1.xpose.msra.mxu0 %v4707
        %4728 = vmatprep.subr.mxu0 0.0
        %4729 = vmatpush1.xpose.msra.mxu0 %v4710
        %4730 = vmatprep.subr.mxu0 0.0
        %4731 = vmatpush1.xpose.msra.mxu0 %v4713
        %4732 = vmatprep.subr.mxu0 0.0
        %4733 = vmatpush1.xpose.msra.mxu0 %v4716
        %4734 = vmatprep.subr.mxu0 0.0
        %4735 = vmatpush1.xpose.msra.mxu0 0.0
        %4736 = vmatprep.subr.mxu0 0.0
        %4737 = vmatpush1.xpose.msra.mxu0 0.0
        %4738 = vmatprep.subr.mxu0 0.0
        %4739 = vmatpush1.xpose.msra.mxu0 0.0
        %4740 = vmatprep.subr.mxu0 0.0
        %4741 = vmatpush1.xpose.msra.mxu0 0.0
        %4742 = vmatprep.subr.mxu0 0.0
        %4743 = vmatpush1.xpose.msra.mxu0 0.0
        %4744 = vmatprep.subr.mxu0 0.0
        %4745 = vmatpush1.xpose.msra.mxu0 0.0
        %4746 = vmatprep.subr.mxu0 0.0
        %4747 = vmatpush1.xpose.msra.mxu0 0.0
        %4748 = vmatprep.subr.mxu0 0.0
        %4749 = vmatpush1.xpose.msra.mxu0 0.0
        %4750 = vmatprep.subr.mxu0 0.0
        %4751 = vmatpush1.xpose.msra.mxu0 0.0
        %4752 = vmatprep.subr.mxu0 0.0
        %4753 = vmatpush1.xpose.msra.mxu0 0.0
        %4754 = vmatprep.subr.mxu0 0.0
        %4755 = vmatpush1.xpose.msra.mxu0 0.0
        %4756 = vmatprep.subr.mxu0 0.0
        %4757 = vmatpush1.xpose.msra.mxu0 0.0
        %4758 = vmatprep.subr.mxu0 0.0
        %4759 = vmatpush1.xpose.msra.mxu0 0.0
        %4760 = vmatprep.subr.mxu0 0.0
        %4761 = vmatpush1.xpose.msra.mxu0 0.0
        %4762 = vmatprep.subr.mxu0 0.0
        %4763 = vmatpush1.xpose.msra.mxu0 0.0
        %4764 = vmatprep.subr.mxu0 0.0
        %4765 = vmatpush1.xpose.msra.mxu0 0.0
        %4766 = vmatprep.subr.mxu0 0.0
        %4767 = vmatpush1.xpose.msra.mxu0 0.0
        %4768 = vmatprep.subr.mxu0 0.0
        %4769 = vmatpush1.xpose.msra.mxu0 0.0
        %4770 = vmatprep.subr.mxu0 0.0
        %4771 = vmatpush1.xpose.msra.mxu0 0.0
        %4772 = vmatprep.subr.mxu0 0.0
        %4773 = vmatpush1.xpose.msra.mxu0 0.0
        %4774 = vmatprep.subr.mxu0 0.0
        %4775 = vmatpush1.xpose.msra.mxu0 0.0
        %4776 = vmatprep.subr.mxu0 0.0
        %4777 = vmatpush1.xpose.msra.mxu0 0.0
        %4778 = vmatprep.subr.mxu0 0.0
        %4779 = vmatpush1.xpose.msra.mxu0 0.0
        %4780 = vmatprep.subr.mxu0 0.0
        %4781 = vmatpush1.xpose.msra.mxu0 0.0
        %4782 = vmatprep.mubr.f32.mxu0 0.0
        %4783 = vmatmul.mubr.f32.gmra.mrb[0].mxu0 %v4252
        %v4784 = vpop.f32.mrb[0].mxu0
        %v4785 = vadd.f32 0.0, %v4784
        %v4786 = vpop.f32.mrb[0].mxu0
        %4787 = vdwg.mxu0
        %v4788 = vld [vmem:[%s1497] sm:$0xf]
        %4790 = vset.pattern.permute.xlu0 0
        %4791 = vperm.xlu0 %4790, %v4788
        %v4792 = vpop.permute.xlu0 %4791
        %v4794 = vmul.f32 %v4785, %v4792
        %v4795 = vadd.f32 %v4685, %v4794
        %v4796 = vld [vmem:[%s1506] sm:$0xff]
        %v4797 = vld [vmem:[%s1506 + $0x8] sm:$0xff]
        %v4798 = vld [vmem:[%s1506 + $0x10] sm:$0xff]
        %v4799 = vld [vmem:[%s1506 + $0x18] sm:$0xff]
        %v4800 = vld [vmem:[%s1506 + $0x20] sm:$0xff]
        %v4801 = vld [vmem:[%s1506 + $0x28] sm:$0xff]
        %v4802 = vld [vmem:[%s1506 + $0x30] sm:$0xff]
        %v4803 = vld [vmem:[%s1506 + $0x38] sm:$0xff]
        %v4805 = vsel %vm851, %v4796, 0
        %v4808 = vsel %vm851, %v4797, 0
        %v4811 = vsel %vm851, %v4798, 0
        %v4814 = vsel %vm851, %v4799, 0
        %v4817 = vsel %vm851, %v4800, 0
        %v4820 = vsel %vm851, %v4801, 0
        %v4823 = vsel %vm851, %v4802, 0
        %v4826 = vsel %vm851, %v4803, 0
        %4828 = vmatprep.subr.mxu0 0.0
        %4829 = vmatpush1.xpose.msra.mxu0 %v4805
        %4830 = vmatprep.subr.mxu0 0.0
        %4831 = vmatpush1.xpose.msra.mxu0 %v4808
        %4832 = vmatprep.subr.mxu0 0.0
        %4833 = vmatpush1.xpose.msra.mxu0 %v4811
        %4834 = vmatprep.subr.mxu0 0.0
        %4835 = vmatpush1.xpose.msra.mxu0 %v4814
        %4836 = vmatprep.subr.mxu0 0.0
        %4837 = vmatpush1.xpose.msra.mxu0 %v4817
        %4838 = vmatprep.subr.mxu0 0.0
        %4839 = vmatpush1.xpose.msra.mxu0 %v4820
        %4840 = vmatprep.subr.mxu0 0.0
        %4841 = vmatpush1.xpose.msra.mxu0 %v4823
        %4842 = vmatprep.subr.mxu0 0.0
        %4843 = vmatpush1.xpose.msra.mxu0 %v4826
        %4844 = vmatprep.subr.mxu0 0.0
        %4845 = vmatpush1.xpose.msra.mxu0 0.0
        %4846 = vmatprep.subr.mxu0 0.0
        %4847 = vmatpush1.xpose.msra.mxu0 0.0
        %4848 = vmatprep.subr.mxu0 0.0
        %4849 = vmatpush1.xpose.msra.mxu0 0.0
        %4850 = vmatprep.subr.mxu0 0.0
        %4851 = vmatpush1.xpose.msra.mxu0 0.0
        %4852 = vmatprep.subr.mxu0 0.0
        %4853 = vmatpush1.xpose.msra.mxu0 0.0
        %4854 = vmatprep.subr.mxu0 0.0
        %4855 = vmatpush1.xpose.msra.mxu0 0.0
        %4856 = vmatprep.subr.mxu0 0.0
        %4857 = vmatpush1.xpose.msra.mxu0 0.0
        %4858 = vmatprep.subr.mxu0 0.0
        %4859 = vmatpush1.xpose.msra.mxu0 0.0
        %4860 = vmatprep.subr.mxu0 0.0
        %4861 = vmatpush1.xpose.msra.mxu0 0.0
        %4862 = vmatprep.subr.mxu0 0.0
        %4863 = vmatpush1.xpose.msra.mxu0 0.0
        %4864 = vmatprep.subr.mxu0 0.0
        %4865 = vmatpush1.xpose.msra.mxu0 0.0
        %4866 = vmatprep.subr.mxu0 0.0
        %4867 = vmatpush1.xpose.msra.mxu0 0.0
        %4868 = vmatprep.subr.mxu0 0.0
        %4869 = vmatpush1.xpose.msra.mxu0 0.0
        %4870 = vmatprep.subr.mxu0 0.0
        %4871 = vmatpush1.xpose.msra.mxu0 0.0
        %4872 = vmatprep.subr.mxu0 0.0
        %4873 = vmatpush1.xpose.msra.mxu0 0.0
        %4874 = vmatprep.subr.mxu0 0.0
        %4875 = vmatpush1.xpose.msra.mxu0 0.0
        %4876 = vmatprep.subr.mxu0 0.0
        %4877 = vmatpush1.xpose.msra.mxu0 0.0
        %4878 = vmatprep.subr.mxu0 0.0
        %4879 = vmatpush1.xpose.msra.mxu0 0.0
        %4880 = vmatprep.subr.mxu0 0.0
        %4881 = vmatpush1.xpose.msra.mxu0 0.0
        %4882 = vmatprep.subr.mxu0 0.0
        %4883 = vmatpush1.xpose.msra.mxu0 0.0
        %4884 = vmatprep.subr.mxu0 0.0
        %4885 = vmatpush1.xpose.msra.mxu0 0.0
        %4886 = vmatprep.subr.mxu0 0.0
        %4887 = vmatpush1.xpose.msra.mxu0 0.0
        %4888 = vmatprep.subr.mxu0 0.0
        %4889 = vmatpush1.xpose.msra.mxu0 0.0
        %4890 = vmatprep.subr.mxu0 0.0
        %4891 = vmatpush1.xpose.msra.mxu0 0.0
        %4892 = vmatprep.mubr.f32.mxu0 0.0
        %4893 = vmatmul.mubr.f32.gmra.mrb[0].mxu0 %v4252
        %v4894 = vpop.f32.mrb[0].mxu0
        %v4895 = vadd.f32 0.0, %v4894
        %v4896 = vpop.f32.mrb[0].mxu0
        %4897 = vdwg.mxu0
        %v4898 = vld [vmem:[%s1609] sm:$0xf]
        %4900 = vset.pattern.permute.xlu0 0
        %4901 = vperm.xlu0 %4900, %v4898
        %v4902 = vpop.permute.xlu0 %4901
        %v4904 = vmul.f32 %v4895, %v4902
        %v4905 = vadd.f32 %v4795, %v4904
        %v4906 = vld [vmem:[%s1618] sm:$0xff]
        %v4907 = vld [vmem:[%s1618 + $0x8] sm:$0xff]
        %v4908 = vld [vmem:[%s1618 + $0x10] sm:$0xff]
        %v4909 = vld [vmem:[%s1618 + $0x18] sm:$0xff]
        %v4910 = vld [vmem:[%s1618 + $0x20] sm:$0xff]
        %v4911 = vld [vmem:[%s1618 + $0x28] sm:$0xff]
        %v4912 = vld [vmem:[%s1618 + $0x30] sm:$0xff]
        %v4913 = vld [vmem:[%s1618 + $0x38] sm:$0xff]
        %v4915 = vsel %vm851, %v4906, 0
        %v4918 = vsel %vm851, %v4907, 0
        %v4921 = vsel %vm851, %v4908, 0
        %v4924 = vsel %vm851, %v4909, 0
        %v4927 = vsel %vm851, %v4910, 0
        %v4930 = vsel %vm851, %v4911, 0
        %v4933 = vsel %vm851, %v4912, 0
        %v4936 = vsel %vm851, %v4913, 0
        %4938 = vmatprep.subr.mxu0 0.0
        %4939 = vmatpush1.xpose.msra.mxu0 %v4915
        %4940 = vmatprep.subr.mxu0 0.0
        %4941 = vmatpush1.xpose.msra.mxu0 %v4918
        %4942 = vmatprep.subr.mxu0 0.0
        %4943 = vmatpush1.xpose.msra.mxu0 %v4921
        %4944 = vmatprep.subr.mxu0 0.0
        %4945 = vmatpush1.xpose.msra.mxu0 %v4924
        %4946 = vmatprep.subr.mxu0 0.0
        %4947 = vmatpush1.xpose.msra.mxu0 %v4927
        %4948 = vmatprep.subr.mxu0 0.0
        %4949 = vmatpush1.xpose.msra.mxu0 %v4930
        %4950 = vmatprep.subr.mxu0 0.0
        %4951 = vmatpush1.xpose.msra.mxu0 %v4933
        %4952 = vmatprep.subr.mxu0 0.0
        %4953 = vmatpush1.xpose.msra.mxu0 %v4936
        %4954 = vmatprep.subr.mxu0 0.0
        %4955 = vmatpush1.xpose.msra.mxu0 0.0
        %4956 = vmatprep.subr.mxu0 0.0
        %4957 = vmatpush1.xpose.msra.mxu0 0.0
        %4958 = vmatprep.subr.mxu0 0.0
        %4959 = vmatpush1.xpose.msra.mxu0 0.0
        %4960 = vmatprep.subr.mxu0 0.0
        %4961 = vmatpush1.xpose.msra.mxu0 0.0
        %4962 = vmatprep.subr.mxu0 0.0
        %4963 = vmatpush1.xpose.msra.mxu0 0.0
        %4964 = vmatprep.subr.mxu0 0.0
        %4965 = vmatpush1.xpose.msra.mxu0 0.0
        %4966 = vmatprep.subr.mxu0 0.0
        %4967 = vmatpush1.xpose.msra.mxu0 0.0
        %4968 = vmatprep.subr.mxu0 0.0
        %4969 = vmatpush1.xpose.msra.mxu0 0.0
        %4970 = vmatprep.subr.mxu0 0.0
        %4971 = vmatpush1.xpose.msra.mxu0 0.0
        %4972 = vmatprep.subr.mxu0 0.0
        %4973 = vmatpush1.xpose.msra.mxu0 0.0
        %4974 = vmatprep.subr.mxu0 0.0
        %4975 = vmatpush1.xpose.msra.mxu0 0.0
        %4976 = vmatprep.subr.mxu0 0.0
        %4977 = vmatpush1.xpose.msra.mxu0 0.0
        %4978 = vmatprep.subr.mxu0 0.0
        %4979 = vmatpush1.xpose.msra.mxu0 0.0
        %4980 = vmatprep.subr.mxu0 0.0
        %4981 = vmatpush1.xpose.msra.mxu0 0.0
        %4982 = vmatprep.subr.mxu0 0.0
        %4983 = vmatpush1.xpose.msra.mxu0 0.0
        %4984 = vmatprep.subr.mxu0 0.0
        %4985 = vmatpush1.xpose.msra.mxu0 0.0
        %4986 = vmatprep.subr.mxu0 0.0
        %4987 = vmatpush1.xpose.msra.mxu0 0.0
        %4988 = vmatprep.subr.mxu0 0.0
        %4989 = vmatpush1.xpose.msra.mxu0 0.0
        %4990 = vmatprep.subr.mxu0 0.0
        %4991 = vmatpush1.xpose.msra.mxu0 0.0
        %4992 = vmatprep.subr.mxu0 0.0
        %4993 = vmatpush1.xpose.msra.mxu0 0.0
        %4994 = vmatprep.subr.mxu0 0.0
        %4995 = vmatpush1.xpose.msra.mxu0 0.0
        %4996 = vmatprep.subr.mxu0 0.0
        %4997 = vmatpush1.xpose.msra.mxu0 0.0
        %4998 = vmatprep.subr.mxu0 0.0
        %4999 = vmatpush1.xpose.msra.mxu0 0.0
        %5000 = vmatprep.subr.mxu0 0.0
        %5001 = vmatpush1.xpose.msra.mxu0 0.0
        %5002 = vmatprep.mubr.f32.mxu0 0.0
        %5003 = vmatmul.mubr.f32.gmra.mrb[0].mxu0 %v4252
        %v5004 = vpop.f32.mrb[0].mxu0
        %v5005 = vadd.f32 0.0, %v5004
        %v5006 = vpop.f32.mrb[0].mxu0
        %5007 = vdwg.mxu0
        %v5008 = vld [vmem:[%s1721] sm:$0xf]
        %5010 = vset.pattern.permute.xlu0 0
        %5011 = vperm.xlu0 %5010, %v5008
        %v5012 = vpop.permute.xlu0 %5011
        %v5014 = vmul.f32 %v5005, %v5012
        %v5015 = vadd.f32 %v4905, %v5014
        %v5016 = vld [vmem:[%s1730] sm:$0xff]
        %v5017 = vld [vmem:[%s1730 + $0x8] sm:$0xff]
        %v5018 = vld [vmem:[%s1730 + $0x10] sm:$0xff]
        %v5019 = vld [vmem:[%s1730 + $0x18] sm:$0xff]
        %v5020 = vld [vmem:[%s1730 + $0x20] sm:$0xff]
        %v5021 = vld [vmem:[%s1730 + $0x28] sm:$0xff]
        %v5022 = vld [vmem:[%s1730 + $0x30] sm:$0xff]
        %v5023 = vld [vmem:[%s1730 + $0x38] sm:$0xff]
        %v5025 = vsel %vm851, %v5016, 0
        %v5028 = vsel %vm851, %v5017, 0
        %v5031 = vsel %vm851, %v5018, 0
        %v5034 = vsel %vm851, %v5019, 0
        %v5037 = vsel %vm851, %v5020, 0
        %v5040 = vsel %vm851, %v5021, 0
        %v5043 = vsel %vm851, %v5022, 0
        %v5046 = vsel %vm851, %v5023, 0
        %5048 = vmatprep.subr.mxu0 0.0
        %5049 = vmatpush1.xpose.msra.mxu0 %v5025
        %5050 = vmatprep.subr.mxu0 0.0
        %5051 = vmatpush1.xpose.msra.mxu0 %v5028
        %5052 = vmatprep.subr.mxu0 0.0
        %5053 = vmatpush1.xpose.msra.mxu0 %v5031
        %5054 = vmatprep.subr.mxu0 0.0
        %5055 = vmatpush1.xpose.msra.mxu0 %v5034
        %5056 = vmatprep.subr.mxu0 0.0
        %5057 = vmatpush1.xpose.msra.mxu0 %v5037
        %5058 = vmatprep.subr.mxu0 0.0
        %5059 = vmatpush1.xpose.msra.mxu0 %v5040
        %5060 = vmatprep.subr.mxu0 0.0
        %5061 = vmatpush1.xpose.msra.mxu0 %v5043
        %5062 = vmatprep.subr.mxu0 0.0
        %5063 = vmatpush1.xpose.msra.mxu0 %v5046
        %5064 = vmatprep.subr.mxu0 0.0
        %5065 = vmatpush1.xpose.msra.mxu0 0.0
        %5066 = vmatprep.subr.mxu0 0.0
        %5067 = vmatpush1.xpose.msra.mxu0 0.0
        %5068 = vmatprep.subr.mxu0 0.0
        %5069 = vmatpush1.xpose.msra.mxu0 0.0
        %5070 = vmatprep.subr.mxu0 0.0
        %5071 = vmatpush1.xpose.msra.mxu0 0.0
        %5072 = vmatprep.subr.mxu0 0.0
        %5073 = vmatpush1.xpose.msra.mxu0 0.0
        %5074 = vmatprep.subr.mxu0 0.0
        %5075 = vmatpush1.xpose.msra.mxu0 0.0
        %5076 = vmatprep.subr.mxu0 0.0
        %5077 = vmatpush1.xpose.msra.mxu0 0.0
        %5078 = vmatprep.subr.mxu0 0.0
        %5079 = vmatpush1.xpose.msra.mxu0 0.0
        %5080 = vmatprep.subr.mxu0 0.0
        %5081 = vmatpush1.xpose.msra.mxu0 0.0
        %5082 = vmatprep.subr.mxu0 0.0
        %5083 = vmatpush1.xpose.msra.mxu0 0.0
        %5084 = vmatprep.subr.mxu0 0.0
        %5085 = vmatpush1.xpose.msra.mxu0 0.0
        %5086 = vmatprep.subr.mxu0 0.0
        %5087 = vmatpush1.xpose.msra.mxu0 0.0
        %5088 = vmatprep.subr.mxu0 0.0
        %5089 = vmatpush1.xpose.msra.mxu0 0.0
        %5090 = vmatprep.subr.mxu0 0.0
        %5091 = vmatpush1.xpose.msra.mxu0 0.0
        %5092 = vmatprep.subr.mxu0 0.0
        %5093 = vmatpush1.xpose.msra.mxu0 0.0
        %5094 = vmatprep.subr.mxu0 0.0
        %5095 = vmatpush1.xpose.msra.mxu0 0.0
        %5096 = vmatprep.subr.mxu0 0.0
        %5097 = vmatpush1.xpose.msra.mxu0 0.0
        %5098 = vmatprep.subr.mxu0 0.0
        %5099 = vmatpush1.xpose.msra.mxu0 0.0
        %5100 = vmatprep.subr.mxu0 0.0
        %5101 = vmatpush1.xpose.msra.mxu0 0.0
        %5102 = vmatprep.subr.mxu0 0.0
        %5103 = vmatpush1.xpose.msra.mxu0 0.0
        %5104 = vmatprep.subr.mxu0 0.0
        %5105 = vmatpush1.xpose.msra.mxu0 0.0
        %5106 = vmatprep.subr.mxu0 0.0
        %5107 = vmatpush1.xpose.msra.mxu0 0.0
        %5108 = vmatprep.subr.mxu0 0.0
        %5109 = vmatpush1.xpose.msra.mxu0 0.0
        %5110 = vmatprep.subr.mxu0 0.0
        %5111 = vmatpush1.xpose.msra.mxu0 0.0
        %5112 = vmatprep.mubr.f32.mxu0 0.0
        %5113 = vmatmul.mubr.f32.gmra.mrb[0].mxu0 %v4252
        %v5114 = vpop.f32.mrb[0].mxu0
        %v5115 = vadd.f32 0.0, %v5114
        %v5116 = vpop.f32.mrb[0].mxu0
        %5117 = vdwg.mxu0
        %v5118 = vld [vmem:[%s1833] sm:$0xf]
        %5120 = vset.pattern.permute.xlu0 0
        %5121 = vperm.xlu0 %5120, %v5118
        %v5122 = vpop.permute.xlu0 %5121
        %v5124 = vmul.f32 %v5115, %v5122
        %v5125 = vadd.f32 %v5015, %v5124
        %v5126 = vld [vmem:[%s1842] sm:$0xff]
        %v5127 = vld [vmem:[%s1842 + $0x8] sm:$0xff]
        %v5128 = vld [vmem:[%s1842 + $0x10] sm:$0xff]
        %v5129 = vld [vmem:[%s1842 + $0x18] sm:$0xff]
        %v5130 = vld [vmem:[%s1842 + $0x20] sm:$0xff]
        %v5131 = vld [vmem:[%s1842 + $0x28] sm:$0xff]
        %v5132 = vld [vmem:[%s1842 + $0x30] sm:$0xff]
        %v5133 = vld [vmem:[%s1842 + $0x38] sm:$0xff]
        %v5135 = vsel %vm851, %v5126, 0
        %v5138 = vsel %vm851, %v5127, 0
        %v5141 = vsel %vm851, %v5128, 0
        %v5144 = vsel %vm851, %v5129, 0
        %v5147 = vsel %vm851, %v5130, 0
        %v5150 = vsel %vm851, %v5131, 0
        %v5153 = vsel %vm851, %v5132, 0
        %v5156 = vsel %vm851, %v5133, 0
        %5158 = vmatprep.subr.mxu0 0.0
        %5159 = vmatpush1.xpose.msra.mxu0 %v5135
        %5160 = vmatprep.subr.mxu0 0.0
        %5161 = vmatpush1.xpose.msra.mxu0 %v5138
        %5162 = vmatprep.subr.mxu0 0.0
        %5163 = vmatpush1.xpose.msra.mxu0 %v5141
        %5164 = vmatprep.subr.mxu0 0.0
        %5165 = vmatpush1.xpose.msra.mxu0 %v5144
        %5166 = vmatprep.subr.mxu0 0.0
        %5167 = vmatpush1.xpose.msra.mxu0 %v5147
        %5168 = vmatprep.subr.mxu0 0.0
        %5169 = vmatpush1.xpose.msra.mxu0 %v5150
        %5170 = vmatprep.subr.mxu0 0.0
        %5171 = vmatpush1.xpose.msra.mxu0 %v5153
        %5172 = vmatprep.subr.mxu0 0.0
        %5173 = vmatpush1.xpose.msra.mxu0 %v5156
        %5174 = vmatprep.subr.mxu0 0.0
        %5175 = vmatpush1.xpose.msra.mxu0 0.0
        %5176 = vmatprep.subr.mxu0 0.0
        %5177 = vmatpush1.xpose.msra.mxu0 0.0
        %5178 = vmatprep.subr.mxu0 0.0
        %5179 = vmatpush1.xpose.msra.mxu0 0.0
        %5180 = vmatprep.subr.mxu0 0.0
        %5181 = vmatpush1.xpose.msra.mxu0 0.0
        %5182 = vmatprep.subr.mxu0 0.0
        %5183 = vmatpush1.xpose.msra.mxu0 0.0
        %5184 = vmatprep.subr.mxu0 0.0
        %5185 = vmatpush1.xpose.msra.mxu0 0.0
        %5186 = vmatprep.subr.mxu0 0.0
        %5187 = vmatpush1.xpose.msra.mxu0 0.0
        %5188 = vmatprep.subr.mxu0 0.0
        %5189 = vmatpush1.xpose.msra.mxu0 0.0
        %5190 = vmatprep.subr.mxu0 0.0
        %5191 = vmatpush1.xpose.msra.mxu0 0.0
        %5192 = vmatprep.subr.mxu0 0.0
        %5193 = vmatpush1.xpose.msra.mxu0 0.0
        %5194 = vmatprep.subr.mxu0 0.0
        %5195 = vmatpush1.xpose.msra.mxu0 0.0
        %5196 = vmatprep.subr.mxu0 0.0
        %5197 = vmatpush1.xpose.msra.mxu0 0.0
        %5198 = vmatprep.subr.mxu0 0.0
        %5199 = vmatpush1.xpose.msra.mxu0 0.0
        %5200 = vmatprep.subr.mxu0 0.0
        %5201 = vmatpush1.xpose.msra.mxu0 0.0
        %5202 = vmatprep.subr.mxu0 0.0
        %5203 = vmatpush1.xpose.msra.mxu0 0.0
        %5204 = vmatprep.subr.mxu0 0.0
        %5205 = vmatpush1.xpose.msra.mxu0 0.0
        %5206 = vmatprep.subr.mxu0 0.0
        %5207 = vmatpush1.xpose.msra.mxu0 0.0
        %5208 = vmatprep.subr.mxu0 0.0
        %5209 = vmatpush1.xpose.msra.mxu0 0.0
        %5210 = vmatprep.subr.mxu0 0.0
        %5211 = vmatpush1.xpose.msra.mxu0 0.0
        %5212 = vmatprep.subr.mxu0 0.0
        %5213 = vmatpush1.xpose.msra.mxu0 0.0
        %5214 = vmatprep.subr.mxu0 0.0
        %5215 = vmatpush1.xpose.msra.mxu0 0.0
        %5216 = vmatprep.subr.mxu0 0.0
        %5217 = vmatpush1.xpose.msra.mxu0 0.0
        %5218 = vmatprep.subr.mxu0 0.0
        %5219 = vmatpush1.xpose.msra.mxu0 0.0
        %5220 = vmatprep.subr.mxu0 0.0
        %5221 = vmatpush1.xpose.msra.mxu0 0.0
        %5222 = vmatprep.mubr.f32.mxu0 0.0
        %5223 = vmatmul.mubr.f32.gmra.mrb[0].mxu0 %v4252
        %v5224 = vpop.f32.mrb[0].mxu0
        %v5225 = vadd.f32 0.0, %v5224
        %v5226 = vpop.f32.mrb[0].mxu0
        %5227 = vdwg.mxu0
        %v5228 = vld [vmem:[%s1945] sm:$0xf]
        %5230 = vset.pattern.permute.xlu0 0
        %5231 = vperm.xlu0 %5230, %v5228
        %v5232 = vpop.permute.xlu0 %5231
        %v5234 = vmul.f32 %v5225, %v5232
        %v5235 = vadd.f32 %v5125, %v5234
        %v5237 = vsel %vm851, %v4228, 0
        %v5240 = vsel %vm851, %v4230, 0
        %v5243 = vsel %vm851, %v4232, 0
        %v5246 = vsel %vm851, %v4234, 0
        %v5249 = vsel %vm851, %v4236, 0
        %v5252 = vsel %vm851, %v4238, 0
        %v5255 = vsel %vm851, %v4240, 0
        %v5258 = vsel %vm851, %v4242, 0
        %5260 = vmatprep.subr.mxu0 0.0
        %5261 = vmatpush1.xpose.msra.mxu0 %v5237
        %5262 = vmatprep.subr.mxu0 0.0
        %5263 = vmatpush1.xpose.msra.mxu0 %v5240
        %5264 = vmatprep.subr.mxu0 0.0
        %5265 = vmatpush1.xpose.msra.mxu0 %v5243
        %5266 = vmatprep.subr.mxu0 0.0
        %5267 = vmatpush1.xpose.msra.mxu0 %v5246
        %5268 = vmatprep.subr.mxu0 0.0
        %5269 = vmatpush1.xpose.msra.mxu0 %v5249
        %5270 = vmatprep.subr.mxu0 0.0
        %5271 = vmatpush1.xpose.msra.mxu0 %v5252
        %5272 = vmatprep.subr.mxu0 0.0
        %5273 = vmatpush1.xpose.msra.mxu0 %v5255
        %5274 = vmatprep.subr.mxu0 0.0
        %5275 = vmatpush1.xpose.msra.mxu0 %v5258
        %5276 = vmatprep.subr.mxu0 0.0
        %5277 = vmatpush1.xpose.msra.mxu0 0.0
        %5278 = vmatprep.subr.mxu0 0.0
        %5279 = vmatpush1.xpose.msra.mxu0 0.0
        %5280 = vmatprep.subr.mxu0 0.0
        %5281 = vmatpush1.xpose.msra.mxu0 0.0
        %5282 = vmatprep.subr.mxu0 0.0
        %5283 = vmatpush1.xpose.msra.mxu0 0.0
        %5284 = vmatprep.subr.mxu0 0.0
        %5285 = vmatpush1.xpose.msra.mxu0 0.0
        %5286 = vmatprep.subr.mxu0 0.0
        %5287 = vmatpush1.xpose.msra.mxu0 0.0
        %5288 = vmatprep.subr.mxu0 0.0
        %5289 = vmatpush1.xpose.msra.mxu0 0.0
        %5290 = vmatprep.subr.mxu0 0.0
        %5291 = vmatpush1.xpose.msra.mxu0 0.0
        %5292 = vmatprep.subr.mxu0 0.0
        %5293 = vmatpush1.xpose.msra.mxu0 0.0
        %5294 = vmatprep.subr.mxu0 0.0
        %5295 = vmatpush1.xpose.msra.mxu0 0.0
        %5296 = vmatprep.subr.mxu0 0.0
        %5297 = vmatpush1.xpose.msra.mxu0 0.0
        %5298 = vmatprep.subr.mxu0 0.0
        %5299 = vmatpush1.xpose.msra.mxu0 0.0
        %5300 = vmatprep.subr.mxu0 0.0
        %5301 = vmatpush1.xpose.msra.mxu0 0.0
        %5302 = vmatprep.subr.mxu0 0.0
        %5303 = vmatpush1.xpose.msra.mxu0 0.0
        %5304 = vmatprep.subr.mxu0 0.0
        %5305 = vmatpush1.xpose.msra.mxu0 0.0
        %5306 = vmatprep.subr.mxu0 0.0
        %5307 = vmatpush1.xpose.msra.mxu0 0.0
        %5308 = vmatprep.subr.mxu0 0.0
        %5309 = vmatpush1.xpose.msra.mxu0 0.0
        %5310 = vmatprep.subr.mxu0 0.0
        %5311 = vmatpush1.xpose.msra.mxu0 0.0
        %5312 = vmatprep.subr.mxu0 0.0
        %5313 = vmatpush1.xpose.msra.mxu0 0.0
        %5314 = vmatprep.subr.mxu0 0.0
        %5315 = vmatpush1.xpose.msra.mxu0 0.0
        %5316 = vmatprep.subr.mxu0 0.0
        %5317 = vmatpush1.xpose.msra.mxu0 0.0
        %5318 = vmatprep.subr.mxu0 0.0
        %5319 = vmatpush1.xpose.msra.mxu0 0.0
        %5320 = vmatprep.subr.mxu0 0.0
        %5321 = vmatpush1.xpose.msra.mxu0 0.0
        %5322 = vmatprep.subr.mxu0 0.0
        %5323 = vmatpush1.xpose.msra.mxu0 0.0
        %5324 = vmatprep.mubr.f32.mxu0 0.0
        %5325 = vmatmul.mubr.f32.gmra.mrb[0].mxu0 %v4252
        %v5326 = vpop.f32.mrb[0].mxu0
        %v5327 = vadd.f32 %v5235, %v5326
        %v5328 = vpop.f32.mrb[0].mxu0
        %5329 = vdwg.mxu0
        %v5331 = vsel %vm449, %v5327, 0
        %5333 = vmatprep.subr.mxu0 0.0
        %5334 = vmatpush1.msra.mxu0 %v5331
        %5335 = vmatprep.subr.mxu0 0.0
        %5336 = vmatpush1.msra.mxu0 0.0
        %5337 = vmatprep.subr.mxu0 0.0
        %5338 = vmatpush1.msra.mxu0 0.0
        %5339 = vmatprep.subr.mxu0 0.0
        %5340 = vmatpush1.msra.mxu0 0.0
        %5341 = vmatprep.subr.mxu0 0.0
        %5342 = vmatpush1.msra.mxu0 0.0
        %5343 = vmatprep.subr.mxu0 0.0
        %5344 = vmatpush1.msra.mxu0 0.0
        %5345 = vmatprep.subr.mxu0 0.0
        %5346 = vmatpush1.msra.mxu0 0.0
        %5347 = vmatprep.subr.mxu0 0.0
        %5348 = vmatpush1.msra.mxu0 0.0
        %5349 = vmatprep.subr.mxu0 0.0
        %5350 = vmatpush1.msra.mxu0 0.0
        %5351 = vmatprep.subr.mxu0 0.0
        %5352 = vmatpush1.msra.mxu0 0.0
        %5353 = vmatprep.subr.mxu0 0.0
        %5354 = vmatpush1.msra.mxu0 0.0
        %5355 = vmatprep.subr.mxu0 0.0
        %5356 = vmatpush1.msra.mxu0 0.0
        %5357 = vmatprep.subr.mxu0 0.0
        %5358 = vmatpush1.msra.mxu0 0.0
        %5359 = vmatprep.subr.mxu0 0.0
        %5360 = vmatpush1.msra.mxu0 0.0
        %5361 = vmatprep.subr.mxu0 0.0
        %5362 = vmatpush1.msra.mxu0 0.0
        %5363 = vmatprep.subr.mxu0 0.0
        %5364 = vmatpush1.msra.mxu0 0.0
        %5365 = vmatprep.subr.mxu0 0.0
        %5366 = vmatpush1.msra.mxu0 0.0
        %5367 = vmatprep.subr.mxu0 0.0
        %5368 = vmatpush1.msra.mxu0 0.0
        %5369 = vmatprep.subr.mxu0 0.0
        %5370 = vmatpush1.msra.mxu0 0.0
        %5371 = vmatprep.subr.mxu0 0.0
        %5372 = vmatpush1.msra.mxu0 0.0
        %5373 = vmatprep.subr.mxu0 0.0
        %5374 = vmatpush1.msra.mxu0 0.0
        %5375 = vmatprep.subr.mxu0 0.0
        %5376 = vmatpush1.msra.mxu0 0.0
        %5377 = vmatprep.subr.mxu0 0.0
        %5378 = vmatpush1.msra.mxu0 0.0
        %5379 = vmatprep.subr.mxu0 0.0
        %5380 = vmatpush1.msra.mxu0 0.0
        %5381 = vmatprep.subr.mxu0 0.0
        %5382 = vmatpush1.msra.mxu0 0.0
        %5383 = vmatprep.subr.mxu0 0.0
        %5384 = vmatpush1.msra.mxu0 0.0
        %5385 = vmatprep.subr.mxu0 0.0
        %5386 = vmatpush1.msra.mxu0 0.0
        %5387 = vmatprep.subr.mxu0 0.0
        %5388 = vmatpush1.msra.mxu0 0.0
        %5389 = vmatprep.subr.mxu0 0.0
        %5390 = vmatpush1.msra.mxu0 0.0
        %5391 = vmatprep.subr.mxu0 0.0
        %5392 = vmatpush1.msra.mxu0 0.0
        %5393 = vmatprep.subr.mxu0 0.0
        %5394 = vmatpush1.msra.mxu0 0.0
        %5395 = vmatprep.subr.mxu0 0.0
        %5396 = vmatpush1.msra.mxu0 0.0
        %5397 = vmatprep.mubr.f32.mxu0 0.0
        %5398 = vmatmul.mubr.f32.gmra.mrb[0].mxu0 %v2054
        %v5399 = vpop.f32.mrb[0].mxu0
        %v5400 = vadd.f32 %v2051, %v5399
        %v5401 = vpop.f32.mrb[0].mxu0
        %5402 = vdwg.mxu0
        %s5403 = scalar_lea.vmem %s422, 8 [#allocation5]
        %5404 = vst.msk [vmem:[%s5403] sm:$0xf] %vm2129, %v5400
        %s5405 = scalar_lea.vmem %s427, 12
        %v5406 = vld [vmem:[%s5405] sm:$0xf]
        %v5408 = vsel %vm449, %v5406, 0
        %5410 = vmatprep.subr.mxu0 0.0
        %5411 = vmatpush1.msra.mxu0 %v5408
        %5412 = vmatprep.subr.mxu0 0.0
        %5413 = vmatpush1.msra.mxu0 0.0
        %5414 = vmatprep.subr.mxu0 0.0
        %5415 = vmatpush1.msra.mxu0 0.0
        %5416 = vmatprep.subr.mxu0 0.0
        %5417 = vmatpush1.msra.mxu0 0.0
        %5418 = vmatprep.subr.mxu0 0.0
        %5419 = vmatpush1.msra.mxu0 0.0
        %5420 = vmatprep.subr.mxu0 0.0
        %5421 = vmatpush1.msra.mxu0 0.0
        %5422 = vmatprep.subr.mxu0 0.0
        %5423 = vmatpush1.msra.mxu0 0.0
        %5424 = vmatprep.subr.mxu0 0.0
        %5425 = vmatpush1.msra.mxu0 0.0
        %5426 = vmatprep.subr.mxu0 0.0
        %5427 = vmatpush1.msra.mxu0 0.0
        %5428 = vmatprep.subr.mxu0 0.0
        %5429 = vmatpush1.msra.mxu0 0.0
        %5430 = vmatprep.subr.mxu0 0.0
        %5431 = vmatpush1.msra.mxu0 0.0
        %5432 = vmatprep.subr.mxu0 0.0
        %5433 = vmatpush1.msra.mxu0 0.0
        %5434 = vmatprep.subr.mxu0 0.0
        %5435 = vmatpush1.msra.mxu0 0.0
        %5436 = vmatprep.subr.mxu0 0.0
        %5437 = vmatpush1.msra.mxu0 0.0
        %5438 = vmatprep.subr.mxu0 0.0
        %5439 = vmatpush1.msra.mxu0 0.0
        %5440 = vmatprep.subr.mxu0 0.0
        %5441 = vmatpush1.msra.mxu0 0.0
        %5442 = vmatprep.subr.mxu0 0.0
        %5443 = vmatpush1.msra.mxu0 0.0
        %5444 = vmatprep.subr.mxu0 0.0
        %5445 = vmatpush1.msra.mxu0 0.0
        %5446 = vmatprep.subr.mxu0 0.0
        %5447 = vmatpush1.msra.mxu0 0.0
        %5448 = vmatprep.subr.mxu0 0.0
        %5449 = vmatpush1.msra.mxu0 0.0
        %5450 = vmatprep.subr.mxu0 0.0
        %5451 = vmatpush1.msra.mxu0 0.0
        %5452 = vmatprep.subr.mxu0 0.0
        %5453 = vmatpush1.msra.mxu0 0.0
        %5454 = vmatprep.subr.mxu0 0.0
        %5455 = vmatpush1.msra.mxu0 0.0
        %5456 = vmatprep.subr.mxu0 0.0
        %5457 = vmatpush1.msra.mxu0 0.0
        %5458 = vmatprep.subr.mxu0 0.0
        %5459 = vmatpush1.msra.mxu0 0.0
        %5460 = vmatprep.subr.mxu0 0.0
        %5461 = vmatpush1.msra.mxu0 0.0
        %5462 = vmatprep.subr.mxu0 0.0
        %5463 = vmatpush1.msra.mxu0 0.0
        %5464 = vmatprep.subr.mxu0 0.0
        %5465 = vmatpush1.msra.mxu0 0.0
        %5466 = vmatprep.subr.mxu0 0.0
        %5467 = vmatpush1.msra.mxu0 0.0
        %5468 = vmatprep.subr.mxu0 0.0
        %5469 = vmatpush1.msra.mxu0 0.0
        %5470 = vmatprep.subr.mxu0 0.0
        %5471 = vmatpush1.msra.mxu0 0.0
        %5472 = vmatprep.subr.mxu0 0.0
        %5473 = vmatpush1.msra.mxu0 0.0
        %5474 = vmatprep.mubr.f32.mxu0 0.0
        %5475 = vmatmul.mubr.f32.gmra.mrb[0].mxu0 %v447
        %v5476 = vpop.f32.mrb[0].mxu0
        %v5477 = vadd.f32 %v443, %v5476
        %v5478 = vpop.f32.mrb[0].mxu0
        %5479 = vdwg.mxu0
        %5480 = vmatprep.subr.mxu0 0.0
        %5481 = vmatpush1.msra.mxu0 %v5408
        %5482 = vmatprep.subr.mxu0 0.0
        %5483 = vmatpush1.msra.mxu0 0.0
        %5484 = vmatprep.subr.mxu0 0.0
        %5485 = vmatpush1.msra.mxu0 0.0
        %5486 = vmatprep.subr.mxu0 0.0
        %5487 = vmatpush1.msra.mxu0 0.0
        %5488 = vmatprep.subr.mxu0 0.0
        %5489 = vmatpush1.msra.mxu0 0.0
        %5490 = vmatprep.subr.mxu0 0.0
        %5491 = vmatpush1.msra.mxu0 0.0
        %5492 = vmatprep.subr.mxu0 0.0
        %5493 = vmatpush1.msra.mxu0 0.0
        %5494 = vmatprep.subr.mxu0 0.0
        %5495 = vmatpush1.msra.mxu0 0.0
        %5496 = vmatprep.subr.mxu0 0.0
        %5497 = vmatpush1.msra.mxu0 0.0
        %5498 = vmatprep.subr.mxu0 0.0
        %5499 = vmatpush1.msra.mxu0 0.0
        %5500 = vmatprep.subr.mxu0 0.0
        %5501 = vmatpush1.msra.mxu0 0.0
        %5502 = vmatprep.subr.mxu0 0.0
        %5503 = vmatpush1.msra.mxu0 0.0
        %5504 = vmatprep.subr.mxu0 0.0
        %5505 = vmatpush1.msra.mxu0 0.0
        %5506 = vmatprep.subr.mxu0 0.0
        %5507 = vmatpush1.msra.mxu0 0.0
        %5508 = vmatprep.subr.mxu0 0.0
        %5509 = vmatpush1.msra.mxu0 0.0
        %5510 = vmatprep.subr.mxu0 0.0
        %5511 = vmatpush1.msra.mxu0 0.0
        %5512 = vmatprep.subr.mxu0 0.0
        %5513 = vmatpush1.msra.mxu0 0.0
        %5514 = vmatprep.subr.mxu0 0.0
        %5515 = vmatpush1.msra.mxu0 0.0
        %5516 = vmatprep.subr.mxu0 0.0
        %5517 = vmatpush1.msra.mxu0 0.0
        %5518 = vmatprep.subr.mxu0 0.0
        %5519 = vmatpush1.msra.mxu0 0.0
        %5520 = vmatprep.subr.mxu0 0.0
        %5521 = vmatpush1.msra.mxu0 0.0
        %5522 = vmatprep.subr.mxu0 0.0
        %5523 = vmatpush1.msra.mxu0 0.0
        %5524 = vmatprep.subr.mxu0 0.0
        %5525 = vmatpush1.msra.mxu0 0.0
        %5526 = vmatprep.subr.mxu0 0.0
        %5527 = vmatpush1.msra.mxu0 0.0
        %5528 = vmatprep.subr.mxu0 0.0
        %5529 = vmatpush1.msra.mxu0 0.0
        %5530 = vmatprep.subr.mxu0 0.0
        %5531 = vmatpush1.msra.mxu0 0.0
        %5532 = vmatprep.subr.mxu0 0.0
        %5533 = vmatpush1.msra.mxu0 0.0
        %5534 = vmatprep.subr.mxu0 0.0
        %5535 = vmatpush1.msra.mxu0 0.0
        %5536 = vmatprep.subr.mxu0 0.0
        %5537 = vmatpush1.msra.mxu0 0.0
        %5538 = vmatprep.subr.mxu0 0.0
        %5539 = vmatpush1.msra.mxu0 0.0
        %5540 = vmatprep.subr.mxu0 0.0
        %5541 = vmatpush1.msra.mxu0 0.0
        %5542 = vmatprep.subr.mxu0 0.0
        %5543 = vmatpush1.msra.mxu0 0.0
        %5544 = vmatprep.mubr.f32.mxu0 0.0
        %5545 = vmatmul.mubr.f32.gmra.mrb[0].mxu0 %v529
        %v5546 = vpop.f32.mrb[0].mxu0
        %v5547 = vadd.f32 %v526, %v5546
        %v5548 = vpop.f32.mrb[0].mxu0
        %5549 = vdwg.mxu0
        %5550 = vmatprep.subr.mxu0 0.0
        %5551 = vmatpush1.msra.mxu0 %v5408
        %5552 = vmatprep.subr.mxu0 0.0
        %5553 = vmatpush1.msra.mxu0 0.0
        %5554 = vmatprep.subr.mxu0 0.0
        %5555 = vmatpush1.msra.mxu0 0.0
        %5556 = vmatprep.subr.mxu0 0.0
        %5557 = vmatpush1.msra.mxu0 0.0
        %5558 = vmatprep.subr.mxu0 0.0
        %5559 = vmatpush1.msra.mxu0 0.0
        %5560 = vmatprep.subr.mxu0 0.0
        %5561 = vmatpush1.msra.mxu0 0.0
        %5562 = vmatprep.subr.mxu0 0.0
        %5563 = vmatpush1.msra.mxu0 0.0
        %5564 = vmatprep.subr.mxu0 0.0
        %5565 = vmatpush1.msra.mxu0 0.0
        %5566 = vmatprep.subr.mxu0 0.0
        %5567 = vmatpush1.msra.mxu0 0.0
        %5568 = vmatprep.subr.mxu0 0.0
        %5569 = vmatpush1.msra.mxu0 0.0
        %5570 = vmatprep.subr.mxu0 0.0
        %5571 = vmatpush1.msra.mxu0 0.0
        %5572 = vmatprep.subr.mxu0 0.0
        %5573 = vmatpush1.msra.mxu0 0.0
        %5574 = vmatprep.subr.mxu0 0.0
        %5575 = vmatpush1.msra.mxu0 0.0
        %5576 = vmatprep.subr.mxu0 0.0
        %5577 = vmatpush1.msra.mxu0 0.0
        %5578 = vmatprep.subr.mxu0 0.0
        %5579 = vmatpush1.msra.mxu0 0.0
        %5580 = vmatprep.subr.mxu0 0.0
        %5581 = vmatpush1.msra.mxu0 0.0
        %5582 = vmatprep.subr.mxu0 0.0
        %5583 = vmatpush1.msra.mxu0 0.0
        %5584 = vmatprep.subr.mxu0 0.0
        %5585 = vmatpush1.msra.mxu0 0.0
        %5586 = vmatprep.subr.mxu0 0.0
        %5587 = vmatpush1.msra.mxu0 0.0
        %5588 = vmatprep.subr.mxu0 0.0
        %5589 = vmatpush1.msra.mxu0 0.0
        %5590 = vmatprep.subr.mxu0 0.0
        %5591 = vmatpush1.msra.mxu0 0.0
        %5592 = vmatprep.subr.mxu0 0.0
        %5593 = vmatpush1.msra.mxu0 0.0
        %5594 = vmatprep.subr.mxu0 0.0
        %5595 = vmatpush1.msra.mxu0 0.0
        %5596 = vmatprep.subr.mxu0 0.0
        %5597 = vmatpush1.msra.mxu0 0.0
        %5598 = vmatprep.subr.mxu0 0.0
        %5599 = vmatpush1.msra.mxu0 0.0
        %5600 = vmatprep.subr.mxu0 0.0
        %5601 = vmatpush1.msra.mxu0 0.0
        %5602 = vmatprep.subr.mxu0 0.0
        %5603 = vmatpush1.msra.mxu0 0.0
        %5604 = vmatprep.subr.mxu0 0.0
        %5605 = vmatpush1.msra.mxu0 0.0
        %5606 = vmatprep.subr.mxu0 0.0
        %5607 = vmatpush1.msra.mxu0 0.0
        %5608 = vmatprep.subr.mxu0 0.0
        %5609 = vmatpush1.msra.mxu0 0.0
        %5610 = vmatprep.subr.mxu0 0.0
        %5611 = vmatpush1.msra.mxu0 0.0
        %5612 = vmatprep.subr.mxu0 0.0
        %5613 = vmatpush1.msra.mxu0 0.0
        %5614 = vmatprep.mubr.f32.mxu0 0.0
        %5615 = vmatmul.mubr.f32.gmra.mrb[0].mxu0 %v607
        %v5616 = vpop.f32.mrb[0].mxu0
        %v5617 = vadd.f32 %v604, %v5616
        %v5618 = vpop.f32.mrb[0].mxu0
        %5619 = vdwg.mxu0
        %5620 = vxpose.xlu0.b32.start [1/16] %v5477, 128
        %5621 = vxpose.xlu0.b32.cont [2/16] 0.0, 128
        %5622 = vxpose.xlu0.b32.cont [3/16] 0.0, 128
        %5623 = vxpose.xlu0.b32.cont [4/16] 0.0, 128
        %5624 = vxpose.xlu0.b32.cont [5/16] 0.0, 128
        %5625 = vxpose.xlu0.b32.cont [6/16] 0.0, 128
        %5626 = vxpose.xlu0.b32.cont [7/16] 0.0, 128
        %5627 = vxpose.xlu0.b32.cont [8/16] 0.0, 128
        %5628 = vxpose.xlu0.b32.cont [9/16] 0.0, 128
        %5629 = vxpose.xlu0.b32.cont [10/16] 0.0, 128
        %5630 = vxpose.xlu0.b32.cont [11/16] 0.0, 128
        %5631 = vxpose.xlu0.b32.cont [12/16] 0.0, 128
        %5632 = vxpose.xlu0.b32.cont [13/16] 0.0, 128
        %5633 = vxpose.xlu0.b32.cont [14/16] 0.0, 128
        %5634 = vxpose.xlu0.b32.cont [15/16] 0.0, 128
        %5635 = vxpose.xlu0.b32.end [16/16] 0.0, 128
        %v5636 = vpop.trf.xlu0
        %v5637 = vpop.trf.xlu0
        %v5638 = vpop.trf.xlu0
        %v5639 = vpop.trf.xlu0
        %v5640 = vpop.trf.xlu0
        %v5641 = vpop.trf.xlu0
        %v5642 = vpop.trf.xlu0
        %v5643 = vpop.trf.xlu0
        %v5644 = vpop.trf.xlu0
        %v5645 = vpop.trf.xlu0
        %v5646 = vpop.trf.xlu0
        %v5647 = vpop.trf.xlu0
        %v5648 = vpop.trf.xlu0
        %v5649 = vpop.trf.xlu0
        %v5650 = vpop.trf.xlu0
        %v5651 = vpop.trf.xlu0
        %v5653 = vsel %vm445, %v5636, 0
        %v5656 = vsel %vm445, %v5637, 0
        %v5659 = vsel %vm445, %v5638, 0
        %v5662 = vsel %vm445, %v5639, 0
        %v5665 = vsel %vm445, %v5640, 0
        %v5668 = vsel %vm445, %v5641, 0
        %v5671 = vsel %vm445, %v5642, 0
        %v5674 = vsel %vm445, %v5643, 0
        %v5677 = vsel %vm449, %v5547, 0
        %5679 = vmatprep.subr.mxu0 0.0
        %5680 = vmatpush1.msra.mxu0 %v5677
        %5681 = vmatprep.subr.mxu0 0.0
        %5682 = vmatpush1.msra.mxu0 0.0
        %5683 = vmatprep.subr.mxu0 0.0
        %5684 = vmatpush1.msra.mxu0 0.0
        %5685 = vmatprep.subr.mxu0 0.0
        %5686 = vmatpush1.msra.mxu0 0.0
        %5687 = vmatprep.subr.mxu0 0.0
        %5688 = vmatpush1.msra.mxu0 0.0
        %5689 = vmatprep.subr.mxu0 0.0
        %5690 = vmatpush1.msra.mxu0 0.0
        %5691 = vmatprep.subr.mxu0 0.0
        %5692 = vmatpush1.msra.mxu0 0.0
        %5693 = vmatprep.subr.mxu0 0.0
        %5694 = vmatpush1.msra.mxu0 0.0
        %5695 = vmatprep.subr.mxu0 0.0
        %5696 = vmatpush1.msra.mxu0 0.0
        %5697 = vmatprep.subr.mxu0 0.0
        %5698 = vmatpush1.msra.mxu0 0.0
        %5699 = vmatprep.subr.mxu0 0.0
        %5700 = vmatpush1.msra.mxu0 0.0
        %5701 = vmatprep.subr.mxu0 0.0
        %5702 = vmatpush1.msra.mxu0 0.0
        %5703 = vmatprep.subr.mxu0 0.0
        %5704 = vmatpush1.msra.mxu0 0.0
        %5705 = vmatprep.subr.mxu0 0.0
        %5706 = vmatpush1.msra.mxu0 0.0
        %5707 = vmatprep.subr.mxu0 0.0
        %5708 = vmatpush1.msra.mxu0 0.0
        %5709 = vmatprep.subr.mxu0 0.0
        %5710 = vmatpush1.msra.mxu0 0.0
        %5711 = vmatprep.subr.mxu0 0.0
        %5712 = vmatpush1.msra.mxu0 0.0
        %5713 = vmatprep.subr.mxu0 0.0
        %5714 = vmatpush1.msra.mxu0 0.0
        %5715 = vmatprep.subr.mxu0 0.0
        %5716 = vmatpush1.msra.mxu0 0.0
        %5717 = vmatprep.subr.mxu0 0.0
        %5718 = vmatpush1.msra.mxu0 0.0
        %5719 = vmatprep.subr.mxu0 0.0
        %5720 = vmatpush1.msra.mxu0 0.0
        %5721 = vmatprep.subr.mxu0 0.0
        %5722 = vmatpush1.msra.mxu0 0.0
        %5723 = vmatprep.subr.mxu0 0.0
        %5724 = vmatpush1.msra.mxu0 0.0
        %5725 = vmatprep.subr.mxu0 0.0
        %5726 = vmatpush1.msra.mxu0 0.0
        %5727 = vmatprep.subr.mxu0 0.0
        %5728 = vmatpush1.msra.mxu0 0.0
        %5729 = vmatprep.subr.mxu0 0.0
        %5730 = vmatpush1.msra.mxu0 0.0
        %5731 = vmatprep.subr.mxu0 0.0
        %5732 = vmatpush1.msra.mxu0 0.0
        %5733 = vmatprep.subr.mxu0 0.0
        %5734 = vmatpush1.msra.mxu0 0.0
        %5735 = vmatprep.subr.mxu0 0.0
        %5736 = vmatpush1.msra.mxu0 0.0
        %5737 = vmatprep.subr.mxu0 0.0
        %5738 = vmatpush1.msra.mxu0 0.0
        %5739 = vmatprep.subr.mxu0 0.0
        %5740 = vmatpush1.msra.mxu0 0.0
        %5741 = vmatprep.subr.mxu0 0.0
        %5742 = vmatpush1.msra.mxu0 0.0
        %5743 = vmatprep.mubr.f32.mxu0 0.0
        %5744 = vmatmul.mubr.f32.gmra.mrb[0].mxu0 %v5653
        %v5745 = vpop.f32.mrb[0].mxu0
        %v5746 = vadd.f32 0.0, %v5745
        %v5747 = vpop.f32.mrb[0].mxu0
        %5748 = vmatprep.mubr.f32.mxu0 0.0
        %5749 = vmatmul.mubr.f32.gmra.mrb[0].mxu0 %v5656
        %v5750 = vpop.f32.mrb[0].mxu0
        %v5751 = vadd.f32 0.0, %v5750
        %v5752 = vpop.f32.mrb[0].mxu0
        %5753 = vmatprep.mubr.f32.mxu0 0.0
        %5754 = vmatmul.mubr.f32.gmra.mrb[0].mxu0 %v5659
        %v5755 = vpop.f32.mrb[0].mxu0
        %v5756 = vadd.f32 0.0, %v5755
        %v5757 = vpop.f32.mrb[0].mxu0
        %5758 = vmatprep.mubr.f32.mxu0 0.0
        %5759 = vmatmul.mubr.f32.gmra.mrb[0].mxu0 %v5662
        %v5760 = vpop.f32.mrb[0].mxu0
        %v5761 = vadd.f32 0.0, %v5760
        %v5762 = vpop.f32.mrb[0].mxu0
        %5763 = vmatprep.mubr.f32.mxu0 0.0
        %5764 = vmatmul.mubr.f32.gmra.mrb[0].mxu0 %v5665
        %v5765 = vpop.f32.mrb[0].mxu0
        %v5766 = vadd.f32 0.0, %v5765
        %v5767 = vpop.f32.mrb[0].mxu0
        %5768 = vmatprep.mubr.f32.mxu0 0.0
        %5769 = vmatmul.mubr.f32.gmra.mrb[0].mxu0 %v5668
        %v5770 = vpop.f32.mrb[0].mxu0
        %v5771 = vadd.f32 0.0, %v5770
        %v5772 = vpop.f32.mrb[0].mxu0
        %5773 = vmatprep.mubr.f32.mxu0 0.0
        %5774 = vmatmul.mubr.f32.gmra.mrb[0].mxu0 %v5671
        %v5775 = vpop.f32.mrb[0].mxu0
        %v5776 = vadd.f32 0.0, %v5775
        %v5777 = vpop.f32.mrb[0].mxu0
        %5778 = vmatprep.mubr.f32.mxu0 0.0
        %5779 = vmatmul.mubr.f32.gmra.mrb[0].mxu0 %v5674
        %v5780 = vpop.f32.mrb[0].mxu0
        %v5781 = vadd.f32 0.0, %v5780
        %v5782 = vpop.f32.mrb[0].mxu0
        %5783 = vdwg.mxu0
        %v5784 = vmul.f32 %v5746, 0.5
        %v5785 = vmul.f32 %v5751, 0.5
        %v5786 = vmul.f32 %v5756, 0.5
        %v5787 = vmul.f32 %v5761, 0.5
        %v5788 = vmul.f32 %v5766, 0.5
        %v5789 = vmul.f32 %v5771, 0.5
        %v5790 = vmul.f32 %v5776, 0.5
        %v5791 = vmul.f32 %v5781, 0.5
        %v5792 = vsel %vm851, %v5784, -inf
        %5793 = vmax.xlane.f32.xlu0 %v5792
        %v5794 = vpop.xlane.xlu0 %5793
        %v5795 = vsel %vm851, %v5785, -inf
        %5796 = vmax.xlane.f32.xlu0 %v5795
        %v5797 = vpop.xlane.xlu0 %5796
        %v5798 = vsel %vm851, %v5786, -inf
        %5799 = vmax.xlane.f32.xlu0 %v5798
        %v5800 = vpop.xlane.xlu0 %5799
        %v5801 = vsel %vm851, %v5787, -inf
        %5802 = vmax.xlane.f32.xlu0 %v5801
        %v5803 = vpop.xlane.xlu0 %5802
        %v5804 = vsel %vm851, %v5788, -inf
        %5805 = vmax.xlane.f32.xlu0 %v5804
        %v5806 = vpop.xlane.xlu0 %5805
        %v5807 = vsel %vm851, %v5789, -inf
        %5808 = vmax.xlane.f32.xlu0 %v5807
        %v5809 = vpop.xlane.xlu0 %5808
        %v5810 = vsel %vm851, %v5790, -inf
        %5811 = vmax.xlane.f32.xlu0 %v5810
        %v5812 = vpop.xlane.xlu0 %5811
        %v5813 = vsel %vm851, %v5791, -inf
        %5814 = vmax.xlane.f32.xlu0 %v5813
        %v5815 = vpop.xlane.xlu0 %5814
        %v5816 = vsub.f32 %v5784, %v5794
        %v5817 = vsub.f32 %v5785, %v5797
        %v5818 = vsub.f32 %v5786, %v5800
        %v5819 = vsub.f32 %v5787, %v5803
        %v5820 = vsub.f32 %v5788, %v5806
        %v5821 = vsub.f32 %v5789, %v5809
        %v5822 = vsub.f32 %v5790, %v5812
        %v5823 = vsub.f32 %v5791, %v5815
        %v5824 = vmul.f32 %v5816, 1.442695
        %v5825 = vpow.pop %v5824
        %v5826 = vmul.f32 %v5817, 1.442695
        %v5827 = vpow.pop %v5826
        %v5828 = vmul.f32 %v5818, 1.442695
        %v5829 = vpow.pop %v5828
        %v5830 = vmul.f32 %v5819, 1.442695
        %v5831 = vpow.pop %v5830
        %v5832 = vmul.f32 %v5820, 1.442695
        %v5833 = vpow.pop %v5832
        %v5834 = vmul.f32 %v5821, 1.442695
        %v5835 = vpow.pop %v5834
        %v5836 = vmul.f32 %v5822, 1.442695
        %v5837 = vpow.pop %v5836
        %v5838 = vmul.f32 %v5823, 1.442695
        %v5839 = vpow.pop %v5838
        %v5840 = vsel %vm851, %v5825, 0.0
        %5841 = vadd.xlane.f32.xlu0 %v5840
        %v5842 = vpop.xlane.xlu0 %5841
        %v5843 = vsel %vm851, %v5827, 0.0
        %5844 = vadd.xlane.f32.xlu0 %v5843
        %v5845 = vpop.xlane.xlu0 %5844
        %v5846 = vsel %vm851, %v5829, 0.0
        %5847 = vadd.xlane.f32.xlu0 %v5846
        %v5848 = vpop.xlane.xlu0 %5847
        %v5849 = vsel %vm851, %v5831, 0.0
        %5850 = vadd.xlane.f32.xlu0 %v5849
        %v5851 = vpop.xlane.xlu0 %5850
        %v5852 = vsel %vm851, %v5833, 0.0
        %5853 = vadd.xlane.f32.xlu0 %v5852
        %v5854 = vpop.xlane.xlu0 %5853
        %v5855 = vsel %vm851, %v5835, 0.0
        %5856 = vadd.xlane.f32.xlu0 %v5855
        %v5857 = vpop.xlane.xlu0 %5856
        %v5858 = vsel %vm851, %v5837, 0.0
        %5859 = vadd.xlane.f32.xlu0 %v5858
        %v5860 = vpop.xlane.xlu0 %5859
        %v5861 = vsel %vm851, %v5839, 0.0
        %5862 = vadd.xlane.f32.xlu0 %v5861
        %v5863 = vpop.xlane.xlu0 %5862
        %v5864 = vrcp.pop %v5842
        %v5865 = vmul.f32 %v5825, %v5864
        %v5866 = vrcp.pop %v5845
        %v5867 = vmul.f32 %v5827, %v5866
        %v5868 = vrcp.pop %v5848
        %v5869 = vmul.f32 %v5829, %v5868
        %v5870 = vrcp.pop %v5851
        %v5871 = vmul.f32 %v5831, %v5870
        %v5872 = vrcp.pop %v5854
        %v5873 = vmul.f32 %v5833, %v5872
        %v5874 = vrcp.pop %v5857
        %v5875 = vmul.f32 %v5835, %v5874
        %v5876 = vrcp.pop %v5860
        %v5877 = vmul.f32 %v5837, %v5876
        %v5878 = vrcp.pop %v5863
        %v5879 = vmul.f32 %v5839, %v5878
        %v5880 = vld [vmem:[#allocation2] sm:$0xff]
        %v5881 = vld [vmem:[#allocation2 + $0x8] sm:$0xff]
        %v5882 = vld [vmem:[#allocation2 + $0x10] sm:$0xff]
        %v5883 = vld [vmem:[#allocation2 + $0x18] sm:$0xff]
        %v5884 = vld [vmem:[#allocation2 + $0x20] sm:$0xff]
        %v5885 = vld [vmem:[#allocation2 + $0x28] sm:$0xff]
        %v5886 = vld [vmem:[#allocation2 + $0x30] sm:$0xff]
        %v5887 = vld [vmem:[#allocation2 + $0x38] sm:$0xff]
        %v5889 = vsel %vm851, %v5617, 0
        %v5892 = vsel %vm851, %v5880, 0
        %v5895 = vsel %vm851, %v5881, 0
        %v5898 = vsel %vm851, %v5882, 0
        %v5901 = vsel %vm851, %v5883, 0
        %v5904 = vsel %vm851, %v5884, 0
        %v5907 = vsel %vm851, %v5885, 0
        %v5910 = vsel %vm851, %v5886, 0
        %v5913 = vsel %vm851, %v5887, 0
        %5915 = vmatprep.subr.mxu0 0.0
        %5916 = vmatpush1.xpose.msra.mxu0 %v5892
        %5917 = vmatprep.subr.mxu0 0.0
        %5918 = vmatpush1.xpose.msra.mxu0 %v5895
        %5919 = vmatprep.subr.mxu0 0.0
        %5920 = vmatpush1.xpose.msra.mxu0 %v5898
        %5921 = vmatprep.subr.mxu0 0.0
        %5922 = vmatpush1.xpose.msra.mxu0 %v5901
        %5923 = vmatprep.subr.mxu0 0.0
        %5924 = vmatpush1.xpose.msra.mxu0 %v5904
        %5925 = vmatprep.subr.mxu0 0.0
        %5926 = vmatpush1.xpose.msra.mxu0 %v5907
        %5927 = vmatprep.subr.mxu0 0.0
        %5928 = vmatpush1.xpose.msra.mxu0 %v5910
        %5929 = vmatprep.subr.mxu0 0.0
        %5930 = vmatpush1.xpose.msra.mxu0 %v5913
        %5931 = vmatprep.subr.mxu0 0.0
        %5932 = vmatpush1.xpose.msra.mxu0 0.0
        %5933 = vmatprep.subr.mxu0 0.0
        %5934 = vmatpush1.xpose.msra.mxu0 0.0
        %5935 = vmatprep.subr.mxu0 0.0
        %5936 = vmatpush1.xpose.msra.mxu0 0.0
        %5937 = vmatprep.subr.mxu0 0.0
        %5938 = vmatpush1.xpose.msra.mxu0 0.0
        %5939 = vmatprep.subr.mxu0 0.0
        %5940 = vmatpush1.xpose.msra.mxu0 0.0
        %5941 = vmatprep.subr.mxu0 0.0
        %5942 = vmatpush1.xpose.msra.mxu0 0.0
        %5943 = vmatprep.subr.mxu0 0.0
        %5944 = vmatpush1.xpose.msra.mxu0 0.0
        %5945 = vmatprep.subr.mxu0 0.0
        %5946 = vmatpush1.xpose.msra.mxu0 0.0
        %5947 = vmatprep.subr.mxu0 0.0
        %5948 = vmatpush1.xpose.msra.mxu0 0.0
        %5949 = vmatprep.subr.mxu0 0.0
        %5950 = vmatpush1.xpose.msra.mxu0 0.0
        %5951 = vmatprep.subr.mxu0 0.0
        %5952 = vmatpush1.xpose.msra.mxu0 0.0
        %5953 = vmatprep.subr.mxu0 0.0
        %5954 = vmatpush1.xpose.msra.mxu0 0.0
        %5955 = vmatprep.subr.mxu0 0.0
        %5956 = vmatpush1.xpose.msra.mxu0 0.0
        %5957 = vmatprep.subr.mxu0 0.0
        %5958 = vmatpush1.xpose.msra.mxu0 0.0
        %5959 = vmatprep.subr.mxu0 0.0
        %5960 = vmatpush1.xpose.msra.mxu0 0.0
        %5961 = vmatprep.subr.mxu0 0.0
        %5962 = vmatpush1.xpose.msra.mxu0 0.0
        %5963 = vmatprep.subr.mxu0 0.0
        %5964 = vmatpush1.xpose.msra.mxu0 0.0
        %5965 = vmatprep.subr.mxu0 0.0
        %5966 = vmatpush1.xpose.msra.mxu0 0.0
        %5967 = vmatprep.subr.mxu0 0.0
        %5968 = vmatpush1.xpose.msra.mxu0 0.0
        %5969 = vmatprep.subr.mxu0 0.0
        %5970 = vmatpush1.xpose.msra.mxu0 0.0
        %5971 = vmatprep.subr.mxu0 0.0
        %5972 = vmatpush1.xpose.msra.mxu0 0.0
        %5973 = vmatprep.subr.mxu0 0.0
        %5974 = vmatpush1.xpose.msra.mxu0 0.0
        %5975 = vmatprep.subr.mxu0 0.0
        %5976 = vmatpush1.xpose.msra.mxu0 0.0
        %5977 = vmatprep.subr.mxu0 0.0
        %5978 = vmatpush1.xpose.msra.mxu0 0.0
        %5979 = vmatprep.mubr.f32.mxu0 0.0
        %5980 = vmatmul.mubr.f32.gmra.mrb[0].mxu0 %v5889
        %v5981 = vpop.f32.mrb[0].mxu0
        %v5982 = vadd.f32 0.0, %v5981
        %v5983 = vpop.f32.mrb[0].mxu0
        %5984 = vdwg.mxu0
        %v5985 = vld [vmem:[%s7] sm:$0xf]
        %5987 = vset.pattern.permute.xlu0 0
        %5988 = vperm.xlu0 %5987, %v5985
        %v5989 = vpop.permute.xlu0 %5988
        %v5991 = vmul.f32 %v5982, %v5989
        %v5992 = vadd.f32 %v1055, %v5991
        %v5993 = vld [vmem:[%s1058] sm:$0xff]
        %v5994 = vld [vmem:[%s1058 + $0x8] sm:$0xff]
        %v5995 = vld [vmem:[%s1058 + $0x10] sm:$0xff]
        %v5996 = vld [vmem:[%s1058 + $0x18] sm:$0xff]
        %v5997 = vld [vmem:[%s1058 + $0x20] sm:$0xff]
        %v5998 = vld [vmem:[%s1058 + $0x28] sm:$0xff]
        %v5999 = vld [vmem:[%s1058 + $0x30] sm:$0xff]
        %v6000 = vld [vmem:[%s1058 + $0x38] sm:$0xff]
        %v6002 = vsel %vm851, %v5993, 0
        %v6005 = vsel %vm851, %v5994, 0
        %v6008 = vsel %vm851, %v5995, 0
        %v6011 = vsel %vm851, %v5996, 0
        %v6014 = vsel %vm851, %v5997, 0
        %v6017 = vsel %vm851, %v5998, 0
        %v6020 = vsel %vm851, %v5999, 0
        %v6023 = vsel %vm851, %v6000, 0
        %6025 = vmatprep.subr.mxu0 0.0
        %6026 = vmatpush1.xpose.msra.mxu0 %v6002
        %6027 = vmatprep.subr.mxu0 0.0
        %6028 = vmatpush1.xpose.msra.mxu0 %v6005
        %6029 = vmatprep.subr.mxu0 0.0
        %6030 = vmatpush1.xpose.msra.mxu0 %v6008
        %6031 = vmatprep.subr.mxu0 0.0
        %6032 = vmatpush1.xpose.msra.mxu0 %v6011
        %6033 = vmatprep.subr.mxu0 0.0
        %6034 = vmatpush1.xpose.msra.mxu0 %v6014
        %6035 = vmatprep.subr.mxu0 0.0
        %6036 = vmatpush1.xpose.msra.mxu0 %v6017
        %6037 = vmatprep.subr.mxu0 0.0
        %6038 = vmatpush1.xpose.msra.mxu0 %v6020
        %6039 = vmatprep.subr.mxu0 0.0
        %6040 = vmatpush1.xpose.msra.mxu0 %v6023
        %6041 = vmatprep.subr.mxu0 0.0
        %6042 = vmatpush1.xpose.msra.mxu0 0.0
        %6043 = vmatprep.subr.mxu0 0.0
        %6044 = vmatpush1.xpose.msra.mxu0 0.0
        %6045 = vmatprep.subr.mxu0 0.0
        %6046 = vmatpush1.xpose.msra.mxu0 0.0
        %6047 = vmatprep.subr.mxu0 0.0
        %6048 = vmatpush1.xpose.msra.mxu0 0.0
        %6049 = vmatprep.subr.mxu0 0.0
        %6050 = vmatpush1.xpose.msra.mxu0 0.0
        %6051 = vmatprep.subr.mxu0 0.0
        %6052 = vmatpush1.xpose.msra.mxu0 0.0
        %6053 = vmatprep.subr.mxu0 0.0
        %6054 = vmatpush1.xpose.msra.mxu0 0.0
        %6055 = vmatprep.subr.mxu0 0.0
        %6056 = vmatpush1.xpose.msra.mxu0 0.0
        %6057 = vmatprep.subr.mxu0 0.0
        %6058 = vmatpush1.xpose.msra.mxu0 0.0
        %6059 = vmatprep.subr.mxu0 0.0
        %6060 = vmatpush1.xpose.msra.mxu0 0.0
        %6061 = vmatprep.subr.mxu0 0.0
        %6062 = vmatpush1.xpose.msra.mxu0 0.0
        %6063 = vmatprep.subr.mxu0 0.0
        %6064 = vmatpush1.xpose.msra.mxu0 0.0
        %6065 = vmatprep.subr.mxu0 0.0
        %6066 = vmatpush1.xpose.msra.mxu0 0.0
        %6067 = vmatprep.subr.mxu0 0.0
        %6068 = vmatpush1.xpose.msra.mxu0 0.0
        %6069 = vmatprep.subr.mxu0 0.0
        %6070 = vmatpush1.xpose.msra.mxu0 0.0
        %6071 = vmatprep.subr.mxu0 0.0
        %6072 = vmatpush1.xpose.msra.mxu0 0.0
        %6073 = vmatprep.subr.mxu0 0.0
        %6074 = vmatpush1.xpose.msra.mxu0 0.0
        %6075 = vmatprep.subr.mxu0 0.0
        %6076 = vmatpush1.xpose.msra.mxu0 0.0
        %6077 = vmatprep.subr.mxu0 0.0
        %6078 = vmatpush1.xpose.msra.mxu0 0.0
        %6079 = vmatprep.subr.mxu0 0.0
        %6080 = vmatpush1.xpose.msra.mxu0 0.0
        %6081 = vmatprep.subr.mxu0 0.0
        %6082 = vmatpush1.xpose.msra.mxu0 0.0
        %6083 = vmatprep.subr.mxu0 0.0
        %6084 = vmatpush1.xpose.msra.mxu0 0.0
        %6085 = vmatprep.subr.mxu0 0.0
        %6086 = vmatpush1.xpose.msra.mxu0 0.0
        %6087 = vmatprep.subr.mxu0 0.0
        %6088 = vmatpush1.xpose.msra.mxu0 0.0
        %6089 = vmatprep.mubr.f32.mxu0 0.0
        %6090 = vmatmul.mubr.f32.gmra.mrb[0].mxu0 %v5889
        %v6091 = vpop.f32.mrb[0].mxu0
        %v6092 = vadd.f32 0.0, %v6091
        %v6093 = vpop.f32.mrb[0].mxu0
        %6094 = vdwg.mxu0
        %v6095 = vld [vmem:[%s1161] sm:$0xf]
        %6097 = vset.pattern.permute.xlu0 0
        %6098 = vperm.xlu0 %6097, %v6095
        %v6099 = vpop.permute.xlu0 %6098
        %v6101 = vmul.f32 %v6092, %v6099
        %v6102 = vadd.f32 %v5992, %v6101
        %v6103 = vld [vmem:[%s1170] sm:$0xff]
        %v6104 = vld [vmem:[%s1170 + $0x8] sm:$0xff]
        %v6105 = vld [vmem:[%s1170 + $0x10] sm:$0xff]
        %v6106 = vld [vmem:[%s1170 + $0x18] sm:$0xff]
        %v6107 = vld [vmem:[%s1170 + $0x20] sm:$0xff]
        %v6108 = vld [vmem:[%s1170 + $0x28] sm:$0xff]
        %v6109 = vld [vmem:[%s1170 + $0x30] sm:$0xff]
        %v6110 = vld [vmem:[%s1170 + $0x38] sm:$0xff]
        %v6112 = vsel %vm851, %v6103, 0
        %v6115 = vsel %vm851, %v6104, 0
        %v6118 = vsel %vm851, %v6105, 0
        %v6121 = vsel %vm851, %v6106, 0
        %v6124 = vsel %vm851, %v6107, 0
        %v6127 = vsel %vm851, %v6108, 0
        %v6130 = vsel %vm851, %v6109, 0
        %v6133 = vsel %vm851, %v6110, 0
        %6135 = vmatprep.subr.mxu0 0.0
        %6136 = vmatpush1.xpose.msra.mxu0 %v6112
        %6137 = vmatprep.subr.mxu0 0.0
        %6138 = vmatpush1.xpose.msra.mxu0 %v6115
        %6139 = vmatprep.subr.mxu0 0.0
        %6140 = vmatpush1.xpose.msra.mxu0 %v6118
        %6141 = vmatprep.subr.mxu0 0.0
        %6142 = vmatpush1.xpose.msra.mxu0 %v6121
        %6143 = vmatprep.subr.mxu0 0.0
        %6144 = vmatpush1.xpose.msra.mxu0 %v6124
        %6145 = vmatprep.subr.mxu0 0.0
        %6146 = vmatpush1.xpose.msra.mxu0 %v6127
        %6147 = vmatprep.subr.mxu0 0.0
        %6148 = vmatpush1.xpose.msra.mxu0 %v6130
        %6149 = vmatprep.subr.mxu0 0.0
        %6150 = vmatpush1.xpose.msra.mxu0 %v6133
        %6151 = vmatprep.subr.mxu0 0.0
        %6152 = vmatpush1.xpose.msra.mxu0 0.0
        %6153 = vmatprep.subr.mxu0 0.0
        %6154 = vmatpush1.xpose.msra.mxu0 0.0
        %6155 = vmatprep.subr.mxu0 0.0
        %6156 = vmatpush1.xpose.msra.mxu0 0.0
        %6157 = vmatprep.subr.mxu0 0.0
        %6158 = vmatpush1.xpose.msra.mxu0 0.0
        %6159 = vmatprep.subr.mxu0 0.0
        %6160 = vmatpush1.xpose.msra.mxu0 0.0
        %6161 = vmatprep.subr.mxu0 0.0
        %6162 = vmatpush1.xpose.msra.mxu0 0.0
        %6163 = vmatprep.subr.mxu0 0.0
        %6164 = vmatpush1.xpose.msra.mxu0 0.0
        %6165 = vmatprep.subr.mxu0 0.0
        %6166 = vmatpush1.xpose.msra.mxu0 0.0
        %6167 = vmatprep.subr.mxu0 0.0
        %6168 = vmatpush1.xpose.msra.mxu0 0.0
        %6169 = vmatprep.subr.mxu0 0.0
        %6170 = vmatpush1.xpose.msra.mxu0 0.0
        %6171 = vmatprep.subr.mxu0 0.0
        %6172 = vmatpush1.xpose.msra.mxu0 0.0
        %6173 = vmatprep.subr.mxu0 0.0
        %6174 = vmatpush1.xpose.msra.mxu0 0.0
        %6175 = vmatprep.subr.mxu0 0.0
        %6176 = vmatpush1.xpose.msra.mxu0 0.0
        %6177 = vmatprep.subr.mxu0 0.0
        %6178 = vmatpush1.xpose.msra.mxu0 0.0
        %6179 = vmatprep.subr.mxu0 0.0
        %6180 = vmatpush1.xpose.msra.mxu0 0.0
        %6181 = vmatprep.subr.mxu0 0.0
        %6182 = vmatpush1.xpose.msra.mxu0 0.0
        %6183 = vmatprep.subr.mxu0 0.0
        %6184 = vmatpush1.xpose.msra.mxu0 0.0
        %6185 = vmatprep.subr.mxu0 0.0
        %6186 = vmatpush1.xpose.msra.mxu0 0.0
        %6187 = vmatprep.subr.mxu0 0.0
        %6188 = vmatpush1.xpose.msra.mxu0 0.0
        %6189 = vmatprep.subr.mxu0 0.0
        %6190 = vmatpush1.xpose.msra.mxu0 0.0
        %6191 = vmatprep.subr.mxu0 0.0
        %6192 = vmatpush1.xpose.msra.mxu0 0.0
        %6193 = vmatprep.subr.mxu0 0.0
        %6194 = vmatpush1.xpose.msra.mxu0 0.0
        %6195 = vmatprep.subr.mxu0 0.0
        %6196 = vmatpush1.xpose.msra.mxu0 0.0
        %6197 = vmatprep.subr.mxu0 0.0
        %6198 = vmatpush1.xpose.msra.mxu0 0.0
        %6199 = vmatprep.mubr.f32.mxu0 0.0
        %6200 = vmatmul.mubr.f32.gmra.mrb[0].mxu0 %v5889
        %v6201 = vpop.f32.mrb[0].mxu0
        %v6202 = vadd.f32 0.0, %v6201
        %v6203 = vpop.f32.mrb[0].mxu0
        %6204 = vdwg.mxu0
        %v6205 = vld [vmem:[%s1273] sm:$0xf]
        %6207 = vset.pattern.permute.xlu0 0
        %6208 = vperm.xlu0 %6207, %v6205
        %v6209 = vpop.permute.xlu0 %6208
        %v6211 = vmul.f32 %v6202, %v6209
        %v6212 = vadd.f32 %v6102, %v6211
        %v6213 = vld [vmem:[%s1282] sm:$0xff]
        %v6214 = vld [vmem:[%s1282 + $0x8] sm:$0xff]
        %v6215 = vld [vmem:[%s1282 + $0x10] sm:$0xff]
        %v6216 = vld [vmem:[%s1282 + $0x18] sm:$0xff]
        %v6217 = vld [vmem:[%s1282 + $0x20] sm:$0xff]
        %v6218 = vld [vmem:[%s1282 + $0x28] sm:$0xff]
        %v6219 = vld [vmem:[%s1282 + $0x30] sm:$0xff]
        %v6220 = vld [vmem:[%s1282 + $0x38] sm:$0xff]
        %v6222 = vsel %vm851, %v6213, 0
        %v6225 = vsel %vm851, %v6214, 0
        %v6228 = vsel %vm851, %v6215, 0
        %v6231 = vsel %vm851, %v6216, 0
        %v6234 = vsel %vm851, %v6217, 0
        %v6237 = vsel %vm851, %v6218, 0
        %v6240 = vsel %vm851, %v6219, 0
        %v6243 = vsel %vm851, %v6220, 0
        %6245 = vmatprep.subr.mxu0 0.0
        %6246 = vmatpush1.xpose.msra.mxu0 %v6222
        %6247 = vmatprep.subr.mxu0 0.0
        %6248 = vmatpush1.xpose.msra.mxu0 %v6225
        %6249 = vmatprep.subr.mxu0 0.0
        %6250 = vmatpush1.xpose.msra.mxu0 %v6228
        %6251 = vmatprep.subr.mxu0 0.0
        %6252 = vmatpush1.xpose.msra.mxu0 %v6231
        %6253 = vmatprep.subr.mxu0 0.0
        %6254 = vmatpush1.xpose.msra.mxu0 %v6234
        %6255 = vmatprep.subr.mxu0 0.0
        %6256 = vmatpush1.xpose.msra.mxu0 %v6237
        %6257 = vmatprep.subr.mxu0 0.0
        %6258 = vmatpush1.xpose.msra.mxu0 %v6240
        %6259 = vmatprep.subr.mxu0 0.0
        %6260 = vmatpush1.xpose.msra.mxu0 %v6243
        %6261 = vmatprep.subr.mxu0 0.0
        %6262 = vmatpush1.xpose.msra.mxu0 0.0
        %6263 = vmatprep.subr.mxu0 0.0
        %6264 = vmatpush1.xpose.msra.mxu0 0.0
        %6265 = vmatprep.subr.mxu0 0.0
        %6266 = vmatpush1.xpose.msra.mxu0 0.0
        %6267 = vmatprep.subr.mxu0 0.0
        %6268 = vmatpush1.xpose.msra.mxu0 0.0
        %6269 = vmatprep.subr.mxu0 0.0
        %6270 = vmatpush1.xpose.msra.mxu0 0.0
        %6271 = vmatprep.subr.mxu0 0.0
        %6272 = vmatpush1.xpose.msra.mxu0 0.0
        %6273 = vmatprep.subr.mxu0 0.0
        %6274 = vmatpush1.xpose.msra.mxu0 0.0
        %6275 = vmatprep.subr.mxu0 0.0
        %6276 = vmatpush1.xpose.msra.mxu0 0.0
        %6277 = vmatprep.subr.mxu0 0.0
        %6278 = vmatpush1.xpose.msra.mxu0 0.0
        %6279 = vmatprep.subr.mxu0 0.0
        %6280 = vmatpush1.xpose.msra.mxu0 0.0
        %6281 = vmatprep.subr.mxu0 0.0
        %6282 = vmatpush1.xpose.msra.mxu0 0.0
        %6283 = vmatprep.subr.mxu0 0.0
        %6284 = vmatpush1.xpose.msra.mxu0 0.0
        %6285 = vmatprep.subr.mxu0 0.0
        %6286 = vmatpush1.xpose.msra.mxu0 0.0
        %6287 = vmatprep.subr.mxu0 0.0
        %6288 = vmatpush1.xpose.msra.mxu0 0.0
        %6289 = vmatprep.subr.mxu0 0.0
        %6290 = vmatpush1.xpose.msra.mxu0 0.0
        %6291 = vmatprep.subr.mxu0 0.0
        %6292 = vmatpush1.xpose.msra.mxu0 0.0
        %6293 = vmatprep.subr.mxu0 0.0
        %6294 = vmatpush1.xpose.msra.mxu0 0.0
        %6295 = vmatprep.subr.mxu0 0.0
        %6296 = vmatpush1.xpose.msra.mxu0 0.0
        %6297 = vmatprep.subr.mxu0 0.0
        %6298 = vmatpush1.xpose.msra.mxu0 0.0
        %6299 = vmatprep.subr.mxu0 0.0
        %6300 = vmatpush1.xpose.msra.mxu0 0.0
        %6301 = vmatprep.subr.mxu0 0.0
        %6302 = vmatpush1.xpose.msra.mxu0 0.0
        %6303 = vmatprep.subr.mxu0 0.0
        %6304 = vmatpush1.xpose.msra.mxu0 0.0
        %6305 = vmatprep.subr.mxu0 0.0
        %6306 = vmatpush1.xpose.msra.mxu0 0.0
        %6307 = vmatprep.subr.mxu0 0.0
        %6308 = vmatpush1.xpose.msra.mxu0 0.0
        %6309 = vmatprep.mubr.f32.mxu0 0.0
        %6310 = vmatmul.mubr.f32.gmra.mrb[0].mxu0 %v5889
        %v6311 = vpop.f32.mrb[0].mxu0
        %v6312 = vadd.f32 0.0, %v6311
        %v6313 = vpop.f32.mrb[0].mxu0
        %6314 = vdwg.mxu0
        %v6315 = vld [vmem:[%s1385] sm:$0xf]
        %6317 = vset.pattern.permute.xlu0 0
        %6318 = vperm.xlu0 %6317, %v6315
        %v6319 = vpop.permute.xlu0 %6318
        %v6321 = vmul.f32 %v6312, %v6319
        %v6322 = vadd.f32 %v6212, %v6321
        %v6323 = vld [vmem:[%s1394] sm:$0xff]
        %v6324 = vld [vmem:[%s1394 + $0x8] sm:$0xff]
        %v6325 = vld [vmem:[%s1394 + $0x10] sm:$0xff]
        %v6326 = vld [vmem:[%s1394 + $0x18] sm:$0xff]
        %v6327 = vld [vmem:[%s1394 + $0x20] sm:$0xff]
        %v6328 = vld [vmem:[%s1394 + $0x28] sm:$0xff]
        %v6329 = vld [vmem:[%s1394 + $0x30] sm:$0xff]
        %v6330 = vld [vmem:[%s1394 + $0x38] sm:$0xff]
        %v6332 = vsel %vm851, %v6323, 0
        %v6335 = vsel %vm851, %v6324, 0
        %v6338 = vsel %vm851, %v6325, 0
        %v6341 = vsel %vm851, %v6326, 0
        %v6344 = vsel %vm851, %v6327, 0
        %v6347 = vsel %vm851, %v6328, 0
        %v6350 = vsel %vm851, %v6329, 0
        %v6353 = vsel %vm851, %v6330, 0
        %6355 = vmatprep.subr.mxu0 0.0
        %6356 = vmatpush1.xpose.msra.mxu0 %v6332
        %6357 = vmatprep.subr.mxu0 0.0
        %6358 = vmatpush1.xpose.msra.mxu0 %v6335
        %6359 = vmatprep.subr.mxu0 0.0
        %6360 = vmatpush1.xpose.msra.mxu0 %v6338
        %6361 = vmatprep.subr.mxu0 0.0
        %6362 = vmatpush1.xpose.msra.mxu0 %v6341
        %6363 = vmatprep.subr.mxu0 0.0
        %6364 = vmatpush1.xpose.msra.mxu0 %v6344
        %6365 = vmatprep.subr.mxu0 0.0
        %6366 = vmatpush1.xpose.msra.mxu0 %v6347
        %6367 = vmatprep.subr.mxu0 0.0
        %6368 = vmatpush1.xpose.msra.mxu0 %v6350
        %6369 = vmatprep.subr.mxu0 0.0
        %6370 = vmatpush1.xpose.msra.mxu0 %v6353
        %6371 = vmatprep.subr.mxu0 0.0
        %6372 = vmatpush1.xpose.msra.mxu0 0.0
        %6373 = vmatprep.subr.mxu0 0.0
        %6374 = vmatpush1.xpose.msra.mxu0 0.0
        %6375 = vmatprep.subr.mxu0 0.0
        %6376 = vmatpush1.xpose.msra.mxu0 0.0
        %6377 = vmatprep.subr.mxu0 0.0
        %6378 = vmatpush1.xpose.msra.mxu0 0.0
        %6379 = vmatprep.subr.mxu0 0.0
        %6380 = vmatpush1.xpose.msra.mxu0 0.0
        %6381 = vmatprep.subr.mxu0 0.0
        %6382 = vmatpush1.xpose.msra.mxu0 0.0
        %6383 = vmatprep.subr.mxu0 0.0
        %6384 = vmatpush1.xpose.msra.mxu0 0.0
        %6385 = vmatprep.subr.mxu0 0.0
        %6386 = vmatpush1.xpose.msra.mxu0 0.0
        %6387 = vmatprep.subr.mxu0 0.0
        %6388 = vmatpush1.xpose.msra.mxu0 0.0
        %6389 = vmatprep.subr.mxu0 0.0
        %6390 = vmatpush1.xpose.msra.mxu0 0.0
        %6391 = vmatprep.subr.mxu0 0.0
        %6392 = vmatpush1.xpose.msra.mxu0 0.0
        %6393 = vmatprep.subr.mxu0 0.0
        %6394 = vmatpush1.xpose.msra.mxu0 0.0
        %6395 = vmatprep.subr.mxu0 0.0
        %6396 = vmatpush1.xpose.msra.mxu0 0.0
        %6397 = vmatprep.subr.mxu0 0.0
        %6398 = vmatpush1.xpose.msra.mxu0 0.0
        %6399 = vmatprep.subr.mxu0 0.0
        %6400 = vmatpush1.xpose.msra.mxu0 0.0
        %6401 = vmatprep.subr.mxu0 0.0
        %6402 = vmatpush1.xpose.msra.mxu0 0.0
        %6403 = vmatprep.subr.mxu0 0.0
        %6404 = vmatpush1.xpose.msra.mxu0 0.0
        %6405 = vmatprep.subr.mxu0 0.0
        %6406 = vmatpush1.xpose.msra.mxu0 0.0
        %6407 = vmatprep.subr.mxu0 0.0
        %6408 = vmatpush1.xpose.msra.mxu0 0.0
        %6409 = vmatprep.subr.mxu0 0.0
        %6410 = vmatpush1.xpose.msra.mxu0 0.0
        %6411 = vmatprep.subr.mxu0 0.0
        %6412 = vmatpush1.xpose.msra.mxu0 0.0
        %6413 = vmatprep.subr.mxu0 0.0
        %6414 = vmatpush1.xpose.msra.mxu0 0.0
        %6415 = vmatprep.subr.mxu0 0.0
        %6416 = vmatpush1.xpose.msra.mxu0 0.0
        %6417 = vmatprep.subr.mxu0 0.0
        %6418 = vmatpush1.xpose.msra.mxu0 0.0
        %6419 = vmatprep.mubr.f32.mxu0 0.0
        %6420 = vmatmul.mubr.f32.gmra.mrb[0].mxu0 %v5889
        %v6421 = vpop.f32.mrb[0].mxu0
        %v6422 = vadd.f32 0.0, %v6421
        %v6423 = vpop.f32.mrb[0].mxu0
        %6424 = vdwg.mxu0
        %v6425 = vld [vmem:[%s1497] sm:$0xf]
        %6427 = vset.pattern.permute.xlu0 0
        %6428 = vperm.xlu0 %6427, %v6425
        %v6429 = vpop.permute.xlu0 %6428
        %v6431 = vmul.f32 %v6422, %v6429
        %v6432 = vadd.f32 %v6322, %v6431
        %v6433 = vld [vmem:[%s1506] sm:$0xff]
        %v6434 = vld [vmem:[%s1506 + $0x8] sm:$0xff]
        %v6435 = vld [vmem:[%s1506 + $0x10] sm:$0xff]
        %v6436 = vld [vmem:[%s1506 + $0x18] sm:$0xff]
        %v6437 = vld [vmem:[%s1506 + $0x20] sm:$0xff]
        %v6438 = vld [vmem:[%s1506 + $0x28] sm:$0xff]
        %v6439 = vld [vmem:[%s1506 + $0x30] sm:$0xff]
        %v6440 = vld [vmem:[%s1506 + $0x38] sm:$0xff]
        %v6442 = vsel %vm851, %v6433, 0
        %v6445 = vsel %vm851, %v6434, 0
        %v6448 = vsel %vm851, %v6435, 0
        %v6451 = vsel %vm851, %v6436, 0
        %v6454 = vsel %vm851, %v6437, 0
        %v6457 = vsel %vm851, %v6438, 0
        %v6460 = vsel %vm851, %v6439, 0
        %v6463 = vsel %vm851, %v6440, 0
        %6465 = vmatprep.subr.mxu0 0.0
        %6466 = vmatpush1.xpose.msra.mxu0 %v6442
        %6467 = vmatprep.subr.mxu0 0.0
        %6468 = vmatpush1.xpose.msra.mxu0 %v6445
        %6469 = vmatprep.subr.mxu0 0.0
        %6470 = vmatpush1.xpose.msra.mxu0 %v6448
        %6471 = vmatprep.subr.mxu0 0.0
        %6472 = vmatpush1.xpose.msra.mxu0 %v6451
        %6473 = vmatprep.subr.mxu0 0.0
        %6474 = vmatpush1.xpose.msra.mxu0 %v6454
        %6475 = vmatprep.subr.mxu0 0.0
        %6476 = vmatpush1.xpose.msra.mxu0 %v6457
        %6477 = vmatprep.subr.mxu0 0.0
        %6478 = vmatpush1.xpose.msra.mxu0 %v6460
        %6479 = vmatprep.subr.mxu0 0.0
        %6480 = vmatpush1.xpose.msra.mxu0 %v6463
        %6481 = vmatprep.subr.mxu0 0.0
        %6482 = vmatpush1.xpose.msra.mxu0 0.0
        %6483 = vmatprep.subr.mxu0 0.0
        %6484 = vmatpush1.xpose.msra.mxu0 0.0
        %6485 = vmatprep.subr.mxu0 0.0
        %6486 = vmatpush1.xpose.msra.mxu0 0.0
        %6487 = vmatprep.subr.mxu0 0.0
        %6488 = vmatpush1.xpose.msra.mxu0 0.0
        %6489 = vmatprep.subr.mxu0 0.0
        %6490 = vmatpush1.xpose.msra.mxu0 0.0
        %6491 = vmatprep.subr.mxu0 0.0
        %6492 = vmatpush1.xpose.msra.mxu0 0.0
        %6493 = vmatprep.subr.mxu0 0.0
        %6494 = vmatpush1.xpose.msra.mxu0 0.0
        %6495 = vmatprep.subr.mxu0 0.0
        %6496 = vmatpush1.xpose.msra.mxu0 0.0
        %6497 = vmatprep.subr.mxu0 0.0
        %6498 = vmatpush1.xpose.msra.mxu0 0.0
        %6499 = vmatprep.subr.mxu0 0.0
        %6500 = vmatpush1.xpose.msra.mxu0 0.0
        %6501 = vmatprep.subr.mxu0 0.0
        %6502 = vmatpush1.xpose.msra.mxu0 0.0
        %6503 = vmatprep.subr.mxu0 0.0
        %6504 = vmatpush1.xpose.msra.mxu0 0.0
        %6505 = vmatprep.subr.mxu0 0.0
        %6506 = vmatpush1.xpose.msra.mxu0 0.0
        %6507 = vmatprep.subr.mxu0 0.0
        %6508 = vmatpush1.xpose.msra.mxu0 0.0
        %6509 = vmatprep.subr.mxu0 0.0
        %6510 = vmatpush1.xpose.msra.mxu0 0.0
        %6511 = vmatprep.subr.mxu0 0.0
        %6512 = vmatpush1.xpose.msra.mxu0 0.0
        %6513 = vmatprep.subr.mxu0 0.0
        %6514 = vmatpush1.xpose.msra.mxu0 0.0
        %6515 = vmatprep.subr.mxu0 0.0
        %6516 = vmatpush1.xpose.msra.mxu0 0.0
        %6517 = vmatprep.subr.mxu0 0.0
        %6518 = vmatpush1.xpose.msra.mxu0 0.0
        %6519 = vmatprep.subr.mxu0 0.0
        %6520 = vmatpush1.xpose.msra.mxu0 0.0
        %6521 = vmatprep.subr.mxu0 0.0
        %6522 = vmatpush1.xpose.msra.mxu0 0.0
        %6523 = vmatprep.subr.mxu0 0.0
        %6524 = vmatpush1.xpose.msra.mxu0 0.0
        %6525 = vmatprep.subr.mxu0 0.0
        %6526 = vmatpush1.xpose.msra.mxu0 0.0
        %6527 = vmatprep.subr.mxu0 0.0
        %6528 = vmatpush1.xpose.msra.mxu0 0.0
        %6529 = vmatprep.mubr.f32.mxu0 0.0
        %6530 = vmatmul.mubr.f32.gmra.mrb[0].mxu0 %v5889
        %v6531 = vpop.f32.mrb[0].mxu0
        %v6532 = vadd.f32 0.0, %v6531
        %v6533 = vpop.f32.mrb[0].mxu0
        %6534 = vdwg.mxu0
        %v6535 = vld [vmem:[%s1609] sm:$0xf]
        %6537 = vset.pattern.permute.xlu0 0
        %6538 = vperm.xlu0 %6537, %v6535
        %v6539 = vpop.permute.xlu0 %6538
        %v6541 = vmul.f32 %v6532, %v6539
        %v6542 = vadd.f32 %v6432, %v6541
        %v6543 = vld [vmem:[%s1618] sm:$0xff]
        %v6544 = vld [vmem:[%s1618 + $0x8] sm:$0xff]
        %v6545 = vld [vmem:[%s1618 + $0x10] sm:$0xff]
        %v6546 = vld [vmem:[%s1618 + $0x18] sm:$0xff]
        %v6547 = vld [vmem:[%s1618 + $0x20] sm:$0xff]
        %v6548 = vld [vmem:[%s1618 + $0x28] sm:$0xff]
        %v6549 = vld [vmem:[%s1618 + $0x30] sm:$0xff]
        %v6550 = vld [vmem:[%s1618 + $0x38] sm:$0xff]
        %v6552 = vsel %vm851, %v6543, 0
        %v6555 = vsel %vm851, %v6544, 0
        %v6558 = vsel %vm851, %v6545, 0
        %v6561 = vsel %vm851, %v6546, 0
        %v6564 = vsel %vm851, %v6547, 0
        %v6567 = vsel %vm851, %v6548, 0
        %v6570 = vsel %vm851, %v6549, 0
        %v6573 = vsel %vm851, %v6550, 0
        %6575 = vmatprep.subr.mxu0 0.0
        %6576 = vmatpush1.xpose.msra.mxu0 %v6552
        %6577 = vmatprep.subr.mxu0 0.0
        %6578 = vmatpush1.xpose.msra.mxu0 %v6555
        %6579 = vmatprep.subr.mxu0 0.0
        %6580 = vmatpush1.xpose.msra.mxu0 %v6558
        %6581 = vmatprep.subr.mxu0 0.0
        %6582 = vmatpush1.xpose.msra.mxu0 %v6561
        %6583 = vmatprep.subr.mxu0 0.0
        %6584 = vmatpush1.xpose.msra.mxu0 %v6564
        %6585 = vmatprep.subr.mxu0 0.0
        %6586 = vmatpush1.xpose.msra.mxu0 %v6567
        %6587 = vmatprep.subr.mxu0 0.0
        %6588 = vmatpush1.xpose.msra.mxu0 %v6570
        %6589 = vmatprep.subr.mxu0 0.0
        %6590 = vmatpush1.xpose.msra.mxu0 %v6573
        %6591 = vmatprep.subr.mxu0 0.0
        %6592 = vmatpush1.xpose.msra.mxu0 0.0
        %6593 = vmatprep.subr.mxu0 0.0
        %6594 = vmatpush1.xpose.msra.mxu0 0.0
        %6595 = vmatprep.subr.mxu0 0.0
        %6596 = vmatpush1.xpose.msra.mxu0 0.0
        %6597 = vmatprep.subr.mxu0 0.0
        %6598 = vmatpush1.xpose.msra.mxu0 0.0
        %6599 = vmatprep.subr.mxu0 0.0
        %6600 = vmatpush1.xpose.msra.mxu0 0.0
        %6601 = vmatprep.subr.mxu0 0.0
        %6602 = vmatpush1.xpose.msra.mxu0 0.0
        %6603 = vmatprep.subr.mxu0 0.0
        %6604 = vmatpush1.xpose.msra.mxu0 0.0
        %6605 = vmatprep.subr.mxu0 0.0
        %6606 = vmatpush1.xpose.msra.mxu0 0.0
        %6607 = vmatprep.subr.mxu0 0.0
        %6608 = vmatpush1.xpose.msra.mxu0 0.0
        %6609 = vmatprep.subr.mxu0 0.0
        %6610 = vmatpush1.xpose.msra.mxu0 0.0
        %6611 = vmatprep.subr.mxu0 0.0
        %6612 = vmatpush1.xpose.msra.mxu0 0.0
        %6613 = vmatprep.subr.mxu0 0.0
        %6614 = vmatpush1.xpose.msra.mxu0 0.0
        %6615 = vmatprep.subr.mxu0 0.0
        %6616 = vmatpush1.xpose.msra.mxu0 0.0
        %6617 = vmatprep.subr.mxu0 0.0
        %6618 = vmatpush1.xpose.msra.mxu0 0.0
        %6619 = vmatprep.subr.mxu0 0.0
        %6620 = vmatpush1.xpose.msra.mxu0 0.0
        %6621 = vmatprep.subr.mxu0 0.0
        %6622 = vmatpush1.xpose.msra.mxu0 0.0
        %6623 = vmatprep.subr.mxu0 0.0
        %6624 = vmatpush1.xpose.msra.mxu0 0.0
        %6625 = vmatprep.subr.mxu0 0.0
        %6626 = vmatpush1.xpose.msra.mxu0 0.0
        %6627 = vmatprep.subr.mxu0 0.0
        %6628 = vmatpush1.xpose.msra.mxu0 0.0
        %6629 = vmatprep.subr.mxu0 0.0
        %6630 = vmatpush1.xpose.msra.mxu0 0.0
        %6631 = vmatprep.subr.mxu0 0.0
        %6632 = vmatpush1.xpose.msra.mxu0 0.0
        %6633 = vmatprep.subr.mxu0 0.0
        %6634 = vmatpush1.xpose.msra.mxu0 0.0
        %6635 = vmatprep.subr.mxu0 0.0
        %6636 = vmatpush1.xpose.msra.mxu0 0.0
        %6637 = vmatprep.subr.mxu0 0.0
        %6638 = vmatpush1.xpose.msra.mxu0 0.0
        %6639 = vmatprep.mubr.f32.mxu0 0.0
        %6640 = vmatmul.mubr.f32.gmra.mrb[0].mxu0 %v5889
        %v6641 = vpop.f32.mrb[0].mxu0
        %v6642 = vadd.f32 0.0, %v6641
        %v6643 = vpop.f32.mrb[0].mxu0
        %6644 = vdwg.mxu0
        %v6645 = vld [vmem:[%s1721] sm:$0xf]
        %6647 = vset.pattern.permute.xlu0 0
        %6648 = vperm.xlu0 %6647, %v6645
        %v6649 = vpop.permute.xlu0 %6648
        %v6651 = vmul.f32 %v6642, %v6649
        %v6652 = vadd.f32 %v6542, %v6651
        %v6653 = vld [vmem:[%s1730] sm:$0xff]
        %v6654 = vld [vmem:[%s1730 + $0x8] sm:$0xff]
        %v6655 = vld [vmem:[%s1730 + $0x10] sm:$0xff]
        %v6656 = vld [vmem:[%s1730 + $0x18] sm:$0xff]
        %v6657 = vld [vmem:[%s1730 + $0x20] sm:$0xff]
        %v6658 = vld [vmem:[%s1730 + $0x28] sm:$0xff]
        %v6659 = vld [vmem:[%s1730 + $0x30] sm:$0xff]
        %v6660 = vld [vmem:[%s1730 + $0x38] sm:$0xff]
        %v6662 = vsel %vm851, %v6653, 0
        %v6665 = vsel %vm851, %v6654, 0
        %v6668 = vsel %vm851, %v6655, 0
        %v6671 = vsel %vm851, %v6656, 0
        %v6674 = vsel %vm851, %v6657, 0
        %v6677 = vsel %vm851, %v6658, 0
        %v6680 = vsel %vm851, %v6659, 0
        %v6683 = vsel %vm851, %v6660, 0
        %6685 = vmatprep.subr.mxu0 0.0
        %6686 = vmatpush1.xpose.msra.mxu0 %v6662
        %6687 = vmatprep.subr.mxu0 0.0
        %6688 = vmatpush1.xpose.msra.mxu0 %v6665
        %6689 = vmatprep.subr.mxu0 0.0
        %6690 = vmatpush1.xpose.msra.mxu0 %v6668
        %6691 = vmatprep.subr.mxu0 0.0
        %6692 = vmatpush1.xpose.msra.mxu0 %v6671
        %6693 = vmatprep.subr.mxu0 0.0
        %6694 = vmatpush1.xpose.msra.mxu0 %v6674
        %6695 = vmatprep.subr.mxu0 0.0
        %6696 = vmatpush1.xpose.msra.mxu0 %v6677
        %6697 = vmatprep.subr.mxu0 0.0
        %6698 = vmatpush1.xpose.msra.mxu0 %v6680
        %6699 = vmatprep.subr.mxu0 0.0
        %6700 = vmatpush1.xpose.msra.mxu0 %v6683
        %6701 = vmatprep.subr.mxu0 0.0
        %6702 = vmatpush1.xpose.msra.mxu0 0.0
        %6703 = vmatprep.subr.mxu0 0.0
        %6704 = vmatpush1.xpose.msra.mxu0 0.0
        %6705 = vmatprep.subr.mxu0 0.0
        %6706 = vmatpush1.xpose.msra.mxu0 0.0
        %6707 = vmatprep.subr.mxu0 0.0
        %6708 = vmatpush1.xpose.msra.mxu0 0.0
        %6709 = vmatprep.subr.mxu0 0.0
        %6710 = vmatpush1.xpose.msra.mxu0 0.0
        %6711 = vmatprep.subr.mxu0 0.0
        %6712 = vmatpush1.xpose.msra.mxu0 0.0
        %6713 = vmatprep.subr.mxu0 0.0
        %6714 = vmatpush1.xpose.msra.mxu0 0.0
        %6715 = vmatprep.subr.mxu0 0.0
        %6716 = vmatpush1.xpose.msra.mxu0 0.0
        %6717 = vmatprep.subr.mxu0 0.0
        %6718 = vmatpush1.xpose.msra.mxu0 0.0
        %6719 = vmatprep.subr.mxu0 0.0
        %6720 = vmatpush1.xpose.msra.mxu0 0.0
        %6721 = vmatprep.subr.mxu0 0.0
        %6722 = vmatpush1.xpose.msra.mxu0 0.0
        %6723 = vmatprep.subr.mxu0 0.0
        %6724 = vmatpush1.xpose.msra.mxu0 0.0
        %6725 = vmatprep.subr.mxu0 0.0
        %6726 = vmatpush1.xpose.msra.mxu0 0.0
        %6727 = vmatprep.subr.mxu0 0.0
        %6728 = vmatpush1.xpose.msra.mxu0 0.0
        %6729 = vmatprep.subr.mxu0 0.0
        %6730 = vmatpush1.xpose.msra.mxu0 0.0
        %6731 = vmatprep.subr.mxu0 0.0
        %6732 = vmatpush1.xpose.msra.mxu0 0.0
        %6733 = vmatprep.subr.mxu0 0.0
        %6734 = vmatpush1.xpose.msra.mxu0 0.0
        %6735 = vmatprep.subr.mxu0 0.0
        %6736 = vmatpush1.xpose.msra.mxu0 0.0
        %6737 = vmatprep.subr.mxu0 0.0
        %6738 = vmatpush1.xpose.msra.mxu0 0.0
        %6739 = vmatprep.subr.mxu0 0.0
        %6740 = vmatpush1.xpose.msra.mxu0 0.0
        %6741 = vmatprep.subr.mxu0 0.0
        %6742 = vmatpush1.xpose.msra.mxu0 0.0
        %6743 = vmatprep.subr.mxu0 0.0
        %6744 = vmatpush1.xpose.msra.mxu0 0.0
        %6745 = vmatprep.subr.mxu0 0.0
        %6746 = vmatpush1.xpose.msra.mxu0 0.0
        %6747 = vmatprep.subr.mxu0 0.0
        %6748 = vmatpush1.xpose.msra.mxu0 0.0
        %6749 = vmatprep.mubr.f32.mxu0 0.0
        %6750 = vmatmul.mubr.f32.gmra.mrb[0].mxu0 %v5889
        %v6751 = vpop.f32.mrb[0].mxu0
        %v6752 = vadd.f32 0.0, %v6751
        %v6753 = vpop.f32.mrb[0].mxu0
        %6754 = vdwg.mxu0
        %v6755 = vld [vmem:[%s1833] sm:$0xf]
        %6757 = vset.pattern.permute.xlu0 0
        %6758 = vperm.xlu0 %6757, %v6755
        %v6759 = vpop.permute.xlu0 %6758
        %v6761 = vmul.f32 %v6752, %v6759
        %v6762 = vadd.f32 %v6652, %v6761
        %v6763 = vld [vmem:[%s1842] sm:$0xff]
        %v6764 = vld [vmem:[%s1842 + $0x8] sm:$0xff]
        %v6765 = vld [vmem:[%s1842 + $0x10] sm:$0xff]
        %v6766 = vld [vmem:[%s1842 + $0x18] sm:$0xff]
        %v6767 = vld [vmem:[%s1842 + $0x20] sm:$0xff]
        %v6768 = vld [vmem:[%s1842 + $0x28] sm:$0xff]
        %v6769 = vld [vmem:[%s1842 + $0x30] sm:$0xff]
        %v6770 = vld [vmem:[%s1842 + $0x38] sm:$0xff]
        %v6772 = vsel %vm851, %v6763, 0
        %v6775 = vsel %vm851, %v6764, 0
        %v6778 = vsel %vm851, %v6765, 0
        %v6781 = vsel %vm851, %v6766, 0
        %v6784 = vsel %vm851, %v6767, 0
        %v6787 = vsel %vm851, %v6768, 0
        %v6790 = vsel %vm851, %v6769, 0
        %v6793 = vsel %vm851, %v6770, 0
        %6795 = vmatprep.subr.mxu0 0.0
        %6796 = vmatpush1.xpose.msra.mxu0 %v6772
        %6797 = vmatprep.subr.mxu0 0.0
        %6798 = vmatpush1.xpose.msra.mxu0 %v6775
        %6799 = vmatprep.subr.mxu0 0.0
        %6800 = vmatpush1.xpose.msra.mxu0 %v6778
        %6801 = vmatprep.subr.mxu0 0.0
        %6802 = vmatpush1.xpose.msra.mxu0 %v6781
        %6803 = vmatprep.subr.mxu0 0.0
        %6804 = vmatpush1.xpose.msra.mxu0 %v6784
        %6805 = vmatprep.subr.mxu0 0.0
        %6806 = vmatpush1.xpose.msra.mxu0 %v6787
        %6807 = vmatprep.subr.mxu0 0.0
        %6808 = vmatpush1.xpose.msra.mxu0 %v6790
        %6809 = vmatprep.subr.mxu0 0.0
        %6810 = vmatpush1.xpose.msra.mxu0 %v6793
        %6811 = vmatprep.subr.mxu0 0.0
        %6812 = vmatpush1.xpose.msra.mxu0 0.0
        %6813 = vmatprep.subr.mxu0 0.0
        %6814 = vmatpush1.xpose.msra.mxu0 0.0
        %6815 = vmatprep.subr.mxu0 0.0
        %6816 = vmatpush1.xpose.msra.mxu0 0.0
        %6817 = vmatprep.subr.mxu0 0.0
        %6818 = vmatpush1.xpose.msra.mxu0 0.0
        %6819 = vmatprep.subr.mxu0 0.0
        %6820 = vmatpush1.xpose.msra.mxu0 0.0
        %6821 = vmatprep.subr.mxu0 0.0
        %6822 = vmatpush1.xpose.msra.mxu0 0.0
        %6823 = vmatprep.subr.mxu0 0.0
        %6824 = vmatpush1.xpose.msra.mxu0 0.0
        %6825 = vmatprep.subr.mxu0 0.0
        %6826 = vmatpush1.xpose.msra.mxu0 0.0
        %6827 = vmatprep.subr.mxu0 0.0
        %6828 = vmatpush1.xpose.msra.mxu0 0.0
        %6829 = vmatprep.subr.mxu0 0.0
        %6830 = vmatpush1.xpose.msra.mxu0 0.0
        %6831 = vmatprep.subr.mxu0 0.0
        %6832 = vmatpush1.xpose.msra.mxu0 0.0
        %6833 = vmatprep.subr.mxu0 0.0
        %6834 = vmatpush1.xpose.msra.mxu0 0.0
        %6835 = vmatprep.subr.mxu0 0.0
        %6836 = vmatpush1.xpose.msra.mxu0 0.0
        %6837 = vmatprep.subr.mxu0 0.0
        %6838 = vmatpush1.xpose.msra.mxu0 0.0
        %6839 = vmatprep.subr.mxu0 0.0
        %6840 = vmatpush1.xpose.msra.mxu0 0.0
        %6841 = vmatprep.subr.mxu0 0.0
        %6842 = vmatpush1.xpose.msra.mxu0 0.0
        %6843 = vmatprep.subr.mxu0 0.0
        %6844 = vmatpush1.xpose.msra.mxu0 0.0
        %6845 = vmatprep.subr.mxu0 0.0
        %6846 = vmatpush1.xpose.msra.mxu0 0.0
        %6847 = vmatprep.subr.mxu0 0.0
        %6848 = vmatpush1.xpose.msra.mxu0 0.0
        %6849 = vmatprep.subr.mxu0 0.0
        %6850 = vmatpush1.xpose.msra.mxu0 0.0
        %6851 = vmatprep.subr.mxu0 0.0
        %6852 = vmatpush1.xpose.msra.mxu0 0.0
        %6853 = vmatprep.subr.mxu0 0.0
        %6854 = vmatpush1.xpose.msra.mxu0 0.0
        %6855 = vmatprep.subr.mxu0 0.0
        %6856 = vmatpush1.xpose.msra.mxu0 0.0
        %6857 = vmatprep.subr.mxu0 0.0
        %6858 = vmatpush1.xpose.msra.mxu0 0.0
        %6859 = vmatprep.mubr.f32.mxu0 0.0
        %6860 = vmatmul.mubr.f32.gmra.mrb[0].mxu0 %v5889
        %v6861 = vpop.f32.mrb[0].mxu0
        %v6862 = vadd.f32 0.0, %v6861
        %v6863 = vpop.f32.mrb[0].mxu0
        %6864 = vdwg.mxu0
        %v6865 = vld [vmem:[%s1945] sm:$0xf]
        %6867 = vset.pattern.permute.xlu0 0
        %6868 = vperm.xlu0 %6867, %v6865
        %v6869 = vpop.permute.xlu0 %6868
        %v6871 = vmul.f32 %v6862, %v6869
        %v6872 = vadd.f32 %v6762, %v6871
        %v6874 = vsel %vm851, %v5865, 0
        %v6877 = vsel %vm851, %v5867, 0
        %v6880 = vsel %vm851, %v5869, 0
        %v6883 = vsel %vm851, %v5871, 0
        %v6886 = vsel %vm851, %v5873, 0
        %v6889 = vsel %vm851, %v5875, 0
        %v6892 = vsel %vm851, %v5877, 0
        %v6895 = vsel %vm851, %v5879, 0
        %6897 = vmatprep.subr.mxu0 0.0
        %6898 = vmatpush1.xpose.msra.mxu0 %v6874
        %6899 = vmatprep.subr.mxu0 0.0
        %6900 = vmatpush1.xpose.msra.mxu0 %v6877
        %6901 = vmatprep.subr.mxu0 0.0
        %6902 = vmatpush1.xpose.msra.mxu0 %v6880
        %6903 = vmatprep.subr.mxu0 0.0
        %6904 = vmatpush1.xpose.msra.mxu0 %v6883
        %6905 = vmatprep.subr.mxu0 0.0
        %6906 = vmatpush1.xpose.msra.mxu0 %v6886
        %6907 = vmatprep.subr.mxu0 0.0
        %6908 = vmatpush1.xpose.msra.mxu0 %v6889
        %6909 = vmatprep.subr.mxu0 0.0
        %6910 = vmatpush1.xpose.msra.mxu0 %v6892
        %6911 = vmatprep.subr.mxu0 0.0
        %6912 = vmatpush1.xpose.msra.mxu0 %v6895
        %6913 = vmatprep.subr.mxu0 0.0
        %6914 = vmatpush1.xpose.msra.mxu0 0.0
        %6915 = vmatprep.subr.mxu0 0.0
        %6916 = vmatpush1.xpose.msra.mxu0 0.0
        %6917 = vmatprep.subr.mxu0 0.0
        %6918 = vmatpush1.xpose.msra.mxu0 0.0
        %6919 = vmatprep.subr.mxu0 0.0
        %6920 = vmatpush1.xpose.msra.mxu0 0.0
        %6921 = vmatprep.subr.mxu0 0.0
        %6922 = vmatpush1.xpose.msra.mxu0 0.0
        %6923 = vmatprep.subr.mxu0 0.0
        %6924 = vmatpush1.xpose.msra.mxu0 0.0
        %6925 = vmatprep.subr.mxu0 0.0
        %6926 = vmatpush1.xpose.msra.mxu0 0.0
        %6927 = vmatprep.subr.mxu0 0.0
        %6928 = vmatpush1.xpose.msra.mxu0 0.0
        %6929 = vmatprep.subr.mxu0 0.0
        %6930 = vmatpush1.xpose.msra.mxu0 0.0
        %6931 = vmatprep.subr.mxu0 0.0
        %6932 = vmatpush1.xpose.msra.mxu0 0.0
        %6933 = vmatprep.subr.mxu0 0.0
        %6934 = vmatpush1.xpose.msra.mxu0 0.0
        %6935 = vmatprep.subr.mxu0 0.0
        %6936 = vmatpush1.xpose.msra.mxu0 0.0
        %6937 = vmatprep.subr.mxu0 0.0
        %6938 = vmatpush1.xpose.msra.mxu0 0.0
        %6939 = vmatprep.subr.mxu0 0.0
        %6940 = vmatpush1.xpose.msra.mxu0 0.0
        %6941 = vmatprep.subr.mxu0 0.0
        %6942 = vmatpush1.xpose.msra.mxu0 0.0
        %6943 = vmatprep.subr.mxu0 0.0
        %6944 = vmatpush1.xpose.msra.mxu0 0.0
        %6945 = vmatprep.subr.mxu0 0.0
        %6946 = vmatpush1.xpose.msra.mxu0 0.0
        %6947 = vmatprep.subr.mxu0 0.0
        %6948 = vmatpush1.xpose.msra.mxu0 0.0
        %6949 = vmatprep.subr.mxu0 0.0
        %6950 = vmatpush1.xpose.msra.mxu0 0.0
        %6951 = vmatprep.subr.mxu0 0.0
        %6952 = vmatpush1.xpose.msra.mxu0 0.0
        %6953 = vmatprep.subr.mxu0 0.0
        %6954 = vmatpush1.xpose.msra.mxu0 0.0
        %6955 = vmatprep.subr.mxu0 0.0
        %6956 = vmatpush1.xpose.msra.mxu0 0.0
        %6957 = vmatprep.subr.mxu0 0.0
        %6958 = vmatpush1.xpose.msra.mxu0 0.0
        %6959 = vmatprep.subr.mxu0 0.0
        %6960 = vmatpush1.xpose.msra.mxu0 0.0
        %6961 = vmatprep.mubr.f32.mxu0 0.0
        %6962 = vmatmul.mubr.f32.gmra.mrb[0].mxu0 %v5889
        %v6963 = vpop.f32.mrb[0].mxu0
        %v6964 = vadd.f32 %v6872, %v6963
        %v6965 = vpop.f32.mrb[0].mxu0
        %6966 = vdwg.mxu0
        %v6968 = vsel %vm449, %v6964, 0
        %6970 = vmatprep.subr.mxu0 0.0
        %6971 = vmatpush1.msra.mxu0 %v6968
        %6972 = vmatprep.subr.mxu0 0.0
        %6973 = vmatpush1.msra.mxu0 0.0
        %6974 = vmatprep.subr.mxu0 0.0
        %6975 = vmatpush1.msra.mxu0 0.0
        %6976 = vmatprep.subr.mxu0 0.0
        %6977 = vmatpush1.msra.mxu0 0.0
        %6978 = vmatprep.subr.mxu0 0.0
        %6979 = vmatpush1.msra.mxu0 0.0
        %6980 = vmatprep.subr.mxu0 0.0
        %6981 = vmatpush1.msra.mxu0 0.0
        %6982 = vmatprep.subr.mxu0 0.0
        %6983 = vmatpush1.msra.mxu0 0.0
        %6984 = vmatprep.subr.mxu0 0.0
        %6985 = vmatpush1.msra.mxu0 0.0
        %6986 = vmatprep.subr.mxu0 0.0
        %6987 = vmatpush1.msra.mxu0 0.0
        %6988 = vmatprep.subr.mxu0 0.0
        %6989 = vmatpush1.msra.mxu0 0.0
        %6990 = vmatprep.subr.mxu0 0.0
        %6991 = vmatpush1.msra.mxu0 0.0
        %6992 = vmatprep.subr.mxu0 0.0
        %6993 = vmatpush1.msra.mxu0 0.0
        %6994 = vmatprep.subr.mxu0 0.0
        %6995 = vmatpush1.msra.mxu0 0.0
        %6996 = vmatprep.subr.mxu0 0.0
        %6997 = vmatpush1.msra.mxu0 0.0
        %6998 = vmatprep.subr.mxu0 0.0
        %6999 = vmatpush1.msra.mxu0 0.0
        %7000 = vmatprep.subr.mxu0 0.0
        %7001 = vmatpush1.msra.mxu0 0.0
        %7002 = vmatprep.subr.mxu0 0.0
        %7003 = vmatpush1.msra.mxu0 0.0
        %7004 = vmatprep.subr.mxu0 0.0
        %7005 = vmatpush1.msra.mxu0 0.0
        %7006 = vmatprep.subr.mxu0 0.0
        %7007 = vmatpush1.msra.mxu0 0.0
        %7008 = vmatprep.subr.mxu0 0.0
        %7009 = vmatpush1.msra.mxu0 0.0
        %7010 = vmatprep.subr.mxu0 0.0
        %7011 = vmatpush1.msra.mxu0 0.0
        %7012 = vmatprep.subr.mxu0 0.0
        %7013 = vmatpush1.msra.mxu0 0.0
        %7014 = vmatprep.subr.mxu0 0.0
        %7015 = vmatpush1.msra.mxu0 0.0
        %7016 = vmatprep.subr.mxu0 0.0
        %7017 = vmatpush1.msra.mxu0 0.0
        %7018 = vmatprep.subr.mxu0 0.0
        %7019 = vmatpush1.msra.mxu0 0.0
        %7020 = vmatprep.subr.mxu0 0.0
        %7021 = vmatpush1.msra.mxu0 0.0
        %7022 = vmatprep.subr.mxu0 0.0
        %7023 = vmatpush1.msra.mxu0 0.0
        %7024 = vmatprep.subr.mxu0 0.0
        %7025 = vmatpush1.msra.mxu0 0.0
        %7026 = vmatprep.subr.mxu0 0.0
        %7027 = vmatpush1.msra.mxu0 0.0
        %7028 = vmatprep.subr.mxu0 0.0
        %7029 = vmatpush1.msra.mxu0 0.0
        %7030 = vmatprep.subr.mxu0 0.0
        %7031 = vmatpush1.msra.mxu0 0.0
        %7032 = vmatprep.subr.mxu0 0.0
        %7033 = vmatpush1.msra.mxu0 0.0
        %7034 = vmatprep.mubr.f32.mxu0 0.0
        %7035 = vmatmul.mubr.f32.gmra.mrb[0].mxu0 %v2054
        %v7036 = vpop.f32.mrb[0].mxu0
        %v7037 = vadd.f32 %v2051, %v7036
        %v7038 = vpop.f32.mrb[0].mxu0
        %7039 = vdwg.mxu0
        %s7040 = scalar_lea.vmem %s422, 12 [#allocation5]
        %7041 = vst.msk [vmem:[%s7040] sm:$0xf] %vm2129, %v7037
        %s7042 = sand.u32 %s292, 1
        %s7043 = scalar_lea.sflag [#allocation4], %s7042
        %s7044 = sand.u32 %s292, 1
        %s7045 = smul.addr %s7044, 16
        %s7046 = scalar_lea.vmem [#allocation5], %s7045
        // Predicated region
        $region73: #{tpu_custom_call.1} parent=67 // pred_check
          %p7047 = pneg %p302
        $region74: #{tpu_custom_call.1} parent=67 // pred_check_branch
          %7049 = sbr.rel (%p7047) target = $region76
        $region75: #{tpu_custom_call.1} parent=67 // pred_region
          %s7050 = smul.u32 4, %s27
          %s7052 = ssub.s32 256, 256
          %7053 = vsyncadd %s7043, %s7052
          %s7054 = smul.addr %s7050, 64
          %s7055 = scalar_lea.hbm %s12, %s7054
          %s7056 = sshll.u32 %s7046, 4
          %s7057 = int_to_ptr.vmem [resolvable:$true] %s7056
          %7062 = dma.vmem_to_hbm [thread:$0]  %s7057, 256, %s7055, %s7043, 64, 64, 4
        $region76: #{tpu_custom_call.1} parent=67 // pred_fallthru
          _
      $region68: #{tpu_custom_call.1} parent=5 // pred_fallthru
        _
      %p7063 = scmp.le.s32.totalorder 2, %s22
      // Predicated region
      $region77: #{tpu_custom_call.1} parent=5 // pred_check
        %p7064 = pneg %p7063
      $region78: #{tpu_custom_call.1} parent=5 // pred_check_branch
        %7066 = sbr.rel (%p7064) target = $region80
      $region79: #{tpu_custom_call.1} parent=5 // pred_region
        %s7067 = ssub.s32 %s22, 2
        // Predicated region
        $region81: #{tpu_custom_call.1} parent=79 // pred_check
          %p7068 = pneg %p308
        $region82: #{tpu_custom_call.1} parent=79 // pred_check_branch
          %7070 = sbr.rel (%p7068) target = $region84
        $region83: #{tpu_custom_call.1} parent=79 // pred_region
          %s7071 = sand.u32 %s293, 1
          %s7072 = scalar_lea.sflag [#allocation4], %s7071
          %s7073 = sand.u32 %s293, 1
          %s7074 = smul.addr %s7073, 16
          %s7075 = scalar_lea.vmem [#allocation5], %s7074
          %7076 = dma.done %s7072, 256
        $region84: #{tpu_custom_call.1} parent=79 // pred_fallthru
          _
      $region80: #{tpu_custom_call.1} parent=5 // pred_fallthru
        _
    $region6: #{tpu_custom_call.1} parent=1 // loop_footer
      %s26 = sadd.s32 1, %s22
    $region7: #{tpu_custom_call.1} parent=1 // loop_footer_branch
      %21 = sbr.rel target = $region3
    $region8: #{tpu_custom_call.1} parent=1 // loop_exit
      _
    %7077 = vsyncpa [#allocation3], 1
    %s7078 = scalar_lea.sflag [#allocation3], 1
    %7079 = vsyncpa %s7078, 1
    %7080 = vsyncpa [#allocation4], 1
    %s7081 = scalar_lea.sflag [#allocation4], 1
    %7082 = vsyncpa %s7081, 1

</llo_original>
